<compile_context>
chip_gen: v7x
topology: tpu7x:2x2x1
jax: 0.10.0
libtpu: 0.0.40
codegen_flags: <defaults>
</compile_context>

<pallas_src>
import functools

import jax
import jax.numpy as jnp
from jax import lax
from jax.experimental import pallas as pl
from jax.experimental.pallas import tpu as pltpu

# Module constants (from the PyTorch source)
N_EMBD = 384          # n_embd
BLOCK_SIZE = 256      # block_size (max T)

# Small test configuration (T <= block_size)
BATCH = 2
SEQ = 128
NUM_HEADS = 6
HEAD_SIZE = 64        # num_heads * head_size == n_embd


# ----------------------------------------------------------------------------
# Fused kernel: QKV projection (all heads) + causal attention + output proj
# ----------------------------------------------------------------------------
def _mha_fused_kernel(x_ref, wqkv_ref, wproj_ref, bproj_ref, o_ref, *,
                      num_heads, head_size):
    # x_ref    : (1, T, C)        current batch's sequence (f32)
    # wqkv_ref : (C, 3*H*Dh)      fused [q | k | v] weights (bf16, scale in q)
    # wproj_ref: (H*Dh, C)        output projection weight (bf16)
    # bproj_ref: (1, C)           output projection bias (f32)
    # o_ref    : (1, T, C)        output (f32), lane-dense last dim (C=384)
    T = x_ref.shape[1]
    C = wproj_ref.shape[1]
    HD = num_heads * head_size

    # Single wide bf16 matmul for q/k/v of all heads, f32 accumulation on MXU,
    # then ONE cast to bf16 so all per-head slices are taken from a bf16 buffer.
    x = x_ref[0].astype(jnp.bfloat16)                                    # (T, C)
    qkv = jnp.dot(x, wqkv_ref[...],
                  preferred_element_type=jnp.float32).astype(jnp.bfloat16)  # (T, 3*HD)

    row = lax.broadcasted_iota(jnp.int32, (T, T), 0)
    col = lax.broadcasted_iota(jnp.int32, (T, T), 1)
    causal = col <= row

    nt_dims = (((1,), (1,)), ((), ()))   # contract last dims: q @ k^T, no XLU transpose

    # Accumulate the output projection per head; init with the bias (hoisted
    # broadcast, done once).
    out_acc = jnp.broadcast_to(bproj_ref[...].astype(jnp.float32), (T, C))

    for h in range(num_heads):           # static unroll, H = 6
        lo = h * head_size
        q_h = qkv[:, lo:lo + head_size]                          # bf16 (T, Dh), scaled
        k_h = qkv[:, HD + lo:HD + lo + head_size]                # bf16 (T, Dh)
        v_h = qkv[:, 2 * HD + lo:2 * HD + lo + head_size]        # bf16 (T, Dh)

        s = lax.dot_general(q_h, k_h, nt_dims,
                            preferred_element_type=jnp.float32)  # (T, T) f32
        s = jnp.where(causal, s, -jnp.inf)
        # softmax in f32 (diagonal always unmasked -> max is finite, no NaNs)
        s = s - jnp.max(s, axis=-1, keepdims=True)
        p = jnp.exp(s)
        denom = jnp.sum(p, axis=-1, keepdims=True)               # (T, 1)

        # Unnormalized PV matmul, then normalize the (T, Dh) output instead of
        # the (T, T) probabilities.
        o_h = jnp.dot(p.astype(jnp.bfloat16), v_h,
                      preferred_element_type=jnp.float32)        # (T, Dh)
        o_h = o_h * pl.reciprocal(denom, approx=True)
        # TODO(synk): attention-weights dropout omitted (eval mode identity).

        # Per-head slice of the output projection weight (static, sublane-aligned).
        out_acc = out_acc + jnp.dot(o_h.astype(jnp.bfloat16),
                                    wproj_ref[lo:lo + head_size, :],
                                    preferred_element_type=jnp.float32)  # (T, C)

    # TODO(synk): residual dropout omitted (eval mode identity).
    o_ref[0] = out_acc.astype(o_ref.dtype)


# ----------------------------------------------------------------------------
# One-time weight fusion (do NOT redo this per forward call)
# ----------------------------------------------------------------------------
def prepare_params(params):
    """Fuse per-head weights into the kernel layout once, cast to bf16 once.

    Returns a dict to be reused across every forward call."""
    H, C, Dh = params["wq"].shape
    HD = H * Dh
    scale = float(N_EMBD) ** (-0.5)   # exactly C ** (-0.5) as in the PyTorch code

    def _flat(w):                     # (H, C, Dh) -> (C, H*Dh)
        return jnp.transpose(w, (1, 0, 2)).reshape(C, HD)

    wqkv = jnp.concatenate(
        [_flat(params["wq"]) * scale, _flat(params["wk"]), _flat(params["wv"])],
        axis=-1).astype(jnp.bfloat16)                        # (C, 3*H*Dh) bf16
    return dict(
        wqkv=jax.device_put(wqkv),
        w_proj=jax.device_put(params["w_proj"].astype(jnp.bfloat16)),  # (H*Dh, C)
        b_proj=jax.device_put(params["b_proj"].astype(jnp.float32)),   # (1, C)
        num_heads=H, head_size=Dh)


def multi_head_attention(x, fused):
    """x: (B, T, C) f32, fused = prepare_params(...) -> (B, T, C) f32."""
    B, T, C = x.shape
    H, Dh = fused["num_heads"], fused["head_size"]
    HD = H * Dh

    kernel = functools.partial(_mha_fused_kernel, num_heads=H, head_size=Dh)
    return pl.pallas_call(
        kernel,
        out_shape=jax.ShapeDtypeStruct((B, T, C), x.dtype),
        grid_spec=pltpu.PrefetchScalarGridSpec(
            num_scalar_prefetch=0,
            grid=(B,),
            in_specs=[
                pl.BlockSpec((1, T, C), lambda b: (b, 0, 0)),
                # Constant index_maps -> weights DMA'd once and stay resident.
                pl.BlockSpec((C, 3 * HD), lambda b: (0, 0)),
                pl.BlockSpec((HD, C), lambda b: (0, 0)),
                pl.BlockSpec((1, C), lambda b: (0, 0)),
            ],
            out_specs=pl.BlockSpec((1, T, C), lambda b: (b, 0, 0)),
        ),
        compiler_params=pltpu.CompilerParams(
            dimension_semantics=("parallel",)),   # B=2 -> both TCs on v7x
    )(x, fused["wqkv"], fused["w_proj"], fused["b_proj"])


# ----------------------------------------------------------------------------
# Parameters and pure-JAX reference (mirrors the PyTorch forward, eval mode)
# ----------------------------------------------------------------------------
def init_params(key, num_heads, head_size):
    """PyTorch Linear weight is (out, in); we store the already-transposed
    (in, out) matrices used in y = x @ W."""
    kq, kk, kv, kp, kb = jax.random.split(key, 5)
    s = 0.02
    wq = s * jax.random.normal(kq, (num_heads, N_EMBD, head_size), jnp.float32)
    wk = s * jax.random.normal(kk, (num_heads, N_EMBD, head_size), jnp.float32)
    wv = s * jax.random.normal(kv, (num_heads, N_EMBD, head_size), jnp.float32)
    w_proj = s * jax.random.normal(kp, (num_heads * head_size, N_EMBD),
                                   jnp.float32)
    b_proj = s * jax.random.normal(kb, (1, N_EMBD), jnp.float32)
    return dict(wq=wq, wk=wk, wv=wv, w_proj=w_proj, b_proj=b_proj)


def reference(x, params):
    B, T, C = x.shape
    scale = float(C) ** (-0.5)
    outs = []
    H = params["wq"].shape[0]
    mask = jnp.tril(jnp.ones((T, T), dtype=bool))
    for h in range(H):
        q = x @ params["wq"][h]
        k = x @ params["wk"][h]
        v = x @ params["wv"][h]
        wei = (q @ jnp.swapaxes(k, -2, -1)) * scale
        wei = jnp.where(mask, wei, -jnp.inf)
        wei = jax.nn.softmax(wei, axis=-1)
        outs.append(wei @ v)
    cat = jnp.concatenate(outs, axis=-1)
    return cat @ params["w_proj"] + params["b_proj"][0]


if __name__ == "__main__":
    key = jax.random.PRNGKey(0)
    kx, kp = jax.random.split(key)
    x = jax.random.normal(kx, (BATCH, SEQ, N_EMBD), jnp.float32)
    params = init_params(kp, NUM_HEADS, HEAD_SIZE)

    fused = prepare_params(params)            # one-time weight fusion (cached)
    fused = jax.block_until_ready(fused)

    out = multi_head_attention(x, fused)
    out = jax.block_until_ready(out)

    ref = reference(x, params)
    assert out.shape == (BATCH, SEQ, N_EMBD)
    # bf16 matmuls with f32 accumulation + approx reciprocal -> relaxed tolerance.
    assert jnp.allclose(out, ref, atol=2e-2, rtol=2e-2), (
        float(jnp.max(jnp.abs(out - ref))))

    print("KERNEL_OK")
</pallas_src>

<mosaic_0001>
module attributes {stable_mosaic.version = 11 : i64} {
  func.func @_mha_fused_kernel(%arg0: i32, %arg1: memref<1x128x384xf32, #tpu.memory_space<vmem>>, %arg2: memref<384x1152xbf16, #tpu.memory_space<vmem>>, %arg3: memref<384x384xbf16, #tpu.memory_space<vmem>>, %arg4: memref<1x384xf32, #tpu.memory_space<vmem>>, %arg5: memref<1x128x384xf32, #tpu.memory_space<vmem>>) attributes {dimension_semantics = [#tpu.dimension_semantics<parallel>], iteration_bounds = array<i64: 2>, scalar_prefetch = 0 : i64, scratch_operands = 0 : i64, tpu.core_type = #tpu.core_type<tc>, window_params = [{transform_indices = @transform_0, window_bounds = array<i64: 1, 128, 384>}, {pipeline_mode = #tpu.pipeline_mode<synchronous>, transform_indices = @transform_1, window_bounds = array<i64: 384, 1152>}, {pipeline_mode = #tpu.pipeline_mode<synchronous>, transform_indices = @transform_2, window_bounds = array<i64: 384, 384>}, {pipeline_mode = #tpu.pipeline_mode<synchronous>, transform_indices = @transform_3, window_bounds = array<i64: 1, 384>}, {transform_indices = @transform_4, window_bounds = array<i64: 1, 128, 384>}]} {
    %c0 = arith.constant 0 : index
    %c0_0 = arith.constant 0 : index
    %c0_1 = arith.constant 0 : index
    %0 = vector.load %arg1[%c0, %c0_0, %c0_1] : memref<1x128x384xf32, #tpu.memory_space<vmem>>, vector<1x128x384xf32>
    %1 = vector.shape_cast %0 : vector<1x128x384xf32> to vector<128x384xf32>
    %2 = arith.truncf %1 : vector<128x384xf32> to vector<128x384xbf16>
    %c0_2 = arith.constant 0 : index
    %c0_3 = arith.constant 0 : index
    %3 = vector.load %arg2[%c0_2, %c0_3] : memref<384x1152xbf16, #tpu.memory_space<vmem>>, vector<384x1152xbf16>
    %cst = arith.constant dense<0.000000e+00> : vector<128x1152xf32>
    %4 = tpu.matmul %2, %3, %cst {dimension_numbers = #tpu.dot_dimension_numbers<[1], [0], [0], [1], [0, 0, 1, 1], [], []>} : vector<128x384xbf16>, vector<384x1152xbf16>, vector<128x1152xf32> -> vector<128x1152xf32>
    %5 = arith.truncf %4 : vector<128x1152xf32> to vector<128x1152xbf16>
    %6 = tpu.iota {dimensions = array<i32: 0>} : vector<128x128xi32>
    %7 = tpu.iota {dimensions = array<i32: 1>} : vector<128x128xi32>
    %8 = arith.cmpi sle, %7, %6 : vector<128x128xi32>
    %c0_4 = arith.constant 0 : index
    %c0_5 = arith.constant 0 : index
    %9 = vector.load %arg4[%c0_4, %c0_5] : memref<1x384xf32, #tpu.memory_space<vmem>>, vector<1x384xf32>
    %10 = vector.shape_cast %9 : vector<1x384xf32> to vector<1x384xf32>
    %11 = vector.broadcast %10 : vector<1x384xf32> to vector<128x384xf32>
    %12 = vector.extract_strided_slice %5 {offsets = [0, 0], sizes = [128, 64], strides = [1, 1]} : vector<128x1152xbf16> to vector<128x64xbf16>
    %13 = vector.extract_strided_slice %5 {offsets = [0, 384], sizes = [128, 64], strides = [1, 1]} : vector<128x1152xbf16> to vector<128x64xbf16>
    %14 = vector.extract_strided_slice %5 {offsets = [0, 768], sizes = [128, 64], strides = [1, 1]} : vector<128x1152xbf16> to vector<128x64xbf16>
    %cst_6 = arith.constant dense<0.000000e+00> : vector<128x128xf32>
    %15 = tpu.matmul %12, %13, %cst_6 {dimension_numbers = #tpu.dot_dimension_numbers<[1], [1], [0], [0], [0, 0, 1, 0], [], []>} : vector<128x64xbf16>, vector<128x64xbf16>, vector<128x128xf32> -> vector<128x128xf32>
    %cst_7 = arith.constant 0xFF800000 : f32
    %16 = vector.broadcast %cst_7 : f32 to vector<128x128xf32>
    %17 = arith.select %8, %15, %16 : vector<128x128xi1>, vector<128x128xf32>
    %cst_8 = arith.constant dense<0xFF800000> : vector<128xf32>
    %18 = vector.multi_reduction <maximumf>, %17, %cst_8 [1] : vector<128x128xf32> to vector<128xf32>
    %19 = vector.shape_cast %18 : vector<128xf32> to vector<128x1xf32>
    %20 = vector.broadcast %19 : vector<128x1xf32> to vector<128x128xf32>
    %21 = arith.subf %17, %20 : vector<128x128xf32>
    %22 = math.exp %21 : vector<128x128xf32>
    %cst_9 = arith.constant dense<0.000000e+00> : vector<128xf32>
    %23 = vector.multi_reduction <add>, %22, %cst_9 [1] : vector<128x128xf32> to vector<128xf32>
    %24 = vector.shape_cast %23 : vector<128xf32> to vector<128x1xf32>
    %25 = arith.truncf %22 : vector<128x128xf32> to vector<128x128xbf16>
    %cst_10 = arith.constant dense<0.000000e+00> : vector<128x64xf32>
    %26 = tpu.matmul %25, %14, %cst_10 {dimension_numbers = #tpu.dot_dimension_numbers<[1], [0], [0], [1], [0, 0, 1, 1], [], []>} : vector<128x128xbf16>, vector<128x64xbf16>, vector<128x64xf32> -> vector<128x64xf32>
    %27 = tpu.reciprocal %24 {approx = true} : vector<128x1xf32> -> vector<128x1xf32>
    %28 = vector.broadcast %27 : vector<128x1xf32> to vector<128x64xf32>
    %29 = arith.mulf %26, %28 : vector<128x64xf32>
    %30 = arith.truncf %29 : vector<128x64xf32> to vector<128x64xbf16>
    %c0_11 = arith.constant 0 : index
    %c0_12 = arith.constant 0 : index
    %31 = vector.load %arg3[%c0_11, %c0_12] : memref<384x384xbf16, #tpu.memory_space<vmem>>, vector<64x384xbf16>
    %cst_13 = arith.constant dense<0.000000e+00> : vector<128x384xf32>
    %32 = tpu.matmul %30, %31, %cst_13 {dimension_numbers = #tpu.dot_dimension_numbers<[1], [0], [0], [1], [0, 0, 1, 1], [], []>} : vector<128x64xbf16>, vector<64x384xbf16>, vector<128x384xf32> -> vector<128x384xf32>
    %33 = arith.addf %11, %32 : vector<128x384xf32>
    %34 = vector.extract_strided_slice %5 {offsets = [0, 64], sizes = [128, 64], strides = [1, 1]} : vector<128x1152xbf16> to vector<128x64xbf16>
    %35 = vector.extract_strided_slice %5 {offsets = [0, 448], sizes = [128, 64], strides = [1, 1]} : vector<128x1152xbf16> to vector<128x64xbf16>
    %36 = vector.extract_strided_slice %5 {offsets = [0, 832], sizes = [128, 64], strides = [1, 1]} : vector<128x1152xbf16> to vector<128x64xbf16>
    %cst_14 = arith.constant dense<0.000000e+00> : vector<128x128xf32>
    %37 = tpu.matmul %34, %35, %cst_14 {dimension_numbers = #tpu.dot_dimension_numbers<[1], [1], [0], [0], [0, 0, 1, 0], [], []>} : vector<128x64xbf16>, vector<128x64xbf16>, vector<128x128xf32> -> vector<128x128xf32>
    %cst_15 = arith.constant 0xFF800000 : f32
    %38 = vector.broadcast %cst_15 : f32 to vector<128x128xf32>
    %39 = arith.select %8, %37, %38 : vector<128x128xi1>, vector<128x128xf32>
    %cst_16 = arith.constant dense<0xFF800000> : vector<128xf32>
    %40 = vector.multi_reduction <maximumf>, %39, %cst_16 [1] : vector<128x128xf32> to vector<128xf32>
    %41 = vector.shape_cast %40 : vector<128xf32> to vector<128x1xf32>
    %42 = vector.broadcast %41 : vector<128x1xf32> to vector<128x128xf32>
    %43 = arith.subf %39, %42 : vector<128x128xf32>
    %44 = math.exp %43 : vector<128x128xf32>
    %cst_17 = arith.constant dense<0.000000e+00> : vector<128xf32>
    %45 = vector.multi_reduction <add>, %44, %cst_17 [1] : vector<128x128xf32> to vector<128xf32>
    %46 = vector.shape_cast %45 : vector<128xf32> to vector<128x1xf32>
    %47 = arith.truncf %44 : vector<128x128xf32> to vector<128x128xbf16>
    %cst_18 = arith.constant dense<0.000000e+00> : vector<128x64xf32>
    %48 = tpu.matmul %47, %36, %cst_18 {dimension_numbers = #tpu.dot_dimension_numbers<[1], [0], [0], [1], [0, 0, 1, 1], [], []>} : vector<128x128xbf16>, vector<128x64xbf16>, vector<128x64xf32> -> vector<128x64xf32>
    %49 = tpu.reciprocal %46 {approx = true} : vector<128x1xf32> -> vector<128x1xf32>
    %50 = vector.broadcast %49 : vector<128x1xf32> to vector<128x64xf32>
    %51 = arith.mulf %48, %50 : vector<128x64xf32>
    %52 = arith.truncf %51 : vector<128x64xf32> to vector<128x64xbf16>
    %c64 = arith.constant 64 : index
    %c0_19 = arith.constant 0 : index
    %53 = vector.load %arg3[%c64, %c0_19] : memref<384x384xbf16, #tpu.memory_space<vmem>>, vector<64x384xbf16>
    %cst_20 = arith.constant dense<0.000000e+00> : vector<128x384xf32>
    %54 = tpu.matmul %52, %53, %cst_20 {dimension_numbers = #tpu.dot_dimension_numbers<[1], [0], [0], [1], [0, 0, 1, 1], [], []>} : vector<128x64xbf16>, vector<64x384xbf16>, vector<128x384xf32> -> vector<128x384xf32>
    %55 = arith.addf %33, %54 : vector<128x384xf32>
    %56 = vector.extract_strided_slice %5 {offsets = [0, 128], sizes = [128, 64], strides = [1, 1]} : vector<128x1152xbf16> to vector<128x64xbf16>
    %57 = vector.extract_strided_slice %5 {offsets = [0, 512], sizes = [128, 64], strides = [1, 1]} : vector<128x1152xbf16> to vector<128x64xbf16>
    %58 = vector.extract_strided_slice %5 {offsets = [0, 896], sizes = [128, 64], strides = [1, 1]} : vector<128x1152xbf16> to vector<128x64xbf16>
    %cst_21 = arith.constant dense<0.000000e+00> : vector<128x128xf32>
    %59 = tpu.matmul %56, %57, %cst_21 {dimension_numbers = #tpu.dot_dimension_numbers<[1], [1], [0], [0], [0, 0, 1, 0], [], []>} : vector<128x64xbf16>, vector<128x64xbf16>, vector<128x128xf32> -> vector<128x128xf32>
    %cst_22 = arith.constant 0xFF800000 : f32
    %60 = vector.broadcast %cst_22 : f32 to vector<128x128xf32>
    %61 = arith.select %8, %59, %60 : vector<128x128xi1>, vector<128x128xf32>
    %cst_23 = arith.constant dense<0xFF800000> : vector<128xf32>
    %62 = vector.multi_reduction <maximumf>, %61, %cst_23 [1] : vector<128x128xf32> to vector<128xf32>
    %63 = vector.shape_cast %62 : vector<128xf32> to vector<128x1xf32>
    %64 = vector.broadcast %63 : vector<128x1xf32> to vector<128x128xf32>
    %65 = arith.subf %61, %64 : vector<128x128xf32>
    %66 = math.exp %65 : vector<128x128xf32>
    %cst_24 = arith.constant dense<0.000000e+00> : vector<128xf32>
    %67 = vector.multi_reduction <add>, %66, %cst_24 [1] : vector<128x128xf32> to vector<128xf32>
    %68 = vector.shape_cast %67 : vector<128xf32> to vector<128x1xf32>
    %69 = arith.truncf %66 : vector<128x128xf32> to vector<128x128xbf16>
    %cst_25 = arith.constant dense<0.000000e+00> : vector<128x64xf32>
    %70 = tpu.matmul %69, %58, %cst_25 {dimension_numbers = #tpu.dot_dimension_numbers<[1], [0], [0], [1], [0, 0, 1, 1], [], []>} : vector<128x128xbf16>, vector<128x64xbf16>, vector<128x64xf32> -> vector<128x64xf32>
    %71 = tpu.reciprocal %68 {approx = true} : vector<128x1xf32> -> vector<128x1xf32>
    %72 = vector.broadcast %71 : vector<128x1xf32> to vector<128x64xf32>
    %73 = arith.mulf %70, %72 : vector<128x64xf32>
    %74 = arith.truncf %73 : vector<128x64xf32> to vector<128x64xbf16>
    %c128 = arith.constant 128 : index
    %c0_26 = arith.constant 0 : index
    %75 = vector.load %arg3[%c128, %c0_26] : memref<384x384xbf16, #tpu.memory_space<vmem>>, vector<64x384xbf16>
    %cst_27 = arith.constant dense<0.000000e+00> : vector<128x384xf32>
    %76 = tpu.matmul %74, %75, %cst_27 {dimension_numbers = #tpu.dot_dimension_numbers<[1], [0], [0], [1], [0, 0, 1, 1], [], []>} : vector<128x64xbf16>, vector<64x384xbf16>, vector<128x384xf32> -> vector<128x384xf32>
    %77 = arith.addf %55, %76 : vector<128x384xf32>
    %78 = vector.extract_strided_slice %5 {offsets = [0, 192], sizes = [128, 64], strides = [1, 1]} : vector<128x1152xbf16> to vector<128x64xbf16>
    %79 = vector.extract_strided_slice %5 {offsets = [0, 576], sizes = [128, 64], strides = [1, 1]} : vector<128x1152xbf16> to vector<128x64xbf16>
    %80 = vector.extract_strided_slice %5 {offsets = [0, 960], sizes = [128, 64], strides = [1, 1]} : vector<128x1152xbf16> to vector<128x64xbf16>
    %cst_28 = arith.constant dense<0.000000e+00> : vector<128x128xf32>
    %81 = tpu.matmul %78, %79, %cst_28 {dimension_numbers = #tpu.dot_dimension_numbers<[1], [1], [0], [0], [0, 0, 1, 0], [], []>} : vector<128x64xbf16>, vector<128x64xbf16>, vector<128x128xf32> -> vector<128x128xf32>
    %cst_29 = arith.constant 0xFF800000 : f32
    %82 = vector.broadcast %cst_29 : f32 to vector<128x128xf32>
    %83 = arith.select %8, %81, %82 : vector<128x128xi1>, vector<128x128xf32>
    %cst_30 = arith.constant dense<0xFF800000> : vector<128xf32>
    %84 = vector.multi_reduction <maximumf>, %83, %cst_30 [1] : vector<128x128xf32> to vector<128xf32>
    %85 = vector.shape_cast %84 : vector<128xf32> to vector<128x1xf32>
    %86 = vector.broadcast %85 : vector<128x1xf32> to vector<128x128xf32>
    %87 = arith.subf %83, %86 : vector<128x128xf32>
    %88 = math.exp %87 : vector<128x128xf32>
    %cst_31 = arith.constant dense<0.000000e+00> : vector<128xf32>
    %89 = vector.multi_reduction <add>, %88, %cst_31 [1] : vector<128x128xf32> to vector<128xf32>
    %90 = vector.shape_cast %89 : vector<128xf32> to vector<128x1xf32>
    %91 = arith.truncf %88 : vector<128x128xf32> to vector<128x128xbf16>
    %cst_32 = arith.constant dense<0.000000e+00> : vector<128x64xf32>
    %92 = tpu.matmul %91, %80, %cst_32 {dimension_numbers = #tpu.dot_dimension_numbers<[1], [0], [0], [1], [0, 0, 1, 1], [], []>} : vector<128x128xbf16>, vector<128x64xbf16>, vector<128x64xf32> -> vector<128x64xf32>
    %93 = tpu.reciprocal %90 {approx = true} : vector<128x1xf32> -> vector<128x1xf32>
    %94 = vector.broadcast %93 : vector<128x1xf32> to vector<128x64xf32>
    %95 = arith.mulf %92, %94 : vector<128x64xf32>
    %96 = arith.truncf %95 : vector<128x64xf32> to vector<128x64xbf16>
    %c192 = arith.constant 192 : index
    %c0_33 = arith.constant 0 : index
    %97 = vector.load %arg3[%c192, %c0_33] : memref<384x384xbf16, #tpu.memory_space<vmem>>, vector<64x384xbf16>
    %cst_34 = arith.constant dense<0.000000e+00> : vector<128x384xf32>
    %98 = tpu.matmul %96, %97, %cst_34 {dimension_numbers = #tpu.dot_dimension_numbers<[1], [0], [0], [1], [0, 0, 1, 1], [], []>} : vector<128x64xbf16>, vector<64x384xbf16>, vector<128x384xf32> -> vector<128x384xf32>
    %99 = arith.addf %77, %98 : vector<128x384xf32>
    %100 = vector.extract_strided_slice %5 {offsets = [0, 256], sizes = [128, 64], strides = [1, 1]} : vector<128x1152xbf16> to vector<128x64xbf16>
    %101 = vector.extract_strided_slice %5 {offsets = [0, 640], sizes = [128, 64], strides = [1, 1]} : vector<128x1152xbf16> to vector<128x64xbf16>
    %102 = vector.extract_strided_slice %5 {offsets = [0, 1024], sizes = [128, 64], strides = [1, 1]} : vector<128x1152xbf16> to vector<128x64xbf16>
    %cst_35 = arith.constant dense<0.000000e+00> : vector<128x128xf32>
    %103 = tpu.matmul %100, %101, %cst_35 {dimension_numbers = #tpu.dot_dimension_numbers<[1], [1], [0], [0], [0, 0, 1, 0], [], []>} : vector<128x64xbf16>, vector<128x64xbf16>, vector<128x128xf32> -> vector<128x128xf32>
    %cst_36 = arith.constant 0xFF800000 : f32
    %104 = vector.broadcast %cst_36 : f32 to vector<128x128xf32>
    %105 = arith.select %8, %103, %104 : vector<128x128xi1>, vector<128x128xf32>
    %cst_37 = arith.constant dense<0xFF800000> : vector<128xf32>
    %106 = vector.multi_reduction <maximumf>, %105, %cst_37 [1] : vector<128x128xf32> to vector<128xf32>
    %107 = vector.shape_cast %106 : vector<128xf32> to vector<128x1xf32>
    %108 = vector.broadcast %107 : vector<128x1xf32> to vector<128x128xf32>
    %109 = arith.subf %105, %108 : vector<128x128xf32>
    %110 = math.exp %109 : vector<128x128xf32>
    %cst_38 = arith.constant dense<0.000000e+00> : vector<128xf32>
    %111 = vector.multi_reduction <add>, %110, %cst_38 [1] : vector<128x128xf32> to vector<128xf32>
    %112 = vector.shape_cast %111 : vector<128xf32> to vector<128x1xf32>
    %113 = arith.truncf %110 : vector<128x128xf32> to vector<128x128xbf16>
    %cst_39 = arith.constant dense<0.000000e+00> : vector<128x64xf32>
    %114 = tpu.matmul %113, %102, %cst_39 {dimension_numbers = #tpu.dot_dimension_numbers<[1], [0], [0], [1], [0, 0, 1, 1], [], []>} : vector<128x128xbf16>, vector<128x64xbf16>, vector<128x64xf32> -> vector<128x64xf32>
    %115 = tpu.reciprocal %112 {approx = true} : vector<128x1xf32> -> vector<128x1xf32>
    %116 = vector.broadcast %115 : vector<128x1xf32> to vector<128x64xf32>
    %117 = arith.mulf %114, %116 : vector<128x64xf32>
    %118 = arith.truncf %117 : vector<128x64xf32> to vector<128x64xbf16>
    %c256 = arith.constant 256 : index
    %c0_40 = arith.constant 0 : index
    %119 = vector.load %arg3[%c256, %c0_40] : memref<384x384xbf16, #tpu.memory_space<vmem>>, vector<64x384xbf16>
    %cst_41 = arith.constant dense<0.000000e+00> : vector<128x384xf32>
    %120 = tpu.matmul %118, %119, %cst_41 {dimension_numbers = #tpu.dot_dimension_numbers<[1], [0], [0], [1], [0, 0, 1, 1], [], []>} : vector<128x64xbf16>, vector<64x384xbf16>, vector<128x384xf32> -> vector<128x384xf32>
    %121 = arith.addf %99, %120 : vector<128x384xf32>
    %122 = vector.extract_strided_slice %5 {offsets = [0, 320], sizes = [128, 64], strides = [1, 1]} : vector<128x1152xbf16> to vector<128x64xbf16>
    %123 = vector.extract_strided_slice %5 {offsets = [0, 704], sizes = [128, 64], strides = [1, 1]} : vector<128x1152xbf16> to vector<128x64xbf16>
    %124 = vector.extract_strided_slice %5 {offsets = [0, 1088], sizes = [128, 64], strides = [1, 1]} : vector<128x1152xbf16> to vector<128x64xbf16>
    %cst_42 = arith.constant dense<0.000000e+00> : vector<128x128xf32>
    %125 = tpu.matmul %122, %123, %cst_42 {dimension_numbers = #tpu.dot_dimension_numbers<[1], [1], [0], [0], [0, 0, 1, 0], [], []>} : vector<128x64xbf16>, vector<128x64xbf16>, vector<128x128xf32> -> vector<128x128xf32>
    %cst_43 = arith.constant 0xFF800000 : f32
    %126 = vector.broadcast %cst_43 : f32 to vector<128x128xf32>
    %127 = arith.select %8, %125, %126 : vector<128x128xi1>, vector<128x128xf32>
    %cst_44 = arith.constant dense<0xFF800000> : vector<128xf32>
    %128 = vector.multi_reduction <maximumf>, %127, %cst_44 [1] : vector<128x128xf32> to vector<128xf32>
    %129 = vector.shape_cast %128 : vector<128xf32> to vector<128x1xf32>
    %130 = vector.broadcast %129 : vector<128x1xf32> to vector<128x128xf32>
    %131 = arith.subf %127, %130 : vector<128x128xf32>
    %132 = math.exp %131 : vector<128x128xf32>
    %cst_45 = arith.constant dense<0.000000e+00> : vector<128xf32>
    %133 = vector.multi_reduction <add>, %132, %cst_45 [1] : vector<128x128xf32> to vector<128xf32>
    %134 = vector.shape_cast %133 : vector<128xf32> to vector<128x1xf32>
    %135 = arith.truncf %132 : vector<128x128xf32> to vector<128x128xbf16>
    %cst_46 = arith.constant dense<0.000000e+00> : vector<128x64xf32>
    %136 = tpu.matmul %135, %124, %cst_46 {dimension_numbers = #tpu.dot_dimension_numbers<[1], [0], [0], [1], [0, 0, 1, 1], [], []>} : vector<128x128xbf16>, vector<128x64xbf16>, vector<128x64xf32> -> vector<128x64xf32>
    %137 = tpu.reciprocal %134 {approx = true} : vector<128x1xf32> -> vector<128x1xf32>
    %138 = vector.broadcast %137 : vector<128x1xf32> to vector<128x64xf32>
    %139 = arith.mulf %136, %138 : vector<128x64xf32>
    %140 = arith.truncf %139 : vector<128x64xf32> to vector<128x64xbf16>
    %c320 = arith.constant 320 : index
    %c0_47 = arith.constant 0 : index
    %141 = vector.load %arg3[%c320, %c0_47] : memref<384x384xbf16, #tpu.memory_space<vmem>>, vector<64x384xbf16>
    %cst_48 = arith.constant dense<0.000000e+00> : vector<128x384xf32>
    %142 = tpu.matmul %140, %141, %cst_48 {dimension_numbers = #tpu.dot_dimension_numbers<[1], [0], [0], [1], [0, 0, 1, 1], [], []>} : vector<128x64xbf16>, vector<64x384xbf16>, vector<128x384xf32> -> vector<128x384xf32>
    %143 = arith.addf %121, %142 : vector<128x384xf32>
    %c0_49 = arith.constant 0 : index
    %c0_50 = arith.constant 0 : index
    %c0_51 = arith.constant 0 : index
    %144 = vector.load %arg5[%c0_49, %c0_50, %c0_51] : memref<1x128x384xf32, #tpu.memory_space<vmem>>, vector<1x128x384xf32>
    %145 = vector.shape_cast %144 : vector<1x128x384xf32> to vector<128x384xf32>
    %146 = vector.shape_cast %143 : vector<128x384xf32> to vector<1x128x384xf32>
    tpu.vector_store %arg5[%c0_49, %c0_50, %c0_51], %146 {strides = array<i32>} : memref<1x128x384xf32, #tpu.memory_space<vmem>>, vector<1x128x384xf32>,
    return
  }
  func.func @transform_0(%arg0: i32) -> (i32, i32, i32) {
    %c0_i32 = arith.constant 0 : i32
    %c0_i32_0 = arith.constant 0 : i32
    %c0_i32_1 = arith.constant 0 : i32
    return %arg0, %c0_i32, %c0_i32_0 : i32, i32, i32
  }
  func.func @transform_1(%arg0: i32) -> (i32, i32) {
    %c0_i32 = arith.constant 0 : i32
    %c0_i32_0 = arith.constant 0 : i32
    %c0_i32_1 = arith.constant 0 : i32
    return %c0_i32, %c0_i32_0 : i32, i32
  }
  func.func @transform_2(%arg0: i32) -> (i32, i32) {
    %c0_i32 = arith.constant 0 : i32
    %c0_i32_0 = arith.constant 0 : i32
    %c0_i32_1 = arith.constant 0 : i32
    return %c0_i32, %c0_i32_0 : i32, i32
  }
  func.func @transform_3(%arg0: i32) -> (i32, i32) {
    %c0_i32 = arith.constant 0 : i32
    %c0_i32_0 = arith.constant 0 : i32
    %c0_i32_1 = arith.constant 0 : i32
    return %c0_i32, %c0_i32_0 : i32, i32
  }
  func.func @transform_4(%arg0: i32) -> (i32, i32, i32) {
    %c0_i32 = arith.constant 0 : i32
    %c0_i32_0 = arith.constant 0 : i32
    %c0_i32_1 = arith.constant 0 : i32
    return %arg0, %c0_i32, %c0_i32_0 : i32, i32, i32
  }
}

</mosaic_0001>

<llo_original>
// kernel: tpu_custom_call.1
$region0: #{tpu_custom_call.1}
  #allocation0 [shape = 'u32[]', space=smem, size = 0x4, offset = 0x4, fixed_abs, tag = 'smem constant byte address 0x4 - core index']
  #allocation1 [shape = 'u32[144,128]{1,0:T(1,128)}', space=vmem, size = 0x12000, scoped, tag = 'internal scratch']
  %s0 = inlined_call_operand.hbm [shape: f32[2,128,384], index: 0, kind: input, shape index: {}]
  %s1 = inlined_call_operand.hbm [shape: bf16[384,1152], index: 1, kind: input, shape index: {}]
  %s2 = inlined_call_operand.hbm [shape: bf16[384,384], index: 2, kind: input, shape index: {}]
  %s3 = inlined_call_operand.vmem [shape: f32[1,384], index: 3, kind: input, shape index: {}]
  %s4 = inlined_call_operand.hbm [shape: f32[2,128,384], index: 4, kind: output, shape index: {}]
  %s5 = sld [smem:[#allocation0]]
  $region61: #{tpu_custom_call.1} parent=0
    _
  %s7 = ssub.s32 1, %s5
  %s8 = scalar_select 0, %s7, %s5
  $region1: #{tpu_custom_call.1} parent=0
    #allocation2 [shape = 'u8[393216]{0}', space=vmem, size = 0x60000, scoped, tag = 'input window, operand 0']
    #allocation3 [shape = 's32[2]{0}', space=sflag, size = 0x8, scoped, tag = 'scoped memory for tpu_custom_call.1']
    #allocation4 [shape = 's32[2]{0}', space=sflag, size = 0x8, scoped, tag = 'scoped memory for tpu_custom_call.1']
    #allocation5 [shape = 'u8[884736]{0}', space=vmem, size = 0xd8000, scoped, tag = 'input window, operand 1, single buffered']
    #allocation6 [shape = 's32[1]{0}', space=sflag, size = 0x4, scoped, tag = 'scoped memory for tpu_custom_call.1']
    #allocation7 [shape = 'u8[294912]{0}', space=vmem, size = 0x48000, scoped, tag = 'input window, operand 2, single buffered']
    #allocation8 [shape = 'u8[393216]{0}', space=vmem, size = 0x60000, scoped, tag = 'output window, operand 0']
    %9 = vsyncpa [#allocation3], 0
    %s10 = scalar_lea.sflag [#allocation3], 1
    %11 = vsyncpa %s10, 0
    %12 = vsyncpa [#allocation6], 0
    %13 = vsyncpa [#allocation4], 0
    %s14 = scalar_lea.sflag [#allocation4], 1
    %15 = vsyncpa %s14, 0
    loop: start=0, step=1, limit=4
    $region2: #{tpu_custom_call.1} parent=1 // loop_pre_header
      _
    $region3: #{tpu_custom_call.1} parent=1 // loop_header
      %s17 = sphi 0, %s21
      %p18 = scmp.ge.s32.totalorder %s17, 4
      %s27 = sphi 0, %s29
      %s30 = sphi 0, %s27
      %s31 = sphi 0, %s30
      %s47 = sphi 0, %s31
      %s51 = sphi 0, %s51
      %s53 = sphi 0, %s51
      %s54 = sphi 0, %s53
      %s68 = sphi 0, %s54
      %s72 = sphi 0, %s72
      %s74 = sphi 0, %s72
      %s75 = sphi 0, %s74
      %s89 = sphi 0, %s75
      %s93 = sphi 0, %s93
      %s95 = sphi 0, %s93
      %s96 = sphi 0, %s95
      %s110 = sphi 0, %s96
      %s116 = sphi 0, %s118
      %s119 = sphi 0, %s116
      %s120 = sphi 0, %s119
      %s136 = sphi 0, %s120
    $region4: #{tpu_custom_call.1} parent=1 // loop_header_branch
      %20 = sbr.rel (%p18) target = $region8
    $region5: #{tpu_custom_call.1} parent=1 // loop_body
      %s22 = ssub.s32 %s17, 1
      %s23 = ssub.s32 %s17, 2
      %s24 = sadd.s32 %s17, 1
      %s25 = ssub.s32 %s17, %s24
      %p26 = scmp.eq.s32.totalorder %s25, 0
      %s28 = sadd.s32 %s27, 1
      %s29 = scalar_select %p26, %s27, %s28
      %p32 = pneg %p26
      %p33 = scmp.eq.s32.totalorder %s17, 1
      %p34 = por %p32, %p33
      %p35 = scmp.ne.s32.totalorder %s27, %s30
      %p36 = scmp.eq.s32.totalorder %s17, 0
      %p37 = por %p35, %p36
      %p38 = scmp.ne.s32.totalorder %s27, %s30
      %p39 = scmp.eq.s32.totalorder %s22, 1
      %p40 = por %p38, %p39
      %p41 = scmp.ne.s32.totalorder %s30, %s31
      %p42 = scmp.eq.s32.totalorder %s22, 0
      %p43 = por %p41, %p42
      %p44 = scmp.ne.s32.totalorder %s30, %s31
      %p45 = scmp.eq.s32.totalorder %s23, 1
      %p46 = por %p44, %p45
      %p48 = scmp.ne.s32.totalorder %s31, %s47
      %p49 = scmp.eq.s32.totalorder %s23, 0
      %p50 = por %p48, %p49
      %s52 = sadd.s32 %s51, 1
      %p55 = scmp.eq.s32.totalorder %s17, 1
      %p56 = scmp.ne.s32.totalorder %s51, %s53
      %p57 = scmp.eq.s32.totalorder %s17, 0
      %p58 = por %p56, %p57
      %p59 = scmp.ne.s32.totalorder %s51, %s53
      %p60 = scmp.eq.s32.totalorder %s22, 1
      %p61 = por %p59, %p60
      %p62 = scmp.ne.s32.totalorder %s53, %s54
      %p63 = scmp.eq.s32.totalorder %s22, 0
      %p64 = por %p62, %p63
      %p65 = scmp.ne.s32.totalorder %s53, %s54
      %p66 = scmp.eq.s32.totalorder %s23, 1
      %p67 = por %p65, %p66
      %p69 = scmp.ne.s32.totalorder %s54, %s68
      %p70 = scmp.eq.s32.totalorder %s23, 0
      %p71 = por %p69, %p70
      %s73 = sadd.s32 %s72, 1
      %p76 = scmp.eq.s32.totalorder %s17, 1
      %p77 = scmp.ne.s32.totalorder %s72, %s74
      %p78 = scmp.eq.s32.totalorder %s17, 0
      %p79 = por %p77, %p78
      %p80 = scmp.ne.s32.totalorder %s72, %s74
      %p81 = scmp.eq.s32.totalorder %s22, 1
      %p82 = por %p80, %p81
      %p83 = scmp.ne.s32.totalorder %s74, %s75
      %p84 = scmp.eq.s32.totalorder %s22, 0
      %p85 = por %p83, %p84
      %p86 = scmp.ne.s32.totalorder %s74, %s75
      %p87 = scmp.eq.s32.totalorder %s23, 1
      %p88 = por %p86, %p87
      %p90 = scmp.ne.s32.totalorder %s75, %s89
      %p91 = scmp.eq.s32.totalorder %s23, 0
      %p92 = por %p90, %p91
      %s94 = sadd.s32 %s93, 1
      %p97 = scmp.eq.s32.totalorder %s17, 1
      %p98 = scmp.ne.s32.totalorder %s93, %s95
      %p99 = scmp.eq.s32.totalorder %s17, 0
      %p100 = por %p98, %p99
      %p101 = scmp.ne.s32.totalorder %s93, %s95
      %p102 = scmp.eq.s32.totalorder %s22, 1
      %p103 = por %p101, %p102
      %p104 = scmp.ne.s32.totalorder %s95, %s96
      %p105 = scmp.eq.s32.totalorder %s22, 0
      %p106 = por %p104, %p105
      %p107 = scmp.ne.s32.totalorder %s95, %s96
      %p108 = scmp.eq.s32.totalorder %s23, 1
      %p109 = por %p107, %p108
      %p111 = scmp.ne.s32.totalorder %s96, %s110
      %p112 = scmp.eq.s32.totalorder %s23, 0
      %p113 = por %p111, %p112
      %s114 = ssub.s32 %s17, %s24
      %p115 = scmp.eq.s32.totalorder %s114, 0
      %s117 = sadd.s32 %s116, 1
      %s118 = scalar_select %p115, %s116, %s117
      %p121 = pneg %p115
      %p122 = scmp.eq.s32.totalorder %s17, 1
      %p123 = por %p121, %p122
      %p124 = scmp.ne.s32.totalorder %s116, %s119
      %p125 = scmp.eq.s32.totalorder %s17, 0
      %p126 = por %p124, %p125
      %p127 = scmp.ne.s32.totalorder %s116, %s119
      %p128 = scmp.eq.s32.totalorder %s22, 1
      %p129 = por %p127, %p128
      %p130 = scmp.ne.s32.totalorder %s119, %s120
      %p131 = scmp.eq.s32.totalorder %s22, 0
      %p132 = por %p130, %p131
      %p133 = scmp.ne.s32.totalorder %s119, %s120
      %p134 = scmp.eq.s32.totalorder %s23, 1
      %p135 = por %p133, %p134
      %p137 = scmp.ne.s32.totalorder %s120, %s136
      %p138 = scmp.eq.s32.totalorder %s23, 0
      %p139 = por %p137, %p138
      %p140 = scmp.le.s32.totalorder 1, %s17
      %p141 = scmp.lt.s32.totalorder %s17, 3
      %p142 = pnand %p140, %p141
      %p143 = pneg %p142
      // Predicated region
      $region9: #{tpu_custom_call.1} parent=5 // pred_check
        _
      $region10: #{tpu_custom_call.1} parent=5 // pred_check_branch
        %145 = sbr.rel (%p142) target = $region12
      $region11: #{tpu_custom_call.1} parent=5 // pred_region
        %s146 = ssub.s32 %s17, 1
        // Predicated region
        $region13: #{tpu_custom_call.1} parent=11 // pred_check
          %p147 = pneg %p64
        $region14: #{tpu_custom_call.1} parent=11 // pred_check_branch
          %149 = sbr.rel (%p147) target = $region16
        $region15: #{tpu_custom_call.1} parent=11 // pred_region
          %s151 = ssub.s32 27648, 27648
          %152 = vsyncadd [#allocation6], %s151
          %s153 = sshll.u32 [#allocation5], 4
          %s154 = int_to_ptr.vmem [resolvable:$true] %s153
          %159 = dma.hbm_to_vmem [thread:$0]  %s1, 27648, %s154, [#allocation6], 576, 576, 36
        $region16: #{tpu_custom_call.1} parent=11 // pred_fallthru
          _
        // Predicated region
        $region17: #{tpu_custom_call.1} parent=11 // pred_check
          %p160 = pneg %p85
        $region18: #{tpu_custom_call.1} parent=11 // pred_check_branch
          %162 = sbr.rel (%p160) target = $region20
        $region19: #{tpu_custom_call.1} parent=11 // pred_region
          %s164 = ssub.s32 9216, 9216
          %165 = vsyncadd [#allocation6], %s164
          %s166 = sshll.u32 [#allocation7], 4
          %s167 = int_to_ptr.vmem [resolvable:$true] %s166
          %172 = dma.hbm_to_vmem [thread:$0]  %s2, 9216, %s167, [#allocation6], 192, 192, 12
        $region20: #{tpu_custom_call.1} parent=11 // pred_fallthru
          _
        // Predicated region
        $region21: #{tpu_custom_call.1} parent=11 // pred_check
          %p173 = pneg %p106
        $region22: #{tpu_custom_call.1} parent=11 // pred_check_branch
          %175 = sbr.rel (%p173) target = $region24
        $region23: #{tpu_custom_call.1} parent=11 // pred_region
          _
        $region24: #{tpu_custom_call.1} parent=11 // pred_fallthru
          _
      $region12: #{tpu_custom_call.1} parent=5 // pred_fallthru
        _
      %p176 = scmp.lt.s32.totalorder %s17, 2
      // Predicated region
      $region25: #{tpu_custom_call.1} parent=5 // pred_check
        %p177 = pneg %p176
      $region26: #{tpu_custom_call.1} parent=5 // pred_check_branch
        %179 = sbr.rel (%p177) target = $region28
      $region27: #{tpu_custom_call.1} parent=5 // pred_region
        // Predicated region
        $region29: #{tpu_custom_call.1} parent=27 // pred_check
          %p180 = pneg %p37
        $region30: #{tpu_custom_call.1} parent=27 // pred_check_branch
          %182 = sbr.rel (%p180) target = $region32
        $region31: #{tpu_custom_call.1} parent=27 // pred_region
          %s183 = sand.u32 %s27, 1
          %s184 = scalar_lea.sflag [#allocation3], %s183
          %s185 = sand.u32 %s27, 1
          %s186 = smul.addr %s185, 384
          %s187 = scalar_lea.vmem [#allocation2], %s186
          %s189 = ssub.s32 6144, 6144
          %190 = vsyncadd %s184, %s189
          %s191 = smul.addr %s17, 48
          %s192 = smul.addr %s191, 128
          %s193 = scalar_lea.hbm %s0, %s192
          %s194 = sshll.u32 %s187, 4
          %s195 = int_to_ptr.vmem [resolvable:$true] %s194
          %200 = dma.hbm_to_vmem [thread:$0]  %s193, 6144, %s195, %s184, 384, 384, 24
        $region32: #{tpu_custom_call.1} parent=27 // pred_fallthru
          _
      $region28: #{tpu_custom_call.1} parent=5 // pred_fallthru
        _
      %p201 = scmp.le.s32.totalorder 1, %s17
      %p202 = scmp.lt.s32.totalorder %s17, 3
      %p203 = pnand %p201, %p202
      %p204 = pneg %p203
      // Predicated region
      $region33: #{tpu_custom_call.1} parent=5 // pred_check
        _
      $region34: #{tpu_custom_call.1} parent=5 // pred_check_branch
        %206 = sbr.rel (%p203) target = $region36
      $region35: #{tpu_custom_call.1} parent=5 // pred_region
        %s207 = ssub.s32 %s17, 1
        %s208 = sand.u32 %s30, 1
        %s209 = scalar_lea.sflag [#allocation3], %s208
        %s210 = sand.u32 %s30, 1
        %s211 = smul.addr %s210, 384
        %s212 = scalar_lea.vmem [#allocation2], %s211
        // Predicated region
        $region37: #{tpu_custom_call.1} parent=35 // pred_check
          %p213 = pneg %p43
        $region38: #{tpu_custom_call.1} parent=35 // pred_check_branch
          %215 = sbr.rel (%p213) target = $region40
        $region39: #{tpu_custom_call.1} parent=35 // pred_region
          %216 = dma.done %s209, 6144
        $region40: #{tpu_custom_call.1} parent=35 // pred_fallthru
          _
        // Predicated region
        $region41: #{tpu_custom_call.1} parent=35 // pred_check
          %p217 = pneg %p64
        $region42: #{tpu_custom_call.1} parent=35 // pred_check_branch
          %219 = sbr.rel (%p217) target = $region44
        $region43: #{tpu_custom_call.1} parent=35 // pred_region
          %220 = dma.done [#allocation6], 27648
        $region44: #{tpu_custom_call.1} parent=35 // pred_fallthru
          _
        // Predicated region
        $region45: #{tpu_custom_call.1} parent=35 // pred_check
          %p221 = pneg %p85
        $region46: #{tpu_custom_call.1} parent=35 // pred_check_branch
          %223 = sbr.rel (%p221) target = $region48
        $region47: #{tpu_custom_call.1} parent=35 // pred_region
          %224 = dma.done [#allocation6], 9216
        $region48: #{tpu_custom_call.1} parent=35 // pred_fallthru
          _
        %s225 = sand.u32 %s30, 1
        %s226 = scalar_lea.sflag [#allocation3], %s225
        %s227 = sand.u32 %s30, 1
        %s228 = smul.addr %s227, 384
        %s229 = scalar_lea.vmem [#allocation2], %s228
        %p230 = pneg %p43
        %p231 = pneg %p40
        %p232 = pneg %p64
        %p233 = pneg %p61
        %p234 = pneg %p85
        %p235 = pneg %p82
        %p236 = pneg %p106
        %p237 = pneg %p103
        %p238 = pneg %p132
        %p239 = pneg %p129
        %s240 = sand.u32 %s119, 1
        %s241 = scalar_lea.sflag [#allocation4], %s240
        %s242 = sand.u32 %s119, 1
        %s243 = smul.addr %s242, 384
        %s244 = scalar_lea.vmem [#allocation8], %s243
        %v246 = vld [vmem:[%s212] sm:$0xff]
        %v247 = vld [vmem:[%s212 + $0x8] sm:$0xff]
        %v248 = vld [vmem:[%s212 + $0x10] sm:$0xff]
        %v249 = vld [vmem:[%s212 + $0x18] sm:$0xff]
        %v250 = vld [vmem:[%s212 + $0x20] sm:$0xff]
        %v251 = vld [vmem:[%s212 + $0x28] sm:$0xff]
        %v252 = vld [vmem:[%s212 + $0x30] sm:$0xff]
        %v253 = vld [vmem:[%s212 + $0x38] sm:$0xff]
        %v254 = vld [vmem:[%s212 + $0x40] sm:$0xff]
        %v255 = vld [vmem:[%s212 + $0x48] sm:$0xff]
        %v256 = vld [vmem:[%s212 + $0x50] sm:$0xff]
        %v257 = vld [vmem:[%s212 + $0x58] sm:$0xff]
        %v258 = vld [vmem:[%s212 + $0x60] sm:$0xff]
        %v259 = vld [vmem:[%s212 + $0x68] sm:$0xff]
        %v260 = vld [vmem:[%s212 + $0x70] sm:$0xff]
        %v261 = vld [vmem:[%s212 + $0x78] sm:$0xff]
        %v262 = vld [vmem:[%s212 + $0x80] sm:$0xff]
        %v263 = vld [vmem:[%s212 + $0x88] sm:$0xff]
        %v264 = vld [vmem:[%s212 + $0x90] sm:$0xff]
        %v265 = vld [vmem:[%s212 + $0x98] sm:$0xff]
        %v266 = vld [vmem:[%s212 + $0xa0] sm:$0xff]
        %v267 = vld [vmem:[%s212 + $0xa8] sm:$0xff]
        %v268 = vld [vmem:[%s212 + $0xb0] sm:$0xff]
        %v269 = vld [vmem:[%s212 + $0xb8] sm:$0xff]
        %v270 = vld [vmem:[%s212 + $0xc0] sm:$0xff]
        %v271 = vld [vmem:[%s212 + $0xc8] sm:$0xff]
        %v272 = vld [vmem:[%s212 + $0xd0] sm:$0xff]
        %v273 = vld [vmem:[%s212 + $0xd8] sm:$0xff]
        %v274 = vld [vmem:[%s212 + $0xe0] sm:$0xff]
        %v275 = vld [vmem:[%s212 + $0xe8] sm:$0xff]
        %v276 = vld [vmem:[%s212 + $0xf0] sm:$0xff]
        %v277 = vld [vmem:[%s212 + $0xf8] sm:$0xff]
        %v278 = vld [vmem:[%s212 + $0x100] sm:$0xff]
        %v279 = vld [vmem:[%s212 + $0x108] sm:$0xff]
        %v280 = vld [vmem:[%s212 + $0x110] sm:$0xff]
        %v281 = vld [vmem:[%s212 + $0x118] sm:$0xff]
        %v282 = vld [vmem:[%s212 + $0x120] sm:$0xff]
        %v283 = vld [vmem:[%s212 + $0x128] sm:$0xff]
        %v284 = vld [vmem:[%s212 + $0x130] sm:$0xff]
        %v285 = vld [vmem:[%s212 + $0x138] sm:$0xff]
        %v286 = vld [vmem:[%s212 + $0x140] sm:$0xff]
        %v287 = vld [vmem:[%s212 + $0x148] sm:$0xff]
        %v288 = vld [vmem:[%s212 + $0x150] sm:$0xff]
        %v289 = vld [vmem:[%s212 + $0x158] sm:$0xff]
        %v290 = vld [vmem:[%s212 + $0x160] sm:$0xff]
        %v291 = vld [vmem:[%s212 + $0x168] sm:$0xff]
        %v292 = vld [vmem:[%s212 + $0x170] sm:$0xff]
        %v293 = vld [vmem:[%s212 + $0x178] sm:$0xff]
        %v294 = vpack.c.bf16 %v249, %v246
        %v295 = vpack.c.bf16 %v250, %v247
        %v296 = vpack.c.bf16 %v251, %v248
        %v297 = vpack.c.bf16 %v255, %v252
        %v298 = vpack.c.bf16 %v256, %v253
        %v299 = vpack.c.bf16 %v257, %v254
        %v300 = vpack.c.bf16 %v261, %v258
        %v301 = vpack.c.bf16 %v262, %v259
        %v302 = vpack.c.bf16 %v263, %v260
        %v303 = vpack.c.bf16 %v267, %v264
        %v304 = vpack.c.bf16 %v268, %v265
        %v305 = vpack.c.bf16 %v269, %v266
        %v306 = vpack.c.bf16 %v273, %v270
        %v307 = vpack.c.bf16 %v274, %v271
        %v308 = vpack.c.bf16 %v275, %v272
        %v309 = vpack.c.bf16 %v279, %v276
        %v310 = vpack.c.bf16 %v280, %v277
        %v311 = vpack.c.bf16 %v281, %v278
        %v312 = vpack.c.bf16 %v285, %v282
        %v313 = vpack.c.bf16 %v286, %v283
        %v314 = vpack.c.bf16 %v287, %v284
        %v315 = vpack.c.bf16 %v291, %v288
        %v316 = vpack.c.bf16 %v292, %v289
        %v317 = vpack.c.bf16 %v293, %v290
        %v318 = vld [vmem:[#allocation5] sm:$0xff]
        %v319 = vld [vmem:[#allocation5 + $0x8] sm:$0xff]
        %v320 = vld [vmem:[#allocation5 + $0x10] sm:$0xff]
        %v321 = vld [vmem:[#allocation5 + $0x18] sm:$0xff]
        %v322 = vld [vmem:[#allocation5 + $0x20] sm:$0xf]
        %v323 = vld [vmem:[#allocation5 + $0x24] sm:$0xff]
        %v324 = vld [vmem:[#allocation5 + $0x2c] sm:$0xff]
        %v325 = vld [vmem:[#allocation5 + $0x34] sm:$0xff]
        %v326 = vld [vmem:[#allocation5 + $0x3c] sm:$0xff]
        %v327 = vld [vmem:[#allocation5 + $0x44] sm:$0xf]
        %v328 = vld [vmem:[#allocation5 + $0x48] sm:$0xff]
        %v329 = vld [vmem:[#allocation5 + $0x50] sm:$0xff]
        %v330 = vld [vmem:[#allocation5 + $0x58] sm:$0xff]
        %v331 = vld [vmem:[#allocation5 + $0x60] sm:$0xff]
        %v332 = vld [vmem:[#allocation5 + $0x68] sm:$0xf]
        %v333 = vld [vmem:[#allocation5 + $0x6c] sm:$0xff]
        %v334 = vld [vmem:[#allocation5 + $0x74] sm:$0xff]
        %v335 = vld [vmem:[#allocation5 + $0x7c] sm:$0xff]
        %v336 = vld [vmem:[#allocation5 + $0x84] sm:$0xff]
        %v337 = vld [vmem:[#allocation5 + $0x8c] sm:$0xf]
        %v338 = vld [vmem:[#allocation5 + $0x90] sm:$0xff]
        %v339 = vld [vmem:[#allocation5 + $0x98] sm:$0xff]
        %v340 = vld [vmem:[#allocation5 + $0xa0] sm:$0xff]
        %v341 = vld [vmem:[#allocation5 + $0xa8] sm:$0xff]
        %v342 = vld [vmem:[#allocation5 + $0xb0] sm:$0xf]
        %v343 = vld [vmem:[#allocation5 + $0xb4] sm:$0xff]
        %v344 = vld [vmem:[#allocation5 + $0xbc] sm:$0xff]
        %v345 = vld [vmem:[#allocation5 + $0xc4] sm:$0xff]
        %v346 = vld [vmem:[#allocation5 + $0xcc] sm:$0xff]
        %v347 = vld [vmem:[#allocation5 + $0xd4] sm:$0xf]
        %v348 = vld [vmem:[#allocation5 + $0xd8] sm:$0xff]
        %v349 = vld [vmem:[#allocation5 + $0xe0] sm:$0xff]
        %v350 = vld [vmem:[#allocation5 + $0xe8] sm:$0xff]
        %v351 = vld [vmem:[#allocation5 + $0xf0] sm:$0xff]
        %v352 = vld [vmem:[#allocation5 + $0xf8] sm:$0xf]
        %v353 = vld [vmem:[#allocation5 + $0xfc] sm:$0xff]
        %v354 = vld [vmem:[#allocation5 + $0x104] sm:$0xff]
        %v355 = vld [vmem:[#allocation5 + $0x10c] sm:$0xff]
        %v356 = vld [vmem:[#allocation5 + $0x114] sm:$0xff]
        %v357 = vld [vmem:[#allocation5 + $0x11c] sm:$0xf]
        %v358 = vld [vmem:[#allocation5 + $0x120] sm:$0xff]
        %v359 = vld [vmem:[#allocation5 + $0x128] sm:$0xff]
        %v360 = vld [vmem:[#allocation5 + $0x130] sm:$0xff]
        %v361 = vld [vmem:[#allocation5 + $0x138] sm:$0xff]
        %v362 = vld [vmem:[#allocation5 + $0x140] sm:$0xf]
        %v363 = vld [vmem:[#allocation5 + $0x144] sm:$0xff]
        %v364 = vld [vmem:[#allocation5 + $0x14c] sm:$0xff]
        %v365 = vld [vmem:[#allocation5 + $0x154] sm:$0xff]
        %v366 = vld [vmem:[#allocation5 + $0x15c] sm:$0xff]
        %v367 = vld [vmem:[#allocation5 + $0x164] sm:$0xf]
        %v368 = vld [vmem:[#allocation5 + $0x168] sm:$0xff]
        %v369 = vld [vmem:[#allocation5 + $0x170] sm:$0xff]
        %v370 = vld [vmem:[#allocation5 + $0x178] sm:$0xff]
        %v371 = vld [vmem:[#allocation5 + $0x180] sm:$0xff]
        %v372 = vld [vmem:[#allocation5 + $0x188] sm:$0xf]
        %v373 = vld [vmem:[#allocation5 + $0x18c] sm:$0xff]
        %v374 = vld [vmem:[#allocation5 + $0x194] sm:$0xff]
        %v375 = vld [vmem:[#allocation5 + $0x19c] sm:$0xff]
        %v376 = vld [vmem:[#allocation5 + $0x1a4] sm:$0xff]
        %v377 = vld [vmem:[#allocation5 + $0x1ac] sm:$0xf]
        %v378 = vld [vmem:[#allocation5 + $0x1b0] sm:$0xff]
        %v379 = vld [vmem:[#allocation5 + $0x1b8] sm:$0xff]
        %v380 = vld [vmem:[#allocation5 + $0x1c0] sm:$0xff]
        %v381 = vld [vmem:[#allocation5 + $0x1c8] sm:$0xff]
        %v382 = vld [vmem:[#allocation5 + $0x1d0] sm:$0xf]
        %v383 = vld [vmem:[#allocation5 + $0x1d4] sm:$0xff]
        %v384 = vld [vmem:[#allocation5 + $0x1dc] sm:$0xff]
        %v385 = vld [vmem:[#allocation5 + $0x1e4] sm:$0xff]
        %v386 = vld [vmem:[#allocation5 + $0x1ec] sm:$0xff]
        %v387 = vld [vmem:[#allocation5 + $0x1f4] sm:$0xf]
        %v388 = vld [vmem:[#allocation5 + $0x1f8] sm:$0xff]
        %v389 = vld [vmem:[#allocation5 + $0x200] sm:$0xff]
        %v390 = vld [vmem:[#allocation5 + $0x208] sm:$0xff]
        %v391 = vld [vmem:[#allocation5 + $0x210] sm:$0xff]
        %v392 = vld [vmem:[#allocation5 + $0x218] sm:$0xf]
        %v393 = vld [vmem:[#allocation5 + $0x21c] sm:$0xff]
        %v394 = vld [vmem:[#allocation5 + $0x224] sm:$0xff]
        %v395 = vld [vmem:[#allocation5 + $0x22c] sm:$0xff]
        %v396 = vld [vmem:[#allocation5 + $0x234] sm:$0xff]
        %v397 = vld [vmem:[#allocation5 + $0x23c] sm:$0xf]
        %v398 = vld [vmem:[#allocation5 + $0x240] sm:$0xff]
        %v399 = vld [vmem:[#allocation5 + $0x248] sm:$0xff]
        %v400 = vld [vmem:[#allocation5 + $0x250] sm:$0xff]
        %v401 = vld [vmem:[#allocation5 + $0x258] sm:$0xff]
        %v402 = vld [vmem:[#allocation5 + $0x260] sm:$0xf]
        %v403 = vld [vmem:[#allocation5 + $0x264] sm:$0xff]
        %v404 = vld [vmem:[#allocation5 + $0x26c] sm:$0xff]
        %v405 = vld [vmem:[#allocation5 + $0x274] sm:$0xff]
        %v406 = vld [vmem:[#allocation5 + $0x27c] sm:$0xff]
        %v407 = vld [vmem:[#allocation5 + $0x284] sm:$0xf]
        %v408 = vld [vmem:[#allocation5 + $0x288] sm:$0xff]
        %v409 = vld [vmem:[#allocation5 + $0x290] sm:$0xff]
        %v410 = vld [vmem:[#allocation5 + $0x298] sm:$0xff]
        %v411 = vld [vmem:[#allocation5 + $0x2a0] sm:$0xff]
        %v412 = vld [vmem:[#allocation5 + $0x2a8] sm:$0xf]
        %v413 = vld [vmem:[#allocation5 + $0x2ac] sm:$0xff]
        %v414 = vld [vmem:[#allocation5 + $0x2b4] sm:$0xff]
        %v415 = vld [vmem:[#allocation5 + $0x2bc] sm:$0xff]
        %v416 = vld [vmem:[#allocation5 + $0x2c4] sm:$0xff]
        %v417 = vld [vmem:[#allocation5 + $0x2cc] sm:$0xf]
        %v418 = vld [vmem:[#allocation5 + $0x2d0] sm:$0xff]
        %v419 = vld [vmem:[#allocation5 + $0x2d8] sm:$0xff]
        %v420 = vld [vmem:[#allocation5 + $0x2e0] sm:$0xff]
        %v421 = vld [vmem:[#allocation5 + $0x2e8] sm:$0xff]
        %v422 = vld [vmem:[#allocation5 + $0x2f0] sm:$0xf]
        %v423 = vld [vmem:[#allocation5 + $0x2f4] sm:$0xff]
        %v424 = vld [vmem:[#allocation5 + $0x2fc] sm:$0xff]
        %v425 = vld [vmem:[#allocation5 + $0x304] sm:$0xff]
        %v426 = vld [vmem:[#allocation5 + $0x30c] sm:$0xff]
        %v427 = vld [vmem:[#allocation5 + $0x314] sm:$0xf]
        %v428 = vld [vmem:[#allocation5 + $0x318] sm:$0xff]
        %v429 = vld [vmem:[#allocation5 + $0x320] sm:$0xff]
        %v430 = vld [vmem:[#allocation5 + $0x328] sm:$0xff]
        %v431 = vld [vmem:[#allocation5 + $0x330] sm:$0xff]
        %v432 = vld [vmem:[#allocation5 + $0x338] sm:$0xf]
        %v433 = vld [vmem:[#allocation5 + $0x33c] sm:$0xff]
        %v434 = vld [vmem:[#allocation5 + $0x344] sm:$0xff]
        %v435 = vld [vmem:[#allocation5 + $0x34c] sm:$0xff]
        %v436 = vld [vmem:[#allocation5 + $0x354] sm:$0xff]
        %v437 = vld [vmem:[#allocation5 + $0x35c] sm:$0xf]
        %v438 = vld [vmem:[#allocation5 + $0x360] sm:$0xff]
        %v439 = vld [vmem:[#allocation5 + $0x368] sm:$0xff]
        %v440 = vld [vmem:[#allocation5 + $0x370] sm:$0xff]
        %v441 = vld [vmem:[#allocation5 + $0x378] sm:$0xff]
        %v442 = vld [vmem:[#allocation5 + $0x380] sm:$0xf]
        %v443 = vld [vmem:[#allocation5 + $0x384] sm:$0xff]
        %v444 = vld [vmem:[#allocation5 + $0x38c] sm:$0xff]
        %v445 = vld [vmem:[#allocation5 + $0x394] sm:$0xff]
        %v446 = vld [vmem:[#allocation5 + $0x39c] sm:$0xff]
        %v447 = vld [vmem:[#allocation5 + $0x3a4] sm:$0xf]
        %v448 = vld [vmem:[#allocation5 + $0x3a8] sm:$0xff]
        %v449 = vld [vmem:[#allocation5 + $0x3b0] sm:$0xff]
        %v450 = vld [vmem:[#allocation5 + $0x3b8] sm:$0xff]
        %v451 = vld [vmem:[#allocation5 + $0x3c0] sm:$0xff]
        %v452 = vld [vmem:[#allocation5 + $0x3c8] sm:$0xf]
        %v453 = vld [vmem:[#allocation5 + $0x3cc] sm:$0xff]
        %v454 = vld [vmem:[#allocation5 + $0x3d4] sm:$0xff]
        %v455 = vld [vmem:[#allocation5 + $0x3dc] sm:$0xff]
        %v456 = vld [vmem:[#allocation5 + $0x3e4] sm:$0xff]
        %v457 = vld [vmem:[#allocation5 + $0x3ec] sm:$0xf]
        %v458 = vld [vmem:[#allocation5 + $0x3f0] sm:$0xff]
        %v459 = vld [vmem:[#allocation5 + $0x3f8] sm:$0xff]
        %v460 = vld [vmem:[#allocation5 + $0x400] sm:$0xff]
        %v461 = vld [vmem:[#allocation5 + $0x408] sm:$0xff]
        %v462 = vld [vmem:[#allocation5 + $0x410] sm:$0xf]
        %v463 = vld [vmem:[#allocation5 + $0x414] sm:$0xff]
        %v464 = vld [vmem:[#allocation5 + $0x41c] sm:$0xff]
        %v465 = vld [vmem:[#allocation5 + $0x424] sm:$0xff]
        %v466 = vld [vmem:[#allocation5 + $0x42c] sm:$0xff]
        %v467 = vld [vmem:[#allocation5 + $0x434] sm:$0xf]
        %v468 = vld [vmem:[#allocation5 + $0x438] sm:$0xff]
        %v469 = vld [vmem:[#allocation5 + $0x440] sm:$0xff]
        %v470 = vld [vmem:[#allocation5 + $0x448] sm:$0xff]
        %v471 = vld [vmem:[#allocation5 + $0x450] sm:$0xff]
        %v472 = vld [vmem:[#allocation5 + $0x458] sm:$0xf]
        %v473 = vld [vmem:[#allocation5 + $0x45c] sm:$0xff]
        %v474 = vld [vmem:[#allocation5 + $0x464] sm:$0xff]
        %v475 = vld [vmem:[#allocation5 + $0x46c] sm:$0xff]
        %v476 = vld [vmem:[#allocation5 + $0x474] sm:$0xff]
        %v477 = vld [vmem:[#allocation5 + $0x47c] sm:$0xf]
        %v478 = vld [vmem:[#allocation5 + $0x480] sm:$0xff]
        %v479 = vld [vmem:[#allocation5 + $0x488] sm:$0xff]
        %v480 = vld [vmem:[#allocation5 + $0x490] sm:$0xff]
        %v481 = vld [vmem:[#allocation5 + $0x498] sm:$0xff]
        %v482 = vld [vmem:[#allocation5 + $0x4a0] sm:$0xf]
        %v483 = vld [vmem:[#allocation5 + $0x4a4] sm:$0xff]
        %v484 = vld [vmem:[#allocation5 + $0x4ac] sm:$0xff]
        %v485 = vld [vmem:[#allocation5 + $0x4b4] sm:$0xff]
        %v486 = vld [vmem:[#allocation5 + $0x4bc] sm:$0xff]
        %v487 = vld [vmem:[#allocation5 + $0x4c4] sm:$0xf]
        %v488 = vld [vmem:[#allocation5 + $0x4c8] sm:$0xff]
        %v489 = vld [vmem:[#allocation5 + $0x4d0] sm:$0xff]
        %v490 = vld [vmem:[#allocation5 + $0x4d8] sm:$0xff]
        %v491 = vld [vmem:[#allocation5 + $0x4e0] sm:$0xff]
        %v492 = vld [vmem:[#allocation5 + $0x4e8] sm:$0xf]
        %v493 = vld [vmem:[#allocation5 + $0x4ec] sm:$0xff]
        %v494 = vld [vmem:[#allocation5 + $0x4f4] sm:$0xff]
        %v495 = vld [vmem:[#allocation5 + $0x4fc] sm:$0xff]
        %v496 = vld [vmem:[#allocation5 + $0x504] sm:$0xff]
        %v497 = vld [vmem:[#allocation5 + $0x50c] sm:$0xf]
        %v498 = vld [vmem:[#allocation5 + $0x510] sm:$0xff]
        %v499 = vld [vmem:[#allocation5 + $0x518] sm:$0xff]
        %v500 = vld [vmem:[#allocation5 + $0x520] sm:$0xff]
        %v501 = vld [vmem:[#allocation5 + $0x528] sm:$0xff]
        %v502 = vld [vmem:[#allocation5 + $0x530] sm:$0xf]
        %v503 = vld [vmem:[#allocation5 + $0x534] sm:$0xff]
        %v504 = vld [vmem:[#allocation5 + $0x53c] sm:$0xff]
        %v505 = vld [vmem:[#allocation5 + $0x544] sm:$0xff]
        %v506 = vld [vmem:[#allocation5 + $0x54c] sm:$0xff]
        %v507 = vld [vmem:[#allocation5 + $0x554] sm:$0xf]
        %v508 = vld [vmem:[#allocation5 + $0x558] sm:$0xff]
        %v509 = vld [vmem:[#allocation5 + $0x560] sm:$0xff]
        %v510 = vld [vmem:[#allocation5 + $0x568] sm:$0xff]
        %v511 = vld [vmem:[#allocation5 + $0x570] sm:$0xff]
        %v512 = vld [vmem:[#allocation5 + $0x578] sm:$0xf]
        %v513 = vld [vmem:[#allocation5 + $0x57c] sm:$0xff]
        %v514 = vld [vmem:[#allocation5 + $0x584] sm:$0xff]
        %v515 = vld [vmem:[#allocation5 + $0x58c] sm:$0xff]
        %v516 = vld [vmem:[#allocation5 + $0x594] sm:$0xff]
        %v517 = vld [vmem:[#allocation5 + $0x59c] sm:$0xf]
        %v518 = vld [vmem:[#allocation5 + $0x5a0] sm:$0xff]
        %v519 = vld [vmem:[#allocation5 + $0x5a8] sm:$0xff]
        %v520 = vld [vmem:[#allocation5 + $0x5b0] sm:$0xff]
        %v521 = vld [vmem:[#allocation5 + $0x5b8] sm:$0xff]
        %v522 = vld [vmem:[#allocation5 + $0x5c0] sm:$0xf]
        %v523 = vld [vmem:[#allocation5 + $0x5c4] sm:$0xff]
        %v524 = vld [vmem:[#allocation5 + $0x5cc] sm:$0xff]
        %v525 = vld [vmem:[#allocation5 + $0x5d4] sm:$0xff]
        %v526 = vld [vmem:[#allocation5 + $0x5dc] sm:$0xff]
        %v527 = vld [vmem:[#allocation5 + $0x5e4] sm:$0xf]
        %v528 = vld [vmem:[#allocation5 + $0x5e8] sm:$0xff]
        %v529 = vld [vmem:[#allocation5 + $0x5f0] sm:$0xff]
        %v530 = vld [vmem:[#allocation5 + $0x5f8] sm:$0xff]
        %v531 = vld [vmem:[#allocation5 + $0x600] sm:$0xff]
        %v532 = vld [vmem:[#allocation5 + $0x608] sm:$0xf]
        %v533 = vld [vmem:[#allocation5 + $0x60c] sm:$0xff]
        %v534 = vld [vmem:[#allocation5 + $0x614] sm:$0xff]
        %v535 = vld [vmem:[#allocation5 + $0x61c] sm:$0xff]
        %v536 = vld [vmem:[#allocation5 + $0x624] sm:$0xff]
        %v537 = vld [vmem:[#allocation5 + $0x62c] sm:$0xf]
        %v538 = vld [vmem:[#allocation5 + $0x630] sm:$0xff]
        %v539 = vld [vmem:[#allocation5 + $0x638] sm:$0xff]
        %v540 = vld [vmem:[#allocation5 + $0x640] sm:$0xff]
        %v541 = vld [vmem:[#allocation5 + $0x648] sm:$0xff]
        %v542 = vld [vmem:[#allocation5 + $0x650] sm:$0xf]
        %v543 = vld [vmem:[#allocation5 + $0x654] sm:$0xff]
        %v544 = vld [vmem:[#allocation5 + $0x65c] sm:$0xff]
        %v545 = vld [vmem:[#allocation5 + $0x664] sm:$0xff]
        %v546 = vld [vmem:[#allocation5 + $0x66c] sm:$0xff]
        %v547 = vld [vmem:[#allocation5 + $0x674] sm:$0xf]
        %v548 = vld [vmem:[#allocation5 + $0x678] sm:$0xff]
        %v549 = vld [vmem:[#allocation5 + $0x680] sm:$0xff]
        %v550 = vld [vmem:[#allocation5 + $0x688] sm:$0xff]
        %v551 = vld [vmem:[#allocation5 + $0x690] sm:$0xff]
        %v552 = vld [vmem:[#allocation5 + $0x698] sm:$0xf]
        %v553 = vld [vmem:[#allocation5 + $0x69c] sm:$0xff]
        %v554 = vld [vmem:[#allocation5 + $0x6a4] sm:$0xff]
        %v555 = vld [vmem:[#allocation5 + $0x6ac] sm:$0xff]
        %v556 = vld [vmem:[#allocation5 + $0x6b4] sm:$0xff]
        %v557 = vld [vmem:[#allocation5 + $0x6bc] sm:$0xf]
        %v798 = vunpack.c.l.b16 %v318
        %v799 = vunpack.c.h.b16 %v318
        %v800 = vunpack.c.l.b16 %v319
        %v801 = vunpack.c.h.b16 %v319
        %v802 = vunpack.c.l.b16 %v320
        %v803 = vunpack.c.h.b16 %v320
        %v804 = vunpack.c.l.b16 %v321
        %v805 = vunpack.c.h.b16 %v321
        %v806 = vunpack.c.l.b16 %v322
        %v807 = vunpack.c.l.b16 %v323
        %v808 = vunpack.c.h.b16 %v323
        %v809 = vunpack.c.l.b16 %v324
        %v810 = vunpack.c.h.b16 %v324
        %v811 = vunpack.c.l.b16 %v325
        %v812 = vunpack.c.h.b16 %v325
        %v813 = vunpack.c.l.b16 %v326
        %v814 = vunpack.c.h.b16 %v326
        %v815 = vunpack.c.l.b16 %v327
        %v816 = vunpack.c.l.b16 %v328
        %v817 = vunpack.c.h.b16 %v328
        %v818 = vunpack.c.l.b16 %v329
        %v819 = vunpack.c.h.b16 %v329
        %v820 = vunpack.c.l.b16 %v330
        %v821 = vunpack.c.h.b16 %v330
        %v822 = vunpack.c.l.b16 %v331
        %v823 = vunpack.c.h.b16 %v331
        %v824 = vunpack.c.l.b16 %v332
        %v825 = vunpack.c.l.b16 %v333
        %v826 = vunpack.c.h.b16 %v333
        %v827 = vunpack.c.l.b16 %v334
        %v828 = vunpack.c.h.b16 %v334
        %v829 = vunpack.c.l.b16 %v335
        %v830 = vunpack.c.h.b16 %v335
        %v831 = vunpack.c.l.b16 %v336
        %v832 = vunpack.c.h.b16 %v336
        %v833 = vunpack.c.l.b16 %v337
        %v834 = vunpack.c.l.b16 %v338
        %v835 = vunpack.c.h.b16 %v338
        %v836 = vunpack.c.l.b16 %v339
        %v837 = vunpack.c.h.b16 %v339
        %v838 = vunpack.c.l.b16 %v340
        %v839 = vunpack.c.h.b16 %v340
        %v840 = vunpack.c.l.b16 %v341
        %v841 = vunpack.c.h.b16 %v341
        %v842 = vunpack.c.l.b16 %v342
        %v843 = vunpack.c.l.b16 %v343
        %v844 = vunpack.c.h.b16 %v343
        %v845 = vunpack.c.l.b16 %v344
        %v846 = vunpack.c.h.b16 %v344
        %v847 = vunpack.c.l.b16 %v345
        %v848 = vunpack.c.h.b16 %v345
        %v849 = vunpack.c.l.b16 %v346
        %v850 = vunpack.c.h.b16 %v346
        %v851 = vunpack.c.l.b16 %v347
        %v852 = vunpack.c.l.b16 %v348
        %v853 = vunpack.c.h.b16 %v348
        %v854 = vunpack.c.l.b16 %v349
        %v855 = vunpack.c.h.b16 %v349
        %v856 = vunpack.c.l.b16 %v350
        %v857 = vunpack.c.h.b16 %v350
        %v858 = vunpack.c.l.b16 %v351
        %v859 = vunpack.c.h.b16 %v351
        %v860 = vunpack.c.l.b16 %v352
        %v861 = vunpack.c.l.b16 %v353
        %v862 = vunpack.c.h.b16 %v353
        %v863 = vunpack.c.l.b16 %v354
        %v864 = vunpack.c.h.b16 %v354
        %v865 = vunpack.c.l.b16 %v355
        %v866 = vunpack.c.h.b16 %v355
        %v867 = vunpack.c.l.b16 %v356
        %v868 = vunpack.c.h.b16 %v356
        %v869 = vunpack.c.l.b16 %v357
        %v870 = vunpack.c.l.b16 %v358
        %v871 = vunpack.c.h.b16 %v358
        %v872 = vunpack.c.l.b16 %v359
        %v873 = vunpack.c.h.b16 %v359
        %v874 = vunpack.c.l.b16 %v360
        %v875 = vunpack.c.h.b16 %v360
        %v876 = vunpack.c.l.b16 %v361
        %v877 = vunpack.c.h.b16 %v361
        %v878 = vunpack.c.l.b16 %v362
        %v879 = vunpack.c.l.b16 %v363
        %v880 = vunpack.c.h.b16 %v363
        %v881 = vunpack.c.l.b16 %v364
        %v882 = vunpack.c.h.b16 %v364
        %v883 = vunpack.c.l.b16 %v365
        %v884 = vunpack.c.h.b16 %v365
        %v885 = vunpack.c.l.b16 %v366
        %v886 = vunpack.c.h.b16 %v366
        %v887 = vunpack.c.l.b16 %v367
        %v888 = vunpack.c.l.b16 %v368
        %v889 = vunpack.c.h.b16 %v368
        %v890 = vunpack.c.l.b16 %v369
        %v891 = vunpack.c.h.b16 %v369
        %v892 = vunpack.c.l.b16 %v370
        %v893 = vunpack.c.h.b16 %v370
        %v894 = vunpack.c.l.b16 %v371
        %v895 = vunpack.c.h.b16 %v371
        %v896 = vunpack.c.l.b16 %v372
        %v897 = vunpack.c.l.b16 %v373
        %v898 = vunpack.c.h.b16 %v373
        %v899 = vunpack.c.l.b16 %v374
        %v900 = vunpack.c.h.b16 %v374
        %v901 = vunpack.c.l.b16 %v375
        %v902 = vunpack.c.h.b16 %v375
        %v903 = vunpack.c.l.b16 %v376
        %v904 = vunpack.c.h.b16 %v376
        %v905 = vunpack.c.l.b16 %v377
        %v906 = vunpack.c.l.b16 %v378
        %v907 = vunpack.c.h.b16 %v378
        %v908 = vunpack.c.l.b16 %v379
        %v909 = vunpack.c.h.b16 %v379
        %v910 = vunpack.c.l.b16 %v380
        %v911 = vunpack.c.h.b16 %v380
        %v912 = vunpack.c.l.b16 %v381
        %v913 = vunpack.c.h.b16 %v381
        %v914 = vunpack.c.l.b16 %v382
        %v915 = vunpack.c.l.b16 %v383
        %v916 = vunpack.c.h.b16 %v383
        %v917 = vunpack.c.l.b16 %v384
        %v918 = vunpack.c.h.b16 %v384
        %v919 = vunpack.c.l.b16 %v385
        %v920 = vunpack.c.h.b16 %v385
        %v921 = vunpack.c.l.b16 %v386
        %v922 = vunpack.c.h.b16 %v386
        %v923 = vunpack.c.l.b16 %v387
        %v924 = vunpack.c.l.b16 %v388
        %v925 = vunpack.c.h.b16 %v388
        %v926 = vunpack.c.l.b16 %v389
        %v927 = vunpack.c.h.b16 %v389
        %v928 = vunpack.c.l.b16 %v390
        %v929 = vunpack.c.h.b16 %v390
        %v930 = vunpack.c.l.b16 %v391
        %v931 = vunpack.c.h.b16 %v391
        %v932 = vunpack.c.l.b16 %v392
        %v933 = vunpack.c.l.b16 %v393
        %v934 = vunpack.c.h.b16 %v393
        %v935 = vunpack.c.l.b16 %v394
        %v936 = vunpack.c.h.b16 %v394
        %v937 = vunpack.c.l.b16 %v395
        %v938 = vunpack.c.h.b16 %v395
        %v939 = vunpack.c.l.b16 %v396
        %v940 = vunpack.c.h.b16 %v396
        %v941 = vunpack.c.l.b16 %v397
        %v942 = vunpack.c.l.b16 %v398
        %v943 = vunpack.c.h.b16 %v398
        %v944 = vunpack.c.l.b16 %v399
        %v945 = vunpack.c.h.b16 %v399
        %v946 = vunpack.c.l.b16 %v400
        %v947 = vunpack.c.h.b16 %v400
        %v948 = vunpack.c.l.b16 %v401
        %v949 = vunpack.c.h.b16 %v401
        %v950 = vunpack.c.l.b16 %v402
        %v951 = vunpack.c.l.b16 %v403
        %v952 = vunpack.c.h.b16 %v403
        %v953 = vunpack.c.l.b16 %v404
        %v954 = vunpack.c.h.b16 %v404
        %v955 = vunpack.c.l.b16 %v405
        %v956 = vunpack.c.h.b16 %v405
        %v957 = vunpack.c.l.b16 %v406
        %v958 = vunpack.c.h.b16 %v406
        %v959 = vunpack.c.l.b16 %v407
        %v960 = vunpack.c.l.b16 %v408
        %v961 = vunpack.c.h.b16 %v408
        %v962 = vunpack.c.l.b16 %v409
        %v963 = vunpack.c.h.b16 %v409
        %v964 = vunpack.c.l.b16 %v410
        %v965 = vunpack.c.h.b16 %v410
        %v966 = vunpack.c.l.b16 %v411
        %v967 = vunpack.c.h.b16 %v411
        %v968 = vunpack.c.l.b16 %v412
        %v969 = vunpack.c.l.b16 %v413
        %v970 = vunpack.c.h.b16 %v413
        %v971 = vunpack.c.l.b16 %v414
        %v972 = vunpack.c.h.b16 %v414
        %v973 = vunpack.c.l.b16 %v415
        %v974 = vunpack.c.h.b16 %v415
        %v975 = vunpack.c.l.b16 %v416
        %v976 = vunpack.c.h.b16 %v416
        %v977 = vunpack.c.l.b16 %v417
        %v978 = vunpack.c.l.b16 %v418
        %v979 = vunpack.c.h.b16 %v418
        %v980 = vunpack.c.l.b16 %v419
        %v981 = vunpack.c.h.b16 %v419
        %v982 = vunpack.c.l.b16 %v420
        %v983 = vunpack.c.h.b16 %v420
        %v984 = vunpack.c.l.b16 %v421
        %v985 = vunpack.c.h.b16 %v421
        %v986 = vunpack.c.l.b16 %v422
        %v987 = vunpack.c.l.b16 %v423
        %v988 = vunpack.c.h.b16 %v423
        %v989 = vunpack.c.l.b16 %v424
        %v990 = vunpack.c.h.b16 %v424
        %v991 = vunpack.c.l.b16 %v425
        %v992 = vunpack.c.h.b16 %v425
        %v993 = vunpack.c.l.b16 %v426
        %v994 = vunpack.c.h.b16 %v426
        %v995 = vunpack.c.l.b16 %v427
        %v996 = vunpack.c.l.b16 %v428
        %v997 = vunpack.c.h.b16 %v428
        %v998 = vunpack.c.l.b16 %v429
        %v999 = vunpack.c.h.b16 %v429
        %v1000 = vunpack.c.l.b16 %v430
        %v1001 = vunpack.c.h.b16 %v430
        %v1002 = vunpack.c.l.b16 %v431
        %v1003 = vunpack.c.h.b16 %v431
        %v1004 = vunpack.c.l.b16 %v432
        %v1005 = vunpack.c.l.b16 %v433
        %v1006 = vunpack.c.h.b16 %v433
        %v1007 = vunpack.c.l.b16 %v434
        %v1008 = vunpack.c.h.b16 %v434
        %v1009 = vunpack.c.l.b16 %v435
        %v1010 = vunpack.c.h.b16 %v435
        %v1011 = vunpack.c.l.b16 %v436
        %v1012 = vunpack.c.h.b16 %v436
        %v1013 = vunpack.c.l.b16 %v437
        %v1014 = vunpack.c.l.b16 %v438
        %v1015 = vunpack.c.h.b16 %v438
        %v1016 = vunpack.c.l.b16 %v439
        %v1017 = vunpack.c.h.b16 %v439
        %v1018 = vunpack.c.l.b16 %v440
        %v1019 = vunpack.c.h.b16 %v440
        %v1020 = vunpack.c.l.b16 %v441
        %v1021 = vunpack.c.h.b16 %v441
        %v1022 = vunpack.c.l.b16 %v442
        %v1023 = vunpack.c.l.b16 %v443
        %v1024 = vunpack.c.h.b16 %v443
        %v1025 = vunpack.c.l.b16 %v444
        %v1026 = vunpack.c.h.b16 %v444
        %v1027 = vunpack.c.l.b16 %v445
        %v1028 = vunpack.c.h.b16 %v445
        %v1029 = vunpack.c.l.b16 %v446
        %v1030 = vunpack.c.h.b16 %v446
        %v1031 = vunpack.c.l.b16 %v447
        %v1032 = vunpack.c.l.b16 %v448
        %v1033 = vunpack.c.h.b16 %v448
        %v1034 = vunpack.c.l.b16 %v449
        %v1035 = vunpack.c.h.b16 %v449
        %v1036 = vunpack.c.l.b16 %v450
        %v1037 = vunpack.c.h.b16 %v450
        %v1038 = vunpack.c.l.b16 %v451
        %v1039 = vunpack.c.h.b16 %v451
        %v1040 = vunpack.c.l.b16 %v452
        %v1041 = vunpack.c.l.b16 %v453
        %v1042 = vunpack.c.h.b16 %v453
        %v1043 = vunpack.c.l.b16 %v454
        %v1044 = vunpack.c.h.b16 %v454
        %v1045 = vunpack.c.l.b16 %v455
        %v1046 = vunpack.c.h.b16 %v455
        %v1047 = vunpack.c.l.b16 %v456
        %v1048 = vunpack.c.h.b16 %v456
        %v1049 = vunpack.c.l.b16 %v457
        %v1050 = vunpack.c.l.b16 %v458
        %v1051 = vunpack.c.h.b16 %v458
        %v1052 = vunpack.c.l.b16 %v459
        %v1053 = vunpack.c.h.b16 %v459
        %v1054 = vunpack.c.l.b16 %v460
        %v1055 = vunpack.c.h.b16 %v460
        %v1056 = vunpack.c.l.b16 %v461
        %v1057 = vunpack.c.h.b16 %v461
        %v1058 = vunpack.c.l.b16 %v462
        %v1059 = vunpack.c.l.b16 %v463
        %v1060 = vunpack.c.h.b16 %v463
        %v1061 = vunpack.c.l.b16 %v464
        %v1062 = vunpack.c.h.b16 %v464
        %v1063 = vunpack.c.l.b16 %v465
        %v1064 = vunpack.c.h.b16 %v465
        %v1065 = vunpack.c.l.b16 %v466
        %v1066 = vunpack.c.h.b16 %v466
        %v1067 = vunpack.c.l.b16 %v467
        %v1068 = vunpack.c.l.b16 %v468
        %v1069 = vunpack.c.h.b16 %v468
        %v1070 = vunpack.c.l.b16 %v469
        %v1071 = vunpack.c.h.b16 %v469
        %v1072 = vunpack.c.l.b16 %v470
        %v1073 = vunpack.c.h.b16 %v470
        %v1074 = vunpack.c.l.b16 %v471
        %v1075 = vunpack.c.h.b16 %v471
        %v1076 = vunpack.c.l.b16 %v472
        %v1077 = vunpack.c.l.b16 %v473
        %v1078 = vunpack.c.h.b16 %v473
        %v1079 = vunpack.c.l.b16 %v474
        %v1080 = vunpack.c.h.b16 %v474
        %v1081 = vunpack.c.l.b16 %v475
        %v1082 = vunpack.c.h.b16 %v475
        %v1083 = vunpack.c.l.b16 %v476
        %v1084 = vunpack.c.h.b16 %v476
        %v1085 = vunpack.c.l.b16 %v477
        %v1086 = vunpack.c.l.b16 %v478
        %v1087 = vunpack.c.h.b16 %v478
        %v1088 = vunpack.c.l.b16 %v479
        %v1089 = vunpack.c.h.b16 %v479
        %v1090 = vunpack.c.l.b16 %v480
        %v1091 = vunpack.c.h.b16 %v480
        %v1092 = vunpack.c.l.b16 %v481
        %v1093 = vunpack.c.h.b16 %v481
        %v1094 = vunpack.c.l.b16 %v482
        %v1095 = vunpack.c.l.b16 %v483
        %v1096 = vunpack.c.h.b16 %v483
        %v1097 = vunpack.c.l.b16 %v484
        %v1098 = vunpack.c.h.b16 %v484
        %v1099 = vunpack.c.l.b16 %v485
        %v1100 = vunpack.c.h.b16 %v485
        %v1101 = vunpack.c.l.b16 %v486
        %v1102 = vunpack.c.h.b16 %v486
        %v1103 = vunpack.c.l.b16 %v487
        %v1104 = vunpack.c.l.b16 %v488
        %v1105 = vunpack.c.h.b16 %v488
        %v1106 = vunpack.c.l.b16 %v489
        %v1107 = vunpack.c.h.b16 %v489
        %v1108 = vunpack.c.l.b16 %v490
        %v1109 = vunpack.c.h.b16 %v490
        %v1110 = vunpack.c.l.b16 %v491
        %v1111 = vunpack.c.h.b16 %v491
        %v1112 = vunpack.c.l.b16 %v492
        %v1113 = vunpack.c.l.b16 %v493
        %v1114 = vunpack.c.h.b16 %v493
        %v1115 = vunpack.c.l.b16 %v494
        %v1116 = vunpack.c.h.b16 %v494
        %v1117 = vunpack.c.l.b16 %v495
        %v1118 = vunpack.c.h.b16 %v495
        %v1119 = vunpack.c.l.b16 %v496
        %v1120 = vunpack.c.h.b16 %v496
        %v1121 = vunpack.c.l.b16 %v497
        %v1122 = vunpack.c.l.b16 %v498
        %v1123 = vunpack.c.h.b16 %v498
        %v1124 = vunpack.c.l.b16 %v499
        %v1125 = vunpack.c.h.b16 %v499
        %v1126 = vunpack.c.l.b16 %v500
        %v1127 = vunpack.c.h.b16 %v500
        %v1128 = vunpack.c.l.b16 %v501
        %v1129 = vunpack.c.h.b16 %v501
        %v1130 = vunpack.c.l.b16 %v502
        %v1131 = vunpack.c.l.b16 %v503
        %v1132 = vunpack.c.h.b16 %v503
        %v1133 = vunpack.c.l.b16 %v504
        %v1134 = vunpack.c.h.b16 %v504
        %v1135 = vunpack.c.l.b16 %v505
        %v1136 = vunpack.c.h.b16 %v505
        %v1137 = vunpack.c.l.b16 %v506
        %v1138 = vunpack.c.h.b16 %v506
        %v1139 = vunpack.c.l.b16 %v507
        %v1140 = vunpack.c.l.b16 %v508
        %v1141 = vunpack.c.h.b16 %v508
        %v1142 = vunpack.c.l.b16 %v509
        %v1143 = vunpack.c.h.b16 %v509
        %v1144 = vunpack.c.l.b16 %v510
        %v1145 = vunpack.c.h.b16 %v510
        %v1146 = vunpack.c.l.b16 %v511
        %v1147 = vunpack.c.h.b16 %v511
        %v1148 = vunpack.c.l.b16 %v512
        %v1149 = vunpack.c.l.b16 %v513
        %v1150 = vunpack.c.h.b16 %v513
        %v1151 = vunpack.c.l.b16 %v514
        %v1152 = vunpack.c.h.b16 %v514
        %v1153 = vunpack.c.l.b16 %v515
        %v1154 = vunpack.c.h.b16 %v515
        %v1155 = vunpack.c.l.b16 %v516
        %v1156 = vunpack.c.h.b16 %v516
        %v1157 = vunpack.c.l.b16 %v517
        %v1158 = vunpack.c.l.b16 %v518
        %v1159 = vunpack.c.h.b16 %v518
        %v1160 = vunpack.c.l.b16 %v519
        %v1161 = vunpack.c.h.b16 %v519
        %v1162 = vunpack.c.l.b16 %v520
        %v1163 = vunpack.c.h.b16 %v520
        %v1164 = vunpack.c.l.b16 %v521
        %v1165 = vunpack.c.h.b16 %v521
        %v1166 = vunpack.c.l.b16 %v522
        %v1167 = vunpack.c.l.b16 %v523
        %v1168 = vunpack.c.h.b16 %v523
        %v1169 = vunpack.c.l.b16 %v524
        %v1170 = vunpack.c.h.b16 %v524
        %v1171 = vunpack.c.l.b16 %v525
        %v1172 = vunpack.c.h.b16 %v525
        %v1173 = vunpack.c.l.b16 %v526
        %v1174 = vunpack.c.h.b16 %v526
        %v1175 = vunpack.c.l.b16 %v527
        %v1176 = vunpack.c.l.b16 %v528
        %v1177 = vunpack.c.h.b16 %v528
        %v1178 = vunpack.c.l.b16 %v529
        %v1179 = vunpack.c.h.b16 %v529
        %v1180 = vunpack.c.l.b16 %v530
        %v1181 = vunpack.c.h.b16 %v530
        %v1182 = vunpack.c.l.b16 %v531
        %v1183 = vunpack.c.h.b16 %v531
        %v1184 = vunpack.c.l.b16 %v532
        %v1185 = vunpack.c.l.b16 %v533
        %v1186 = vunpack.c.h.b16 %v533
        %v1187 = vunpack.c.l.b16 %v534
        %v1188 = vunpack.c.h.b16 %v534
        %v1189 = vunpack.c.l.b16 %v535
        %v1190 = vunpack.c.h.b16 %v535
        %v1191 = vunpack.c.l.b16 %v536
        %v1192 = vunpack.c.h.b16 %v536
        %v1193 = vunpack.c.l.b16 %v537
        %v1194 = vunpack.c.l.b16 %v538
        %v1195 = vunpack.c.h.b16 %v538
        %v1196 = vunpack.c.l.b16 %v539
        %v1197 = vunpack.c.h.b16 %v539
        %v1198 = vunpack.c.l.b16 %v540
        %v1199 = vunpack.c.h.b16 %v540
        %v1200 = vunpack.c.l.b16 %v541
        %v1201 = vunpack.c.h.b16 %v541
        %v1202 = vunpack.c.l.b16 %v542
        %v1203 = vunpack.c.l.b16 %v543
        %v1204 = vunpack.c.h.b16 %v543
        %v1205 = vunpack.c.l.b16 %v544
        %v1206 = vunpack.c.h.b16 %v544
        %v1207 = vunpack.c.l.b16 %v545
        %v1208 = vunpack.c.h.b16 %v545
        %v1209 = vunpack.c.l.b16 %v546
        %v1210 = vunpack.c.h.b16 %v546
        %v1211 = vunpack.c.l.b16 %v547
        %v1212 = vunpack.c.l.b16 %v548
        %v1213 = vunpack.c.h.b16 %v548
        %v1214 = vunpack.c.l.b16 %v549
        %v1215 = vunpack.c.h.b16 %v549
        %v1216 = vunpack.c.l.b16 %v550
        %v1217 = vunpack.c.h.b16 %v550
        %v1218 = vunpack.c.l.b16 %v551
        %v1219 = vunpack.c.h.b16 %v551
        %v1220 = vunpack.c.l.b16 %v552
        %v1221 = vunpack.c.l.b16 %v553
        %v1222 = vunpack.c.h.b16 %v553
        %v1223 = vunpack.c.l.b16 %v554
        %v1224 = vunpack.c.h.b16 %v554
        %v1225 = vunpack.c.l.b16 %v555
        %v1226 = vunpack.c.h.b16 %v555
        %v1227 = vunpack.c.l.b16 %v556
        %v1228 = vunpack.c.h.b16 %v556
        %v1229 = vunpack.c.l.b16 %v557
        %v1230 = vpack.c.b16 %v807, %v798
        %v1231 = vpack.c.b16 %v808, %v799
        %v1232 = vpack.c.b16 %v809, %v800
        %v1233 = vpack.c.b16 %v810, %v801
        %v1234 = vpack.c.b16 %v811, %v802
        %v1235 = vpack.c.b16 %v812, %v803
        %v1236 = vpack.c.b16 %v813, %v804
        %v1237 = vpack.c.b16 %v814, %v805
        %v1238 = vpack.c.b16 %v815, %v806
        %v1239 = vpack.c.b16 %v825, %v816
        %v1240 = vpack.c.b16 %v826, %v817
        %v1241 = vpack.c.b16 %v827, %v818
        %v1242 = vpack.c.b16 %v828, %v819
        %v1243 = vpack.c.b16 %v829, %v820
        %v1244 = vpack.c.b16 %v830, %v821
        %v1245 = vpack.c.b16 %v831, %v822
        %v1246 = vpack.c.b16 %v832, %v823
        %v1247 = vpack.c.b16 %v833, %v824
        %v1248 = vpack.c.b16 %v843, %v834
        %v1249 = vpack.c.b16 %v844, %v835
        %v1250 = vpack.c.b16 %v845, %v836
        %v1251 = vpack.c.b16 %v846, %v837
        %v1252 = vpack.c.b16 %v847, %v838
        %v1253 = vpack.c.b16 %v848, %v839
        %v1254 = vpack.c.b16 %v849, %v840
        %v1255 = vpack.c.b16 %v850, %v841
        %v1256 = vpack.c.b16 %v851, %v842
        %v1257 = vpack.c.b16 %v861, %v852
        %v1258 = vpack.c.b16 %v862, %v853
        %v1259 = vpack.c.b16 %v863, %v854
        %v1260 = vpack.c.b16 %v864, %v855
        %v1261 = vpack.c.b16 %v865, %v856
        %v1262 = vpack.c.b16 %v866, %v857
        %v1263 = vpack.c.b16 %v867, %v858
        %v1264 = vpack.c.b16 %v868, %v859
        %v1265 = vpack.c.b16 %v869, %v860
        %v1266 = vpack.c.b16 %v879, %v870
        %v1267 = vpack.c.b16 %v880, %v871
        %v1268 = vpack.c.b16 %v881, %v872
        %v1269 = vpack.c.b16 %v882, %v873
        %v1270 = vpack.c.b16 %v883, %v874
        %v1271 = vpack.c.b16 %v884, %v875
        %v1272 = vpack.c.b16 %v885, %v876
        %v1273 = vpack.c.b16 %v886, %v877
        %v1274 = vpack.c.b16 %v887, %v878
        %v1275 = vpack.c.b16 %v897, %v888
        %v1276 = vpack.c.b16 %v898, %v889
        %v1277 = vpack.c.b16 %v899, %v890
        %v1278 = vpack.c.b16 %v900, %v891
        %v1279 = vpack.c.b16 %v901, %v892
        %v1280 = vpack.c.b16 %v902, %v893
        %v1281 = vpack.c.b16 %v903, %v894
        %v1282 = vpack.c.b16 %v904, %v895
        %v1283 = vpack.c.b16 %v905, %v896
        %v1284 = vpack.c.b16 %v915, %v906
        %v1285 = vpack.c.b16 %v916, %v907
        %v1286 = vpack.c.b16 %v917, %v908
        %v1287 = vpack.c.b16 %v918, %v909
        %v1288 = vpack.c.b16 %v919, %v910
        %v1289 = vpack.c.b16 %v920, %v911
        %v1290 = vpack.c.b16 %v921, %v912
        %v1291 = vpack.c.b16 %v922, %v913
        %v1292 = vpack.c.b16 %v923, %v914
        %v1293 = vpack.c.b16 %v933, %v924
        %v1294 = vpack.c.b16 %v934, %v925
        %v1295 = vpack.c.b16 %v935, %v926
        %v1296 = vpack.c.b16 %v936, %v927
        %v1297 = vpack.c.b16 %v937, %v928
        %v1298 = vpack.c.b16 %v938, %v929
        %v1299 = vpack.c.b16 %v939, %v930
        %v1300 = vpack.c.b16 %v940, %v931
        %v1301 = vpack.c.b16 %v941, %v932
        %v1302 = vpack.c.b16 %v951, %v942
        %v1303 = vpack.c.b16 %v952, %v943
        %v1304 = vpack.c.b16 %v953, %v944
        %v1305 = vpack.c.b16 %v954, %v945
        %v1306 = vpack.c.b16 %v955, %v946
        %v1307 = vpack.c.b16 %v956, %v947
        %v1308 = vpack.c.b16 %v957, %v948
        %v1309 = vpack.c.b16 %v958, %v949
        %v1310 = vpack.c.b16 %v959, %v950
        %v1311 = vpack.c.b16 %v969, %v960
        %v1312 = vpack.c.b16 %v970, %v961
        %v1313 = vpack.c.b16 %v971, %v962
        %v1314 = vpack.c.b16 %v972, %v963
        %v1315 = vpack.c.b16 %v973, %v964
        %v1316 = vpack.c.b16 %v974, %v965
        %v1317 = vpack.c.b16 %v975, %v966
        %v1318 = vpack.c.b16 %v976, %v967
        %v1319 = vpack.c.b16 %v977, %v968
        %v1320 = vpack.c.b16 %v987, %v978
        %v1321 = vpack.c.b16 %v988, %v979
        %v1322 = vpack.c.b16 %v989, %v980
        %v1323 = vpack.c.b16 %v990, %v981
        %v1324 = vpack.c.b16 %v991, %v982
        %v1325 = vpack.c.b16 %v992, %v983
        %v1326 = vpack.c.b16 %v993, %v984
        %v1327 = vpack.c.b16 %v994, %v985
        %v1328 = vpack.c.b16 %v995, %v986
        %v1329 = vpack.c.b16 %v1005, %v996
        %v1330 = vpack.c.b16 %v1006, %v997
        %v1331 = vpack.c.b16 %v1007, %v998
        %v1332 = vpack.c.b16 %v1008, %v999
        %v1333 = vpack.c.b16 %v1009, %v1000
        %v1334 = vpack.c.b16 %v1010, %v1001
        %v1335 = vpack.c.b16 %v1011, %v1002
        %v1336 = vpack.c.b16 %v1012, %v1003
        %v1337 = vpack.c.b16 %v1013, %v1004
        %v1338 = vpack.c.b16 %v1023, %v1014
        %v1339 = vpack.c.b16 %v1024, %v1015
        %v1340 = vpack.c.b16 %v1025, %v1016
        %v1341 = vpack.c.b16 %v1026, %v1017
        %v1342 = vpack.c.b16 %v1027, %v1018
        %v1343 = vpack.c.b16 %v1028, %v1019
        %v1344 = vpack.c.b16 %v1029, %v1020
        %v1345 = vpack.c.b16 %v1030, %v1021
        %v1346 = vpack.c.b16 %v1031, %v1022
        %v1347 = vpack.c.b16 %v1041, %v1032
        %v1348 = vpack.c.b16 %v1042, %v1033
        %v1349 = vpack.c.b16 %v1043, %v1034
        %v1350 = vpack.c.b16 %v1044, %v1035
        %v1351 = vpack.c.b16 %v1045, %v1036
        %v1352 = vpack.c.b16 %v1046, %v1037
        %v1353 = vpack.c.b16 %v1047, %v1038
        %v1354 = vpack.c.b16 %v1048, %v1039
        %v1355 = vpack.c.b16 %v1049, %v1040
        %v1356 = vpack.c.b16 %v1059, %v1050
        %v1357 = vpack.c.b16 %v1060, %v1051
        %v1358 = vpack.c.b16 %v1061, %v1052
        %v1359 = vpack.c.b16 %v1062, %v1053
        %v1360 = vpack.c.b16 %v1063, %v1054
        %v1361 = vpack.c.b16 %v1064, %v1055
        %v1362 = vpack.c.b16 %v1065, %v1056
        %v1363 = vpack.c.b16 %v1066, %v1057
        %v1364 = vpack.c.b16 %v1067, %v1058
        %v1365 = vpack.c.b16 %v1077, %v1068
        %v1366 = vpack.c.b16 %v1078, %v1069
        %v1367 = vpack.c.b16 %v1079, %v1070
        %v1368 = vpack.c.b16 %v1080, %v1071
        %v1369 = vpack.c.b16 %v1081, %v1072
        %v1370 = vpack.c.b16 %v1082, %v1073
        %v1371 = vpack.c.b16 %v1083, %v1074
        %v1372 = vpack.c.b16 %v1084, %v1075
        %v1373 = vpack.c.b16 %v1085, %v1076
        %v1374 = vpack.c.b16 %v1095, %v1086
        %v1375 = vpack.c.b16 %v1096, %v1087
        %v1376 = vpack.c.b16 %v1097, %v1088
        %v1377 = vpack.c.b16 %v1098, %v1089
        %v1378 = vpack.c.b16 %v1099, %v1090
        %v1379 = vpack.c.b16 %v1100, %v1091
        %v1380 = vpack.c.b16 %v1101, %v1092
        %v1381 = vpack.c.b16 %v1102, %v1093
        %v1382 = vpack.c.b16 %v1103, %v1094
        %v1383 = vpack.c.b16 %v1113, %v1104
        %v1384 = vpack.c.b16 %v1114, %v1105
        %v1385 = vpack.c.b16 %v1115, %v1106
        %v1386 = vpack.c.b16 %v1116, %v1107
        %v1387 = vpack.c.b16 %v1117, %v1108
        %v1388 = vpack.c.b16 %v1118, %v1109
        %v1389 = vpack.c.b16 %v1119, %v1110
        %v1390 = vpack.c.b16 %v1120, %v1111
        %v1391 = vpack.c.b16 %v1121, %v1112
        %v1392 = vpack.c.b16 %v1131, %v1122
        %v1393 = vpack.c.b16 %v1132, %v1123
        %v1394 = vpack.c.b16 %v1133, %v1124
        %v1395 = vpack.c.b16 %v1134, %v1125
        %v1396 = vpack.c.b16 %v1135, %v1126
        %v1397 = vpack.c.b16 %v1136, %v1127
        %v1398 = vpack.c.b16 %v1137, %v1128
        %v1399 = vpack.c.b16 %v1138, %v1129
        %v1400 = vpack.c.b16 %v1139, %v1130
        %v1401 = vpack.c.b16 %v1149, %v1140
        %v1402 = vpack.c.b16 %v1150, %v1141
        %v1403 = vpack.c.b16 %v1151, %v1142
        %v1404 = vpack.c.b16 %v1152, %v1143
        %v1405 = vpack.c.b16 %v1153, %v1144
        %v1406 = vpack.c.b16 %v1154, %v1145
        %v1407 = vpack.c.b16 %v1155, %v1146
        %v1408 = vpack.c.b16 %v1156, %v1147
        %v1409 = vpack.c.b16 %v1157, %v1148
        %v1410 = vpack.c.b16 %v1167, %v1158
        %v1411 = vpack.c.b16 %v1168, %v1159
        %v1412 = vpack.c.b16 %v1169, %v1160
        %v1413 = vpack.c.b16 %v1170, %v1161
        %v1414 = vpack.c.b16 %v1171, %v1162
        %v1415 = vpack.c.b16 %v1172, %v1163
        %v1416 = vpack.c.b16 %v1173, %v1164
        %v1417 = vpack.c.b16 %v1174, %v1165
        %v1418 = vpack.c.b16 %v1175, %v1166
        %v1419 = vpack.c.b16 %v1185, %v1176
        %v1420 = vpack.c.b16 %v1186, %v1177
        %v1421 = vpack.c.b16 %v1187, %v1178
        %v1422 = vpack.c.b16 %v1188, %v1179
        %v1423 = vpack.c.b16 %v1189, %v1180
        %v1424 = vpack.c.b16 %v1190, %v1181
        %v1425 = vpack.c.b16 %v1191, %v1182
        %v1426 = vpack.c.b16 %v1192, %v1183
        %v1427 = vpack.c.b16 %v1193, %v1184
        %v1428 = vpack.c.b16 %v1203, %v1194
        %v1429 = vpack.c.b16 %v1204, %v1195
        %v1430 = vpack.c.b16 %v1205, %v1196
        %v1431 = vpack.c.b16 %v1206, %v1197
        %v1432 = vpack.c.b16 %v1207, %v1198
        %v1433 = vpack.c.b16 %v1208, %v1199
        %v1434 = vpack.c.b16 %v1209, %v1200
        %v1435 = vpack.c.b16 %v1210, %v1201
        %v1436 = vpack.c.b16 %v1211, %v1202
        %v1437 = vpack.c.b16 %v1221, %v1212
        %v1438 = vpack.c.b16 %v1222, %v1213
        %v1439 = vpack.c.b16 %v1223, %v1214
        %v1440 = vpack.c.b16 %v1224, %v1215
        %v1441 = vpack.c.b16 %v1225, %v1216
        %v1442 = vpack.c.b16 %v1226, %v1217
        %v1443 = vpack.c.b16 %v1227, %v1218
        %v1444 = vpack.c.b16 %v1228, %v1219
        %v1445 = vpack.c.b16 %v1229, %v1220
        %1662 = vmatprep.subr.bf16.mxu0 %v1231
        %1663 = vmatpush1.bf16.msra.mxu0 %v1230
        %1664 = vmatprep.subr.bf16.mxu0 %v1240
        %1665 = vmatpush1.bf16.msra.mxu0 %v1239
        %1666 = vmatprep.subr.bf16.mxu0 %v1249
        %1667 = vmatpush1.bf16.msra.mxu0 %v1248
        %1668 = vmatprep.subr.bf16.mxu0 %v1258
        %1669 = vmatpush1.bf16.msra.mxu0 %v1257
        %1670 = vmatprep.subr.bf16.mxu0 %v1267
        %1671 = vmatpush1.bf16.msra.mxu0 %v1266
        %1672 = vmatprep.subr.bf16.mxu0 %v1276
        %1673 = vmatpush1.bf16.msra.mxu0 %v1275
        %1674 = vmatprep.subr.bf16.mxu0 %v1285
        %1675 = vmatpush1.bf16.msra.mxu0 %v1284
        %1676 = vmatprep.subr.bf16.mxu0 %v1294
        %1677 = vmatpush1.bf16.msra.mxu0 %v1293
        %1678 = vmatprep.subr.bf16.mxu0 %v1303
        %1679 = vmatpush1.bf16.msra.mxu0 %v1302
        %1680 = vmatprep.subr.bf16.mxu0 %v1312
        %1681 = vmatpush1.bf16.msra.mxu0 %v1311
        %1682 = vmatprep.subr.bf16.mxu0 %v1321
        %1683 = vmatpush1.bf16.msra.mxu0 %v1320
        %1684 = vmatprep.subr.bf16.mxu0 %v1330
        %1685 = vmatpush1.bf16.msra.mxu0 %v1329
        %1686 = vmatprep.subr.bf16.mxu0 %v1339
        %1687 = vmatpush1.bf16.msra.mxu0 %v1338
        %1688 = vmatprep.subr.bf16.mxu0 %v1348
        %1689 = vmatpush1.bf16.msra.mxu0 %v1347
        %1690 = vmatprep.subr.bf16.mxu0 %v1357
        %1691 = vmatpush1.bf16.msra.mxu0 %v1356
        %1692 = vmatprep.subr.bf16.mxu0 %v1366
        %1693 = vmatpush1.bf16.msra.mxu0 %v1365
        %1694 = vmatprep.mubr.bf16.mxu0 %v295
        %1695 = vmatmul.mubr.bf16.gmra.mrb[0].mxu0 %v294
        %v1696 = vpop.f32.mrb[0].mxu0
        %v1697 = vadd.f32 0.0, %v1696
        %v1698 = vpop.f32.mrb[0].mxu0
        %v1699 = vadd.f32 0.0, %v1698
        %v1700 = vpop.f32.mrb[0].mxu0
        %v1701 = vadd.f32 0.0, %v1700
        %v1702 = vpop.f32.mrb[0].mxu0
        %v1703 = vadd.f32 0.0, %v1702
        %1704 = vmatprep.mubr.bf16.mxu0 %v298
        %1705 = vmatmul.mubr.bf16.gmra.mrb[0].mxu0 %v297
        %v1706 = vpop.f32.mrb[0].mxu0
        %v1707 = vadd.f32 0.0, %v1706
        %v1708 = vpop.f32.mrb[0].mxu0
        %v1709 = vadd.f32 0.0, %v1708
        %v1710 = vpop.f32.mrb[0].mxu0
        %v1711 = vadd.f32 0.0, %v1710
        %v1712 = vpop.f32.mrb[0].mxu0
        %v1713 = vadd.f32 0.0, %v1712
        %1714 = vmatprep.mubr.bf16.mxu0 %v301
        %1715 = vmatmul.mubr.bf16.gmra.mrb[0].mxu0 %v300
        %v1716 = vpop.f32.mrb[0].mxu0
        %v1717 = vadd.f32 0.0, %v1716
        %v1718 = vpop.f32.mrb[0].mxu0
        %v1719 = vadd.f32 0.0, %v1718
        %v1720 = vpop.f32.mrb[0].mxu0
        %v1721 = vadd.f32 0.0, %v1720
        %v1722 = vpop.f32.mrb[0].mxu0
        %v1723 = vadd.f32 0.0, %v1722
        %1724 = vmatprep.mubr.bf16.mxu0 %v304
        %1725 = vmatmul.mubr.bf16.gmra.mrb[0].mxu0 %v303
        %v1726 = vpop.f32.mrb[0].mxu0
        %v1727 = vadd.f32 0.0, %v1726
        %v1728 = vpop.f32.mrb[0].mxu0
        %v1729 = vadd.f32 0.0, %v1728
        %v1730 = vpop.f32.mrb[0].mxu0
        %v1731 = vadd.f32 0.0, %v1730
        %v1732 = vpop.f32.mrb[0].mxu0
        %v1733 = vadd.f32 0.0, %v1732
        %1734 = vmatprep.mubr.bf16.mxu0 %v307
        %1735 = vmatmul.mubr.bf16.gmra.mrb[0].mxu0 %v306
        %v1736 = vpop.f32.mrb[0].mxu0
        %v1737 = vadd.f32 0.0, %v1736
        %v1738 = vpop.f32.mrb[0].mxu0
        %v1739 = vadd.f32 0.0, %v1738
        %v1740 = vpop.f32.mrb[0].mxu0
        %v1741 = vadd.f32 0.0, %v1740
        %v1742 = vpop.f32.mrb[0].mxu0
        %v1743 = vadd.f32 0.0, %v1742
        %1744 = vmatprep.mubr.bf16.mxu0 %v310
        %1745 = vmatmul.mubr.bf16.gmra.mrb[0].mxu0 %v309
        %v1746 = vpop.f32.mrb[0].mxu0
        %v1747 = vadd.f32 0.0, %v1746
        %v1748 = vpop.f32.mrb[0].mxu0
        %v1749 = vadd.f32 0.0, %v1748
        %v1750 = vpop.f32.mrb[0].mxu0
        %v1751 = vadd.f32 0.0, %v1750
        %v1752 = vpop.f32.mrb[0].mxu0
        %v1753 = vadd.f32 0.0, %v1752
        %1754 = vmatprep.mubr.bf16.mxu0 %v313
        %1755 = vmatmul.mubr.bf16.gmra.mrb[0].mxu0 %v312
        %v1756 = vpop.f32.mrb[0].mxu0
        %v1757 = vadd.f32 0.0, %v1756
        %v1758 = vpop.f32.mrb[0].mxu0
        %v1759 = vadd.f32 0.0, %v1758
        %v1760 = vpop.f32.mrb[0].mxu0
        %v1761 = vadd.f32 0.0, %v1760
        %v1762 = vpop.f32.mrb[0].mxu0
        %v1763 = vadd.f32 0.0, %v1762
        %1764 = vmatprep.mubr.bf16.mxu0 %v316
        %1765 = vmatmul.mubr.bf16.gmra.mrb[0].mxu0 %v315
        %v1766 = vpop.f32.mrb[0].mxu0
        %v1767 = vadd.f32 0.0, %v1766
        %v1768 = vpop.f32.mrb[0].mxu0
        %v1769 = vadd.f32 0.0, %v1768
        %v1770 = vpop.f32.mrb[0].mxu0
        %v1771 = vadd.f32 0.0, %v1770
        %v1772 = vpop.f32.mrb[0].mxu0
        %v1773 = vadd.f32 0.0, %v1772
        %1774 = vdwg.mxu0
        %1775 = vmatprep.subr.bf16.mxu0 %v1375
        %1776 = vmatpush1.bf16.msra.mxu0 %v1374
        %1777 = vmatprep.subr.bf16.mxu0 %v1384
        %1778 = vmatpush1.bf16.msra.mxu0 %v1383
        %1779 = vmatprep.subr.bf16.mxu0 %v1393
        %1780 = vmatpush1.bf16.msra.mxu0 %v1392
        %1781 = vmatprep.subr.bf16.mxu0 %v1402
        %1782 = vmatpush1.bf16.msra.mxu0 %v1401
        %1783 = vmatprep.subr.bf16.mxu0 %v1411
        %1784 = vmatpush1.bf16.msra.mxu0 %v1410
        %1785 = vmatprep.subr.bf16.mxu0 %v1420
        %1786 = vmatpush1.bf16.msra.mxu0 %v1419
        %1787 = vmatprep.subr.bf16.mxu0 %v1429
        %1788 = vmatpush1.bf16.msra.mxu0 %v1428
        %1789 = vmatprep.subr.bf16.mxu0 %v1438
        %1790 = vmatpush1.bf16.msra.mxu0 %v1437
        %1791 = vmatprep.subr.bf16.mxu0 0
        %1792 = vmatpush1.bf16.msra.mxu0 0
        %1793 = vmatprep.subr.bf16.mxu0 0
        %1794 = vmatpush1.bf16.msra.mxu0 0
        %1795 = vmatprep.subr.bf16.mxu0 0
        %1796 = vmatpush1.bf16.msra.mxu0 0
        %1797 = vmatprep.subr.bf16.mxu0 0
        %1798 = vmatpush1.bf16.msra.mxu0 0
        %1799 = vmatprep.subr.bf16.mxu0 0
        %1800 = vmatpush1.bf16.msra.mxu0 0
        %1801 = vmatprep.subr.bf16.mxu0 0
        %1802 = vmatpush1.bf16.msra.mxu0 0
        %1803 = vmatprep.subr.bf16.mxu0 0
        %1804 = vmatpush1.bf16.msra.mxu0 0
        %1805 = vmatprep.subr.bf16.mxu0 0
        %1806 = vmatpush1.bf16.msra.mxu0 0
        %1807 = vmatprep.mubr.bf16.mxu0 0
        %1808 = vmatmul.mubr.bf16.gmra.mrb[0].mxu0 %v296
        %v1809 = vpop.f32.mrb[0].mxu0
        %v1810 = vadd.f32 %v1697, %v1809
        %v1811 = vpop.f32.mrb[0].mxu0
        %v1812 = vadd.f32 %v1699, %v1811
        %v1813 = vpop.f32.mrb[0].mxu0
        %v1814 = vadd.f32 %v1701, %v1813
        %v1815 = vpop.f32.mrb[0].mxu0
        %v1816 = vadd.f32 %v1703, %v1815
        %1817 = vmatprep.mubr.bf16.mxu0 0
        %1818 = vmatmul.mubr.bf16.gmra.mrb[0].mxu0 %v299
        %v1819 = vpop.f32.mrb[0].mxu0
        %v1820 = vadd.f32 %v1707, %v1819
        %v1821 = vpop.f32.mrb[0].mxu0
        %v1822 = vadd.f32 %v1709, %v1821
        %v1823 = vpop.f32.mrb[0].mxu0
        %v1824 = vadd.f32 %v1711, %v1823
        %v1825 = vpop.f32.mrb[0].mxu0
        %v1826 = vadd.f32 %v1713, %v1825
        %1827 = vmatprep.mubr.bf16.mxu0 0
        %1828 = vmatmul.mubr.bf16.gmra.mrb[0].mxu0 %v302
        %v1829 = vpop.f32.mrb[0].mxu0
        %v1830 = vadd.f32 %v1717, %v1829
        %v1831 = vpop.f32.mrb[0].mxu0
        %v1832 = vadd.f32 %v1719, %v1831
        %v1833 = vpop.f32.mrb[0].mxu0
        %v1834 = vadd.f32 %v1721, %v1833
        %v1835 = vpop.f32.mrb[0].mxu0
        %v1836 = vadd.f32 %v1723, %v1835
        %1837 = vmatprep.mubr.bf16.mxu0 0
        %1838 = vmatmul.mubr.bf16.gmra.mrb[0].mxu0 %v305
        %v1839 = vpop.f32.mrb[0].mxu0
        %v1840 = vadd.f32 %v1727, %v1839
        %v1841 = vpop.f32.mrb[0].mxu0
        %v1842 = vadd.f32 %v1729, %v1841
        %v1843 = vpop.f32.mrb[0].mxu0
        %v1844 = vadd.f32 %v1731, %v1843
        %v1845 = vpop.f32.mrb[0].mxu0
        %v1846 = vadd.f32 %v1733, %v1845
        %1847 = vmatprep.mubr.bf16.mxu0 0
        %1848 = vmatmul.mubr.bf16.gmra.mrb[0].mxu0 %v308
        %v1849 = vpop.f32.mrb[0].mxu0
        %v1850 = vadd.f32 %v1737, %v1849
        %v1851 = vpop.f32.mrb[0].mxu0
        %v1852 = vadd.f32 %v1739, %v1851
        %v1853 = vpop.f32.mrb[0].mxu0
        %v1854 = vadd.f32 %v1741, %v1853
        %v1855 = vpop.f32.mrb[0].mxu0
        %v1856 = vadd.f32 %v1743, %v1855
        %1857 = vmatprep.mubr.bf16.mxu0 0
        %1858 = vmatmul.mubr.bf16.gmra.mrb[0].mxu0 %v311
        %v1859 = vpop.f32.mrb[0].mxu0
        %v1860 = vadd.f32 %v1747, %v1859
        %v1861 = vpop.f32.mrb[0].mxu0
        %v1862 = vadd.f32 %v1749, %v1861
        %v1863 = vpop.f32.mrb[0].mxu0
        %v1864 = vadd.f32 %v1751, %v1863
        %v1865 = vpop.f32.mrb[0].mxu0
        %v1866 = vadd.f32 %v1753, %v1865
        %1867 = vmatprep.mubr.bf16.mxu0 0
        %1868 = vmatmul.mubr.bf16.gmra.mrb[0].mxu0 %v314
        %v1869 = vpop.f32.mrb[0].mxu0
        %v1870 = vadd.f32 %v1757, %v1869
        %v1871 = vpop.f32.mrb[0].mxu0
        %v1872 = vadd.f32 %v1759, %v1871
        %v1873 = vpop.f32.mrb[0].mxu0
        %v1874 = vadd.f32 %v1761, %v1873
        %v1875 = vpop.f32.mrb[0].mxu0
        %v1876 = vadd.f32 %v1763, %v1875
        %1877 = vmatprep.mubr.bf16.mxu0 0
        %1878 = vmatmul.mubr.bf16.gmra.mrb[0].mxu0 %v317
        %v1879 = vpop.f32.mrb[0].mxu0
        %v1880 = vadd.f32 %v1767, %v1879
        %v1881 = vpop.f32.mrb[0].mxu0
        %v1882 = vadd.f32 %v1769, %v1881
        %v1883 = vpop.f32.mrb[0].mxu0
        %v1884 = vadd.f32 %v1771, %v1883
        %v1885 = vpop.f32.mrb[0].mxu0
        %v1886 = vadd.f32 %v1773, %v1885
        %1887 = vdwg.mxu0
        %1888 = vmatprep.subr.bf16.mxu0 %v1233
        %1889 = vmatpush1.bf16.msra.mxu0 %v1232
        %1890 = vmatprep.subr.bf16.mxu0 %v1242
        %1891 = vmatpush1.bf16.msra.mxu0 %v1241
        %1892 = vmatprep.subr.bf16.mxu0 %v1251
        %1893 = vmatpush1.bf16.msra.mxu0 %v1250
        %1894 = vmatprep.subr.bf16.mxu0 %v1260
        %1895 = vmatpush1.bf16.msra.mxu0 %v1259
        %1896 = vmatprep.subr.bf16.mxu0 %v1269
        %1897 = vmatpush1.bf16.msra.mxu0 %v1268
        %1898 = vmatprep.subr.bf16.mxu0 %v1278
        %1899 = vmatpush1.bf16.msra.mxu0 %v1277
        %1900 = vmatprep.subr.bf16.mxu0 %v1287
        %1901 = vmatpush1.bf16.msra.mxu0 %v1286
        %1902 = vmatprep.subr.bf16.mxu0 %v1296
        %1903 = vmatpush1.bf16.msra.mxu0 %v1295
        %1904 = vmatprep.subr.bf16.mxu0 %v1305
        %1905 = vmatpush1.bf16.msra.mxu0 %v1304
        %1906 = vmatprep.subr.bf16.mxu0 %v1314
        %1907 = vmatpush1.bf16.msra.mxu0 %v1313
        %1908 = vmatprep.subr.bf16.mxu0 %v1323
        %1909 = vmatpush1.bf16.msra.mxu0 %v1322
        %1910 = vmatprep.subr.bf16.mxu0 %v1332
        %1911 = vmatpush1.bf16.msra.mxu0 %v1331
        %1912 = vmatprep.subr.bf16.mxu0 %v1341
        %1913 = vmatpush1.bf16.msra.mxu0 %v1340
        %1914 = vmatprep.subr.bf16.mxu0 %v1350
        %1915 = vmatpush1.bf16.msra.mxu0 %v1349
        %1916 = vmatprep.subr.bf16.mxu0 %v1359
        %1917 = vmatpush1.bf16.msra.mxu0 %v1358
        %1918 = vmatprep.subr.bf16.mxu0 %v1368
        %1919 = vmatpush1.bf16.msra.mxu0 %v1367
        %1920 = vmatprep.mubr.bf16.mxu0 %v295
        %1921 = vmatmul.mubr.bf16.gmra.mrb[0].mxu0 %v294
        %v1922 = vpop.f32.mrb[0].mxu0
        %v1923 = vadd.f32 0.0, %v1922
        %v1924 = vpop.f32.mrb[0].mxu0
        %v1925 = vadd.f32 0.0, %v1924
        %v1926 = vpop.f32.mrb[0].mxu0
        %v1927 = vadd.f32 0.0, %v1926
        %v1928 = vpop.f32.mrb[0].mxu0
        %v1929 = vadd.f32 0.0, %v1928
        %1930 = vmatprep.mubr.bf16.mxu0 %v298
        %1931 = vmatmul.mubr.bf16.gmra.mrb[0].mxu0 %v297
        %v1932 = vpop.f32.mrb[0].mxu0
        %v1933 = vadd.f32 0.0, %v1932
        %v1934 = vpop.f32.mrb[0].mxu0
        %v1935 = vadd.f32 0.0, %v1934
        %v1936 = vpop.f32.mrb[0].mxu0
        %v1937 = vadd.f32 0.0, %v1936
        %v1938 = vpop.f32.mrb[0].mxu0
        %v1939 = vadd.f32 0.0, %v1938
        %1940 = vmatprep.mubr.bf16.mxu0 %v301
        %1941 = vmatmul.mubr.bf16.gmra.mrb[0].mxu0 %v300
        %v1942 = vpop.f32.mrb[0].mxu0
        %v1943 = vadd.f32 0.0, %v1942
        %v1944 = vpop.f32.mrb[0].mxu0
        %v1945 = vadd.f32 0.0, %v1944
        %v1946 = vpop.f32.mrb[0].mxu0
        %v1947 = vadd.f32 0.0, %v1946
        %v1948 = vpop.f32.mrb[0].mxu0
        %v1949 = vadd.f32 0.0, %v1948
        %1950 = vmatprep.mubr.bf16.mxu0 %v304
        %1951 = vmatmul.mubr.bf16.gmra.mrb[0].mxu0 %v303
        %v1952 = vpop.f32.mrb[0].mxu0
        %v1953 = vadd.f32 0.0, %v1952
        %v1954 = vpop.f32.mrb[0].mxu0
        %v1955 = vadd.f32 0.0, %v1954
        %v1956 = vpop.f32.mrb[0].mxu0
        %v1957 = vadd.f32 0.0, %v1956
        %v1958 = vpop.f32.mrb[0].mxu0
        %v1959 = vadd.f32 0.0, %v1958
        %1960 = vmatprep.mubr.bf16.mxu0 %v307
        %1961 = vmatmul.mubr.bf16.gmra.mrb[0].mxu0 %v306
        %v1962 = vpop.f32.mrb[0].mxu0
        %v1963 = vadd.f32 0.0, %v1962
        %v1964 = vpop.f32.mrb[0].mxu0
        %v1965 = vadd.f32 0.0, %v1964
        %v1966 = vpop.f32.mrb[0].mxu0
        %v1967 = vadd.f32 0.0, %v1966
        %v1968 = vpop.f32.mrb[0].mxu0
        %v1969 = vadd.f32 0.0, %v1968
        %1970 = vmatprep.mubr.bf16.mxu0 %v310
        %1971 = vmatmul.mubr.bf16.gmra.mrb[0].mxu0 %v309
        %v1972 = vpop.f32.mrb[0].mxu0
        %v1973 = vadd.f32 0.0, %v1972
        %v1974 = vpop.f32.mrb[0].mxu0
        %v1975 = vadd.f32 0.0, %v1974
        %v1976 = vpop.f32.mrb[0].mxu0
        %v1977 = vadd.f32 0.0, %v1976
        %v1978 = vpop.f32.mrb[0].mxu0
        %v1979 = vadd.f32 0.0, %v1978
        %1980 = vmatprep.mubr.bf16.mxu0 %v313
        %1981 = vmatmul.mubr.bf16.gmra.mrb[0].mxu0 %v312
        %v1982 = vpop.f32.mrb[0].mxu0
        %v1983 = vadd.f32 0.0, %v1982
        %v1984 = vpop.f32.mrb[0].mxu0
        %v1985 = vadd.f32 0.0, %v1984
        %v1986 = vpop.f32.mrb[0].mxu0
        %v1987 = vadd.f32 0.0, %v1986
        %v1988 = vpop.f32.mrb[0].mxu0
        %v1989 = vadd.f32 0.0, %v1988
        %1990 = vmatprep.mubr.bf16.mxu0 %v316
        %1991 = vmatmul.mubr.bf16.gmra.mrb[0].mxu0 %v315
        %v1992 = vpop.f32.mrb[0].mxu0
        %v1993 = vadd.f32 0.0, %v1992
        %v1994 = vpop.f32.mrb[0].mxu0
        %v1995 = vadd.f32 0.0, %v1994
        %v1996 = vpop.f32.mrb[0].mxu0
        %v1997 = vadd.f32 0.0, %v1996
        %v1998 = vpop.f32.mrb[0].mxu0
        %v1999 = vadd.f32 0.0, %v1998
        %2000 = vdwg.mxu0
        %2001 = vmatprep.subr.bf16.mxu0 %v1377
        %2002 = vmatpush1.bf16.msra.mxu0 %v1376
        %2003 = vmatprep.subr.bf16.mxu0 %v1386
        %2004 = vmatpush1.bf16.msra.mxu0 %v1385
        %2005 = vmatprep.subr.bf16.mxu0 %v1395
        %2006 = vmatpush1.bf16.msra.mxu0 %v1394
        %2007 = vmatprep.subr.bf16.mxu0 %v1404
        %2008 = vmatpush1.bf16.msra.mxu0 %v1403
        %2009 = vmatprep.subr.bf16.mxu0 %v1413
        %2010 = vmatpush1.bf16.msra.mxu0 %v1412
        %2011 = vmatprep.subr.bf16.mxu0 %v1422
        %2012 = vmatpush1.bf16.msra.mxu0 %v1421
        %2013 = vmatprep.subr.bf16.mxu0 %v1431
        %2014 = vmatpush1.bf16.msra.mxu0 %v1430
        %2015 = vmatprep.subr.bf16.mxu0 %v1440
        %2016 = vmatpush1.bf16.msra.mxu0 %v1439
        %2017 = vmatprep.subr.bf16.mxu0 0
        %2018 = vmatpush1.bf16.msra.mxu0 0
        %2019 = vmatprep.subr.bf16.mxu0 0
        %2020 = vmatpush1.bf16.msra.mxu0 0
        %2021 = vmatprep.subr.bf16.mxu0 0
        %2022 = vmatpush1.bf16.msra.mxu0 0
        %2023 = vmatprep.subr.bf16.mxu0 0
        %2024 = vmatpush1.bf16.msra.mxu0 0
        %2025 = vmatprep.subr.bf16.mxu0 0
        %2026 = vmatpush1.bf16.msra.mxu0 0
        %2027 = vmatprep.subr.bf16.mxu0 0
        %2028 = vmatpush1.bf16.msra.mxu0 0
        %2029 = vmatprep.subr.bf16.mxu0 0
        %2030 = vmatpush1.bf16.msra.mxu0 0
        %2031 = vmatprep.subr.bf16.mxu0 0
        %2032 = vmatpush1.bf16.msra.mxu0 0
        %2033 = vmatprep.mubr.bf16.mxu0 0
        %2034 = vmatmul.mubr.bf16.gmra.mrb[0].mxu0 %v296
        %v2035 = vpop.f32.mrb[0].mxu0
        %v2036 = vadd.f32 %v1923, %v2035
        %v2037 = vpop.f32.mrb[0].mxu0
        %v2038 = vadd.f32 %v1925, %v2037
        %v2039 = vpop.f32.mrb[0].mxu0
        %v2040 = vadd.f32 %v1927, %v2039
        %v2041 = vpop.f32.mrb[0].mxu0
        %v2042 = vadd.f32 %v1929, %v2041
        %2043 = vmatprep.mubr.bf16.mxu0 0
        %2044 = vmatmul.mubr.bf16.gmra.mrb[0].mxu0 %v299
        %v2045 = vpop.f32.mrb[0].mxu0
        %v2046 = vadd.f32 %v1933, %v2045
        %v2047 = vpop.f32.mrb[0].mxu0
        %v2048 = vadd.f32 %v1935, %v2047
        %v2049 = vpop.f32.mrb[0].mxu0
        %v2050 = vadd.f32 %v1937, %v2049
        %v2051 = vpop.f32.mrb[0].mxu0
        %v2052 = vadd.f32 %v1939, %v2051
        %2053 = vmatprep.mubr.bf16.mxu0 0
        %2054 = vmatmul.mubr.bf16.gmra.mrb[0].mxu0 %v302
        %v2055 = vpop.f32.mrb[0].mxu0
        %v2056 = vadd.f32 %v1943, %v2055
        %v2057 = vpop.f32.mrb[0].mxu0
        %v2058 = vadd.f32 %v1945, %v2057
        %v2059 = vpop.f32.mrb[0].mxu0
        %v2060 = vadd.f32 %v1947, %v2059
        %v2061 = vpop.f32.mrb[0].mxu0
        %v2062 = vadd.f32 %v1949, %v2061
        %2063 = vmatprep.mubr.bf16.mxu0 0
        %2064 = vmatmul.mubr.bf16.gmra.mrb[0].mxu0 %v305
        %v2065 = vpop.f32.mrb[0].mxu0
        %v2066 = vadd.f32 %v1953, %v2065
        %v2067 = vpop.f32.mrb[0].mxu0
        %v2068 = vadd.f32 %v1955, %v2067
        %v2069 = vpop.f32.mrb[0].mxu0
        %v2070 = vadd.f32 %v1957, %v2069
        %v2071 = vpop.f32.mrb[0].mxu0
        %v2072 = vadd.f32 %v1959, %v2071
        %2073 = vmatprep.mubr.bf16.mxu0 0
        %2074 = vmatmul.mubr.bf16.gmra.mrb[0].mxu0 %v308
        %v2075 = vpop.f32.mrb[0].mxu0
        %v2076 = vadd.f32 %v1963, %v2075
        %v2077 = vpop.f32.mrb[0].mxu0
        %v2078 = vadd.f32 %v1965, %v2077
        %v2079 = vpop.f32.mrb[0].mxu0
        %v2080 = vadd.f32 %v1967, %v2079
        %v2081 = vpop.f32.mrb[0].mxu0
        %v2082 = vadd.f32 %v1969, %v2081
        %2083 = vmatprep.mubr.bf16.mxu0 0
        %2084 = vmatmul.mubr.bf16.gmra.mrb[0].mxu0 %v311
        %v2085 = vpop.f32.mrb[0].mxu0
        %v2086 = vadd.f32 %v1973, %v2085
        %v2087 = vpop.f32.mrb[0].mxu0
        %v2088 = vadd.f32 %v1975, %v2087
        %v2089 = vpop.f32.mrb[0].mxu0
        %v2090 = vadd.f32 %v1977, %v2089
        %v2091 = vpop.f32.mrb[0].mxu0
        %v2092 = vadd.f32 %v1979, %v2091
        %2093 = vmatprep.mubr.bf16.mxu0 0
        %2094 = vmatmul.mubr.bf16.gmra.mrb[0].mxu0 %v314
        %v2095 = vpop.f32.mrb[0].mxu0
        %v2096 = vadd.f32 %v1983, %v2095
        %v2097 = vpop.f32.mrb[0].mxu0
        %v2098 = vadd.f32 %v1985, %v2097
        %v2099 = vpop.f32.mrb[0].mxu0
        %v2100 = vadd.f32 %v1987, %v2099
        %v2101 = vpop.f32.mrb[0].mxu0
        %v2102 = vadd.f32 %v1989, %v2101
        %2103 = vmatprep.mubr.bf16.mxu0 0
        %2104 = vmatmul.mubr.bf16.gmra.mrb[0].mxu0 %v317
        %v2105 = vpop.f32.mrb[0].mxu0
        %v2106 = vadd.f32 %v1993, %v2105
        %v2107 = vpop.f32.mrb[0].mxu0
        %v2108 = vadd.f32 %v1995, %v2107
        %v2109 = vpop.f32.mrb[0].mxu0
        %v2110 = vadd.f32 %v1997, %v2109
        %v2111 = vpop.f32.mrb[0].mxu0
        %v2112 = vadd.f32 %v1999, %v2111
        %2113 = vdwg.mxu0
        %2114 = vmatprep.subr.bf16.mxu0 %v1235
        %2115 = vmatpush1.bf16.msra.mxu0 %v1234
        %2116 = vmatprep.subr.bf16.mxu0 %v1244
        %2117 = vmatpush1.bf16.msra.mxu0 %v1243
        %2118 = vmatprep.subr.bf16.mxu0 %v1253
        %2119 = vmatpush1.bf16.msra.mxu0 %v1252
        %2120 = vmatprep.subr.bf16.mxu0 %v1262
        %2121 = vmatpush1.bf16.msra.mxu0 %v1261
        %2122 = vmatprep.subr.bf16.mxu0 %v1271
        %2123 = vmatpush1.bf16.msra.mxu0 %v1270
        %2124 = vmatprep.subr.bf16.mxu0 %v1280
        %2125 = vmatpush1.bf16.msra.mxu0 %v1279
        %2126 = vmatprep.subr.bf16.mxu0 %v1289
        %2127 = vmatpush1.bf16.msra.mxu0 %v1288
        %2128 = vmatprep.subr.bf16.mxu0 %v1298
        %2129 = vmatpush1.bf16.msra.mxu0 %v1297
        %2130 = vmatprep.subr.bf16.mxu0 %v1307
        %2131 = vmatpush1.bf16.msra.mxu0 %v1306
        %2132 = vmatprep.subr.bf16.mxu0 %v1316
        %2133 = vmatpush1.bf16.msra.mxu0 %v1315
        %2134 = vmatprep.subr.bf16.mxu0 %v1325
        %2135 = vmatpush1.bf16.msra.mxu0 %v1324
        %2136 = vmatprep.subr.bf16.mxu0 %v1334
        %2137 = vmatpush1.bf16.msra.mxu0 %v1333
        %2138 = vmatprep.subr.bf16.mxu0 %v1343
        %2139 = vmatpush1.bf16.msra.mxu0 %v1342
        %2140 = vmatprep.subr.bf16.mxu0 %v1352
        %2141 = vmatpush1.bf16.msra.mxu0 %v1351
        %2142 = vmatprep.subr.bf16.mxu0 %v1361
        %2143 = vmatpush1.bf16.msra.mxu0 %v1360
        %2144 = vmatprep.subr.bf16.mxu0 %v1370
        %2145 = vmatpush1.bf16.msra.mxu0 %v1369
        %2146 = vmatprep.mubr.bf16.mxu0 %v295
        %2147 = vmatmul.mubr.bf16.gmra.mrb[0].mxu0 %v294
        %v2148 = vpop.f32.mrb[0].mxu0
        %v2149 = vadd.f32 0.0, %v2148
        %v2150 = vpop.f32.mrb[0].mxu0
        %v2151 = vadd.f32 0.0, %v2150
        %v2152 = vpop.f32.mrb[0].mxu0
        %v2153 = vadd.f32 0.0, %v2152
        %v2154 = vpop.f32.mrb[0].mxu0
        %v2155 = vadd.f32 0.0, %v2154
        %2156 = vmatprep.mubr.bf16.mxu0 %v298
        %2157 = vmatmul.mubr.bf16.gmra.mrb[0].mxu0 %v297
        %v2158 = vpop.f32.mrb[0].mxu0
        %v2159 = vadd.f32 0.0, %v2158
        %v2160 = vpop.f32.mrb[0].mxu0
        %v2161 = vadd.f32 0.0, %v2160
        %v2162 = vpop.f32.mrb[0].mxu0
        %v2163 = vadd.f32 0.0, %v2162
        %v2164 = vpop.f32.mrb[0].mxu0
        %v2165 = vadd.f32 0.0, %v2164
        %2166 = vmatprep.mubr.bf16.mxu0 %v301
        %2167 = vmatmul.mubr.bf16.gmra.mrb[0].mxu0 %v300
        %v2168 = vpop.f32.mrb[0].mxu0
        %v2169 = vadd.f32 0.0, %v2168
        %v2170 = vpop.f32.mrb[0].mxu0
        %v2171 = vadd.f32 0.0, %v2170
        %v2172 = vpop.f32.mrb[0].mxu0
        %v2173 = vadd.f32 0.0, %v2172
        %v2174 = vpop.f32.mrb[0].mxu0
        %v2175 = vadd.f32 0.0, %v2174
        %2176 = vmatprep.mubr.bf16.mxu0 %v304
        %2177 = vmatmul.mubr.bf16.gmra.mrb[0].mxu0 %v303
        %v2178 = vpop.f32.mrb[0].mxu0
        %v2179 = vadd.f32 0.0, %v2178
        %v2180 = vpop.f32.mrb[0].mxu0
        %v2181 = vadd.f32 0.0, %v2180
        %v2182 = vpop.f32.mrb[0].mxu0
        %v2183 = vadd.f32 0.0, %v2182
        %v2184 = vpop.f32.mrb[0].mxu0
        %v2185 = vadd.f32 0.0, %v2184
        %2186 = vmatprep.mubr.bf16.mxu0 %v307
        %2187 = vmatmul.mubr.bf16.gmra.mrb[0].mxu0 %v306
        %v2188 = vpop.f32.mrb[0].mxu0
        %v2189 = vadd.f32 0.0, %v2188
        %v2190 = vpop.f32.mrb[0].mxu0
        %v2191 = vadd.f32 0.0, %v2190
        %v2192 = vpop.f32.mrb[0].mxu0
        %v2193 = vadd.f32 0.0, %v2192
        %v2194 = vpop.f32.mrb[0].mxu0
        %v2195 = vadd.f32 0.0, %v2194
        %2196 = vmatprep.mubr.bf16.mxu0 %v310
        %2197 = vmatmul.mubr.bf16.gmra.mrb[0].mxu0 %v309
        %v2198 = vpop.f32.mrb[0].mxu0
        %v2199 = vadd.f32 0.0, %v2198
        %v2200 = vpop.f32.mrb[0].mxu0
        %v2201 = vadd.f32 0.0, %v2200
        %v2202 = vpop.f32.mrb[0].mxu0
        %v2203 = vadd.f32 0.0, %v2202
        %v2204 = vpop.f32.mrb[0].mxu0
        %v2205 = vadd.f32 0.0, %v2204
        %2206 = vmatprep.mubr.bf16.mxu0 %v313
        %2207 = vmatmul.mubr.bf16.gmra.mrb[0].mxu0 %v312
        %v2208 = vpop.f32.mrb[0].mxu0
        %v2209 = vadd.f32 0.0, %v2208
        %v2210 = vpop.f32.mrb[0].mxu0
        %v2211 = vadd.f32 0.0, %v2210
        %v2212 = vpop.f32.mrb[0].mxu0
        %v2213 = vadd.f32 0.0, %v2212
        %v2214 = vpop.f32.mrb[0].mxu0
        %v2215 = vadd.f32 0.0, %v2214
        %2216 = vmatprep.mubr.bf16.mxu0 %v316
        %2217 = vmatmul.mubr.bf16.gmra.mrb[0].mxu0 %v315
        %v2218 = vpop.f32.mrb[0].mxu0
        %v2219 = vadd.f32 0.0, %v2218
        %v2220 = vpop.f32.mrb[0].mxu0
        %v2221 = vadd.f32 0.0, %v2220
        %v2222 = vpop.f32.mrb[0].mxu0
        %v2223 = vadd.f32 0.0, %v2222
        %v2224 = vpop.f32.mrb[0].mxu0
        %v2225 = vadd.f32 0.0, %v2224
        %2226 = vdwg.mxu0
        %2227 = vmatprep.subr.bf16.mxu0 %v1379
        %2228 = vmatpush1.bf16.msra.mxu0 %v1378
        %2229 = vmatprep.subr.bf16.mxu0 %v1388
        %2230 = vmatpush1.bf16.msra.mxu0 %v1387
        %2231 = vmatprep.subr.bf16.mxu0 %v1397
        %2232 = vmatpush1.bf16.msra.mxu0 %v1396
        %2233 = vmatprep.subr.bf16.mxu0 %v1406
        %2234 = vmatpush1.bf16.msra.mxu0 %v1405
        %2235 = vmatprep.subr.bf16.mxu0 %v1415
        %2236 = vmatpush1.bf16.msra.mxu0 %v1414
        %2237 = vmatprep.subr.bf16.mxu0 %v1424
        %2238 = vmatpush1.bf16.msra.mxu0 %v1423
        %2239 = vmatprep.subr.bf16.mxu0 %v1433
        %2240 = vmatpush1.bf16.msra.mxu0 %v1432
        %2241 = vmatprep.subr.bf16.mxu0 %v1442
        %2242 = vmatpush1.bf16.msra.mxu0 %v1441
        %2243 = vmatprep.subr.bf16.mxu0 0
        %2244 = vmatpush1.bf16.msra.mxu0 0
        %2245 = vmatprep.subr.bf16.mxu0 0
        %2246 = vmatpush1.bf16.msra.mxu0 0
        %2247 = vmatprep.subr.bf16.mxu0 0
        %2248 = vmatpush1.bf16.msra.mxu0 0
        %2249 = vmatprep.subr.bf16.mxu0 0
        %2250 = vmatpush1.bf16.msra.mxu0 0
        %2251 = vmatprep.subr.bf16.mxu0 0
        %2252 = vmatpush1.bf16.msra.mxu0 0
        %2253 = vmatprep.subr.bf16.mxu0 0
        %2254 = vmatpush1.bf16.msra.mxu0 0
        %2255 = vmatprep.subr.bf16.mxu0 0
        %2256 = vmatpush1.bf16.msra.mxu0 0
        %2257 = vmatprep.subr.bf16.mxu0 0
        %2258 = vmatpush1.bf16.msra.mxu0 0
        %2259 = vmatprep.mubr.bf16.mxu0 0
        %2260 = vmatmul.mubr.bf16.gmra.mrb[0].mxu0 %v296
        %v2261 = vpop.f32.mrb[0].mxu0
        %v2262 = vadd.f32 %v2149, %v2261
        %v2263 = vpop.f32.mrb[0].mxu0
        %v2264 = vadd.f32 %v2151, %v2263
        %v2265 = vpop.f32.mrb[0].mxu0
        %v2266 = vadd.f32 %v2153, %v2265
        %v2267 = vpop.f32.mrb[0].mxu0
        %v2268 = vadd.f32 %v2155, %v2267
        %2269 = vmatprep.mubr.bf16.mxu0 0
        %2270 = vmatmul.mubr.bf16.gmra.mrb[0].mxu0 %v299
        %v2271 = vpop.f32.mrb[0].mxu0
        %v2272 = vadd.f32 %v2159, %v2271
        %v2273 = vpop.f32.mrb[0].mxu0
        %v2274 = vadd.f32 %v2161, %v2273
        %v2275 = vpop.f32.mrb[0].mxu0
        %v2276 = vadd.f32 %v2163, %v2275
        %v2277 = vpop.f32.mrb[0].mxu0
        %v2278 = vadd.f32 %v2165, %v2277
        %2279 = vmatprep.mubr.bf16.mxu0 0
        %2280 = vmatmul.mubr.bf16.gmra.mrb[0].mxu0 %v302
        %v2281 = vpop.f32.mrb[0].mxu0
        %v2282 = vadd.f32 %v2169, %v2281
        %v2283 = vpop.f32.mrb[0].mxu0
        %v2284 = vadd.f32 %v2171, %v2283
        %v2285 = vpop.f32.mrb[0].mxu0
        %v2286 = vadd.f32 %v2173, %v2285
        %v2287 = vpop.f32.mrb[0].mxu0
        %v2288 = vadd.f32 %v2175, %v2287
        %2289 = vmatprep.mubr.bf16.mxu0 0
        %2290 = vmatmul.mubr.bf16.gmra.mrb[0].mxu0 %v305
        %v2291 = vpop.f32.mrb[0].mxu0
        %v2292 = vadd.f32 %v2179, %v2291
        %v2293 = vpop.f32.mrb[0].mxu0
        %v2294 = vadd.f32 %v2181, %v2293
        %v2295 = vpop.f32.mrb[0].mxu0
        %v2296 = vadd.f32 %v2183, %v2295
        %v2297 = vpop.f32.mrb[0].mxu0
        %v2298 = vadd.f32 %v2185, %v2297
        %2299 = vmatprep.mubr.bf16.mxu0 0
        %2300 = vmatmul.mubr.bf16.gmra.mrb[0].mxu0 %v308
        %v2301 = vpop.f32.mrb[0].mxu0
        %v2302 = vadd.f32 %v2189, %v2301
        %v2303 = vpop.f32.mrb[0].mxu0
        %v2304 = vadd.f32 %v2191, %v2303
        %v2305 = vpop.f32.mrb[0].mxu0
        %v2306 = vadd.f32 %v2193, %v2305
        %v2307 = vpop.f32.mrb[0].mxu0
        %v2308 = vadd.f32 %v2195, %v2307
        %2309 = vmatprep.mubr.bf16.mxu0 0
        %2310 = vmatmul.mubr.bf16.gmra.mrb[0].mxu0 %v311
        %v2311 = vpop.f32.mrb[0].mxu0
        %v2312 = vadd.f32 %v2199, %v2311
        %v2313 = vpop.f32.mrb[0].mxu0
        %v2314 = vadd.f32 %v2201, %v2313
        %v2315 = vpop.f32.mrb[0].mxu0
        %v2316 = vadd.f32 %v2203, %v2315
        %v2317 = vpop.f32.mrb[0].mxu0
        %v2318 = vadd.f32 %v2205, %v2317
        %2319 = vmatprep.mubr.bf16.mxu0 0
        %2320 = vmatmul.mubr.bf16.gmra.mrb[0].mxu0 %v314
        %v2321 = vpop.f32.mrb[0].mxu0
        %v2322 = vadd.f32 %v2209, %v2321
        %v2323 = vpop.f32.mrb[0].mxu0
        %v2324 = vadd.f32 %v2211, %v2323
        %v2325 = vpop.f32.mrb[0].mxu0
        %v2326 = vadd.f32 %v2213, %v2325
        %v2327 = vpop.f32.mrb[0].mxu0
        %v2328 = vadd.f32 %v2215, %v2327
        %2329 = vmatprep.mubr.bf16.mxu0 0
        %2330 = vmatmul.mubr.bf16.gmra.mrb[0].mxu0 %v317
        %v2331 = vpop.f32.mrb[0].mxu0
        %v2332 = vadd.f32 %v2219, %v2331
        %v2333 = vpop.f32.mrb[0].mxu0
        %v2334 = vadd.f32 %v2221, %v2333
        %v2335 = vpop.f32.mrb[0].mxu0
        %v2336 = vadd.f32 %v2223, %v2335
        %v2337 = vpop.f32.mrb[0].mxu0
        %v2338 = vadd.f32 %v2225, %v2337
        %2339 = vdwg.mxu0
        %2340 = vmatprep.subr.bf16.mxu0 %v1237
        %2341 = vmatpush1.bf16.msra.mxu0 %v1236
        %2342 = vmatprep.subr.bf16.mxu0 %v1246
        %2343 = vmatpush1.bf16.msra.mxu0 %v1245
        %2344 = vmatprep.subr.bf16.mxu0 %v1255
        %2345 = vmatpush1.bf16.msra.mxu0 %v1254
        %2346 = vmatprep.subr.bf16.mxu0 %v1264
        %2347 = vmatpush1.bf16.msra.mxu0 %v1263
        %2348 = vmatprep.subr.bf16.mxu0 %v1273
        %2349 = vmatpush1.bf16.msra.mxu0 %v1272
        %2350 = vmatprep.subr.bf16.mxu0 %v1282
        %2351 = vmatpush1.bf16.msra.mxu0 %v1281
        %2352 = vmatprep.subr.bf16.mxu0 %v1291
        %2353 = vmatpush1.bf16.msra.mxu0 %v1290
        %2354 = vmatprep.subr.bf16.mxu0 %v1300
        %2355 = vmatpush1.bf16.msra.mxu0 %v1299
        %2356 = vmatprep.subr.bf16.mxu0 %v1309
        %2357 = vmatpush1.bf16.msra.mxu0 %v1308
        %2358 = vmatprep.subr.bf16.mxu0 %v1318
        %2359 = vmatpush1.bf16.msra.mxu0 %v1317
        %2360 = vmatprep.subr.bf16.mxu0 %v1327
        %2361 = vmatpush1.bf16.msra.mxu0 %v1326
        %2362 = vmatprep.subr.bf16.mxu0 %v1336
        %2363 = vmatpush1.bf16.msra.mxu0 %v1335
        %2364 = vmatprep.subr.bf16.mxu0 %v1345
        %2365 = vmatpush1.bf16.msra.mxu0 %v1344
        %2366 = vmatprep.subr.bf16.mxu0 %v1354
        %2367 = vmatpush1.bf16.msra.mxu0 %v1353
        %2368 = vmatprep.subr.bf16.mxu0 %v1363
        %2369 = vmatpush1.bf16.msra.mxu0 %v1362
        %2370 = vmatprep.subr.bf16.mxu0 %v1372
        %2371 = vmatpush1.bf16.msra.mxu0 %v1371
        %2372 = vmatprep.mubr.bf16.mxu0 %v295
        %2373 = vmatmul.mubr.bf16.gmra.mrb[0].mxu0 %v294
        %v2374 = vpop.f32.mrb[0].mxu0
        %v2375 = vadd.f32 0.0, %v2374
        %v2376 = vpop.f32.mrb[0].mxu0
        %v2377 = vadd.f32 0.0, %v2376
        %v2378 = vpop.f32.mrb[0].mxu0
        %v2379 = vadd.f32 0.0, %v2378
        %v2380 = vpop.f32.mrb[0].mxu0
        %v2381 = vadd.f32 0.0, %v2380
        %2382 = vmatprep.mubr.bf16.mxu0 %v298
        %2383 = vmatmul.mubr.bf16.gmra.mrb[0].mxu0 %v297
        %v2384 = vpop.f32.mrb[0].mxu0
        %v2385 = vadd.f32 0.0, %v2384
        %v2386 = vpop.f32.mrb[0].mxu0
        %v2387 = vadd.f32 0.0, %v2386
        %v2388 = vpop.f32.mrb[0].mxu0
        %v2389 = vadd.f32 0.0, %v2388
        %v2390 = vpop.f32.mrb[0].mxu0
        %v2391 = vadd.f32 0.0, %v2390
        %2392 = vmatprep.mubr.bf16.mxu0 %v301
        %2393 = vmatmul.mubr.bf16.gmra.mrb[0].mxu0 %v300
        %v2394 = vpop.f32.mrb[0].mxu0
        %v2395 = vadd.f32 0.0, %v2394
        %v2396 = vpop.f32.mrb[0].mxu0
        %v2397 = vadd.f32 0.0, %v2396
        %v2398 = vpop.f32.mrb[0].mxu0
        %v2399 = vadd.f32 0.0, %v2398
        %v2400 = vpop.f32.mrb[0].mxu0
        %v2401 = vadd.f32 0.0, %v2400
        %2402 = vmatprep.mubr.bf16.mxu0 %v304
        %2403 = vmatmul.mubr.bf16.gmra.mrb[0].mxu0 %v303
        %v2404 = vpop.f32.mrb[0].mxu0
        %v2405 = vadd.f32 0.0, %v2404
        %v2406 = vpop.f32.mrb[0].mxu0
        %v2407 = vadd.f32 0.0, %v2406
        %v2408 = vpop.f32.mrb[0].mxu0
        %v2409 = vadd.f32 0.0, %v2408
        %v2410 = vpop.f32.mrb[0].mxu0
        %v2411 = vadd.f32 0.0, %v2410
        %2412 = vmatprep.mubr.bf16.mxu0 %v307
        %2413 = vmatmul.mubr.bf16.gmra.mrb[0].mxu0 %v306
        %v2414 = vpop.f32.mrb[0].mxu0
        %v2415 = vadd.f32 0.0, %v2414
        %v2416 = vpop.f32.mrb[0].mxu0
        %v2417 = vadd.f32 0.0, %v2416
        %v2418 = vpop.f32.mrb[0].mxu0
        %v2419 = vadd.f32 0.0, %v2418
        %v2420 = vpop.f32.mrb[0].mxu0
        %v2421 = vadd.f32 0.0, %v2420
        %2422 = vmatprep.mubr.bf16.mxu0 %v310
        %2423 = vmatmul.mubr.bf16.gmra.mrb[0].mxu0 %v309
        %v2424 = vpop.f32.mrb[0].mxu0
        %v2425 = vadd.f32 0.0, %v2424
        %v2426 = vpop.f32.mrb[0].mxu0
        %v2427 = vadd.f32 0.0, %v2426
        %v2428 = vpop.f32.mrb[0].mxu0
        %v2429 = vadd.f32 0.0, %v2428
        %v2430 = vpop.f32.mrb[0].mxu0
        %v2431 = vadd.f32 0.0, %v2430
        %2432 = vmatprep.mubr.bf16.mxu0 %v313
        %2433 = vmatmul.mubr.bf16.gmra.mrb[0].mxu0 %v312
        %v2434 = vpop.f32.mrb[0].mxu0
        %v2435 = vadd.f32 0.0, %v2434
        %v2436 = vpop.f32.mrb[0].mxu0
        %v2437 = vadd.f32 0.0, %v2436
        %v2438 = vpop.f32.mrb[0].mxu0
        %v2439 = vadd.f32 0.0, %v2438
        %v2440 = vpop.f32.mrb[0].mxu0
        %v2441 = vadd.f32 0.0, %v2440
        %2442 = vmatprep.mubr.bf16.mxu0 %v316
        %2443 = vmatmul.mubr.bf16.gmra.mrb[0].mxu0 %v315
        %v2444 = vpop.f32.mrb[0].mxu0
        %v2445 = vadd.f32 0.0, %v2444
        %v2446 = vpop.f32.mrb[0].mxu0
        %v2447 = vadd.f32 0.0, %v2446
        %v2448 = vpop.f32.mrb[0].mxu0
        %v2449 = vadd.f32 0.0, %v2448
        %v2450 = vpop.f32.mrb[0].mxu0
        %v2451 = vadd.f32 0.0, %v2450
        %2452 = vdwg.mxu0
        %2453 = vmatprep.subr.bf16.mxu0 %v1381
        %2454 = vmatpush1.bf16.msra.mxu0 %v1380
        %2455 = vmatprep.subr.bf16.mxu0 %v1390
        %2456 = vmatpush1.bf16.msra.mxu0 %v1389
        %2457 = vmatprep.subr.bf16.mxu0 %v1399
        %2458 = vmatpush1.bf16.msra.mxu0 %v1398
        %2459 = vmatprep.subr.bf16.mxu0 %v1408
        %2460 = vmatpush1.bf16.msra.mxu0 %v1407
        %2461 = vmatprep.subr.bf16.mxu0 %v1417
        %2462 = vmatpush1.bf16.msra.mxu0 %v1416
        %2463 = vmatprep.subr.bf16.mxu0 %v1426
        %2464 = vmatpush1.bf16.msra.mxu0 %v1425
        %2465 = vmatprep.subr.bf16.mxu0 %v1435
        %2466 = vmatpush1.bf16.msra.mxu0 %v1434
        %2467 = vmatprep.subr.bf16.mxu0 %v1444
        %2468 = vmatpush1.bf16.msra.mxu0 %v1443
        %2469 = vmatprep.subr.bf16.mxu0 0
        %2470 = vmatpush1.bf16.msra.mxu0 0
        %2471 = vmatprep.subr.bf16.mxu0 0
        %2472 = vmatpush1.bf16.msra.mxu0 0
        %2473 = vmatprep.subr.bf16.mxu0 0
        %2474 = vmatpush1.bf16.msra.mxu0 0
        %2475 = vmatprep.subr.bf16.mxu0 0
        %2476 = vmatpush1.bf16.msra.mxu0 0
        %2477 = vmatprep.subr.bf16.mxu0 0
        %2478 = vmatpush1.bf16.msra.mxu0 0
        %2479 = vmatprep.subr.bf16.mxu0 0
        %2480 = vmatpush1.bf16.msra.mxu0 0
        %2481 = vmatprep.subr.bf16.mxu0 0
        %2482 = vmatpush1.bf16.msra.mxu0 0
        %2483 = vmatprep.subr.bf16.mxu0 0
        %2484 = vmatpush1.bf16.msra.mxu0 0
        %2485 = vmatprep.mubr.bf16.mxu0 0
        %2486 = vmatmul.mubr.bf16.gmra.mrb[0].mxu0 %v296
        %v2487 = vpop.f32.mrb[0].mxu0
        %v2488 = vadd.f32 %v2375, %v2487
        %v2489 = vpop.f32.mrb[0].mxu0
        %v2490 = vadd.f32 %v2377, %v2489
        %v2491 = vpop.f32.mrb[0].mxu0
        %v2492 = vadd.f32 %v2379, %v2491
        %v2493 = vpop.f32.mrb[0].mxu0
        %v2494 = vadd.f32 %v2381, %v2493
        %2495 = vmatprep.mubr.bf16.mxu0 0
        %2496 = vmatmul.mubr.bf16.gmra.mrb[0].mxu0 %v299
        %v2497 = vpop.f32.mrb[0].mxu0
        %v2498 = vadd.f32 %v2385, %v2497
        %v2499 = vpop.f32.mrb[0].mxu0
        %v2500 = vadd.f32 %v2387, %v2499
        %v2501 = vpop.f32.mrb[0].mxu0
        %v2502 = vadd.f32 %v2389, %v2501
        %v2503 = vpop.f32.mrb[0].mxu0
        %v2504 = vadd.f32 %v2391, %v2503
        %2505 = vmatprep.mubr.bf16.mxu0 0
        %2506 = vmatmul.mubr.bf16.gmra.mrb[0].mxu0 %v302
        %v2507 = vpop.f32.mrb[0].mxu0
        %v2508 = vadd.f32 %v2395, %v2507
        %v2509 = vpop.f32.mrb[0].mxu0
        %v2510 = vadd.f32 %v2397, %v2509
        %v2511 = vpop.f32.mrb[0].mxu0
        %v2512 = vadd.f32 %v2399, %v2511
        %v2513 = vpop.f32.mrb[0].mxu0
        %v2514 = vadd.f32 %v2401, %v2513
        %2515 = vmatprep.mubr.bf16.mxu0 0
        %2516 = vmatmul.mubr.bf16.gmra.mrb[0].mxu0 %v305
        %v2517 = vpop.f32.mrb[0].mxu0
        %v2518 = vadd.f32 %v2405, %v2517
        %v2519 = vpop.f32.mrb[0].mxu0
        %v2520 = vadd.f32 %v2407, %v2519
        %v2521 = vpop.f32.mrb[0].mxu0
        %v2522 = vadd.f32 %v2409, %v2521
        %v2523 = vpop.f32.mrb[0].mxu0
        %v2524 = vadd.f32 %v2411, %v2523
        %2525 = vmatprep.mubr.bf16.mxu0 0
        %2526 = vmatmul.mubr.bf16.gmra.mrb[0].mxu0 %v308
        %v2527 = vpop.f32.mrb[0].mxu0
        %v2528 = vadd.f32 %v2415, %v2527
        %v2529 = vpop.f32.mrb[0].mxu0
        %v2530 = vadd.f32 %v2417, %v2529
        %v2531 = vpop.f32.mrb[0].mxu0
        %v2532 = vadd.f32 %v2419, %v2531
        %v2533 = vpop.f32.mrb[0].mxu0
        %v2534 = vadd.f32 %v2421, %v2533
        %2535 = vmatprep.mubr.bf16.mxu0 0
        %2536 = vmatmul.mubr.bf16.gmra.mrb[0].mxu0 %v311
        %v2537 = vpop.f32.mrb[0].mxu0
        %v2538 = vadd.f32 %v2425, %v2537
        %v2539 = vpop.f32.mrb[0].mxu0
        %v2540 = vadd.f32 %v2427, %v2539
        %v2541 = vpop.f32.mrb[0].mxu0
        %v2542 = vadd.f32 %v2429, %v2541
        %v2543 = vpop.f32.mrb[0].mxu0
        %v2544 = vadd.f32 %v2431, %v2543
        %2545 = vmatprep.mubr.bf16.mxu0 0
        %2546 = vmatmul.mubr.bf16.gmra.mrb[0].mxu0 %v314
        %v2547 = vpop.f32.mrb[0].mxu0
        %v2548 = vadd.f32 %v2435, %v2547
        %v2549 = vpop.f32.mrb[0].mxu0
        %v2550 = vadd.f32 %v2437, %v2549
        %v2551 = vpop.f32.mrb[0].mxu0
        %v2552 = vadd.f32 %v2439, %v2551
        %v2553 = vpop.f32.mrb[0].mxu0
        %v2554 = vadd.f32 %v2441, %v2553
        %2555 = vmatprep.mubr.bf16.mxu0 0
        %2556 = vmatmul.mubr.bf16.gmra.mrb[0].mxu0 %v317
        %v2557 = vpop.f32.mrb[0].mxu0
        %v2558 = vadd.f32 %v2445, %v2557
        %v2559 = vpop.f32.mrb[0].mxu0
        %v2560 = vadd.f32 %v2447, %v2559
        %v2561 = vpop.f32.mrb[0].mxu0
        %v2562 = vadd.f32 %v2449, %v2561
        %v2563 = vpop.f32.mrb[0].mxu0
        %v2564 = vadd.f32 %v2451, %v2563
        %2565 = vdwg.mxu0
        %2566 = vmatprep.subr.bf16.mxu0 0
        %2567 = vmatpush1.bf16.msra.mxu0 %v1238
        %2568 = vmatprep.subr.bf16.mxu0 0
        %2569 = vmatpush1.bf16.msra.mxu0 %v1247
        %2570 = vmatprep.subr.bf16.mxu0 0
        %2571 = vmatpush1.bf16.msra.mxu0 %v1256
        %2572 = vmatprep.subr.bf16.mxu0 0
        %2573 = vmatpush1.bf16.msra.mxu0 %v1265
        %2574 = vmatprep.subr.bf16.mxu0 0
        %2575 = vmatpush1.bf16.msra.mxu0 %v1274
        %2576 = vmatprep.subr.bf16.mxu0 0
        %2577 = vmatpush1.bf16.msra.mxu0 %v1283
        %2578 = vmatprep.subr.bf16.mxu0 0
        %2579 = vmatpush1.bf16.msra.mxu0 %v1292
        %2580 = vmatprep.subr.bf16.mxu0 0
        %2581 = vmatpush1.bf16.msra.mxu0 %v1301
        %2582 = vmatprep.subr.bf16.mxu0 0
        %2583 = vmatpush1.bf16.msra.mxu0 %v1310
        %2584 = vmatprep.subr.bf16.mxu0 0
        %2585 = vmatpush1.bf16.msra.mxu0 %v1319
        %2586 = vmatprep.subr.bf16.mxu0 0
        %2587 = vmatpush1.bf16.msra.mxu0 %v1328
        %2588 = vmatprep.subr.bf16.mxu0 0
        %2589 = vmatpush1.bf16.msra.mxu0 %v1337
        %2590 = vmatprep.subr.bf16.mxu0 0
        %2591 = vmatpush1.bf16.msra.mxu0 %v1346
        %2592 = vmatprep.subr.bf16.mxu0 0
        %2593 = vmatpush1.bf16.msra.mxu0 %v1355
        %2594 = vmatprep.subr.bf16.mxu0 0
        %2595 = vmatpush1.bf16.msra.mxu0 %v1364
        %2596 = vmatprep.subr.bf16.mxu0 0
        %2597 = vmatpush1.bf16.msra.mxu0 %v1373
        %2598 = vmatprep.mubr.bf16.mxu0 %v295
        %2599 = vmatmul.mubr.bf16.gmra.mrb[0].mxu0 %v294
        %v2600 = vpop.f32.mrb[0].mxu0
        %v2601 = vadd.f32 0.0, %v2600
        %v2602 = vpop.f32.mrb[0].mxu0
        %v2603 = vpop.f32.mrb[0].mxu0
        %v2604 = vadd.f32 0.0, %v2603
        %v2605 = vpop.f32.mrb[0].mxu0
        %2606 = vmatprep.mubr.bf16.mxu0 %v298
        %2607 = vmatmul.mubr.bf16.gmra.mrb[0].mxu0 %v297
        %v2608 = vpop.f32.mrb[0].mxu0
        %v2609 = vadd.f32 0.0, %v2608
        %v2610 = vpop.f32.mrb[0].mxu0
        %v2611 = vpop.f32.mrb[0].mxu0
        %v2612 = vadd.f32 0.0, %v2611
        %v2613 = vpop.f32.mrb[0].mxu0
        %2614 = vmatprep.mubr.bf16.mxu0 %v301
        %2615 = vmatmul.mubr.bf16.gmra.mrb[0].mxu0 %v300
        %v2616 = vpop.f32.mrb[0].mxu0
        %v2617 = vadd.f32 0.0, %v2616
        %v2618 = vpop.f32.mrb[0].mxu0
        %v2619 = vpop.f32.mrb[0].mxu0
        %v2620 = vadd.f32 0.0, %v2619
        %v2621 = vpop.f32.mrb[0].mxu0
        %2622 = vmatprep.mubr.bf16.mxu0 %v304
        %2623 = vmatmul.mubr.bf16.gmra.mrb[0].mxu0 %v303
        %v2624 = vpop.f32.mrb[0].mxu0
        %v2625 = vadd.f32 0.0, %v2624
        %v2626 = vpop.f32.mrb[0].mxu0
        %v2627 = vpop.f32.mrb[0].mxu0
        %v2628 = vadd.f32 0.0, %v2627
        %v2629 = vpop.f32.mrb[0].mxu0
        %2630 = vmatprep.mubr.bf16.mxu0 %v307
        %2631 = vmatmul.mubr.bf16.gmra.mrb[0].mxu0 %v306
        %v2632 = vpop.f32.mrb[0].mxu0
        %v2633 = vadd.f32 0.0, %v2632
        %v2634 = vpop.f32.mrb[0].mxu0
        %v2635 = vpop.f32.mrb[0].mxu0
        %v2636 = vadd.f32 0.0, %v2635
        %v2637 = vpop.f32.mrb[0].mxu0
        %2638 = vmatprep.mubr.bf16.mxu0 %v310
        %2639 = vmatmul.mubr.bf16.gmra.mrb[0].mxu0 %v309
        %v2640 = vpop.f32.mrb[0].mxu0
        %v2641 = vadd.f32 0.0, %v2640
        %v2642 = vpop.f32.mrb[0].mxu0
        %v2643 = vpop.f32.mrb[0].mxu0
        %v2644 = vadd.f32 0.0, %v2643
        %v2645 = vpop.f32.mrb[0].mxu0
        %2646 = vmatprep.mubr.bf16.mxu0 %v313
        %2647 = vmatmul.mubr.bf16.gmra.mrb[0].mxu0 %v312
        %v2648 = vpop.f32.mrb[0].mxu0
        %v2649 = vadd.f32 0.0, %v2648
        %v2650 = vpop.f32.mrb[0].mxu0
        %v2651 = vpop.f32.mrb[0].mxu0
        %v2652 = vadd.f32 0.0, %v2651
        %v2653 = vpop.f32.mrb[0].mxu0
        %2654 = vmatprep.mubr.bf16.mxu0 %v316
        %2655 = vmatmul.mubr.bf16.gmra.mrb[0].mxu0 %v315
        %v2656 = vpop.f32.mrb[0].mxu0
        %v2657 = vadd.f32 0.0, %v2656
        %v2658 = vpop.f32.mrb[0].mxu0
        %v2659 = vpop.f32.mrb[0].mxu0
        %v2660 = vadd.f32 0.0, %v2659
        %v2661 = vpop.f32.mrb[0].mxu0
        %2662 = vdwg.mxu0
        %2663 = vmatprep.subr.bf16.mxu0 0
        %2664 = vmatpush1.bf16.msra.mxu0 %v1382
        %2665 = vmatprep.subr.bf16.mxu0 0
        %2666 = vmatpush1.bf16.msra.mxu0 %v1391
        %2667 = vmatprep.subr.bf16.mxu0 0
        %2668 = vmatpush1.bf16.msra.mxu0 %v1400
        %2669 = vmatprep.subr.bf16.mxu0 0
        %2670 = vmatpush1.bf16.msra.mxu0 %v1409
        %2671 = vmatprep.subr.bf16.mxu0 0
        %2672 = vmatpush1.bf16.msra.mxu0 %v1418
        %2673 = vmatprep.subr.bf16.mxu0 0
        %2674 = vmatpush1.bf16.msra.mxu0 %v1427
        %2675 = vmatprep.subr.bf16.mxu0 0
        %2676 = vmatpush1.bf16.msra.mxu0 %v1436
        %2677 = vmatprep.subr.bf16.mxu0 0
        %2678 = vmatpush1.bf16.msra.mxu0 %v1445
        %2679 = vmatprep.subr.bf16.mxu0 0
        %2680 = vmatpush1.bf16.msra.mxu0 0
        %2681 = vmatprep.subr.bf16.mxu0 0
        %2682 = vmatpush1.bf16.msra.mxu0 0
        %2683 = vmatprep.subr.bf16.mxu0 0
        %2684 = vmatpush1.bf16.msra.mxu0 0
        %2685 = vmatprep.subr.bf16.mxu0 0
        %2686 = vmatpush1.bf16.msra.mxu0 0
        %2687 = vmatprep.subr.bf16.mxu0 0
        %2688 = vmatpush1.bf16.msra.mxu0 0
        %2689 = vmatprep.subr.bf16.mxu0 0
        %2690 = vmatpush1.bf16.msra.mxu0 0
        %2691 = vmatprep.subr.bf16.mxu0 0
        %2692 = vmatpush1.bf16.msra.mxu0 0
        %2693 = vmatprep.subr.bf16.mxu0 0
        %2694 = vmatpush1.bf16.msra.mxu0 0
        %2695 = vmatprep.mubr.bf16.mxu0 0
        %2696 = vmatmul.mubr.bf16.gmra.mrb[0].mxu0 %v296
        %v2697 = vpop.f32.mrb[0].mxu0
        %v2698 = vadd.f32 %v2601, %v2697
        %v2699 = vpop.f32.mrb[0].mxu0
        %v2700 = vpop.f32.mrb[0].mxu0
        %v2701 = vadd.f32 %v2604, %v2700
        %v2702 = vpop.f32.mrb[0].mxu0
        %2703 = vmatprep.mubr.bf16.mxu0 0
        %2704 = vmatmul.mubr.bf16.gmra.mrb[0].mxu0 %v299
        %v2705 = vpop.f32.mrb[0].mxu0
        %v2706 = vadd.f32 %v2609, %v2705
        %v2707 = vpop.f32.mrb[0].mxu0
        %v2708 = vpop.f32.mrb[0].mxu0
        %v2709 = vadd.f32 %v2612, %v2708
        %v2710 = vpop.f32.mrb[0].mxu0
        %2711 = vmatprep.mubr.bf16.mxu0 0
        %2712 = vmatmul.mubr.bf16.gmra.mrb[0].mxu0 %v302
        %v2713 = vpop.f32.mrb[0].mxu0
        %v2714 = vadd.f32 %v2617, %v2713
        %v2715 = vpop.f32.mrb[0].mxu0
        %v2716 = vpop.f32.mrb[0].mxu0
        %v2717 = vadd.f32 %v2620, %v2716
        %v2718 = vpop.f32.mrb[0].mxu0
        %2719 = vmatprep.mubr.bf16.mxu0 0
        %2720 = vmatmul.mubr.bf16.gmra.mrb[0].mxu0 %v305
        %v2721 = vpop.f32.mrb[0].mxu0
        %v2722 = vadd.f32 %v2625, %v2721
        %v2723 = vpop.f32.mrb[0].mxu0
        %v2724 = vpop.f32.mrb[0].mxu0
        %v2725 = vadd.f32 %v2628, %v2724
        %v2726 = vpop.f32.mrb[0].mxu0
        %2727 = vmatprep.mubr.bf16.mxu0 0
        %2728 = vmatmul.mubr.bf16.gmra.mrb[0].mxu0 %v308
        %v2729 = vpop.f32.mrb[0].mxu0
        %v2730 = vadd.f32 %v2633, %v2729
        %v2731 = vpop.f32.mrb[0].mxu0
        %v2732 = vpop.f32.mrb[0].mxu0
        %v2733 = vadd.f32 %v2636, %v2732
        %v2734 = vpop.f32.mrb[0].mxu0
        %2735 = vmatprep.mubr.bf16.mxu0 0
        %2736 = vmatmul.mubr.bf16.gmra.mrb[0].mxu0 %v311
        %v2737 = vpop.f32.mrb[0].mxu0
        %v2738 = vadd.f32 %v2641, %v2737
        %v2739 = vpop.f32.mrb[0].mxu0
        %v2740 = vpop.f32.mrb[0].mxu0
        %v2741 = vadd.f32 %v2644, %v2740
        %v2742 = vpop.f32.mrb[0].mxu0
        %2743 = vmatprep.mubr.bf16.mxu0 0
        %2744 = vmatmul.mubr.bf16.gmra.mrb[0].mxu0 %v314
        %v2745 = vpop.f32.mrb[0].mxu0
        %v2746 = vadd.f32 %v2649, %v2745
        %v2747 = vpop.f32.mrb[0].mxu0
        %v2748 = vpop.f32.mrb[0].mxu0
        %v2749 = vadd.f32 %v2652, %v2748
        %v2750 = vpop.f32.mrb[0].mxu0
        %2751 = vmatprep.mubr.bf16.mxu0 0
        %2752 = vmatmul.mubr.bf16.gmra.mrb[0].mxu0 %v317
        %v2753 = vpop.f32.mrb[0].mxu0
        %v2754 = vadd.f32 %v2657, %v2753
        %v2755 = vpop.f32.mrb[0].mxu0
        %v2756 = vpop.f32.mrb[0].mxu0
        %v2757 = vadd.f32 %v2660, %v2756
        %v2758 = vpop.f32.mrb[0].mxu0
        %2759 = vdwg.mxu0
        %v2760 = vpack.c.bf16 %v1814, %v1810
        %v2761 = vpack.c.bf16 %v1816, %v1812
        %v2762 = vpack.c.bf16 %v2040, %v2036
        %v2763 = vpack.c.bf16 %v2042, %v2038
        %v2764 = vpack.c.bf16 %v2266, %v2262
        %v2765 = vpack.c.bf16 %v2268, %v2264
        %v2766 = vpack.c.bf16 %v2492, %v2488
        %v2767 = vpack.c.bf16 %v2494, %v2490
        %v2768 = vpack.c.bf16 %v2701, %v2698
        %v2769 = vpack.c.bf16 %v1824, %v1820
        %v2770 = vpack.c.bf16 %v1826, %v1822
        %v2771 = vpack.c.bf16 %v2050, %v2046
        %v2772 = vpack.c.bf16 %v2052, %v2048
        %v2773 = vpack.c.bf16 %v2276, %v2272
        %v2774 = vpack.c.bf16 %v2278, %v2274
        %v2775 = vpack.c.bf16 %v2502, %v2498
        %v2776 = vpack.c.bf16 %v2504, %v2500
        %v2777 = vpack.c.bf16 %v2709, %v2706
        %v2778 = vpack.c.bf16 %v1834, %v1830
        %v2779 = vpack.c.bf16 %v1836, %v1832
        %v2780 = vpack.c.bf16 %v2060, %v2056
        %v2781 = vpack.c.bf16 %v2062, %v2058
        %v2782 = vpack.c.bf16 %v2286, %v2282
        %v2783 = vpack.c.bf16 %v2288, %v2284
        %v2784 = vpack.c.bf16 %v2512, %v2508
        %v2785 = vpack.c.bf16 %v2514, %v2510
        %v2786 = vpack.c.bf16 %v2717, %v2714
        %v2787 = vpack.c.bf16 %v1844, %v1840
        %v2788 = vpack.c.bf16 %v1846, %v1842
        %v2789 = vpack.c.bf16 %v2070, %v2066
        %v2790 = vpack.c.bf16 %v2072, %v2068
        %v2791 = vpack.c.bf16 %v2296, %v2292
        %v2792 = vpack.c.bf16 %v2298, %v2294
        %v2793 = vpack.c.bf16 %v2522, %v2518
        %v2794 = vpack.c.bf16 %v2524, %v2520
        %v2795 = vpack.c.bf16 %v2725, %v2722
        %v2796 = vpack.c.bf16 %v1854, %v1850
        %v2797 = vpack.c.bf16 %v1856, %v1852
        %v2798 = vpack.c.bf16 %v2080, %v2076
        %v2799 = vpack.c.bf16 %v2082, %v2078
        %v2800 = vpack.c.bf16 %v2306, %v2302
        %v2801 = vpack.c.bf16 %v2308, %v2304
        %v2802 = vpack.c.bf16 %v2532, %v2528
        %v2803 = vpack.c.bf16 %v2534, %v2530
        %v2804 = vpack.c.bf16 %v2733, %v2730
        %v2805 = vpack.c.bf16 %v1864, %v1860
        %v2806 = vpack.c.bf16 %v1866, %v1862
        %v2807 = vpack.c.bf16 %v2090, %v2086
        %v2808 = vpack.c.bf16 %v2092, %v2088
        %v2809 = vpack.c.bf16 %v2316, %v2312
        %v2810 = vpack.c.bf16 %v2318, %v2314
        %v2811 = vpack.c.bf16 %v2542, %v2538
        %v2812 = vpack.c.bf16 %v2544, %v2540
        %v2813 = vpack.c.bf16 %v2741, %v2738
        %v2814 = vpack.c.bf16 %v1874, %v1870
        %v2815 = vpack.c.bf16 %v1876, %v1872
        %v2816 = vpack.c.bf16 %v2100, %v2096
        %v2817 = vpack.c.bf16 %v2102, %v2098
        %v2818 = vpack.c.bf16 %v2326, %v2322
        %v2819 = vpack.c.bf16 %v2328, %v2324
        %v2820 = vpack.c.bf16 %v2552, %v2548
        %v2821 = vpack.c.bf16 %v2554, %v2550
        %v2822 = vpack.c.bf16 %v2749, %v2746
        %v2823 = vpack.c.bf16 %v1884, %v1880
        %v2824 = vpack.c.bf16 %v1886, %v1882
        %v2825 = vpack.c.bf16 %v2110, %v2106
        %v2826 = vpack.c.bf16 %v2112, %v2108
        %v2827 = vpack.c.bf16 %v2336, %v2332
        %v2828 = vpack.c.bf16 %v2338, %v2334
        %v2829 = vpack.c.bf16 %v2562, %v2558
        %v2830 = vpack.c.bf16 %v2564, %v2560
        %v2831 = vpack.c.bf16 %v2757, %v2754
        %v2832 = vlaneseq
        %v2833 = vshrl.u32 %v2832, 7
        %v2834 = vadd.s32 %v2833, 8
        %v2835 = vadd.s32 %v2833, 16
        %v2836 = vadd.s32 %v2833, 24
        %v2837 = vadd.s32 %v2833, 32
        %v2838 = vadd.s32 %v2833, 40
        %v2839 = vadd.s32 %v2833, 48
        %v2840 = vadd.s32 %v2833, 56
        %v2841 = vadd.s32 %v2833, 64
        %v2842 = vadd.s32 %v2833, 72
        %v2843 = vadd.s32 %v2833, 80
        %v2844 = vadd.s32 %v2833, 88
        %v2845 = vadd.s32 %v2833, 96
        %v2846 = vadd.s32 %v2833, 104
        %v2847 = vadd.s32 %v2833, 112
        %v2848 = vadd.s32 %v2833, 120
        %v2849 = vlaneseq
        %v2850 = vand.u32 %v2849, 127
        %vm2851 = vcmp.le.s32.totalorder %v2850, %v2833
        %vm2852 = vcmp.le.s32.totalorder %v2850, %v2834
        %vm2853 = vcmp.le.s32.totalorder %v2850, %v2835
        %vm2854 = vcmp.le.s32.totalorder %v2850, %v2836
        %vm2855 = vcmp.le.s32.totalorder %v2850, %v2837
        %vm2856 = vcmp.le.s32.totalorder %v2850, %v2838
        %vm2857 = vcmp.le.s32.totalorder %v2850, %v2839
        %vm2858 = vcmp.le.s32.totalorder %v2850, %v2840
        %vm2859 = vcmp.le.s32.totalorder %v2850, %v2841
        %vm2860 = vcmp.le.s32.totalorder %v2850, %v2842
        %vm2861 = vcmp.le.s32.totalorder %v2850, %v2843
        %vm2862 = vcmp.le.s32.totalorder %v2850, %v2844
        %vm2863 = vcmp.le.s32.totalorder %v2850, %v2845
        %vm2864 = vcmp.le.s32.totalorder %v2850, %v2846
        %vm2865 = vcmp.le.s32.totalorder %v2850, %v2847
        %vm2866 = vcmp.le.s32.totalorder %v2850, %v2848
        %v2867 = vld [vmem:[%s3] sm:$0x7]
        %v2869 = vlaneseq
        %v2870 = vshrl.u32 %v2869, 7
        %v2871 = vsub.s32 0, %v2870
        %v2872 = vrot.slane %v2867, %v2871
        %v2873 = vlaneseq
        %v2874 = vshrl.u32 %v2873, 7
        %v2875 = vsub.s32 1, %v2874
        %v2876 = vrot.slane %v2867, %v2875
        %v2877 = vlaneseq
        %v2878 = vshrl.u32 %v2877, 7
        %v2879 = vsub.s32 2, %v2878
        %v2880 = vrot.slane %v2867, %v2879
        %vm2884 = vcmask 523264
        %v2886 = vsel %vm2884, %v2760, 0
        %v2889 = vsel %vm2884, %v2769, 0
        %v2892 = vsel %vm2884, %v2778, 0
        %v2895 = vsel %vm2884, %v2787, 0
        %v2898 = vsel %vm2884, %v2796, 0
        %v2901 = vsel %vm2884, %v2805, 0
        %v2904 = vsel %vm2884, %v2814, 0
        %v2907 = vsel %vm2884, %v2823, 0
        %v2910 = vsel %vm2884, %v2763, 0
        %v2913 = vsel %vm2884, %v2772, 0
        %v2916 = vsel %vm2884, %v2781, 0
        %v2919 = vsel %vm2884, %v2790, 0
        %v2922 = vsel %vm2884, %v2799, 0
        %v2925 = vsel %vm2884, %v2808, 0
        %v2928 = vsel %vm2884, %v2817, 0
        %v2931 = vsel %vm2884, %v2826, 0
        %2933 = vmatprep.subr.bf16.mxu0 0
        %2934 = vmatpush1.bf16.xpose.msra.mxu0 %v2910
        %2935 = vmatprep.subr.bf16.mxu0 0
        %2936 = vmatpush1.bf16.xpose.msra.mxu0 %v2913
        %2937 = vmatprep.subr.bf16.mxu0 0
        %2938 = vmatpush1.bf16.xpose.msra.mxu0 %v2916
        %2939 = vmatprep.subr.bf16.mxu0 0
        %2940 = vmatpush1.bf16.xpose.msra.mxu0 %v2919
        %2941 = vmatprep.subr.bf16.mxu0 0
        %2942 = vmatpush1.bf16.xpose.msra.mxu0 %v2922
        %2943 = vmatprep.subr.bf16.mxu0 0
        %2944 = vmatpush1.bf16.xpose.msra.mxu0 %v2925
        %2945 = vmatprep.subr.bf16.mxu0 0
        %2946 = vmatpush1.bf16.xpose.msra.mxu0 %v2928
        %2947 = vmatprep.subr.bf16.mxu0 0
        %2948 = vmatpush1.bf16.xpose.msra.mxu0 %v2931
        %2949 = vmatprep.subr.bf16.mxu0 0
        %2950 = vmatpush1.bf16.xpose.msra.mxu0 0
        %2951 = vmatprep.subr.bf16.mxu0 0
        %2952 = vmatpush1.bf16.xpose.msra.mxu0 0
        %2953 = vmatprep.subr.bf16.mxu0 0
        %2954 = vmatpush1.bf16.xpose.msra.mxu0 0
        %2955 = vmatprep.subr.bf16.mxu0 0
        %2956 = vmatpush1.bf16.xpose.msra.mxu0 0
        %2957 = vmatprep.subr.bf16.mxu0 0
        %2958 = vmatpush1.bf16.xpose.msra.mxu0 0
        %2959 = vmatprep.subr.bf16.mxu0 0
        %2960 = vmatpush1.bf16.xpose.msra.mxu0 0
        %2961 = vmatprep.subr.bf16.mxu0 0
        %2962 = vmatpush1.bf16.xpose.msra.mxu0 0
        %2963 = vmatprep.subr.bf16.mxu0 0
        %2964 = vmatpush1.bf16.xpose.msra.mxu0 0
        %2965 = vmatprep.mubr.bf16.mxu0 0
        %2966 = vmatmul.mubr.bf16.gmra.mrb[0].mxu0 %v2886
        %v2967 = vpop.f32.mrb[0].mxu0
        %v2968 = vadd.f32 0.0, %v2967
        %v2969 = vpop.f32.mrb[0].mxu0
        %v2970 = vpop.f32.mrb[0].mxu0
        %v2971 = vadd.f32 0.0, %v2970
        %v2972 = vpop.f32.mrb[0].mxu0
        %2973 = vmatprep.mubr.bf16.mxu0 0
        %2974 = vmatmul.mubr.bf16.gmra.mrb[0].mxu0 %v2889
        %v2975 = vpop.f32.mrb[0].mxu0
        %v2976 = vadd.f32 0.0, %v2975
        %v2977 = vpop.f32.mrb[0].mxu0
        %v2978 = vpop.f32.mrb[0].mxu0
        %v2979 = vadd.f32 0.0, %v2978
        %v2980 = vpop.f32.mrb[0].mxu0
        %2981 = vmatprep.mubr.bf16.mxu0 0
        %2982 = vmatmul.mubr.bf16.gmra.mrb[0].mxu0 %v2892
        %v2983 = vpop.f32.mrb[0].mxu0
        %v2984 = vadd.f32 0.0, %v2983
        %v2985 = vpop.f32.mrb[0].mxu0
        %v2986 = vpop.f32.mrb[0].mxu0
        %v2987 = vadd.f32 0.0, %v2986
        %v2988 = vpop.f32.mrb[0].mxu0
        %2989 = vmatprep.mubr.bf16.mxu0 0
        %2990 = vmatmul.mubr.bf16.gmra.mrb[0].mxu0 %v2895
        %v2991 = vpop.f32.mrb[0].mxu0
        %v2992 = vadd.f32 0.0, %v2991
        %v2993 = vpop.f32.mrb[0].mxu0
        %v2994 = vpop.f32.mrb[0].mxu0
        %v2995 = vadd.f32 0.0, %v2994
        %v2996 = vpop.f32.mrb[0].mxu0
        %2997 = vmatprep.mubr.bf16.mxu0 0
        %2998 = vmatmul.mubr.bf16.gmra.mrb[0].mxu0 %v2898
        %v2999 = vpop.f32.mrb[0].mxu0
        %v3000 = vadd.f32 0.0, %v2999
        %v3001 = vpop.f32.mrb[0].mxu0
        %v3002 = vpop.f32.mrb[0].mxu0
        %v3003 = vadd.f32 0.0, %v3002
        %v3004 = vpop.f32.mrb[0].mxu0
        %3005 = vmatprep.mubr.bf16.mxu0 0
        %3006 = vmatmul.mubr.bf16.gmra.mrb[0].mxu0 %v2901
        %v3007 = vpop.f32.mrb[0].mxu0
        %v3008 = vadd.f32 0.0, %v3007
        %v3009 = vpop.f32.mrb[0].mxu0
        %v3010 = vpop.f32.mrb[0].mxu0
        %v3011 = vadd.f32 0.0, %v3010
        %v3012 = vpop.f32.mrb[0].mxu0
        %3013 = vmatprep.mubr.bf16.mxu0 0
        %3014 = vmatmul.mubr.bf16.gmra.mrb[0].mxu0 %v2904
        %v3015 = vpop.f32.mrb[0].mxu0
        %v3016 = vadd.f32 0.0, %v3015
        %v3017 = vpop.f32.mrb[0].mxu0
        %v3018 = vpop.f32.mrb[0].mxu0
        %v3019 = vadd.f32 0.0, %v3018
        %v3020 = vpop.f32.mrb[0].mxu0
        %3021 = vmatprep.mubr.bf16.mxu0 0
        %3022 = vmatmul.mubr.bf16.gmra.mrb[0].mxu0 %v2907
        %v3023 = vpop.f32.mrb[0].mxu0
        %v3024 = vadd.f32 0.0, %v3023
        %v3025 = vpop.f32.mrb[0].mxu0
        %v3026 = vpop.f32.mrb[0].mxu0
        %v3027 = vadd.f32 0.0, %v3026
        %v3028 = vpop.f32.mrb[0].mxu0
        %3029 = vdwg.mxu0
        %v3030 = vsel %vm2851, %v2968, -inf
        %v3031 = vsel %vm2852, %v2971, -inf
        %v3032 = vsel %vm2853, %v2976, -inf
        %v3033 = vsel %vm2854, %v2979, -inf
        %v3034 = vsel %vm2855, %v2984, -inf
        %v3035 = vsel %vm2856, %v2987, -inf
        %v3036 = vsel %vm2857, %v2992, -inf
        %v3037 = vsel %vm2858, %v2995, -inf
        %v3038 = vsel %vm2859, %v3000, -inf
        %v3039 = vsel %vm2860, %v3003, -inf
        %v3040 = vsel %vm2861, %v3008, -inf
        %v3041 = vsel %vm2862, %v3011, -inf
        %v3042 = vsel %vm2863, %v3016, -inf
        %v3043 = vsel %vm2864, %v3019, -inf
        %v3044 = vsel %vm2865, %v3024, -inf
        %v3045 = vsel %vm2866, %v3027, -inf
        %3046 = vmax.xlane.f32.xlu0 %v3030
        %v3047 = vpop.xlane.xlu0 %3046
        %3048 = vmax.xlane.f32.xlu0 %v3031
        %v3049 = vpop.xlane.xlu0 %3048
        %3050 = vmax.xlane.f32.xlu0 %v3032
        %v3051 = vpop.xlane.xlu0 %3050
        %3052 = vmax.xlane.f32.xlu0 %v3033
        %v3053 = vpop.xlane.xlu0 %3052
        %3054 = vmax.xlane.f32.xlu0 %v3034
        %v3055 = vpop.xlane.xlu0 %3054
        %3056 = vmax.xlane.f32.xlu0 %v3035
        %v3057 = vpop.xlane.xlu0 %3056
        %3058 = vmax.xlane.f32.xlu0 %v3036
        %v3059 = vpop.xlane.xlu0 %3058
        %3060 = vmax.xlane.f32.xlu0 %v3037
        %v3061 = vpop.xlane.xlu0 %3060
        %3062 = vmax.xlane.f32.xlu0 %v3038
        %v3063 = vpop.xlane.xlu0 %3062
        %3064 = vmax.xlane.f32.xlu0 %v3039
        %v3065 = vpop.xlane.xlu0 %3064
        %3066 = vmax.xlane.f32.xlu0 %v3040
        %v3067 = vpop.xlane.xlu0 %3066
        %3068 = vmax.xlane.f32.xlu0 %v3041
        %v3069 = vpop.xlane.xlu0 %3068
        %3070 = vmax.xlane.f32.xlu0 %v3042
        %v3071 = vpop.xlane.xlu0 %3070
        %3072 = vmax.xlane.f32.xlu0 %v3043
        %v3073 = vpop.xlane.xlu0 %3072
        %3074 = vmax.xlane.f32.xlu0 %v3044
        %v3075 = vpop.xlane.xlu0 %3074
        %3076 = vmax.xlane.f32.xlu0 %v3045
        %v3077 = vpop.xlane.xlu0 %3076
        %v3078 = vsub.f32 %v3030, %v3047
        %v3079 = vsub.f32 %v3031, %v3049
        %v3080 = vsub.f32 %v3032, %v3051
        %v3081 = vsub.f32 %v3033, %v3053
        %v3082 = vsub.f32 %v3034, %v3055
        %v3083 = vsub.f32 %v3035, %v3057
        %v3084 = vsub.f32 %v3036, %v3059
        %v3085 = vsub.f32 %v3037, %v3061
        %v3086 = vsub.f32 %v3038, %v3063
        %v3087 = vsub.f32 %v3039, %v3065
        %v3088 = vsub.f32 %v3040, %v3067
        %v3089 = vsub.f32 %v3041, %v3069
        %v3090 = vsub.f32 %v3042, %v3071
        %v3091 = vsub.f32 %v3043, %v3073
        %v3092 = vsub.f32 %v3044, %v3075
        %v3093 = vsub.f32 %v3045, %v3077
        %v3094 = vmul.f32 %v3078, 1.442695
        %v3095 = vpow.pop %v3094
        %v3096 = vmul.f32 %v3079, 1.442695
        %v3097 = vpow.pop %v3096
        %v3098 = vmul.f32 %v3080, 1.442695
        %v3099 = vpow.pop %v3098
        %v3100 = vmul.f32 %v3081, 1.442695
        %v3101 = vpow.pop %v3100
        %v3102 = vmul.f32 %v3082, 1.442695
        %v3103 = vpow.pop %v3102
        %v3104 = vmul.f32 %v3083, 1.442695
        %v3105 = vpow.pop %v3104
        %v3106 = vmul.f32 %v3084, 1.442695
        %v3107 = vpow.pop %v3106
        %v3108 = vmul.f32 %v3085, 1.442695
        %v3109 = vpow.pop %v3108
        %v3110 = vmul.f32 %v3086, 1.442695
        %v3111 = vpow.pop %v3110
        %v3112 = vmul.f32 %v3087, 1.442695
        %v3113 = vpow.pop %v3112
        %v3114 = vmul.f32 %v3088, 1.442695
        %v3115 = vpow.pop %v3114
        %v3116 = vmul.f32 %v3089, 1.442695
        %v3117 = vpow.pop %v3116
        %v3118 = vmul.f32 %v3090, 1.442695
        %v3119 = vpow.pop %v3118
        %v3120 = vmul.f32 %v3091, 1.442695
        %v3121 = vpow.pop %v3120
        %v3122 = vmul.f32 %v3092, 1.442695
        %v3123 = vpow.pop %v3122
        %v3124 = vmul.f32 %v3093, 1.442695
        %v3125 = vpow.pop %v3124
        %3126 = vadd.xlane.f32.xlu0 %v3095
        %v3127 = vpop.xlane.xlu0 %3126
        %3128 = vadd.xlane.f32.xlu0 %v3097
        %v3129 = vpop.xlane.xlu0 %3128
        %3130 = vadd.xlane.f32.xlu0 %v3099
        %v3131 = vpop.xlane.xlu0 %3130
        %3132 = vadd.xlane.f32.xlu0 %v3101
        %v3133 = vpop.xlane.xlu0 %3132
        %3134 = vadd.xlane.f32.xlu0 %v3103
        %v3135 = vpop.xlane.xlu0 %3134
        %3136 = vadd.xlane.f32.xlu0 %v3105
        %v3137 = vpop.xlane.xlu0 %3136
        %3138 = vadd.xlane.f32.xlu0 %v3107
        %v3139 = vpop.xlane.xlu0 %3138
        %3140 = vadd.xlane.f32.xlu0 %v3109
        %v3141 = vpop.xlane.xlu0 %3140
        %3142 = vadd.xlane.f32.xlu0 %v3111
        %v3143 = vpop.xlane.xlu0 %3142
        %3144 = vadd.xlane.f32.xlu0 %v3113
        %v3145 = vpop.xlane.xlu0 %3144
        %3146 = vadd.xlane.f32.xlu0 %v3115
        %v3147 = vpop.xlane.xlu0 %3146
        %3148 = vadd.xlane.f32.xlu0 %v3117
        %v3149 = vpop.xlane.xlu0 %3148
        %3150 = vadd.xlane.f32.xlu0 %v3119
        %v3151 = vpop.xlane.xlu0 %3150
        %3152 = vadd.xlane.f32.xlu0 %v3121
        %v3153 = vpop.xlane.xlu0 %3152
        %3154 = vadd.xlane.f32.xlu0 %v3123
        %v3155 = vpop.xlane.xlu0 %3154
        %3156 = vadd.xlane.f32.xlu0 %v3125
        %v3157 = vpop.xlane.xlu0 %3156
        %v3158 = vpack.c.bf16 %v3097, %v3095
        %v3159 = vpack.c.bf16 %v3101, %v3099
        %v3160 = vpack.c.bf16 %v3105, %v3103
        %v3161 = vpack.c.bf16 %v3109, %v3107
        %v3162 = vpack.c.bf16 %v3113, %v3111
        %v3163 = vpack.c.bf16 %v3117, %v3115
        %v3164 = vpack.c.bf16 %v3121, %v3119
        %v3165 = vpack.c.bf16 %v3125, %v3123
        %3166 = vmatprep.subr.bf16.mxu0 0
        %3167 = vmatpush1.bf16.msra.mxu0 %v2766
        %3168 = vmatprep.subr.bf16.mxu0 0
        %3169 = vmatpush1.bf16.msra.mxu0 %v2775
        %3170 = vmatprep.subr.bf16.mxu0 0
        %3171 = vmatpush1.bf16.msra.mxu0 %v2784
        %3172 = vmatprep.subr.bf16.mxu0 0
        %3173 = vmatpush1.bf16.msra.mxu0 %v2793
        %3174 = vmatprep.subr.bf16.mxu0 0
        %3175 = vmatpush1.bf16.msra.mxu0 %v2802
        %3176 = vmatprep.subr.bf16.mxu0 0
        %3177 = vmatpush1.bf16.msra.mxu0 %v2811
        %3178 = vmatprep.subr.bf16.mxu0 0
        %3179 = vmatpush1.bf16.msra.mxu0 %v2820
        %3180 = vmatprep.subr.bf16.mxu0 0
        %3181 = vmatpush1.bf16.msra.mxu0 %v2829
        %3182 = vmatprep.subr.bf16.mxu0 0
        %3183 = vmatpush1.bf16.msra.mxu0 0
        %3184 = vmatprep.subr.bf16.mxu0 0
        %3185 = vmatpush1.bf16.msra.mxu0 0
        %3186 = vmatprep.subr.bf16.mxu0 0
        %3187 = vmatpush1.bf16.msra.mxu0 0
        %3188 = vmatprep.subr.bf16.mxu0 0
        %3189 = vmatpush1.bf16.msra.mxu0 0
        %3190 = vmatprep.subr.bf16.mxu0 0
        %3191 = vmatpush1.bf16.msra.mxu0 0
        %3192 = vmatprep.subr.bf16.mxu0 0
        %3193 = vmatpush1.bf16.msra.mxu0 0
        %3194 = vmatprep.subr.bf16.mxu0 0
        %3195 = vmatpush1.bf16.msra.mxu0 0
        %3196 = vmatprep.subr.bf16.mxu0 0
        %3197 = vmatpush1.bf16.msra.mxu0 0
        %3198 = vmatprep.mubr.bf16.mxu0 0
        %3199 = vmatmul.mubr.bf16.gmra.mrb[0].mxu0 %v3158
        %v3200 = vpop.f32.mrb[0].mxu0
        %v3201 = vadd.f32 0.0, %v3200
        %v3202 = vpop.f32.mrb[0].mxu0
        %v3203 = vpop.f32.mrb[0].mxu0
        %v3204 = vadd.f32 0.0, %v3203
        %v3205 = vpop.f32.mrb[0].mxu0
        %3206 = vmatprep.mubr.bf16.mxu0 0
        %3207 = vmatmul.mubr.bf16.gmra.mrb[0].mxu0 %v3159
        %v3208 = vpop.f32.mrb[0].mxu0
        %v3209 = vadd.f32 0.0, %v3208
        %v3210 = vpop.f32.mrb[0].mxu0
        %v3211 = vpop.f32.mrb[0].mxu0
        %v3212 = vadd.f32 0.0, %v3211
        %v3213 = vpop.f32.mrb[0].mxu0
        %3214 = vmatprep.mubr.bf16.mxu0 0
        %3215 = vmatmul.mubr.bf16.gmra.mrb[0].mxu0 %v3160
        %v3216 = vpop.f32.mrb[0].mxu0
        %v3217 = vadd.f32 0.0, %v3216
        %v3218 = vpop.f32.mrb[0].mxu0
        %v3219 = vpop.f32.mrb[0].mxu0
        %v3220 = vadd.f32 0.0, %v3219
        %v3221 = vpop.f32.mrb[0].mxu0
        %3222 = vmatprep.mubr.bf16.mxu0 0
        %3223 = vmatmul.mubr.bf16.gmra.mrb[0].mxu0 %v3161
        %v3224 = vpop.f32.mrb[0].mxu0
        %v3225 = vadd.f32 0.0, %v3224
        %v3226 = vpop.f32.mrb[0].mxu0
        %v3227 = vpop.f32.mrb[0].mxu0
        %v3228 = vadd.f32 0.0, %v3227
        %v3229 = vpop.f32.mrb[0].mxu0
        %3230 = vmatprep.mubr.bf16.mxu0 0
        %3231 = vmatmul.mubr.bf16.gmra.mrb[0].mxu0 %v3162
        %v3232 = vpop.f32.mrb[0].mxu0
        %v3233 = vadd.f32 0.0, %v3232
        %v3234 = vpop.f32.mrb[0].mxu0
        %v3235 = vpop.f32.mrb[0].mxu0
        %v3236 = vadd.f32 0.0, %v3235
        %v3237 = vpop.f32.mrb[0].mxu0
        %3238 = vmatprep.mubr.bf16.mxu0 0
        %3239 = vmatmul.mubr.bf16.gmra.mrb[0].mxu0 %v3163
        %v3240 = vpop.f32.mrb[0].mxu0
        %v3241 = vadd.f32 0.0, %v3240
        %v3242 = vpop.f32.mrb[0].mxu0
        %v3243 = vpop.f32.mrb[0].mxu0
        %v3244 = vadd.f32 0.0, %v3243
        %v3245 = vpop.f32.mrb[0].mxu0
        %3246 = vmatprep.mubr.bf16.mxu0 0
        %3247 = vmatmul.mubr.bf16.gmra.mrb[0].mxu0 %v3164
        %v3248 = vpop.f32.mrb[0].mxu0
        %v3249 = vadd.f32 0.0, %v3248
        %v3250 = vpop.f32.mrb[0].mxu0
        %v3251 = vpop.f32.mrb[0].mxu0
        %v3252 = vadd.f32 0.0, %v3251
        %v3253 = vpop.f32.mrb[0].mxu0
        %3254 = vmatprep.mubr.bf16.mxu0 0
        %3255 = vmatmul.mubr.bf16.gmra.mrb[0].mxu0 %v3165
        %v3256 = vpop.f32.mrb[0].mxu0
        %v3257 = vadd.f32 0.0, %v3256
        %v3258 = vpop.f32.mrb[0].mxu0
        %v3259 = vpop.f32.mrb[0].mxu0
        %v3260 = vadd.f32 0.0, %v3259
        %v3261 = vpop.f32.mrb[0].mxu0
        %3262 = vdwg.mxu0
        %v3263 = vrcp.pop %v3127
        %v3264 = vrcp.pop %v3129
        %v3265 = vrcp.pop %v3131
        %v3266 = vrcp.pop %v3133
        %v3267 = vrcp.pop %v3135
        %v3268 = vrcp.pop %v3137
        %v3269 = vrcp.pop %v3139
        %v3270 = vrcp.pop %v3141
        %v3271 = vrcp.pop %v3143
        %v3272 = vrcp.pop %v3145
        %v3273 = vrcp.pop %v3147
        %v3274 = vrcp.pop %v3149
        %v3275 = vrcp.pop %v3151
        %v3276 = vrcp.pop %v3153
        %v3277 = vrcp.pop %v3155
        %v3278 = vrcp.pop %v3157
        %v3279 = vmul.f32 %v3201, %v3263
        %v3280 = vmul.f32 %v3204, %v3264
        %v3281 = vmul.f32 %v3209, %v3265
        %v3282 = vmul.f32 %v3212, %v3266
        %v3283 = vmul.f32 %v3217, %v3267
        %v3284 = vmul.f32 %v3220, %v3268
        %v3285 = vmul.f32 %v3225, %v3269
        %v3286 = vmul.f32 %v3228, %v3270
        %v3287 = vmul.f32 %v3233, %v3271
        %v3288 = vmul.f32 %v3236, %v3272
        %v3289 = vmul.f32 %v3241, %v3273
        %v3290 = vmul.f32 %v3244, %v3274
        %v3291 = vmul.f32 %v3249, %v3275
        %v3292 = vmul.f32 %v3252, %v3276
        %v3293 = vmul.f32 %v3257, %v3277
        %v3294 = vmul.f32 %v3260, %v3278
        %v3295 = vpack.c.bf16 %v3280, %v3279
        %v3296 = vpack.c.bf16 %v3282, %v3281
        %v3297 = vpack.c.bf16 %v3284, %v3283
        %v3298 = vpack.c.bf16 %v3286, %v3285
        %v3299 = vpack.c.bf16 %v3288, %v3287
        %v3300 = vpack.c.bf16 %v3290, %v3289
        %v3301 = vpack.c.bf16 %v3292, %v3291
        %v3302 = vpack.c.bf16 %v3294, %v3293
        %v3303 = vld [vmem:[#allocation7] sm:$0xff]
        %v3304 = vld [vmem:[#allocation7 + $0x8] sm:$0xf]
        %v3305 = vld [vmem:[#allocation7 + $0xc] sm:$0xff]
        %v3306 = vld [vmem:[#allocation7 + $0x14] sm:$0xf]
        %v3307 = vld [vmem:[#allocation7 + $0x18] sm:$0xff]
        %v3308 = vld [vmem:[#allocation7 + $0x20] sm:$0xf]
        %v3309 = vld [vmem:[#allocation7 + $0x24] sm:$0xff]
        %v3310 = vld [vmem:[#allocation7 + $0x2c] sm:$0xf]
        %v3311 = vld [vmem:[#allocation7 + $0x30] sm:$0xff]
        %v3312 = vld [vmem:[#allocation7 + $0x38] sm:$0xf]
        %v3313 = vld [vmem:[#allocation7 + $0x3c] sm:$0xff]
        %v3314 = vld [vmem:[#allocation7 + $0x44] sm:$0xf]
        %v3315 = vld [vmem:[#allocation7 + $0x48] sm:$0xff]
        %v3316 = vld [vmem:[#allocation7 + $0x50] sm:$0xf]
        %v3317 = vld [vmem:[#allocation7 + $0x54] sm:$0xff]
        %v3318 = vld [vmem:[#allocation7 + $0x5c] sm:$0xf]
        %v3335 = vunpack.c.l.b16 %v3303
        %v3336 = vunpack.c.h.b16 %v3303
        %v3337 = vunpack.c.l.b16 %v3304
        %v3338 = vunpack.c.l.b16 %v3305
        %v3339 = vunpack.c.h.b16 %v3305
        %v3340 = vunpack.c.l.b16 %v3306
        %v3341 = vunpack.c.l.b16 %v3307
        %v3342 = vunpack.c.h.b16 %v3307
        %v3343 = vunpack.c.l.b16 %v3308
        %v3344 = vunpack.c.l.b16 %v3309
        %v3345 = vunpack.c.h.b16 %v3309
        %v3346 = vunpack.c.l.b16 %v3310
        %v3347 = vunpack.c.l.b16 %v3311
        %v3348 = vunpack.c.h.b16 %v3311
        %v3349 = vunpack.c.l.b16 %v3312
        %v3350 = vunpack.c.l.b16 %v3313
        %v3351 = vunpack.c.h.b16 %v3313
        %v3352 = vunpack.c.l.b16 %v3314
        %v3353 = vunpack.c.l.b16 %v3315
        %v3354 = vunpack.c.h.b16 %v3315
        %v3355 = vunpack.c.l.b16 %v3316
        %v3356 = vunpack.c.l.b16 %v3317
        %v3357 = vunpack.c.h.b16 %v3317
        %v3358 = vunpack.c.l.b16 %v3318
        %v3359 = vpack.c.b16 %v3338, %v3335
        %v3360 = vpack.c.b16 %v3339, %v3336
        %v3361 = vpack.c.b16 %v3340, %v3337
        %v3362 = vpack.c.b16 %v3344, %v3341
        %v3363 = vpack.c.b16 %v3345, %v3342
        %v3364 = vpack.c.b16 %v3346, %v3343
        %v3365 = vpack.c.b16 %v3350, %v3347
        %v3366 = vpack.c.b16 %v3351, %v3348
        %v3367 = vpack.c.b16 %v3352, %v3349
        %v3368 = vpack.c.b16 %v3356, %v3353
        %v3369 = vpack.c.b16 %v3357, %v3354
        %v3370 = vpack.c.b16 %v3358, %v3355
        %v3384 = vsel %vm2884, %v3295, 0
        %v3387 = vsel %vm2884, %v3296, 0
        %v3390 = vsel %vm2884, %v3297, 0
        %v3393 = vsel %vm2884, %v3298, 0
        %v3396 = vsel %vm2884, %v3299, 0
        %v3399 = vsel %vm2884, %v3300, 0
        %v3402 = vsel %vm2884, %v3301, 0
        %v3405 = vsel %vm2884, %v3302, 0
        %3407 = vmatprep.subr.bf16.mxu0 %v3360
        %3408 = vmatpush1.bf16.msra.mxu0 %v3359
        %3409 = vmatprep.subr.bf16.mxu0 %v3363
        %3410 = vmatpush1.bf16.msra.mxu0 %v3362
        %3411 = vmatprep.subr.bf16.mxu0 %v3366
        %3412 = vmatpush1.bf16.msra.mxu0 %v3365
        %3413 = vmatprep.subr.bf16.mxu0 %v3369
        %3414 = vmatpush1.bf16.msra.mxu0 %v3368
        %3415 = vmatprep.subr.bf16.mxu0 0
        %3416 = vmatpush1.bf16.msra.mxu0 0
        %3417 = vmatprep.subr.bf16.mxu0 0
        %3418 = vmatpush1.bf16.msra.mxu0 0
        %3419 = vmatprep.subr.bf16.mxu0 0
        %3420 = vmatpush1.bf16.msra.mxu0 0
        %3421 = vmatprep.subr.bf16.mxu0 0
        %3422 = vmatpush1.bf16.msra.mxu0 0
        %3423 = vmatprep.subr.bf16.mxu0 0
        %3424 = vmatpush1.bf16.msra.mxu0 0
        %3425 = vmatprep.subr.bf16.mxu0 0
        %3426 = vmatpush1.bf16.msra.mxu0 0
        %3427 = vmatprep.subr.bf16.mxu0 0
        %3428 = vmatpush1.bf16.msra.mxu0 0
        %3429 = vmatprep.subr.bf16.mxu0 0
        %3430 = vmatpush1.bf16.msra.mxu0 0
        %3431 = vmatprep.subr.bf16.mxu0 0
        %3432 = vmatpush1.bf16.msra.mxu0 0
        %3433 = vmatprep.subr.bf16.mxu0 0
        %3434 = vmatpush1.bf16.msra.mxu0 0
        %3435 = vmatprep.subr.bf16.mxu0 0
        %3436 = vmatpush1.bf16.msra.mxu0 0
        %3437 = vmatprep.subr.bf16.mxu0 0
        %3438 = vmatpush1.bf16.msra.mxu0 0
        %3439 = vmatprep.mubr.bf16.mxu0 0
        %3440 = vmatmul.mubr.bf16.gmra.mrb[0].mxu0 %v3384
        %v3441 = vpop.f32.mrb[0].mxu0
        %v3442 = vadd.f32 0.0, %v3441
        %v3443 = vpop.f32.mrb[0].mxu0
        %v3444 = vadd.f32 0.0, %v3443
        %v3445 = vpop.f32.mrb[0].mxu0
        %v3446 = vadd.f32 0.0, %v3445
        %v3447 = vpop.f32.mrb[0].mxu0
        %v3448 = vadd.f32 0.0, %v3447
        %3449 = vmatprep.mubr.bf16.mxu0 0
        %3450 = vmatmul.mubr.bf16.gmra.mrb[0].mxu0 %v3387
        %v3451 = vpop.f32.mrb[0].mxu0
        %v3452 = vadd.f32 0.0, %v3451
        %v3453 = vpop.f32.mrb[0].mxu0
        %v3454 = vadd.f32 0.0, %v3453
        %v3455 = vpop.f32.mrb[0].mxu0
        %v3456 = vadd.f32 0.0, %v3455
        %v3457 = vpop.f32.mrb[0].mxu0
        %v3458 = vadd.f32 0.0, %v3457
        %3459 = vmatprep.mubr.bf16.mxu0 0
        %3460 = vmatmul.mubr.bf16.gmra.mrb[0].mxu0 %v3390
        %v3461 = vpop.f32.mrb[0].mxu0
        %v3462 = vadd.f32 0.0, %v3461
        %v3463 = vpop.f32.mrb[0].mxu0
        %v3464 = vadd.f32 0.0, %v3463
        %v3465 = vpop.f32.mrb[0].mxu0
        %v3466 = vadd.f32 0.0, %v3465
        %v3467 = vpop.f32.mrb[0].mxu0
        %v3468 = vadd.f32 0.0, %v3467
        %3469 = vmatprep.mubr.bf16.mxu0 0
        %3470 = vmatmul.mubr.bf16.gmra.mrb[0].mxu0 %v3393
        %v3471 = vpop.f32.mrb[0].mxu0
        %v3472 = vadd.f32 0.0, %v3471
        %v3473 = vpop.f32.mrb[0].mxu0
        %v3474 = vadd.f32 0.0, %v3473
        %v3475 = vpop.f32.mrb[0].mxu0
        %v3476 = vadd.f32 0.0, %v3475
        %v3477 = vpop.f32.mrb[0].mxu0
        %v3478 = vadd.f32 0.0, %v3477
        %3479 = vmatprep.mubr.bf16.mxu0 0
        %3480 = vmatmul.mubr.bf16.gmra.mrb[0].mxu0 %v3396
        %v3481 = vpop.f32.mrb[0].mxu0
        %v3482 = vadd.f32 0.0, %v3481
        %v3483 = vpop.f32.mrb[0].mxu0
        %v3484 = vadd.f32 0.0, %v3483
        %v3485 = vpop.f32.mrb[0].mxu0
        %v3486 = vadd.f32 0.0, %v3485
        %v3487 = vpop.f32.mrb[0].mxu0
        %v3488 = vadd.f32 0.0, %v3487
        %3489 = vmatprep.mubr.bf16.mxu0 0
        %3490 = vmatmul.mubr.bf16.gmra.mrb[0].mxu0 %v3399
        %v3491 = vpop.f32.mrb[0].mxu0
        %v3492 = vadd.f32 0.0, %v3491
        %v3493 = vpop.f32.mrb[0].mxu0
        %v3494 = vadd.f32 0.0, %v3493
        %v3495 = vpop.f32.mrb[0].mxu0
        %v3496 = vadd.f32 0.0, %v3495
        %v3497 = vpop.f32.mrb[0].mxu0
        %v3498 = vadd.f32 0.0, %v3497
        %3499 = vmatprep.mubr.bf16.mxu0 0
        %3500 = vmatmul.mubr.bf16.gmra.mrb[0].mxu0 %v3402
        %v3501 = vpop.f32.mrb[0].mxu0
        %v3502 = vadd.f32 0.0, %v3501
        %v3503 = vpop.f32.mrb[0].mxu0
        %v3504 = vadd.f32 0.0, %v3503
        %v3505 = vpop.f32.mrb[0].mxu0
        %v3506 = vadd.f32 0.0, %v3505
        %v3507 = vpop.f32.mrb[0].mxu0
        %v3508 = vadd.f32 0.0, %v3507
        %3509 = vmatprep.mubr.bf16.mxu0 0
        %3510 = vmatmul.mubr.bf16.gmra.mrb[0].mxu0 %v3405
        %v3511 = vpop.f32.mrb[0].mxu0
        %v3512 = vadd.f32 0.0, %v3511
        %v3513 = vpop.f32.mrb[0].mxu0
        %v3514 = vadd.f32 0.0, %v3513
        %v3515 = vpop.f32.mrb[0].mxu0
        %v3516 = vadd.f32 0.0, %v3515
        %v3517 = vpop.f32.mrb[0].mxu0
        %v3518 = vadd.f32 0.0, %v3517
        %3519 = vdwg.mxu0
        %3520 = vmatprep.subr.bf16.mxu0 0
        %3521 = vmatpush1.bf16.msra.mxu0 %v3361
        %3522 = vmatprep.subr.bf16.mxu0 0
        %3523 = vmatpush1.bf16.msra.mxu0 %v3364
        %3524 = vmatprep.subr.bf16.mxu0 0
        %3525 = vmatpush1.bf16.msra.mxu0 %v3367
        %3526 = vmatprep.subr.bf16.mxu0 0
        %3527 = vmatpush1.bf16.msra.mxu0 %v3370
        %3528 = vmatprep.subr.bf16.mxu0 0
        %3529 = vmatpush1.bf16.msra.mxu0 0
        %3530 = vmatprep.subr.bf16.mxu0 0
        %3531 = vmatpush1.bf16.msra.mxu0 0
        %3532 = vmatprep.subr.bf16.mxu0 0
        %3533 = vmatpush1.bf16.msra.mxu0 0
        %3534 = vmatprep.subr.bf16.mxu0 0
        %3535 = vmatpush1.bf16.msra.mxu0 0
        %3536 = vmatprep.subr.bf16.mxu0 0
        %3537 = vmatpush1.bf16.msra.mxu0 0
        %3538 = vmatprep.subr.bf16.mxu0 0
        %3539 = vmatpush1.bf16.msra.mxu0 0
        %3540 = vmatprep.subr.bf16.mxu0 0
        %3541 = vmatpush1.bf16.msra.mxu0 0
        %3542 = vmatprep.subr.bf16.mxu0 0
        %3543 = vmatpush1.bf16.msra.mxu0 0
        %3544 = vmatprep.subr.bf16.mxu0 0
        %3545 = vmatpush1.bf16.msra.mxu0 0
        %3546 = vmatprep.subr.bf16.mxu0 0
        %3547 = vmatpush1.bf16.msra.mxu0 0
        %3548 = vmatprep.subr.bf16.mxu0 0
        %3549 = vmatpush1.bf16.msra.mxu0 0
        %3550 = vmatprep.subr.bf16.mxu0 0
        %3551 = vmatpush1.bf16.msra.mxu0 0
        %3552 = vmatprep.mubr.bf16.mxu0 0
        %3553 = vmatmul.mubr.bf16.gmra.mrb[0].mxu0 %v3384
        %v3554 = vpop.f32.mrb[0].mxu0
        %v3555 = vadd.f32 0.0, %v3554
        %v3556 = vpop.f32.mrb[0].mxu0
        %v3557 = vpop.f32.mrb[0].mxu0
        %v3558 = vadd.f32 0.0, %v3557
        %v3559 = vpop.f32.mrb[0].mxu0
        %3560 = vmatprep.mubr.bf16.mxu0 0
        %3561 = vmatmul.mubr.bf16.gmra.mrb[0].mxu0 %v3387
        %v3562 = vpop.f32.mrb[0].mxu0
        %v3563 = vadd.f32 0.0, %v3562
        %v3564 = vpop.f32.mrb[0].mxu0
        %v3565 = vpop.f32.mrb[0].mxu0
        %v3566 = vadd.f32 0.0, %v3565
        %v3567 = vpop.f32.mrb[0].mxu0
        %3568 = vmatprep.mubr.bf16.mxu0 0
        %3569 = vmatmul.mubr.bf16.gmra.mrb[0].mxu0 %v3390
        %v3570 = vpop.f32.mrb[0].mxu0
        %v3571 = vadd.f32 0.0, %v3570
        %v3572 = vpop.f32.mrb[0].mxu0
        %v3573 = vpop.f32.mrb[0].mxu0
        %v3574 = vadd.f32 0.0, %v3573
        %v3575 = vpop.f32.mrb[0].mxu0
        %3576 = vmatprep.mubr.bf16.mxu0 0
        %3577 = vmatmul.mubr.bf16.gmra.mrb[0].mxu0 %v3393
        %v3578 = vpop.f32.mrb[0].mxu0
        %v3579 = vadd.f32 0.0, %v3578
        %v3580 = vpop.f32.mrb[0].mxu0
        %v3581 = vpop.f32.mrb[0].mxu0
        %v3582 = vadd.f32 0.0, %v3581
        %v3583 = vpop.f32.mrb[0].mxu0
        %3584 = vmatprep.mubr.bf16.mxu0 0
        %3585 = vmatmul.mubr.bf16.gmra.mrb[0].mxu0 %v3396
        %v3586 = vpop.f32.mrb[0].mxu0
        %v3587 = vadd.f32 0.0, %v3586
        %v3588 = vpop.f32.mrb[0].mxu0
        %v3589 = vpop.f32.mrb[0].mxu0
        %v3590 = vadd.f32 0.0, %v3589
        %v3591 = vpop.f32.mrb[0].mxu0
        %3592 = vmatprep.mubr.bf16.mxu0 0
        %3593 = vmatmul.mubr.bf16.gmra.mrb[0].mxu0 %v3399
        %v3594 = vpop.f32.mrb[0].mxu0
        %v3595 = vadd.f32 0.0, %v3594
        %v3596 = vpop.f32.mrb[0].mxu0
        %v3597 = vpop.f32.mrb[0].mxu0
        %v3598 = vadd.f32 0.0, %v3597
        %v3599 = vpop.f32.mrb[0].mxu0
        %3600 = vmatprep.mubr.bf16.mxu0 0
        %3601 = vmatmul.mubr.bf16.gmra.mrb[0].mxu0 %v3402
        %v3602 = vpop.f32.mrb[0].mxu0
        %v3603 = vadd.f32 0.0, %v3602
        %v3604 = vpop.f32.mrb[0].mxu0
        %v3605 = vpop.f32.mrb[0].mxu0
        %v3606 = vadd.f32 0.0, %v3605
        %v3607 = vpop.f32.mrb[0].mxu0
        %3608 = vmatprep.mubr.bf16.mxu0 0
        %3609 = vmatmul.mubr.bf16.gmra.mrb[0].mxu0 %v3405
        %v3610 = vpop.f32.mrb[0].mxu0
        %v3611 = vadd.f32 0.0, %v3610
        %v3612 = vpop.f32.mrb[0].mxu0
        %v3613 = vpop.f32.mrb[0].mxu0
        %v3614 = vadd.f32 0.0, %v3613
        %v3615 = vpop.f32.mrb[0].mxu0
        %3616 = vdwg.mxu0
        %v3617 = vadd.f32 %v2872, %v3442
        %v3618 = vadd.f32 %v2876, %v3444
        %v3619 = vadd.f32 %v2880, %v3555
        %v3620 = vadd.f32 %v2872, %v3446
        %v3621 = vadd.f32 %v2876, %v3448
        %v3622 = vadd.f32 %v2880, %v3558
        %v3623 = vadd.f32 %v2872, %v3452
        %v3624 = vadd.f32 %v2876, %v3454
        %v3625 = vadd.f32 %v2880, %v3563
        %v3626 = vadd.f32 %v2872, %v3456
        %v3627 = vadd.f32 %v2876, %v3458
        %v3628 = vadd.f32 %v2880, %v3566
        %v3629 = vadd.f32 %v2872, %v3462
        %v3630 = vadd.f32 %v2876, %v3464
        %v3631 = vadd.f32 %v2880, %v3571
        %v3632 = vadd.f32 %v2872, %v3466
        %v3633 = vadd.f32 %v2876, %v3468
        %v3634 = vadd.f32 %v2880, %v3574
        %v3635 = vadd.f32 %v2872, %v3472
        %v3636 = vadd.f32 %v2876, %v3474
        %v3637 = vadd.f32 %v2880, %v3579
        %v3638 = vadd.f32 %v2872, %v3476
        %v3639 = vadd.f32 %v2876, %v3478
        %v3640 = vadd.f32 %v2880, %v3582
        %v3641 = vadd.f32 %v2872, %v3482
        %v3642 = vadd.f32 %v2876, %v3484
        %v3643 = vadd.f32 %v2880, %v3587
        %v3644 = vadd.f32 %v2872, %v3486
        %v3645 = vadd.f32 %v2876, %v3488
        %v3646 = vadd.f32 %v2880, %v3590
        %v3647 = vadd.f32 %v2872, %v3492
        %v3648 = vadd.f32 %v2876, %v3494
        %v3649 = vadd.f32 %v2880, %v3595
        %v3650 = vadd.f32 %v2872, %v3496
        %v3651 = vadd.f32 %v2876, %v3498
        %v3652 = vadd.f32 %v2880, %v3598
        %v3653 = vadd.f32 %v2872, %v3502
        %v3654 = vadd.f32 %v2876, %v3504
        %v3655 = vadd.f32 %v2880, %v3603
        %v3656 = vadd.f32 %v2872, %v3506
        %v3657 = vadd.f32 %v2876, %v3508
        %v3658 = vadd.f32 %v2880, %v3606
        %v3659 = vadd.f32 %v2872, %v3512
        %v3660 = vadd.f32 %v2876, %v3514
        %v3661 = vadd.f32 %v2880, %v3611
        %v3662 = vadd.f32 %v2872, %v3516
        %v3663 = vadd.f32 %v2876, %v3518
        %v3664 = vadd.f32 %v2880, %v3614
        %3673 = vrot.lane.b32.xlu0 %v2760, 64
        %v3674 = vpop.permute.xlu0 %3673
        %3675 = vrot.lane.b32.xlu0 %v2769, 64
        %v3676 = vpop.permute.xlu0 %3675
        %3677 = vrot.lane.b32.xlu0 %v2778, 64
        %v3678 = vpop.permute.xlu0 %3677
        %3679 = vrot.lane.b32.xlu0 %v2787, 64
        %v3680 = vpop.permute.xlu0 %3679
        %3681 = vrot.lane.b32.xlu0 %v2796, 64
        %v3682 = vpop.permute.xlu0 %3681
        %3683 = vrot.lane.b32.xlu0 %v2805, 64
        %v3684 = vpop.permute.xlu0 %3683
        %3685 = vrot.lane.b32.xlu0 %v2814, 64
        %v3686 = vpop.permute.xlu0 %3685
        %3687 = vrot.lane.b32.xlu0 %v2823, 64
        %v3688 = vpop.permute.xlu0 %3687
        %3697 = vrot.lane.b32.xlu0 %v2763, 64
        %v3698 = vpop.permute.xlu0 %3697
        %3699 = vrot.lane.b32.xlu0 %v2772, 64
        %v3700 = vpop.permute.xlu0 %3699
        %3701 = vrot.lane.b32.xlu0 %v2781, 64
        %v3702 = vpop.permute.xlu0 %3701
        %3703 = vrot.lane.b32.xlu0 %v2790, 64
        %v3704 = vpop.permute.xlu0 %3703
        %3705 = vrot.lane.b32.xlu0 %v2799, 64
        %v3706 = vpop.permute.xlu0 %3705
        %3707 = vrot.lane.b32.xlu0 %v2808, 64
        %v3708 = vpop.permute.xlu0 %3707
        %3709 = vrot.lane.b32.xlu0 %v2817, 64
        %v3710 = vpop.permute.xlu0 %3709
        %3711 = vrot.lane.b32.xlu0 %v2826, 64
        %v3712 = vpop.permute.xlu0 %3711
        %v3714 = vsel %vm2884, %v3674, 0
        %v3717 = vsel %vm2884, %v3676, 0
        %v3720 = vsel %vm2884, %v3678, 0
        %v3723 = vsel %vm2884, %v3680, 0
        %v3726 = vsel %vm2884, %v3682, 0
        %v3729 = vsel %vm2884, %v3684, 0
        %v3732 = vsel %vm2884, %v3686, 0
        %v3735 = vsel %vm2884, %v3688, 0
        %v3738 = vsel %vm2884, %v3698, 0
        %v3741 = vsel %vm2884, %v3700, 0
        %v3744 = vsel %vm2884, %v3702, 0
        %v3747 = vsel %vm2884, %v3704, 0
        %v3750 = vsel %vm2884, %v3706, 0
        %v3753 = vsel %vm2884, %v3708, 0
        %v3756 = vsel %vm2884, %v3710, 0
        %v3759 = vsel %vm2884, %v3712, 0
        %3761 = vmatprep.subr.bf16.mxu0 0
        %3762 = vmatpush1.bf16.xpose.msra.mxu0 %v3738
        %3763 = vmatprep.subr.bf16.mxu0 0
        %3764 = vmatpush1.bf16.xpose.msra.mxu0 %v3741
        %3765 = vmatprep.subr.bf16.mxu0 0
        %3766 = vmatpush1.bf16.xpose.msra.mxu0 %v3744
        %3767 = vmatprep.subr.bf16.mxu0 0
        %3768 = vmatpush1.bf16.xpose.msra.mxu0 %v3747
        %3769 = vmatprep.subr.bf16.mxu0 0
        %3770 = vmatpush1.bf16.xpose.msra.mxu0 %v3750
        %3771 = vmatprep.subr.bf16.mxu0 0
        %3772 = vmatpush1.bf16.xpose.msra.mxu0 %v3753
        %3773 = vmatprep.subr.bf16.mxu0 0
        %3774 = vmatpush1.bf16.xpose.msra.mxu0 %v3756
        %3775 = vmatprep.subr.bf16.mxu0 0
        %3776 = vmatpush1.bf16.xpose.msra.mxu0 %v3759
        %3777 = vmatprep.subr.bf16.mxu0 0
        %3778 = vmatpush1.bf16.xpose.msra.mxu0 0
        %3779 = vmatprep.subr.bf16.mxu0 0
        %3780 = vmatpush1.bf16.xpose.msra.mxu0 0
        %3781 = vmatprep.subr.bf16.mxu0 0
        %3782 = vmatpush1.bf16.xpose.msra.mxu0 0
        %3783 = vmatprep.subr.bf16.mxu0 0
        %3784 = vmatpush1.bf16.xpose.msra.mxu0 0
        %3785 = vmatprep.subr.bf16.mxu0 0
        %3786 = vmatpush1.bf16.xpose.msra.mxu0 0
        %3787 = vmatprep.subr.bf16.mxu0 0
        %3788 = vmatpush1.bf16.xpose.msra.mxu0 0
        %3789 = vmatprep.subr.bf16.mxu0 0
        %3790 = vmatpush1.bf16.xpose.msra.mxu0 0
        %3791 = vmatprep.subr.bf16.mxu0 0
        %3792 = vmatpush1.bf16.xpose.msra.mxu0 0
        %3793 = vmatprep.mubr.bf16.mxu0 0
        %3794 = vmatmul.mubr.bf16.gmra.mrb[0].mxu0 %v3714
        %v3795 = vpop.f32.mrb[0].mxu0
        %v3796 = vadd.f32 0.0, %v3795
        %v3797 = vpop.f32.mrb[0].mxu0
        %v3798 = vpop.f32.mrb[0].mxu0
        %v3799 = vadd.f32 0.0, %v3798
        %v3800 = vpop.f32.mrb[0].mxu0
        %3801 = vmatprep.mubr.bf16.mxu0 0
        %3802 = vmatmul.mubr.bf16.gmra.mrb[0].mxu0 %v3717
        %v3803 = vpop.f32.mrb[0].mxu0
        %v3804 = vadd.f32 0.0, %v3803
        %v3805 = vpop.f32.mrb[0].mxu0
        %v3806 = vpop.f32.mrb[0].mxu0
        %v3807 = vadd.f32 0.0, %v3806
        %v3808 = vpop.f32.mrb[0].mxu0
        %3809 = vmatprep.mubr.bf16.mxu0 0
        %3810 = vmatmul.mubr.bf16.gmra.mrb[0].mxu0 %v3720
        %v3811 = vpop.f32.mrb[0].mxu0
        %v3812 = vadd.f32 0.0, %v3811
        %v3813 = vpop.f32.mrb[0].mxu0
        %v3814 = vpop.f32.mrb[0].mxu0
        %v3815 = vadd.f32 0.0, %v3814
        %v3816 = vpop.f32.mrb[0].mxu0
        %3817 = vmatprep.mubr.bf16.mxu0 0
        %3818 = vmatmul.mubr.bf16.gmra.mrb[0].mxu0 %v3723
        %v3819 = vpop.f32.mrb[0].mxu0
        %v3820 = vadd.f32 0.0, %v3819
        %v3821 = vpop.f32.mrb[0].mxu0
        %v3822 = vpop.f32.mrb[0].mxu0
        %v3823 = vadd.f32 0.0, %v3822
        %v3824 = vpop.f32.mrb[0].mxu0
        %3825 = vmatprep.mubr.bf16.mxu0 0
        %3826 = vmatmul.mubr.bf16.gmra.mrb[0].mxu0 %v3726
        %v3827 = vpop.f32.mrb[0].mxu0
        %v3828 = vadd.f32 0.0, %v3827
        %v3829 = vpop.f32.mrb[0].mxu0
        %v3830 = vpop.f32.mrb[0].mxu0
        %v3831 = vadd.f32 0.0, %v3830
        %v3832 = vpop.f32.mrb[0].mxu0
        %3833 = vmatprep.mubr.bf16.mxu0 0
        %3834 = vmatmul.mubr.bf16.gmra.mrb[0].mxu0 %v3729
        %v3835 = vpop.f32.mrb[0].mxu0
        %v3836 = vadd.f32 0.0, %v3835
        %v3837 = vpop.f32.mrb[0].mxu0
        %v3838 = vpop.f32.mrb[0].mxu0
        %v3839 = vadd.f32 0.0, %v3838
        %v3840 = vpop.f32.mrb[0].mxu0
        %3841 = vmatprep.mubr.bf16.mxu0 0
        %3842 = vmatmul.mubr.bf16.gmra.mrb[0].mxu0 %v3732
        %v3843 = vpop.f32.mrb[0].mxu0
        %v3844 = vadd.f32 0.0, %v3843
        %v3845 = vpop.f32.mrb[0].mxu0
        %v3846 = vpop.f32.mrb[0].mxu0
        %v3847 = vadd.f32 0.0, %v3846
        %v3848 = vpop.f32.mrb[0].mxu0
        %3849 = vmatprep.mubr.bf16.mxu0 0
        %3850 = vmatmul.mubr.bf16.gmra.mrb[0].mxu0 %v3735
        %v3851 = vpop.f32.mrb[0].mxu0
        %v3852 = vadd.f32 0.0, %v3851
        %v3853 = vpop.f32.mrb[0].mxu0
        %v3854 = vpop.f32.mrb[0].mxu0
        %v3855 = vadd.f32 0.0, %v3854
        %v3856 = vpop.f32.mrb[0].mxu0
        %3857 = vdwg.mxu0
        %v3858 = vsel %vm2851, %v3796, -inf
        %v3859 = vsel %vm2852, %v3799, -inf
        %v3860 = vsel %vm2853, %v3804, -inf
        %v3861 = vsel %vm2854, %v3807, -inf
        %v3862 = vsel %vm2855, %v3812, -inf
        %v3863 = vsel %vm2856, %v3815, -inf
        %v3864 = vsel %vm2857, %v3820, -inf
        %v3865 = vsel %vm2858, %v3823, -inf
        %v3866 = vsel %vm2859, %v3828, -inf
        %v3867 = vsel %vm2860, %v3831, -inf
        %v3868 = vsel %vm2861, %v3836, -inf
        %v3869 = vsel %vm2862, %v3839, -inf
        %v3870 = vsel %vm2863, %v3844, -inf
        %v3871 = vsel %vm2864, %v3847, -inf
        %v3872 = vsel %vm2865, %v3852, -inf
        %v3873 = vsel %vm2866, %v3855, -inf
        %3874 = vmax.xlane.f32.xlu0 %v3858
        %v3875 = vpop.xlane.xlu0 %3874
        %3876 = vmax.xlane.f32.xlu0 %v3859
        %v3877 = vpop.xlane.xlu0 %3876
        %3878 = vmax.xlane.f32.xlu0 %v3860
        %v3879 = vpop.xlane.xlu0 %3878
        %3880 = vmax.xlane.f32.xlu0 %v3861
        %v3881 = vpop.xlane.xlu0 %3880
        %3882 = vmax.xlane.f32.xlu0 %v3862
        %v3883 = vpop.xlane.xlu0 %3882
        %3884 = vmax.xlane.f32.xlu0 %v3863
        %v3885 = vpop.xlane.xlu0 %3884
        %3886 = vmax.xlane.f32.xlu0 %v3864
        %v3887 = vpop.xlane.xlu0 %3886
        %3888 = vmax.xlane.f32.xlu0 %v3865
        %v3889 = vpop.xlane.xlu0 %3888
        %3890 = vmax.xlane.f32.xlu0 %v3866
        %v3891 = vpop.xlane.xlu0 %3890
        %3892 = vmax.xlane.f32.xlu0 %v3867
        %v3893 = vpop.xlane.xlu0 %3892
        %3894 = vmax.xlane.f32.xlu0 %v3868
        %v3895 = vpop.xlane.xlu0 %3894
        %3896 = vmax.xlane.f32.xlu0 %v3869
        %v3897 = vpop.xlane.xlu0 %3896
        %3898 = vmax.xlane.f32.xlu0 %v3870
        %v3899 = vpop.xlane.xlu0 %3898
        %3900 = vmax.xlane.f32.xlu0 %v3871
        %v3901 = vpop.xlane.xlu0 %3900
        %3902 = vmax.xlane.f32.xlu0 %v3872
        %v3903 = vpop.xlane.xlu0 %3902
        %3904 = vmax.xlane.f32.xlu0 %v3873
        %v3905 = vpop.xlane.xlu0 %3904
        %v3906 = vsub.f32 %v3858, %v3875
        %v3907 = vsub.f32 %v3859, %v3877
        %v3908 = vsub.f32 %v3860, %v3879
        %v3909 = vsub.f32 %v3861, %v3881
        %v3910 = vsub.f32 %v3862, %v3883
        %v3911 = vsub.f32 %v3863, %v3885
        %v3912 = vsub.f32 %v3864, %v3887
        %v3913 = vsub.f32 %v3865, %v3889
        %v3914 = vsub.f32 %v3866, %v3891
        %v3915 = vsub.f32 %v3867, %v3893
        %v3916 = vsub.f32 %v3868, %v3895
        %v3917 = vsub.f32 %v3869, %v3897
        %v3918 = vsub.f32 %v3870, %v3899
        %v3919 = vsub.f32 %v3871, %v3901
        %v3920 = vsub.f32 %v3872, %v3903
        %v3921 = vsub.f32 %v3873, %v3905
        %v3922 = vmul.f32 %v3906, 1.442695
        %v3923 = vpow.pop %v3922
        %v3924 = vmul.f32 %v3907, 1.442695
        %v3925 = vpow.pop %v3924
        %v3926 = vmul.f32 %v3908, 1.442695
        %v3927 = vpow.pop %v3926
        %v3928 = vmul.f32 %v3909, 1.442695
        %v3929 = vpow.pop %v3928
        %v3930 = vmul.f32 %v3910, 1.442695
        %v3931 = vpow.pop %v3930
        %v3932 = vmul.f32 %v3911, 1.442695
        %v3933 = vpow.pop %v3932
        %v3934 = vmul.f32 %v3912, 1.442695
        %v3935 = vpow.pop %v3934
        %v3936 = vmul.f32 %v3913, 1.442695
        %v3937 = vpow.pop %v3936
        %v3938 = vmul.f32 %v3914, 1.442695
        %v3939 = vpow.pop %v3938
        %v3940 = vmul.f32 %v3915, 1.442695
        %v3941 = vpow.pop %v3940
        %v3942 = vmul.f32 %v3916, 1.442695
        %v3943 = vpow.pop %v3942
        %v3944 = vmul.f32 %v3917, 1.442695
        %v3945 = vpow.pop %v3944
        %v3946 = vmul.f32 %v3918, 1.442695
        %v3947 = vpow.pop %v3946
        %v3948 = vmul.f32 %v3919, 1.442695
        %v3949 = vpow.pop %v3948
        %v3950 = vmul.f32 %v3920, 1.442695
        %v3951 = vpow.pop %v3950
        %v3952 = vmul.f32 %v3921, 1.442695
        %v3953 = vpow.pop %v3952
        %3954 = vadd.xlane.f32.xlu0 %v3923
        %v3955 = vpop.xlane.xlu0 %3954
        %3956 = vadd.xlane.f32.xlu0 %v3925
        %v3957 = vpop.xlane.xlu0 %3956
        %3958 = vadd.xlane.f32.xlu0 %v3927
        %v3959 = vpop.xlane.xlu0 %3958
        %3960 = vadd.xlane.f32.xlu0 %v3929
        %v3961 = vpop.xlane.xlu0 %3960
        %3962 = vadd.xlane.f32.xlu0 %v3931
        %v3963 = vpop.xlane.xlu0 %3962
        %3964 = vadd.xlane.f32.xlu0 %v3933
        %v3965 = vpop.xlane.xlu0 %3964
        %3966 = vadd.xlane.f32.xlu0 %v3935
        %v3967 = vpop.xlane.xlu0 %3966
        %3968 = vadd.xlane.f32.xlu0 %v3937
        %v3969 = vpop.xlane.xlu0 %3968
        %3970 = vadd.xlane.f32.xlu0 %v3939
        %v3971 = vpop.xlane.xlu0 %3970
        %3972 = vadd.xlane.f32.xlu0 %v3941
        %v3973 = vpop.xlane.xlu0 %3972
        %3974 = vadd.xlane.f32.xlu0 %v3943
        %v3975 = vpop.xlane.xlu0 %3974
        %3976 = vadd.xlane.f32.xlu0 %v3945
        %v3977 = vpop.xlane.xlu0 %3976
        %3978 = vadd.xlane.f32.xlu0 %v3947
        %v3979 = vpop.xlane.xlu0 %3978
        %3980 = vadd.xlane.f32.xlu0 %v3949
        %v3981 = vpop.xlane.xlu0 %3980
        %3982 = vadd.xlane.f32.xlu0 %v3951
        %v3983 = vpop.xlane.xlu0 %3982
        %3984 = vadd.xlane.f32.xlu0 %v3953
        %v3985 = vpop.xlane.xlu0 %3984
        %v3986 = vpack.c.bf16 %v3925, %v3923
        %v3987 = vpack.c.bf16 %v3929, %v3927
        %v3988 = vpack.c.bf16 %v3933, %v3931
        %v3989 = vpack.c.bf16 %v3937, %v3935
        %v3990 = vpack.c.bf16 %v3941, %v3939
        %v3991 = vpack.c.bf16 %v3945, %v3943
        %v3992 = vpack.c.bf16 %v3949, %v3947
        %v3993 = vpack.c.bf16 %v3953, %v3951
        %4002 = vrot.lane.b32.xlu0 %v2766, 64
        %v4003 = vpop.permute.xlu0 %4002
        %4004 = vrot.lane.b32.xlu0 %v2775, 64
        %v4005 = vpop.permute.xlu0 %4004
        %4006 = vrot.lane.b32.xlu0 %v2784, 64
        %v4007 = vpop.permute.xlu0 %4006
        %4008 = vrot.lane.b32.xlu0 %v2793, 64
        %v4009 = vpop.permute.xlu0 %4008
        %4010 = vrot.lane.b32.xlu0 %v2802, 64
        %v4011 = vpop.permute.xlu0 %4010
        %4012 = vrot.lane.b32.xlu0 %v2811, 64
        %v4013 = vpop.permute.xlu0 %4012
        %4014 = vrot.lane.b32.xlu0 %v2820, 64
        %v4015 = vpop.permute.xlu0 %4014
        %4016 = vrot.lane.b32.xlu0 %v2829, 64
        %v4017 = vpop.permute.xlu0 %4016
        %4026 = vmatprep.subr.bf16.mxu0 0
        %4027 = vmatpush1.bf16.msra.mxu0 %v4003
        %4028 = vmatprep.subr.bf16.mxu0 0
        %4029 = vmatpush1.bf16.msra.mxu0 %v4005
        %4030 = vmatprep.subr.bf16.mxu0 0
        %4031 = vmatpush1.bf16.msra.mxu0 %v4007
        %4032 = vmatprep.subr.bf16.mxu0 0
        %4033 = vmatpush1.bf16.msra.mxu0 %v4009
        %4034 = vmatprep.subr.bf16.mxu0 0
        %4035 = vmatpush1.bf16.msra.mxu0 %v4011
        %4036 = vmatprep.subr.bf16.mxu0 0
        %4037 = vmatpush1.bf16.msra.mxu0 %v4013
        %4038 = vmatprep.subr.bf16.mxu0 0
        %4039 = vmatpush1.bf16.msra.mxu0 %v4015
        %4040 = vmatprep.subr.bf16.mxu0 0
        %4041 = vmatpush1.bf16.msra.mxu0 %v4017
        %4042 = vmatprep.subr.bf16.mxu0 0
        %4043 = vmatpush1.bf16.msra.mxu0 0
        %4044 = vmatprep.subr.bf16.mxu0 0
        %4045 = vmatpush1.bf16.msra.mxu0 0
        %4046 = vmatprep.subr.bf16.mxu0 0
        %4047 = vmatpush1.bf16.msra.mxu0 0
        %4048 = vmatprep.subr.bf16.mxu0 0
        %4049 = vmatpush1.bf16.msra.mxu0 0
        %4050 = vmatprep.subr.bf16.mxu0 0
        %4051 = vmatpush1.bf16.msra.mxu0 0
        %4052 = vmatprep.subr.bf16.mxu0 0
        %4053 = vmatpush1.bf16.msra.mxu0 0
        %4054 = vmatprep.subr.bf16.mxu0 0
        %4055 = vmatpush1.bf16.msra.mxu0 0
        %4056 = vmatprep.subr.bf16.mxu0 0
        %4057 = vmatpush1.bf16.msra.mxu0 0
        %4058 = vmatprep.mubr.bf16.mxu0 0
        %4059 = vmatmul.mubr.bf16.gmra.mrb[0].mxu0 %v3986
        %v4060 = vpop.f32.mrb[0].mxu0
        %v4061 = vadd.f32 0.0, %v4060
        %v4062 = vpop.f32.mrb[0].mxu0
        %v4063 = vpop.f32.mrb[0].mxu0
        %v4064 = vadd.f32 0.0, %v4063
        %v4065 = vpop.f32.mrb[0].mxu0
        %4066 = vmatprep.mubr.bf16.mxu0 0
        %4067 = vmatmul.mubr.bf16.gmra.mrb[0].mxu0 %v3987
        %v4068 = vpop.f32.mrb[0].mxu0
        %v4069 = vadd.f32 0.0, %v4068
        %v4070 = vpop.f32.mrb[0].mxu0
        %v4071 = vpop.f32.mrb[0].mxu0
        %v4072 = vadd.f32 0.0, %v4071
        %v4073 = vpop.f32.mrb[0].mxu0
        %4074 = vmatprep.mubr.bf16.mxu0 0
        %4075 = vmatmul.mubr.bf16.gmra.mrb[0].mxu0 %v3988
        %v4076 = vpop.f32.mrb[0].mxu0
        %v4077 = vadd.f32 0.0, %v4076
        %v4078 = vpop.f32.mrb[0].mxu0
        %v4079 = vpop.f32.mrb[0].mxu0
        %v4080 = vadd.f32 0.0, %v4079
        %v4081 = vpop.f32.mrb[0].mxu0
        %4082 = vmatprep.mubr.bf16.mxu0 0
        %4083 = vmatmul.mubr.bf16.gmra.mrb[0].mxu0 %v3989
        %v4084 = vpop.f32.mrb[0].mxu0
        %v4085 = vadd.f32 0.0, %v4084
        %v4086 = vpop.f32.mrb[0].mxu0
        %v4087 = vpop.f32.mrb[0].mxu0
        %v4088 = vadd.f32 0.0, %v4087
        %v4089 = vpop.f32.mrb[0].mxu0
        %4090 = vmatprep.mubr.bf16.mxu0 0
        %4091 = vmatmul.mubr.bf16.gmra.mrb[0].mxu0 %v3990
        %v4092 = vpop.f32.mrb[0].mxu0
        %v4093 = vadd.f32 0.0, %v4092
        %v4094 = vpop.f32.mrb[0].mxu0
        %v4095 = vpop.f32.mrb[0].mxu0
        %v4096 = vadd.f32 0.0, %v4095
        %v4097 = vpop.f32.mrb[0].mxu0
        %4098 = vmatprep.mubr.bf16.mxu0 0
        %4099 = vmatmul.mubr.bf16.gmra.mrb[0].mxu0 %v3991
        %v4100 = vpop.f32.mrb[0].mxu0
        %v4101 = vadd.f32 0.0, %v4100
        %v4102 = vpop.f32.mrb[0].mxu0
        %v4103 = vpop.f32.mrb[0].mxu0
        %v4104 = vadd.f32 0.0, %v4103
        %v4105 = vpop.f32.mrb[0].mxu0
        %4106 = vmatprep.mubr.bf16.mxu0 0
        %4107 = vmatmul.mubr.bf16.gmra.mrb[0].mxu0 %v3992
        %v4108 = vpop.f32.mrb[0].mxu0
        %v4109 = vadd.f32 0.0, %v4108
        %v4110 = vpop.f32.mrb[0].mxu0
        %v4111 = vpop.f32.mrb[0].mxu0
        %v4112 = vadd.f32 0.0, %v4111
        %v4113 = vpop.f32.mrb[0].mxu0
        %4114 = vmatprep.mubr.bf16.mxu0 0
        %4115 = vmatmul.mubr.bf16.gmra.mrb[0].mxu0 %v3993
        %v4116 = vpop.f32.mrb[0].mxu0
        %v4117 = vadd.f32 0.0, %v4116
        %v4118 = vpop.f32.mrb[0].mxu0
        %v4119 = vpop.f32.mrb[0].mxu0
        %v4120 = vadd.f32 0.0, %v4119
        %v4121 = vpop.f32.mrb[0].mxu0
        %4122 = vdwg.mxu0
        %v4123 = vrcp.pop %v3955
        %v4124 = vrcp.pop %v3957
        %v4125 = vrcp.pop %v3959
        %v4126 = vrcp.pop %v3961
        %v4127 = vrcp.pop %v3963
        %v4128 = vrcp.pop %v3965
        %v4129 = vrcp.pop %v3967
        %v4130 = vrcp.pop %v3969
        %v4131 = vrcp.pop %v3971
        %v4132 = vrcp.pop %v3973
        %v4133 = vrcp.pop %v3975
        %v4134 = vrcp.pop %v3977
        %v4135 = vrcp.pop %v3979
        %v4136 = vrcp.pop %v3981
        %v4137 = vrcp.pop %v3983
        %v4138 = vrcp.pop %v3985
        %v4139 = vmul.f32 %v4061, %v4123
        %v4140 = vmul.f32 %v4064, %v4124
        %v4141 = vmul.f32 %v4069, %v4125
        %v4142 = vmul.f32 %v4072, %v4126
        %v4143 = vmul.f32 %v4077, %v4127
        %v4144 = vmul.f32 %v4080, %v4128
        %v4145 = vmul.f32 %v4085, %v4129
        %v4146 = vmul.f32 %v4088, %v4130
        %v4147 = vmul.f32 %v4093, %v4131
        %v4148 = vmul.f32 %v4096, %v4132
        %v4149 = vmul.f32 %v4101, %v4133
        %v4150 = vmul.f32 %v4104, %v4134
        %v4151 = vmul.f32 %v4109, %v4135
        %v4152 = vmul.f32 %v4112, %v4136
        %v4153 = vmul.f32 %v4117, %v4137
        %v4154 = vmul.f32 %v4120, %v4138
        %v4155 = vpack.c.bf16 %v4140, %v4139
        %v4156 = vpack.c.bf16 %v4142, %v4141
        %v4157 = vpack.c.bf16 %v4144, %v4143
        %v4158 = vpack.c.bf16 %v4146, %v4145
        %v4159 = vpack.c.bf16 %v4148, %v4147
        %v4160 = vpack.c.bf16 %v4150, %v4149
        %v4161 = vpack.c.bf16 %v4152, %v4151
        %v4162 = vpack.c.bf16 %v4154, %v4153
        %v4163 = vld [vmem:[#allocation7 + $0x60] sm:$0xff]
        %v4164 = vld [vmem:[#allocation7 + $0x68] sm:$0xf]
        %v4165 = vld [vmem:[#allocation7 + $0x6c] sm:$0xff]
        %v4166 = vld [vmem:[#allocation7 + $0x74] sm:$0xf]
        %v4167 = vld [vmem:[#allocation7 + $0x78] sm:$0xff]
        %v4168 = vld [vmem:[#allocation7 + $0x80] sm:$0xf]
        %v4169 = vld [vmem:[#allocation7 + $0x84] sm:$0xff]
        %v4170 = vld [vmem:[#allocation7 + $0x8c] sm:$0xf]
        %v4171 = vld [vmem:[#allocation7 + $0x90] sm:$0xff]
        %v4172 = vld [vmem:[#allocation7 + $0x98] sm:$0xf]
        %v4173 = vld [vmem:[#allocation7 + $0x9c] sm:$0xff]
        %v4174 = vld [vmem:[#allocation7 + $0xa4] sm:$0xf]
        %v4175 = vld [vmem:[#allocation7 + $0xa8] sm:$0xff]
        %v4176 = vld [vmem:[#allocation7 + $0xb0] sm:$0xf]
        %v4177 = vld [vmem:[#allocation7 + $0xb4] sm:$0xff]
        %v4178 = vld [vmem:[#allocation7 + $0xbc] sm:$0xf]
        %v4195 = vunpack.c.l.b16 %v4163
        %v4196 = vunpack.c.h.b16 %v4163
        %v4197 = vunpack.c.l.b16 %v4164
        %v4198 = vunpack.c.l.b16 %v4165
        %v4199 = vunpack.c.h.b16 %v4165
        %v4200 = vunpack.c.l.b16 %v4166
        %v4201 = vunpack.c.l.b16 %v4167
        %v4202 = vunpack.c.h.b16 %v4167
        %v4203 = vunpack.c.l.b16 %v4168
        %v4204 = vunpack.c.l.b16 %v4169
        %v4205 = vunpack.c.h.b16 %v4169
        %v4206 = vunpack.c.l.b16 %v4170
        %v4207 = vunpack.c.l.b16 %v4171
        %v4208 = vunpack.c.h.b16 %v4171
        %v4209 = vunpack.c.l.b16 %v4172
        %v4210 = vunpack.c.l.b16 %v4173
        %v4211 = vunpack.c.h.b16 %v4173
        %v4212 = vunpack.c.l.b16 %v4174
        %v4213 = vunpack.c.l.b16 %v4175
        %v4214 = vunpack.c.h.b16 %v4175
        %v4215 = vunpack.c.l.b16 %v4176
        %v4216 = vunpack.c.l.b16 %v4177
        %v4217 = vunpack.c.h.b16 %v4177
        %v4218 = vunpack.c.l.b16 %v4178
        %v4219 = vpack.c.b16 %v4198, %v4195
        %v4220 = vpack.c.b16 %v4199, %v4196
        %v4221 = vpack.c.b16 %v4200, %v4197
        %v4222 = vpack.c.b16 %v4204, %v4201
        %v4223 = vpack.c.b16 %v4205, %v4202
        %v4224 = vpack.c.b16 %v4206, %v4203
        %v4225 = vpack.c.b16 %v4210, %v4207
        %v4226 = vpack.c.b16 %v4211, %v4208
        %v4227 = vpack.c.b16 %v4212, %v4209
        %v4228 = vpack.c.b16 %v4216, %v4213
        %v4229 = vpack.c.b16 %v4217, %v4214
        %v4230 = vpack.c.b16 %v4218, %v4215
        %v4244 = vsel %vm2884, %v4155, 0
        %v4247 = vsel %vm2884, %v4156, 0
        %v4250 = vsel %vm2884, %v4157, 0
        %v4253 = vsel %vm2884, %v4158, 0
        %v4256 = vsel %vm2884, %v4159, 0
        %v4259 = vsel %vm2884, %v4160, 0
        %v4262 = vsel %vm2884, %v4161, 0
        %v4265 = vsel %vm2884, %v4162, 0
        %4267 = vmatprep.subr.bf16.mxu0 %v4220
        %4268 = vmatpush1.bf16.msra.mxu0 %v4219
        %4269 = vmatprep.subr.bf16.mxu0 %v4223
        %4270 = vmatpush1.bf16.msra.mxu0 %v4222
        %4271 = vmatprep.subr.bf16.mxu0 %v4226
        %4272 = vmatpush1.bf16.msra.mxu0 %v4225
        %4273 = vmatprep.subr.bf16.mxu0 %v4229
        %4274 = vmatpush1.bf16.msra.mxu0 %v4228
        %4275 = vmatprep.subr.bf16.mxu0 0
        %4276 = vmatpush1.bf16.msra.mxu0 0
        %4277 = vmatprep.subr.bf16.mxu0 0
        %4278 = vmatpush1.bf16.msra.mxu0 0
        %4279 = vmatprep.subr.bf16.mxu0 0
        %4280 = vmatpush1.bf16.msra.mxu0 0
        %4281 = vmatprep.subr.bf16.mxu0 0
        %4282 = vmatpush1.bf16.msra.mxu0 0
        %4283 = vmatprep.subr.bf16.mxu0 0
        %4284 = vmatpush1.bf16.msra.mxu0 0
        %4285 = vmatprep.subr.bf16.mxu0 0
        %4286 = vmatpush1.bf16.msra.mxu0 0
        %4287 = vmatprep.subr.bf16.mxu0 0
        %4288 = vmatpush1.bf16.msra.mxu0 0
        %4289 = vmatprep.subr.bf16.mxu0 0
        %4290 = vmatpush1.bf16.msra.mxu0 0
        %4291 = vmatprep.subr.bf16.mxu0 0
        %4292 = vmatpush1.bf16.msra.mxu0 0
        %4293 = vmatprep.subr.bf16.mxu0 0
        %4294 = vmatpush1.bf16.msra.mxu0 0
        %4295 = vmatprep.subr.bf16.mxu0 0
        %4296 = vmatpush1.bf16.msra.mxu0 0
        %4297 = vmatprep.subr.bf16.mxu0 0
        %4298 = vmatpush1.bf16.msra.mxu0 0
        %4299 = vmatprep.mubr.bf16.mxu0 0
        %4300 = vmatmul.mubr.bf16.gmra.mrb[0].mxu0 %v4244
        %v4301 = vpop.f32.mrb[0].mxu0
        %v4302 = vadd.f32 0.0, %v4301
        %v4303 = vpop.f32.mrb[0].mxu0
        %v4304 = vadd.f32 0.0, %v4303
        %v4305 = vpop.f32.mrb[0].mxu0
        %v4306 = vadd.f32 0.0, %v4305
        %v4307 = vpop.f32.mrb[0].mxu0
        %v4308 = vadd.f32 0.0, %v4307
        %4309 = vmatprep.mubr.bf16.mxu0 0
        %4310 = vmatmul.mubr.bf16.gmra.mrb[0].mxu0 %v4247
        %v4311 = vpop.f32.mrb[0].mxu0
        %v4312 = vadd.f32 0.0, %v4311
        %v4313 = vpop.f32.mrb[0].mxu0
        %v4314 = vadd.f32 0.0, %v4313
        %v4315 = vpop.f32.mrb[0].mxu0
        %v4316 = vadd.f32 0.0, %v4315
        %v4317 = vpop.f32.mrb[0].mxu0
        %v4318 = vadd.f32 0.0, %v4317
        %4319 = vmatprep.mubr.bf16.mxu0 0
        %4320 = vmatmul.mubr.bf16.gmra.mrb[0].mxu0 %v4250
        %v4321 = vpop.f32.mrb[0].mxu0
        %v4322 = vadd.f32 0.0, %v4321
        %v4323 = vpop.f32.mrb[0].mxu0
        %v4324 = vadd.f32 0.0, %v4323
        %v4325 = vpop.f32.mrb[0].mxu0
        %v4326 = vadd.f32 0.0, %v4325
        %v4327 = vpop.f32.mrb[0].mxu0
        %v4328 = vadd.f32 0.0, %v4327
        %4329 = vmatprep.mubr.bf16.mxu0 0
        %4330 = vmatmul.mubr.bf16.gmra.mrb[0].mxu0 %v4253
        %v4331 = vpop.f32.mrb[0].mxu0
        %v4332 = vadd.f32 0.0, %v4331
        %v4333 = vpop.f32.mrb[0].mxu0
        %v4334 = vadd.f32 0.0, %v4333
        %v4335 = vpop.f32.mrb[0].mxu0
        %v4336 = vadd.f32 0.0, %v4335
        %v4337 = vpop.f32.mrb[0].mxu0
        %v4338 = vadd.f32 0.0, %v4337
        %4339 = vmatprep.mubr.bf16.mxu0 0
        %4340 = vmatmul.mubr.bf16.gmra.mrb[0].mxu0 %v4256
        %v4341 = vpop.f32.mrb[0].mxu0
        %v4342 = vadd.f32 0.0, %v4341
        %v4343 = vpop.f32.mrb[0].mxu0
        %v4344 = vadd.f32 0.0, %v4343
        %v4345 = vpop.f32.mrb[0].mxu0
        %v4346 = vadd.f32 0.0, %v4345
        %v4347 = vpop.f32.mrb[0].mxu0
        %v4348 = vadd.f32 0.0, %v4347
        %4349 = vmatprep.mubr.bf16.mxu0 0
        %4350 = vmatmul.mubr.bf16.gmra.mrb[0].mxu0 %v4259
        %v4351 = vpop.f32.mrb[0].mxu0
        %v4352 = vadd.f32 0.0, %v4351
        %v4353 = vpop.f32.mrb[0].mxu0
        %v4354 = vadd.f32 0.0, %v4353
        %v4355 = vpop.f32.mrb[0].mxu0
        %v4356 = vadd.f32 0.0, %v4355
        %v4357 = vpop.f32.mrb[0].mxu0
        %v4358 = vadd.f32 0.0, %v4357
        %4359 = vmatprep.mubr.bf16.mxu0 0
        %4360 = vmatmul.mubr.bf16.gmra.mrb[0].mxu0 %v4262
        %v4361 = vpop.f32.mrb[0].mxu0
        %v4362 = vadd.f32 0.0, %v4361
        %v4363 = vpop.f32.mrb[0].mxu0
        %v4364 = vadd.f32 0.0, %v4363
        %v4365 = vpop.f32.mrb[0].mxu0
        %v4366 = vadd.f32 0.0, %v4365
        %v4367 = vpop.f32.mrb[0].mxu0
        %v4368 = vadd.f32 0.0, %v4367
        %4369 = vmatprep.mubr.bf16.mxu0 0
        %4370 = vmatmul.mubr.bf16.gmra.mrb[0].mxu0 %v4265
        %v4371 = vpop.f32.mrb[0].mxu0
        %v4372 = vadd.f32 0.0, %v4371
        %v4373 = vpop.f32.mrb[0].mxu0
        %v4374 = vadd.f32 0.0, %v4373
        %v4375 = vpop.f32.mrb[0].mxu0
        %v4376 = vadd.f32 0.0, %v4375
        %v4377 = vpop.f32.mrb[0].mxu0
        %v4378 = vadd.f32 0.0, %v4377
        %4379 = vdwg.mxu0
        %4380 = vmatprep.subr.bf16.mxu0 0
        %4381 = vmatpush1.bf16.msra.mxu0 %v4221
        %4382 = vmatprep.subr.bf16.mxu0 0
        %4383 = vmatpush1.bf16.msra.mxu0 %v4224
        %4384 = vmatprep.subr.bf16.mxu0 0
        %4385 = vmatpush1.bf16.msra.mxu0 %v4227
        %4386 = vmatprep.subr.bf16.mxu0 0
        %4387 = vmatpush1.bf16.msra.mxu0 %v4230
        %4388 = vmatprep.subr.bf16.mxu0 0
        %4389 = vmatpush1.bf16.msra.mxu0 0
        %4390 = vmatprep.subr.bf16.mxu0 0
        %4391 = vmatpush1.bf16.msra.mxu0 0
        %4392 = vmatprep.subr.bf16.mxu0 0
        %4393 = vmatpush1.bf16.msra.mxu0 0
        %4394 = vmatprep.subr.bf16.mxu0 0
        %4395 = vmatpush1.bf16.msra.mxu0 0
        %4396 = vmatprep.subr.bf16.mxu0 0
        %4397 = vmatpush1.bf16.msra.mxu0 0
        %4398 = vmatprep.subr.bf16.mxu0 0
        %4399 = vmatpush1.bf16.msra.mxu0 0
        %4400 = vmatprep.subr.bf16.mxu0 0
        %4401 = vmatpush1.bf16.msra.mxu0 0
        %4402 = vmatprep.subr.bf16.mxu0 0
        %4403 = vmatpush1.bf16.msra.mxu0 0
        %4404 = vmatprep.subr.bf16.mxu0 0
        %4405 = vmatpush1.bf16.msra.mxu0 0
        %4406 = vmatprep.subr.bf16.mxu0 0
        %4407 = vmatpush1.bf16.msra.mxu0 0
        %4408 = vmatprep.subr.bf16.mxu0 0
        %4409 = vmatpush1.bf16.msra.mxu0 0
        %4410 = vmatprep.subr.bf16.mxu0 0
        %4411 = vmatpush1.bf16.msra.mxu0 0
        %4412 = vmatprep.mubr.bf16.mxu0 0
        %4413 = vmatmul.mubr.bf16.gmra.mrb[0].mxu0 %v4244
        %v4414 = vpop.f32.mrb[0].mxu0
        %v4415 = vadd.f32 0.0, %v4414
        %v4416 = vpop.f32.mrb[0].mxu0
        %v4417 = vpop.f32.mrb[0].mxu0
        %v4418 = vadd.f32 0.0, %v4417
        %v4419 = vpop.f32.mrb[0].mxu0
        %4420 = vmatprep.mubr.bf16.mxu0 0
        %4421 = vmatmul.mubr.bf16.gmra.mrb[0].mxu0 %v4247
        %v4422 = vpop.f32.mrb[0].mxu0
        %v4423 = vadd.f32 0.0, %v4422
        %v4424 = vpop.f32.mrb[0].mxu0
        %v4425 = vpop.f32.mrb[0].mxu0
        %v4426 = vadd.f32 0.0, %v4425
        %v4427 = vpop.f32.mrb[0].mxu0
        %4428 = vmatprep.mubr.bf16.mxu0 0
        %4429 = vmatmul.mubr.bf16.gmra.mrb[0].mxu0 %v4250
        %v4430 = vpop.f32.mrb[0].mxu0
        %v4431 = vadd.f32 0.0, %v4430
        %v4432 = vpop.f32.mrb[0].mxu0
        %v4433 = vpop.f32.mrb[0].mxu0
        %v4434 = vadd.f32 0.0, %v4433
        %v4435 = vpop.f32.mrb[0].mxu0
        %4436 = vmatprep.mubr.bf16.mxu0 0
        %4437 = vmatmul.mubr.bf16.gmra.mrb[0].mxu0 %v4253
        %v4438 = vpop.f32.mrb[0].mxu0
        %v4439 = vadd.f32 0.0, %v4438
        %v4440 = vpop.f32.mrb[0].mxu0
        %v4441 = vpop.f32.mrb[0].mxu0
        %v4442 = vadd.f32 0.0, %v4441
        %v4443 = vpop.f32.mrb[0].mxu0
        %4444 = vmatprep.mubr.bf16.mxu0 0
        %4445 = vmatmul.mubr.bf16.gmra.mrb[0].mxu0 %v4256
        %v4446 = vpop.f32.mrb[0].mxu0
        %v4447 = vadd.f32 0.0, %v4446
        %v4448 = vpop.f32.mrb[0].mxu0
        %v4449 = vpop.f32.mrb[0].mxu0
        %v4450 = vadd.f32 0.0, %v4449
        %v4451 = vpop.f32.mrb[0].mxu0
        %4452 = vmatprep.mubr.bf16.mxu0 0
        %4453 = vmatmul.mubr.bf16.gmra.mrb[0].mxu0 %v4259
        %v4454 = vpop.f32.mrb[0].mxu0
        %v4455 = vadd.f32 0.0, %v4454
        %v4456 = vpop.f32.mrb[0].mxu0
        %v4457 = vpop.f32.mrb[0].mxu0
        %v4458 = vadd.f32 0.0, %v4457
        %v4459 = vpop.f32.mrb[0].mxu0
        %4460 = vmatprep.mubr.bf16.mxu0 0
        %4461 = vmatmul.mubr.bf16.gmra.mrb[0].mxu0 %v4262
        %v4462 = vpop.f32.mrb[0].mxu0
        %v4463 = vadd.f32 0.0, %v4462
        %v4464 = vpop.f32.mrb[0].mxu0
        %v4465 = vpop.f32.mrb[0].mxu0
        %v4466 = vadd.f32 0.0, %v4465
        %v4467 = vpop.f32.mrb[0].mxu0
        %4468 = vmatprep.mubr.bf16.mxu0 0
        %4469 = vmatmul.mubr.bf16.gmra.mrb[0].mxu0 %v4265
        %v4470 = vpop.f32.mrb[0].mxu0
        %v4471 = vadd.f32 0.0, %v4470
        %v4472 = vpop.f32.mrb[0].mxu0
        %v4473 = vpop.f32.mrb[0].mxu0
        %v4474 = vadd.f32 0.0, %v4473
        %v4475 = vpop.f32.mrb[0].mxu0
        %4476 = vdwg.mxu0
        %v4477 = vadd.f32 %v3617, %v4302
        %v4478 = vadd.f32 %v3618, %v4304
        %v4479 = vadd.f32 %v3619, %v4415
        %v4480 = vadd.f32 %v3620, %v4306
        %v4481 = vadd.f32 %v3621, %v4308
        %v4482 = vadd.f32 %v3622, %v4418
        %v4483 = vadd.f32 %v3623, %v4312
        %v4484 = vadd.f32 %v3624, %v4314
        %v4485 = vadd.f32 %v3625, %v4423
        %v4486 = vadd.f32 %v3626, %v4316
        %v4487 = vadd.f32 %v3627, %v4318
        %v4488 = vadd.f32 %v3628, %v4426
        %v4489 = vadd.f32 %v3629, %v4322
        %v4490 = vadd.f32 %v3630, %v4324
        %v4491 = vadd.f32 %v3631, %v4431
        %v4492 = vadd.f32 %v3632, %v4326
        %v4493 = vadd.f32 %v3633, %v4328
        %v4494 = vadd.f32 %v3634, %v4434
        %v4495 = vadd.f32 %v3635, %v4332
        %v4496 = vadd.f32 %v3636, %v4334
        %v4497 = vadd.f32 %v3637, %v4439
        %v4498 = vadd.f32 %v3638, %v4336
        %v4499 = vadd.f32 %v3639, %v4338
        %v4500 = vadd.f32 %v3640, %v4442
        %v4501 = vadd.f32 %v3641, %v4342
        %v4502 = vadd.f32 %v3642, %v4344
        %v4503 = vadd.f32 %v3643, %v4447
        %v4504 = vadd.f32 %v3644, %v4346
        %v4505 = vadd.f32 %v3645, %v4348
        %v4506 = vadd.f32 %v3646, %v4450
        %v4507 = vadd.f32 %v3647, %v4352
        %v4508 = vadd.f32 %v3648, %v4354
        %v4509 = vadd.f32 %v3649, %v4455
        %v4510 = vadd.f32 %v3650, %v4356
        %v4511 = vadd.f32 %v3651, %v4358
        %v4512 = vadd.f32 %v3652, %v4458
        %v4513 = vadd.f32 %v3653, %v4362
        %v4514 = vadd.f32 %v3654, %v4364
        %v4515 = vadd.f32 %v3655, %v4463
        %v4516 = vadd.f32 %v3656, %v4366
        %v4517 = vadd.f32 %v3657, %v4368
        %v4518 = vadd.f32 %v3658, %v4466
        %v4519 = vadd.f32 %v3659, %v4372
        %v4520 = vadd.f32 %v3660, %v4374
        %v4521 = vadd.f32 %v3661, %v4471
        %v4522 = vadd.f32 %v3662, %v4376
        %v4523 = vadd.f32 %v3663, %v4378
        %v4524 = vadd.f32 %v3664, %v4474
        %v4526 = vsel %vm2884, %v2761, 0
        %v4529 = vsel %vm2884, %v2770, 0
        %v4532 = vsel %vm2884, %v2779, 0
        %v4535 = vsel %vm2884, %v2788, 0
        %v4538 = vsel %vm2884, %v2797, 0
        %v4541 = vsel %vm2884, %v2806, 0
        %v4544 = vsel %vm2884, %v2815, 0
        %v4547 = vsel %vm2884, %v2824, 0
        %v4550 = vsel %vm2884, %v2764, 0
        %v4553 = vsel %vm2884, %v2773, 0
        %v4556 = vsel %vm2884, %v2782, 0
        %v4559 = vsel %vm2884, %v2791, 0
        %v4562 = vsel %vm2884, %v2800, 0
        %v4565 = vsel %vm2884, %v2809, 0
        %v4568 = vsel %vm2884, %v2818, 0
        %v4571 = vsel %vm2884, %v2827, 0
        %4573 = vmatprep.subr.bf16.mxu0 0
        %4574 = vmatpush1.bf16.xpose.msra.mxu0 %v4550
        %4575 = vmatprep.subr.bf16.mxu0 0
        %4576 = vmatpush1.bf16.xpose.msra.mxu0 %v4553
        %4577 = vmatprep.subr.bf16.mxu0 0
        %4578 = vmatpush1.bf16.xpose.msra.mxu0 %v4556
        %4579 = vmatprep.subr.bf16.mxu0 0
        %4580 = vmatpush1.bf16.xpose.msra.mxu0 %v4559
        %4581 = vmatprep.subr.bf16.mxu0 0
        %4582 = vmatpush1.bf16.xpose.msra.mxu0 %v4562
        %4583 = vmatprep.subr.bf16.mxu0 0
        %4584 = vmatpush1.bf16.xpose.msra.mxu0 %v4565
        %4585 = vmatprep.subr.bf16.mxu0 0
        %4586 = vmatpush1.bf16.xpose.msra.mxu0 %v4568
        %4587 = vmatprep.subr.bf16.mxu0 0
        %4588 = vmatpush1.bf16.xpose.msra.mxu0 %v4571
        %4589 = vmatprep.subr.bf16.mxu0 0
        %4590 = vmatpush1.bf16.xpose.msra.mxu0 0
        %4591 = vmatprep.subr.bf16.mxu0 0
        %4592 = vmatpush1.bf16.xpose.msra.mxu0 0
        %4593 = vmatprep.subr.bf16.mxu0 0
        %4594 = vmatpush1.bf16.xpose.msra.mxu0 0
        %4595 = vmatprep.subr.bf16.mxu0 0
        %4596 = vmatpush1.bf16.xpose.msra.mxu0 0
        %4597 = vmatprep.subr.bf16.mxu0 0
        %4598 = vmatpush1.bf16.xpose.msra.mxu0 0
        %4599 = vmatprep.subr.bf16.mxu0 0
        %4600 = vmatpush1.bf16.xpose.msra.mxu0 0
        %4601 = vmatprep.subr.bf16.mxu0 0
        %4602 = vmatpush1.bf16.xpose.msra.mxu0 0
        %4603 = vmatprep.subr.bf16.mxu0 0
        %4604 = vmatpush1.bf16.xpose.msra.mxu0 0
        %4605 = vmatprep.mubr.bf16.mxu0 0
        %4606 = vmatmul.mubr.bf16.gmra.mrb[0].mxu0 %v4526
        %v4607 = vpop.f32.mrb[0].mxu0
        %v4608 = vadd.f32 0.0, %v4607
        %v4609 = vpop.f32.mrb[0].mxu0
        %v4610 = vpop.f32.mrb[0].mxu0
        %v4611 = vadd.f32 0.0, %v4610
        %v4612 = vpop.f32.mrb[0].mxu0
        %4613 = vmatprep.mubr.bf16.mxu0 0
        %4614 = vmatmul.mubr.bf16.gmra.mrb[0].mxu0 %v4529
        %v4615 = vpop.f32.mrb[0].mxu0
        %v4616 = vadd.f32 0.0, %v4615
        %v4617 = vpop.f32.mrb[0].mxu0
        %v4618 = vpop.f32.mrb[0].mxu0
        %v4619 = vadd.f32 0.0, %v4618
        %v4620 = vpop.f32.mrb[0].mxu0
        %4621 = vmatprep.mubr.bf16.mxu0 0
        %4622 = vmatmul.mubr.bf16.gmra.mrb[0].mxu0 %v4532
        %v4623 = vpop.f32.mrb[0].mxu0
        %v4624 = vadd.f32 0.0, %v4623
        %v4625 = vpop.f32.mrb[0].mxu0
        %v4626 = vpop.f32.mrb[0].mxu0
        %v4627 = vadd.f32 0.0, %v4626
        %v4628 = vpop.f32.mrb[0].mxu0
        %4629 = vmatprep.mubr.bf16.mxu0 0
        %4630 = vmatmul.mubr.bf16.gmra.mrb[0].mxu0 %v4535
        %v4631 = vpop.f32.mrb[0].mxu0
        %v4632 = vadd.f32 0.0, %v4631
        %v4633 = vpop.f32.mrb[0].mxu0
        %v4634 = vpop.f32.mrb[0].mxu0
        %v4635 = vadd.f32 0.0, %v4634
        %v4636 = vpop.f32.mrb[0].mxu0
        %4637 = vmatprep.mubr.bf16.mxu0 0
        %4638 = vmatmul.mubr.bf16.gmra.mrb[0].mxu0 %v4538
        %v4639 = vpop.f32.mrb[0].mxu0
        %v4640 = vadd.f32 0.0, %v4639
        %v4641 = vpop.f32.mrb[0].mxu0
        %v4642 = vpop.f32.mrb[0].mxu0
        %v4643 = vadd.f32 0.0, %v4642
        %v4644 = vpop.f32.mrb[0].mxu0
        %4645 = vmatprep.mubr.bf16.mxu0 0
        %4646 = vmatmul.mubr.bf16.gmra.mrb[0].mxu0 %v4541
        %v4647 = vpop.f32.mrb[0].mxu0
        %v4648 = vadd.f32 0.0, %v4647
        %v4649 = vpop.f32.mrb[0].mxu0
        %v4650 = vpop.f32.mrb[0].mxu0
        %v4651 = vadd.f32 0.0, %v4650
        %v4652 = vpop.f32.mrb[0].mxu0
        %4653 = vmatprep.mubr.bf16.mxu0 0
        %4654 = vmatmul.mubr.bf16.gmra.mrb[0].mxu0 %v4544
        %v4655 = vpop.f32.mrb[0].mxu0
        %v4656 = vadd.f32 0.0, %v4655
        %v4657 = vpop.f32.mrb[0].mxu0
        %v4658 = vpop.f32.mrb[0].mxu0
        %v4659 = vadd.f32 0.0, %v4658
        %v4660 = vpop.f32.mrb[0].mxu0
        %4661 = vmatprep.mubr.bf16.mxu0 0
        %4662 = vmatmul.mubr.bf16.gmra.mrb[0].mxu0 %v4547
        %v4663 = vpop.f32.mrb[0].mxu0
        %v4664 = vadd.f32 0.0, %v4663
        %v4665 = vpop.f32.mrb[0].mxu0
        %v4666 = vpop.f32.mrb[0].mxu0
        %v4667 = vadd.f32 0.0, %v4666
        %v4668 = vpop.f32.mrb[0].mxu0
        %4669 = vdwg.mxu0
        %v4670 = vsel %vm2851, %v4608, -inf
        %v4671 = vsel %vm2852, %v4611, -inf
        %v4672 = vsel %vm2853, %v4616, -inf
        %v4673 = vsel %vm2854, %v4619, -inf
        %v4674 = vsel %vm2855, %v4624, -inf
        %v4675 = vsel %vm2856, %v4627, -inf
        %v4676 = vsel %vm2857, %v4632, -inf
        %v4677 = vsel %vm2858, %v4635, -inf
        %v4678 = vsel %vm2859, %v4640, -inf
        %v4679 = vsel %vm2860, %v4643, -inf
        %v4680 = vsel %vm2861, %v4648, -inf
        %v4681 = vsel %vm2862, %v4651, -inf
        %v4682 = vsel %vm2863, %v4656, -inf
        %v4683 = vsel %vm2864, %v4659, -inf
        %v4684 = vsel %vm2865, %v4664, -inf
        %v4685 = vsel %vm2866, %v4667, -inf
        %4686 = vmax.xlane.f32.xlu0 %v4670
        %v4687 = vpop.xlane.xlu0 %4686
        %4688 = vmax.xlane.f32.xlu0 %v4671
        %v4689 = vpop.xlane.xlu0 %4688
        %4690 = vmax.xlane.f32.xlu0 %v4672
        %v4691 = vpop.xlane.xlu0 %4690
        %4692 = vmax.xlane.f32.xlu0 %v4673
        %v4693 = vpop.xlane.xlu0 %4692
        %4694 = vmax.xlane.f32.xlu0 %v4674
        %v4695 = vpop.xlane.xlu0 %4694
        %4696 = vmax.xlane.f32.xlu0 %v4675
        %v4697 = vpop.xlane.xlu0 %4696
        %4698 = vmax.xlane.f32.xlu0 %v4676
        %v4699 = vpop.xlane.xlu0 %4698
        %4700 = vmax.xlane.f32.xlu0 %v4677
        %v4701 = vpop.xlane.xlu0 %4700
        %4702 = vmax.xlane.f32.xlu0 %v4678
        %v4703 = vpop.xlane.xlu0 %4702
        %4704 = vmax.xlane.f32.xlu0 %v4679
        %v4705 = vpop.xlane.xlu0 %4704
        %4706 = vmax.xlane.f32.xlu0 %v4680
        %v4707 = vpop.xlane.xlu0 %4706
        %4708 = vmax.xlane.f32.xlu0 %v4681
        %v4709 = vpop.xlane.xlu0 %4708
        %4710 = vmax.xlane.f32.xlu0 %v4682
        %v4711 = vpop.xlane.xlu0 %4710
        %4712 = vmax.xlane.f32.xlu0 %v4683
        %v4713 = vpop.xlane.xlu0 %4712
        %4714 = vmax.xlane.f32.xlu0 %v4684
        %v4715 = vpop.xlane.xlu0 %4714
        %4716 = vmax.xlane.f32.xlu0 %v4685
        %v4717 = vpop.xlane.xlu0 %4716
        %v4718 = vsub.f32 %v4670, %v4687
        %v4719 = vsub.f32 %v4671, %v4689
        %v4720 = vsub.f32 %v4672, %v4691
        %v4721 = vsub.f32 %v4673, %v4693
        %v4722 = vsub.f32 %v4674, %v4695
        %v4723 = vsub.f32 %v4675, %v4697
        %v4724 = vsub.f32 %v4676, %v4699
        %v4725 = vsub.f32 %v4677, %v4701
        %v4726 = vsub.f32 %v4678, %v4703
        %v4727 = vsub.f32 %v4679, %v4705
        %v4728 = vsub.f32 %v4680, %v4707
        %v4729 = vsub.f32 %v4681, %v4709
        %v4730 = vsub.f32 %v4682, %v4711
        %v4731 = vsub.f32 %v4683, %v4713
        %v4732 = vsub.f32 %v4684, %v4715
        %v4733 = vsub.f32 %v4685, %v4717
        %v4734 = vmul.f32 %v4718, 1.442695
        %v4735 = vpow.pop %v4734
        %v4736 = vmul.f32 %v4719, 1.442695
        %v4737 = vpow.pop %v4736
        %v4738 = vmul.f32 %v4720, 1.442695
        %v4739 = vpow.pop %v4738
        %v4740 = vmul.f32 %v4721, 1.442695
        %v4741 = vpow.pop %v4740
        %v4742 = vmul.f32 %v4722, 1.442695
        %v4743 = vpow.pop %v4742
        %v4744 = vmul.f32 %v4723, 1.442695
        %v4745 = vpow.pop %v4744
        %v4746 = vmul.f32 %v4724, 1.442695
        %v4747 = vpow.pop %v4746
        %v4748 = vmul.f32 %v4725, 1.442695
        %v4749 = vpow.pop %v4748
        %v4750 = vmul.f32 %v4726, 1.442695
        %v4751 = vpow.pop %v4750
        %v4752 = vmul.f32 %v4727, 1.442695
        %v4753 = vpow.pop %v4752
        %v4754 = vmul.f32 %v4728, 1.442695
        %v4755 = vpow.pop %v4754
        %v4756 = vmul.f32 %v4729, 1.442695
        %v4757 = vpow.pop %v4756
        %v4758 = vmul.f32 %v4730, 1.442695
        %v4759 = vpow.pop %v4758
        %v4760 = vmul.f32 %v4731, 1.442695
        %v4761 = vpow.pop %v4760
        %v4762 = vmul.f32 %v4732, 1.442695
        %v4763 = vpow.pop %v4762
        %v4764 = vmul.f32 %v4733, 1.442695
        %v4765 = vpow.pop %v4764
        %4766 = vadd.xlane.f32.xlu0 %v4735
        %v4767 = vpop.xlane.xlu0 %4766
        %4768 = vadd.xlane.f32.xlu0 %v4737
        %v4769 = vpop.xlane.xlu0 %4768
        %4770 = vadd.xlane.f32.xlu0 %v4739
        %v4771 = vpop.xlane.xlu0 %4770
        %4772 = vadd.xlane.f32.xlu0 %v4741
        %v4773 = vpop.xlane.xlu0 %4772
        %4774 = vadd.xlane.f32.xlu0 %v4743
        %v4775 = vpop.xlane.xlu0 %4774
        %4776 = vadd.xlane.f32.xlu0 %v4745
        %v4777 = vpop.xlane.xlu0 %4776
        %4778 = vadd.xlane.f32.xlu0 %v4747
        %v4779 = vpop.xlane.xlu0 %4778
        %4780 = vadd.xlane.f32.xlu0 %v4749
        %v4781 = vpop.xlane.xlu0 %4780
        %4782 = vadd.xlane.f32.xlu0 %v4751
        %v4783 = vpop.xlane.xlu0 %4782
        %4784 = vadd.xlane.f32.xlu0 %v4753
        %v4785 = vpop.xlane.xlu0 %4784
        %4786 = vadd.xlane.f32.xlu0 %v4755
        %v4787 = vpop.xlane.xlu0 %4786
        %4788 = vadd.xlane.f32.xlu0 %v4757
        %v4789 = vpop.xlane.xlu0 %4788
        %4790 = vadd.xlane.f32.xlu0 %v4759
        %v4791 = vpop.xlane.xlu0 %4790
        %4792 = vadd.xlane.f32.xlu0 %v4761
        %v4793 = vpop.xlane.xlu0 %4792
        %4794 = vadd.xlane.f32.xlu0 %v4763
        %v4795 = vpop.xlane.xlu0 %4794
        %4796 = vadd.xlane.f32.xlu0 %v4765
        %v4797 = vpop.xlane.xlu0 %4796
        %v4798 = vpack.c.bf16 %v4737, %v4735
        %v4799 = vpack.c.bf16 %v4741, %v4739
        %v4800 = vpack.c.bf16 %v4745, %v4743
        %v4801 = vpack.c.bf16 %v4749, %v4747
        %v4802 = vpack.c.bf16 %v4753, %v4751
        %v4803 = vpack.c.bf16 %v4757, %v4755
        %v4804 = vpack.c.bf16 %v4761, %v4759
        %v4805 = vpack.c.bf16 %v4765, %v4763
        %4806 = vmatprep.subr.bf16.mxu0 0
        %4807 = vmatpush1.bf16.msra.mxu0 %v2767
        %4808 = vmatprep.subr.bf16.mxu0 0
        %4809 = vmatpush1.bf16.msra.mxu0 %v2776
        %4810 = vmatprep.subr.bf16.mxu0 0
        %4811 = vmatpush1.bf16.msra.mxu0 %v2785
        %4812 = vmatprep.subr.bf16.mxu0 0
        %4813 = vmatpush1.bf16.msra.mxu0 %v2794
        %4814 = vmatprep.subr.bf16.mxu0 0
        %4815 = vmatpush1.bf16.msra.mxu0 %v2803
        %4816 = vmatprep.subr.bf16.mxu0 0
        %4817 = vmatpush1.bf16.msra.mxu0 %v2812
        %4818 = vmatprep.subr.bf16.mxu0 0
        %4819 = vmatpush1.bf16.msra.mxu0 %v2821
        %4820 = vmatprep.subr.bf16.mxu0 0
        %4821 = vmatpush1.bf16.msra.mxu0 %v2830
        %4822 = vmatprep.subr.bf16.mxu0 0
        %4823 = vmatpush1.bf16.msra.mxu0 0
        %4824 = vmatprep.subr.bf16.mxu0 0
        %4825 = vmatpush1.bf16.msra.mxu0 0
        %4826 = vmatprep.subr.bf16.mxu0 0
        %4827 = vmatpush1.bf16.msra.mxu0 0
        %4828 = vmatprep.subr.bf16.mxu0 0
        %4829 = vmatpush1.bf16.msra.mxu0 0
        %4830 = vmatprep.subr.bf16.mxu0 0
        %4831 = vmatpush1.bf16.msra.mxu0 0
        %4832 = vmatprep.subr.bf16.mxu0 0
        %4833 = vmatpush1.bf16.msra.mxu0 0
        %4834 = vmatprep.subr.bf16.mxu0 0
        %4835 = vmatpush1.bf16.msra.mxu0 0
        %4836 = vmatprep.subr.bf16.mxu0 0
        %4837 = vmatpush1.bf16.msra.mxu0 0
        %4838 = vmatprep.mubr.bf16.mxu0 0
        %4839 = vmatmul.mubr.bf16.gmra.mrb[0].mxu0 %v4798
        %v4840 = vpop.f32.mrb[0].mxu0
        %v4841 = vadd.f32 0.0, %v4840
        %v4842 = vpop.f32.mrb[0].mxu0
        %v4843 = vpop.f32.mrb[0].mxu0
        %v4844 = vadd.f32 0.0, %v4843
        %v4845 = vpop.f32.mrb[0].mxu0
        %4846 = vmatprep.mubr.bf16.mxu0 0
        %4847 = vmatmul.mubr.bf16.gmra.mrb[0].mxu0 %v4799
        %v4848 = vpop.f32.mrb[0].mxu0
        %v4849 = vadd.f32 0.0, %v4848
        %v4850 = vpop.f32.mrb[0].mxu0
        %v4851 = vpop.f32.mrb[0].mxu0
        %v4852 = vadd.f32 0.0, %v4851
        %v4853 = vpop.f32.mrb[0].mxu0
        %4854 = vmatprep.mubr.bf16.mxu0 0
        %4855 = vmatmul.mubr.bf16.gmra.mrb[0].mxu0 %v4800
        %v4856 = vpop.f32.mrb[0].mxu0
        %v4857 = vadd.f32 0.0, %v4856
        %v4858 = vpop.f32.mrb[0].mxu0
        %v4859 = vpop.f32.mrb[0].mxu0
        %v4860 = vadd.f32 0.0, %v4859
        %v4861 = vpop.f32.mrb[0].mxu0
        %4862 = vmatprep.mubr.bf16.mxu0 0
        %4863 = vmatmul.mubr.bf16.gmra.mrb[0].mxu0 %v4801
        %v4864 = vpop.f32.mrb[0].mxu0
        %v4865 = vadd.f32 0.0, %v4864
        %v4866 = vpop.f32.mrb[0].mxu0
        %v4867 = vpop.f32.mrb[0].mxu0
        %v4868 = vadd.f32 0.0, %v4867
        %v4869 = vpop.f32.mrb[0].mxu0
        %4870 = vmatprep.mubr.bf16.mxu0 0
        %4871 = vmatmul.mubr.bf16.gmra.mrb[0].mxu0 %v4802
        %v4872 = vpop.f32.mrb[0].mxu0
        %v4873 = vadd.f32 0.0, %v4872
        %v4874 = vpop.f32.mrb[0].mxu0
        %v4875 = vpop.f32.mrb[0].mxu0
        %v4876 = vadd.f32 0.0, %v4875
        %v4877 = vpop.f32.mrb[0].mxu0
        %4878 = vmatprep.mubr.bf16.mxu0 0
        %4879 = vmatmul.mubr.bf16.gmra.mrb[0].mxu0 %v4803
        %v4880 = vpop.f32.mrb[0].mxu0
        %v4881 = vadd.f32 0.0, %v4880
        %v4882 = vpop.f32.mrb[0].mxu0
        %v4883 = vpop.f32.mrb[0].mxu0
        %v4884 = vadd.f32 0.0, %v4883
        %v4885 = vpop.f32.mrb[0].mxu0
        %4886 = vmatprep.mubr.bf16.mxu0 0
        %4887 = vmatmul.mubr.bf16.gmra.mrb[0].mxu0 %v4804
        %v4888 = vpop.f32.mrb[0].mxu0
        %v4889 = vadd.f32 0.0, %v4888
        %v4890 = vpop.f32.mrb[0].mxu0
        %v4891 = vpop.f32.mrb[0].mxu0
        %v4892 = vadd.f32 0.0, %v4891
        %v4893 = vpop.f32.mrb[0].mxu0
        %4894 = vmatprep.mubr.bf16.mxu0 0
        %4895 = vmatmul.mubr.bf16.gmra.mrb[0].mxu0 %v4805
        %v4896 = vpop.f32.mrb[0].mxu0
        %v4897 = vadd.f32 0.0, %v4896
        %v4898 = vpop.f32.mrb[0].mxu0
        %v4899 = vpop.f32.mrb[0].mxu0
        %v4900 = vadd.f32 0.0, %v4899
        %v4901 = vpop.f32.mrb[0].mxu0
        %4902 = vdwg.mxu0
        %v4903 = vrcp.pop %v4767
        %v4904 = vrcp.pop %v4769
        %v4905 = vrcp.pop %v4771
        %v4906 = vrcp.pop %v4773
        %v4907 = vrcp.pop %v4775
        %v4908 = vrcp.pop %v4777
        %v4909 = vrcp.pop %v4779
        %v4910 = vrcp.pop %v4781
        %v4911 = vrcp.pop %v4783
        %v4912 = vrcp.pop %v4785
        %v4913 = vrcp.pop %v4787
        %v4914 = vrcp.pop %v4789
        %v4915 = vrcp.pop %v4791
        %v4916 = vrcp.pop %v4793
        %v4917 = vrcp.pop %v4795
        %v4918 = vrcp.pop %v4797
        %v4919 = vmul.f32 %v4841, %v4903
        %v4920 = vmul.f32 %v4844, %v4904
        %v4921 = vmul.f32 %v4849, %v4905
        %v4922 = vmul.f32 %v4852, %v4906
        %v4923 = vmul.f32 %v4857, %v4907
        %v4924 = vmul.f32 %v4860, %v4908
        %v4925 = vmul.f32 %v4865, %v4909
        %v4926 = vmul.f32 %v4868, %v4910
        %v4927 = vmul.f32 %v4873, %v4911
        %v4928 = vmul.f32 %v4876, %v4912
        %v4929 = vmul.f32 %v4881, %v4913
        %v4930 = vmul.f32 %v4884, %v4914
        %v4931 = vmul.f32 %v4889, %v4915
        %v4932 = vmul.f32 %v4892, %v4916
        %v4933 = vmul.f32 %v4897, %v4917
        %v4934 = vmul.f32 %v4900, %v4918
        %v4935 = vpack.c.bf16 %v4920, %v4919
        %v4936 = vpack.c.bf16 %v4922, %v4921
        %v4937 = vpack.c.bf16 %v4924, %v4923
        %v4938 = vpack.c.bf16 %v4926, %v4925
        %v4939 = vpack.c.bf16 %v4928, %v4927
        %v4940 = vpack.c.bf16 %v4930, %v4929
        %v4941 = vpack.c.bf16 %v4932, %v4931
        %v4942 = vpack.c.bf16 %v4934, %v4933
        %v4943 = vld [vmem:[#allocation7 + $0xc0] sm:$0xff]
        %v4944 = vld [vmem:[#allocation7 + $0xc8] sm:$0xf]
        %v4945 = vld [vmem:[#allocation7 + $0xcc] sm:$0xff]
        %v4946 = vld [vmem:[#allocation7 + $0xd4] sm:$0xf]
        %v4947 = vld [vmem:[#allocation7 + $0xd8] sm:$0xff]
        %v4948 = vld [vmem:[#allocation7 + $0xe0] sm:$0xf]
        %v4949 = vld [vmem:[#allocation7 + $0xe4] sm:$0xff]
        %v4950 = vld [vmem:[#allocation7 + $0xec] sm:$0xf]
        %v4951 = vld [vmem:[#allocation7 + $0xf0] sm:$0xff]
        %v4952 = vld [vmem:[#allocation7 + $0xf8] sm:$0xf]
        %v4953 = vld [vmem:[#allocation7 + $0xfc] sm:$0xff]
        %v4954 = vld [vmem:[#allocation7 + $0x104] sm:$0xf]
        %v4955 = vld [vmem:[#allocation7 + $0x108] sm:$0xff]
        %v4956 = vld [vmem:[#allocation7 + $0x110] sm:$0xf]
        %v4957 = vld [vmem:[#allocation7 + $0x114] sm:$0xff]
        %v4958 = vld [vmem:[#allocation7 + $0x11c] sm:$0xf]
        %v4975 = vunpack.c.l.b16 %v4943
        %v4976 = vunpack.c.h.b16 %v4943
        %v4977 = vunpack.c.l.b16 %v4944
        %v4978 = vunpack.c.l.b16 %v4945
        %v4979 = vunpack.c.h.b16 %v4945
        %v4980 = vunpack.c.l.b16 %v4946
        %v4981 = vunpack.c.l.b16 %v4947
        %v4982 = vunpack.c.h.b16 %v4947
        %v4983 = vunpack.c.l.b16 %v4948
        %v4984 = vunpack.c.l.b16 %v4949
        %v4985 = vunpack.c.h.b16 %v4949
        %v4986 = vunpack.c.l.b16 %v4950
        %v4987 = vunpack.c.l.b16 %v4951
        %v4988 = vunpack.c.h.b16 %v4951
        %v4989 = vunpack.c.l.b16 %v4952
        %v4990 = vunpack.c.l.b16 %v4953
        %v4991 = vunpack.c.h.b16 %v4953
        %v4992 = vunpack.c.l.b16 %v4954
        %v4993 = vunpack.c.l.b16 %v4955
        %v4994 = vunpack.c.h.b16 %v4955
        %v4995 = vunpack.c.l.b16 %v4956
        %v4996 = vunpack.c.l.b16 %v4957
        %v4997 = vunpack.c.h.b16 %v4957
        %v4998 = vunpack.c.l.b16 %v4958
        %v4999 = vpack.c.b16 %v4978, %v4975
        %v5000 = vpack.c.b16 %v4979, %v4976
        %v5001 = vpack.c.b16 %v4980, %v4977
        %v5002 = vpack.c.b16 %v4984, %v4981
        %v5003 = vpack.c.b16 %v4985, %v4982
        %v5004 = vpack.c.b16 %v4986, %v4983
        %v5005 = vpack.c.b16 %v4990, %v4987
        %v5006 = vpack.c.b16 %v4991, %v4988
        %v5007 = vpack.c.b16 %v4992, %v4989
        %v5008 = vpack.c.b16 %v4996, %v4993
        %v5009 = vpack.c.b16 %v4997, %v4994
        %v5010 = vpack.c.b16 %v4998, %v4995
        %v5024 = vsel %vm2884, %v4935, 0
        %v5027 = vsel %vm2884, %v4936, 0
        %v5030 = vsel %vm2884, %v4937, 0
        %v5033 = vsel %vm2884, %v4938, 0
        %v5036 = vsel %vm2884, %v4939, 0
        %v5039 = vsel %vm2884, %v4940, 0
        %v5042 = vsel %vm2884, %v4941, 0
        %v5045 = vsel %vm2884, %v4942, 0
        %5047 = vmatprep.subr.bf16.mxu0 %v5000
        %5048 = vmatpush1.bf16.msra.mxu0 %v4999
        %5049 = vmatprep.subr.bf16.mxu0 %v5003
        %5050 = vmatpush1.bf16.msra.mxu0 %v5002
        %5051 = vmatprep.subr.bf16.mxu0 %v5006
        %5052 = vmatpush1.bf16.msra.mxu0 %v5005
        %5053 = vmatprep.subr.bf16.mxu0 %v5009
        %5054 = vmatpush1.bf16.msra.mxu0 %v5008
        %5055 = vmatprep.subr.bf16.mxu0 0
        %5056 = vmatpush1.bf16.msra.mxu0 0
        %5057 = vmatprep.subr.bf16.mxu0 0
        %5058 = vmatpush1.bf16.msra.mxu0 0
        %5059 = vmatprep.subr.bf16.mxu0 0
        %5060 = vmatpush1.bf16.msra.mxu0 0
        %5061 = vmatprep.subr.bf16.mxu0 0
        %5062 = vmatpush1.bf16.msra.mxu0 0
        %5063 = vmatprep.subr.bf16.mxu0 0
        %5064 = vmatpush1.bf16.msra.mxu0 0
        %5065 = vmatprep.subr.bf16.mxu0 0
        %5066 = vmatpush1.bf16.msra.mxu0 0
        %5067 = vmatprep.subr.bf16.mxu0 0
        %5068 = vmatpush1.bf16.msra.mxu0 0
        %5069 = vmatprep.subr.bf16.mxu0 0
        %5070 = vmatpush1.bf16.msra.mxu0 0
        %5071 = vmatprep.subr.bf16.mxu0 0
        %5072 = vmatpush1.bf16.msra.mxu0 0
        %5073 = vmatprep.subr.bf16.mxu0 0
        %5074 = vmatpush1.bf16.msra.mxu0 0
        %5075 = vmatprep.subr.bf16.mxu0 0
        %5076 = vmatpush1.bf16.msra.mxu0 0
        %5077 = vmatprep.subr.bf16.mxu0 0
        %5078 = vmatpush1.bf16.msra.mxu0 0
        %5079 = vmatprep.mubr.bf16.mxu0 0
        %5080 = vmatmul.mubr.bf16.gmra.mrb[0].mxu0 %v5024
        %v5081 = vpop.f32.mrb[0].mxu0
        %v5082 = vadd.f32 0.0, %v5081
        %v5083 = vpop.f32.mrb[0].mxu0
        %v5084 = vadd.f32 0.0, %v5083
        %v5085 = vpop.f32.mrb[0].mxu0
        %v5086 = vadd.f32 0.0, %v5085
        %v5087 = vpop.f32.mrb[0].mxu0
        %v5088 = vadd.f32 0.0, %v5087
        %5089 = vmatprep.mubr.bf16.mxu0 0
        %5090 = vmatmul.mubr.bf16.gmra.mrb[0].mxu0 %v5027
        %v5091 = vpop.f32.mrb[0].mxu0
        %v5092 = vadd.f32 0.0, %v5091
        %v5093 = vpop.f32.mrb[0].mxu0
        %v5094 = vadd.f32 0.0, %v5093
        %v5095 = vpop.f32.mrb[0].mxu0
        %v5096 = vadd.f32 0.0, %v5095
        %v5097 = vpop.f32.mrb[0].mxu0
        %v5098 = vadd.f32 0.0, %v5097
        %5099 = vmatprep.mubr.bf16.mxu0 0
        %5100 = vmatmul.mubr.bf16.gmra.mrb[0].mxu0 %v5030
        %v5101 = vpop.f32.mrb[0].mxu0
        %v5102 = vadd.f32 0.0, %v5101
        %v5103 = vpop.f32.mrb[0].mxu0
        %v5104 = vadd.f32 0.0, %v5103
        %v5105 = vpop.f32.mrb[0].mxu0
        %v5106 = vadd.f32 0.0, %v5105
        %v5107 = vpop.f32.mrb[0].mxu0
        %v5108 = vadd.f32 0.0, %v5107
        %5109 = vmatprep.mubr.bf16.mxu0 0
        %5110 = vmatmul.mubr.bf16.gmra.mrb[0].mxu0 %v5033
        %v5111 = vpop.f32.mrb[0].mxu0
        %v5112 = vadd.f32 0.0, %v5111
        %v5113 = vpop.f32.mrb[0].mxu0
        %v5114 = vadd.f32 0.0, %v5113
        %v5115 = vpop.f32.mrb[0].mxu0
        %v5116 = vadd.f32 0.0, %v5115
        %v5117 = vpop.f32.mrb[0].mxu0
        %v5118 = vadd.f32 0.0, %v5117
        %5119 = vmatprep.mubr.bf16.mxu0 0
        %5120 = vmatmul.mubr.bf16.gmra.mrb[0].mxu0 %v5036
        %v5121 = vpop.f32.mrb[0].mxu0
        %v5122 = vadd.f32 0.0, %v5121
        %v5123 = vpop.f32.mrb[0].mxu0
        %v5124 = vadd.f32 0.0, %v5123
        %v5125 = vpop.f32.mrb[0].mxu0
        %v5126 = vadd.f32 0.0, %v5125
        %v5127 = vpop.f32.mrb[0].mxu0
        %v5128 = vadd.f32 0.0, %v5127
        %5129 = vmatprep.mubr.bf16.mxu0 0
        %5130 = vmatmul.mubr.bf16.gmra.mrb[0].mxu0 %v5039
        %v5131 = vpop.f32.mrb[0].mxu0
        %v5132 = vadd.f32 0.0, %v5131
        %v5133 = vpop.f32.mrb[0].mxu0
        %v5134 = vadd.f32 0.0, %v5133
        %v5135 = vpop.f32.mrb[0].mxu0
        %v5136 = vadd.f32 0.0, %v5135
        %v5137 = vpop.f32.mrb[0].mxu0
        %v5138 = vadd.f32 0.0, %v5137
        %5139 = vmatprep.mubr.bf16.mxu0 0
        %5140 = vmatmul.mubr.bf16.gmra.mrb[0].mxu0 %v5042
        %v5141 = vpop.f32.mrb[0].mxu0
        %v5142 = vadd.f32 0.0, %v5141
        %v5143 = vpop.f32.mrb[0].mxu0
        %v5144 = vadd.f32 0.0, %v5143
        %v5145 = vpop.f32.mrb[0].mxu0
        %v5146 = vadd.f32 0.0, %v5145
        %v5147 = vpop.f32.mrb[0].mxu0
        %v5148 = vadd.f32 0.0, %v5147
        %5149 = vmatprep.mubr.bf16.mxu0 0
        %5150 = vmatmul.mubr.bf16.gmra.mrb[0].mxu0 %v5045
        %v5151 = vpop.f32.mrb[0].mxu0
        %v5152 = vadd.f32 0.0, %v5151
        %v5153 = vpop.f32.mrb[0].mxu0
        %v5154 = vadd.f32 0.0, %v5153
        %v5155 = vpop.f32.mrb[0].mxu0
        %v5156 = vadd.f32 0.0, %v5155
        %v5157 = vpop.f32.mrb[0].mxu0
        %v5158 = vadd.f32 0.0, %v5157
        %5159 = vdwg.mxu0
        %5160 = vmatprep.subr.bf16.mxu0 0
        %5161 = vmatpush1.bf16.msra.mxu0 %v5001
        %5162 = vmatprep.subr.bf16.mxu0 0
        %5163 = vmatpush1.bf16.msra.mxu0 %v5004
        %5164 = vmatprep.subr.bf16.mxu0 0
        %5165 = vmatpush1.bf16.msra.mxu0 %v5007
        %5166 = vmatprep.subr.bf16.mxu0 0
        %5167 = vmatpush1.bf16.msra.mxu0 %v5010
        %5168 = vmatprep.subr.bf16.mxu0 0
        %5169 = vmatpush1.bf16.msra.mxu0 0
        %5170 = vmatprep.subr.bf16.mxu0 0
        %5171 = vmatpush1.bf16.msra.mxu0 0
        %5172 = vmatprep.subr.bf16.mxu0 0
        %5173 = vmatpush1.bf16.msra.mxu0 0
        %5174 = vmatprep.subr.bf16.mxu0 0
        %5175 = vmatpush1.bf16.msra.mxu0 0
        %5176 = vmatprep.subr.bf16.mxu0 0
        %5177 = vmatpush1.bf16.msra.mxu0 0
        %5178 = vmatprep.subr.bf16.mxu0 0
        %5179 = vmatpush1.bf16.msra.mxu0 0
        %5180 = vmatprep.subr.bf16.mxu0 0
        %5181 = vmatpush1.bf16.msra.mxu0 0
        %5182 = vmatprep.subr.bf16.mxu0 0
        %5183 = vmatpush1.bf16.msra.mxu0 0
        %5184 = vmatprep.subr.bf16.mxu0 0
        %5185 = vmatpush1.bf16.msra.mxu0 0
        %5186 = vmatprep.subr.bf16.mxu0 0
        %5187 = vmatpush1.bf16.msra.mxu0 0
        %5188 = vmatprep.subr.bf16.mxu0 0
        %5189 = vmatpush1.bf16.msra.mxu0 0
        %5190 = vmatprep.subr.bf16.mxu0 0
        %5191 = vmatpush1.bf16.msra.mxu0 0
        %5192 = vmatprep.mubr.bf16.mxu0 0
        %5193 = vmatmul.mubr.bf16.gmra.mrb[0].mxu0 %v5024
        %v5194 = vpop.f32.mrb[0].mxu0
        %v5195 = vadd.f32 0.0, %v5194
        %v5196 = vpop.f32.mrb[0].mxu0
        %v5197 = vpop.f32.mrb[0].mxu0
        %v5198 = vadd.f32 0.0, %v5197
        %v5199 = vpop.f32.mrb[0].mxu0
        %5200 = vmatprep.mubr.bf16.mxu0 0
        %5201 = vmatmul.mubr.bf16.gmra.mrb[0].mxu0 %v5027
        %v5202 = vpop.f32.mrb[0].mxu0
        %v5203 = vadd.f32 0.0, %v5202
        %v5204 = vpop.f32.mrb[0].mxu0
        %v5205 = vpop.f32.mrb[0].mxu0
        %v5206 = vadd.f32 0.0, %v5205
        %v5207 = vpop.f32.mrb[0].mxu0
        %5208 = vmatprep.mubr.bf16.mxu0 0
        %5209 = vmatmul.mubr.bf16.gmra.mrb[0].mxu0 %v5030
        %v5210 = vpop.f32.mrb[0].mxu0
        %v5211 = vadd.f32 0.0, %v5210
        %v5212 = vpop.f32.mrb[0].mxu0
        %v5213 = vpop.f32.mrb[0].mxu0
        %v5214 = vadd.f32 0.0, %v5213
        %v5215 = vpop.f32.mrb[0].mxu0
        %5216 = vmatprep.mubr.bf16.mxu0 0
        %5217 = vmatmul.mubr.bf16.gmra.mrb[0].mxu0 %v5033
        %v5218 = vpop.f32.mrb[0].mxu0
        %v5219 = vadd.f32 0.0, %v5218
        %v5220 = vpop.f32.mrb[0].mxu0
        %v5221 = vpop.f32.mrb[0].mxu0
        %v5222 = vadd.f32 0.0, %v5221
        %v5223 = vpop.f32.mrb[0].mxu0
        %5224 = vmatprep.mubr.bf16.mxu0 0
        %5225 = vmatmul.mubr.bf16.gmra.mrb[0].mxu0 %v5036
        %v5226 = vpop.f32.mrb[0].mxu0
        %v5227 = vadd.f32 0.0, %v5226
        %v5228 = vpop.f32.mrb[0].mxu0
        %v5229 = vpop.f32.mrb[0].mxu0
        %v5230 = vadd.f32 0.0, %v5229
        %v5231 = vpop.f32.mrb[0].mxu0
        %5232 = vmatprep.mubr.bf16.mxu0 0
        %5233 = vmatmul.mubr.bf16.gmra.mrb[0].mxu0 %v5039
        %v5234 = vpop.f32.mrb[0].mxu0
        %v5235 = vadd.f32 0.0, %v5234
        %v5236 = vpop.f32.mrb[0].mxu0
        %v5237 = vpop.f32.mrb[0].mxu0
        %v5238 = vadd.f32 0.0, %v5237
        %v5239 = vpop.f32.mrb[0].mxu0
        %5240 = vmatprep.mubr.bf16.mxu0 0
        %5241 = vmatmul.mubr.bf16.gmra.mrb[0].mxu0 %v5042
        %v5242 = vpop.f32.mrb[0].mxu0
        %v5243 = vadd.f32 0.0, %v5242
        %v5244 = vpop.f32.mrb[0].mxu0
        %v5245 = vpop.f32.mrb[0].mxu0
        %v5246 = vadd.f32 0.0, %v5245
        %v5247 = vpop.f32.mrb[0].mxu0
        %5248 = vmatprep.mubr.bf16.mxu0 0
        %5249 = vmatmul.mubr.bf16.gmra.mrb[0].mxu0 %v5045
        %v5250 = vpop.f32.mrb[0].mxu0
        %v5251 = vadd.f32 0.0, %v5250
        %v5252 = vpop.f32.mrb[0].mxu0
        %v5253 = vpop.f32.mrb[0].mxu0
        %v5254 = vadd.f32 0.0, %v5253
        %v5255 = vpop.f32.mrb[0].mxu0
        %5256 = vdwg.mxu0
        %v5257 = vadd.f32 %v4477, %v5082
        %v5258 = vadd.f32 %v4478, %v5084
        %v5259 = vadd.f32 %v4479, %v5195
        %v5260 = vadd.f32 %v4480, %v5086
        %v5261 = vadd.f32 %v4481, %v5088
        %v5262 = vadd.f32 %v4482, %v5198
        %v5263 = vadd.f32 %v4483, %v5092
        %v5264 = vadd.f32 %v4484, %v5094
        %v5265 = vadd.f32 %v4485, %v5203
        %v5266 = vadd.f32 %v4486, %v5096
        %v5267 = vadd.f32 %v4487, %v5098
        %v5268 = vadd.f32 %v4488, %v5206
        %v5269 = vadd.f32 %v4489, %v5102
        %v5270 = vadd.f32 %v4490, %v5104
        %v5271 = vadd.f32 %v4491, %v5211
        %v5272 = vadd.f32 %v4492, %v5106
        %v5273 = vadd.f32 %v4493, %v5108
        %v5274 = vadd.f32 %v4494, %v5214
        %v5275 = vadd.f32 %v4495, %v5112
        %v5276 = vadd.f32 %v4496, %v5114
        %v5277 = vadd.f32 %v4497, %v5219
        %v5278 = vadd.f32 %v4498, %v5116
        %v5279 = vadd.f32 %v4499, %v5118
        %v5280 = vadd.f32 %v4500, %v5222
        %v5281 = vadd.f32 %v4501, %v5122
        %v5282 = vadd.f32 %v4502, %v5124
        %v5283 = vadd.f32 %v4503, %v5227
        %v5284 = vadd.f32 %v4504, %v5126
        %v5285 = vadd.f32 %v4505, %v5128
        %v5286 = vadd.f32 %v4506, %v5230
        %v5287 = vadd.f32 %v4507, %v5132
        %v5288 = vadd.f32 %v4508, %v5134
        %v5289 = vadd.f32 %v4509, %v5235
        %v5290 = vadd.f32 %v4510, %v5136
        %v5291 = vadd.f32 %v4511, %v5138
        %v5292 = vadd.f32 %v4512, %v5238
        %v5293 = vadd.f32 %v4513, %v5142
        %v5294 = vadd.f32 %v4514, %v5144
        %v5295 = vadd.f32 %v4515, %v5243
        %v5296 = vadd.f32 %v4516, %v5146
        %v5297 = vadd.f32 %v4517, %v5148
        %v5298 = vadd.f32 %v4518, %v5246
        %v5299 = vadd.f32 %v4519, %v5152
        %v5300 = vadd.f32 %v4520, %v5154
        %v5301 = vadd.f32 %v4521, %v5251
        %v5302 = vadd.f32 %v4522, %v5156
        %v5303 = vadd.f32 %v4523, %v5158
        %v5304 = vadd.f32 %v4524, %v5254
        %5313 = vrot.lane.b32.xlu0 %v2761, 64
        %v5314 = vpop.permute.xlu0 %5313
        %5315 = vrot.lane.b32.xlu0 %v2770, 64
        %v5316 = vpop.permute.xlu0 %5315
        %5317 = vrot.lane.b32.xlu0 %v2779, 64
        %v5318 = vpop.permute.xlu0 %5317
        %5319 = vrot.lane.b32.xlu0 %v2788, 64
        %v5320 = vpop.permute.xlu0 %5319
        %5321 = vrot.lane.b32.xlu0 %v2797, 64
        %v5322 = vpop.permute.xlu0 %5321
        %5323 = vrot.lane.b32.xlu0 %v2806, 64
        %v5324 = vpop.permute.xlu0 %5323
        %5325 = vrot.lane.b32.xlu0 %v2815, 64
        %v5326 = vpop.permute.xlu0 %5325
        %5327 = vrot.lane.b32.xlu0 %v2824, 64
        %v5328 = vpop.permute.xlu0 %5327
        %5337 = vrot.lane.b32.xlu0 %v2764, 64
        %v5338 = vpop.permute.xlu0 %5337
        %5339 = vrot.lane.b32.xlu0 %v2773, 64
        %v5340 = vpop.permute.xlu0 %5339
        %5341 = vrot.lane.b32.xlu0 %v2782, 64
        %v5342 = vpop.permute.xlu0 %5341
        %5343 = vrot.lane.b32.xlu0 %v2791, 64
        %v5344 = vpop.permute.xlu0 %5343
        %5345 = vrot.lane.b32.xlu0 %v2800, 64
        %v5346 = vpop.permute.xlu0 %5345
        %5347 = vrot.lane.b32.xlu0 %v2809, 64
        %v5348 = vpop.permute.xlu0 %5347
        %5349 = vrot.lane.b32.xlu0 %v2818, 64
        %v5350 = vpop.permute.xlu0 %5349
        %5351 = vrot.lane.b32.xlu0 %v2827, 64
        %v5352 = vpop.permute.xlu0 %5351
        %v5354 = vsel %vm2884, %v5314, 0
        %v5357 = vsel %vm2884, %v5316, 0
        %v5360 = vsel %vm2884, %v5318, 0
        %v5363 = vsel %vm2884, %v5320, 0
        %v5366 = vsel %vm2884, %v5322, 0
        %v5369 = vsel %vm2884, %v5324, 0
        %v5372 = vsel %vm2884, %v5326, 0
        %v5375 = vsel %vm2884, %v5328, 0
        %v5378 = vsel %vm2884, %v5338, 0
        %v5381 = vsel %vm2884, %v5340, 0
        %v5384 = vsel %vm2884, %v5342, 0
        %v5387 = vsel %vm2884, %v5344, 0
        %v5390 = vsel %vm2884, %v5346, 0
        %v5393 = vsel %vm2884, %v5348, 0
        %v5396 = vsel %vm2884, %v5350, 0
        %v5399 = vsel %vm2884, %v5352, 0
        %5401 = vmatprep.subr.bf16.mxu0 0
        %5402 = vmatpush1.bf16.xpose.msra.mxu0 %v5378
        %5403 = vmatprep.subr.bf16.mxu0 0
        %5404 = vmatpush1.bf16.xpose.msra.mxu0 %v5381
        %5405 = vmatprep.subr.bf16.mxu0 0
        %5406 = vmatpush1.bf16.xpose.msra.mxu0 %v5384
        %5407 = vmatprep.subr.bf16.mxu0 0
        %5408 = vmatpush1.bf16.xpose.msra.mxu0 %v5387
        %5409 = vmatprep.subr.bf16.mxu0 0
        %5410 = vmatpush1.bf16.xpose.msra.mxu0 %v5390
        %5411 = vmatprep.subr.bf16.mxu0 0
        %5412 = vmatpush1.bf16.xpose.msra.mxu0 %v5393
        %5413 = vmatprep.subr.bf16.mxu0 0
        %5414 = vmatpush1.bf16.xpose.msra.mxu0 %v5396
        %5415 = vmatprep.subr.bf16.mxu0 0
        %5416 = vmatpush1.bf16.xpose.msra.mxu0 %v5399
        %5417 = vmatprep.subr.bf16.mxu0 0
        %5418 = vmatpush1.bf16.xpose.msra.mxu0 0
        %5419 = vmatprep.subr.bf16.mxu0 0
        %5420 = vmatpush1.bf16.xpose.msra.mxu0 0
        %5421 = vmatprep.subr.bf16.mxu0 0
        %5422 = vmatpush1.bf16.xpose.msra.mxu0 0
        %5423 = vmatprep.subr.bf16.mxu0 0
        %5424 = vmatpush1.bf16.xpose.msra.mxu0 0
        %5425 = vmatprep.subr.bf16.mxu0 0
        %5426 = vmatpush1.bf16.xpose.msra.mxu0 0
        %5427 = vmatprep.subr.bf16.mxu0 0
        %5428 = vmatpush1.bf16.xpose.msra.mxu0 0
        %5429 = vmatprep.subr.bf16.mxu0 0
        %5430 = vmatpush1.bf16.xpose.msra.mxu0 0
        %5431 = vmatprep.subr.bf16.mxu0 0
        %5432 = vmatpush1.bf16.xpose.msra.mxu0 0
        %5433 = vmatprep.mubr.bf16.mxu0 0
        %5434 = vmatmul.mubr.bf16.gmra.mrb[0].mxu0 %v5354
        %v5435 = vpop.f32.mrb[0].mxu0
        %v5436 = vadd.f32 0.0, %v5435
        %v5437 = vpop.f32.mrb[0].mxu0
        %v5438 = vpop.f32.mrb[0].mxu0
        %v5439 = vadd.f32 0.0, %v5438
        %v5440 = vpop.f32.mrb[0].mxu0
        %5441 = vmatprep.mubr.bf16.mxu0 0
        %5442 = vmatmul.mubr.bf16.gmra.mrb[0].mxu0 %v5357
        %v5443 = vpop.f32.mrb[0].mxu0
        %v5444 = vadd.f32 0.0, %v5443
        %v5445 = vpop.f32.mrb[0].mxu0
        %v5446 = vpop.f32.mrb[0].mxu0
        %v5447 = vadd.f32 0.0, %v5446
        %v5448 = vpop.f32.mrb[0].mxu0
        %5449 = vmatprep.mubr.bf16.mxu0 0
        %5450 = vmatmul.mubr.bf16.gmra.mrb[0].mxu0 %v5360
        %v5451 = vpop.f32.mrb[0].mxu0
        %v5452 = vadd.f32 0.0, %v5451
        %v5453 = vpop.f32.mrb[0].mxu0
        %v5454 = vpop.f32.mrb[0].mxu0
        %v5455 = vadd.f32 0.0, %v5454
        %v5456 = vpop.f32.mrb[0].mxu0
        %5457 = vmatprep.mubr.bf16.mxu0 0
        %5458 = vmatmul.mubr.bf16.gmra.mrb[0].mxu0 %v5363
        %v5459 = vpop.f32.mrb[0].mxu0
        %v5460 = vadd.f32 0.0, %v5459
        %v5461 = vpop.f32.mrb[0].mxu0
        %v5462 = vpop.f32.mrb[0].mxu0
        %v5463 = vadd.f32 0.0, %v5462
        %v5464 = vpop.f32.mrb[0].mxu0
        %5465 = vmatprep.mubr.bf16.mxu0 0
        %5466 = vmatmul.mubr.bf16.gmra.mrb[0].mxu0 %v5366
        %v5467 = vpop.f32.mrb[0].mxu0
        %v5468 = vadd.f32 0.0, %v5467
        %v5469 = vpop.f32.mrb[0].mxu0
        %v5470 = vpop.f32.mrb[0].mxu0
        %v5471 = vadd.f32 0.0, %v5470
        %v5472 = vpop.f32.mrb[0].mxu0
        %5473 = vmatprep.mubr.bf16.mxu0 0
        %5474 = vmatmul.mubr.bf16.gmra.mrb[0].mxu0 %v5369
        %v5475 = vpop.f32.mrb[0].mxu0
        %v5476 = vadd.f32 0.0, %v5475
        %v5477 = vpop.f32.mrb[0].mxu0
        %v5478 = vpop.f32.mrb[0].mxu0
        %v5479 = vadd.f32 0.0, %v5478
        %v5480 = vpop.f32.mrb[0].mxu0
        %5481 = vmatprep.mubr.bf16.mxu0 0
        %5482 = vmatmul.mubr.bf16.gmra.mrb[0].mxu0 %v5372
        %v5483 = vpop.f32.mrb[0].mxu0
        %v5484 = vadd.f32 0.0, %v5483
        %v5485 = vpop.f32.mrb[0].mxu0
        %v5486 = vpop.f32.mrb[0].mxu0
        %v5487 = vadd.f32 0.0, %v5486
        %v5488 = vpop.f32.mrb[0].mxu0
        %5489 = vmatprep.mubr.bf16.mxu0 0
        %5490 = vmatmul.mubr.bf16.gmra.mrb[0].mxu0 %v5375
        %v5491 = vpop.f32.mrb[0].mxu0
        %v5492 = vadd.f32 0.0, %v5491
        %v5493 = vpop.f32.mrb[0].mxu0
        %v5494 = vpop.f32.mrb[0].mxu0
        %v5495 = vadd.f32 0.0, %v5494
        %v5496 = vpop.f32.mrb[0].mxu0
        %5497 = vdwg.mxu0
        %v5498 = vsel %vm2851, %v5436, -inf
        %v5499 = vsel %vm2852, %v5439, -inf
        %v5500 = vsel %vm2853, %v5444, -inf
        %v5501 = vsel %vm2854, %v5447, -inf
        %v5502 = vsel %vm2855, %v5452, -inf
        %v5503 = vsel %vm2856, %v5455, -inf
        %v5504 = vsel %vm2857, %v5460, -inf
        %v5505 = vsel %vm2858, %v5463, -inf
        %v5506 = vsel %vm2859, %v5468, -inf
        %v5507 = vsel %vm2860, %v5471, -inf
        %v5508 = vsel %vm2861, %v5476, -inf
        %v5509 = vsel %vm2862, %v5479, -inf
        %v5510 = vsel %vm2863, %v5484, -inf
        %v5511 = vsel %vm2864, %v5487, -inf
        %v5512 = vsel %vm2865, %v5492, -inf
        %v5513 = vsel %vm2866, %v5495, -inf
        %5514 = vmax.xlane.f32.xlu0 %v5498
        %v5515 = vpop.xlane.xlu0 %5514
        %5516 = vmax.xlane.f32.xlu0 %v5499
        %v5517 = vpop.xlane.xlu0 %5516
        %5518 = vmax.xlane.f32.xlu0 %v5500
        %v5519 = vpop.xlane.xlu0 %5518
        %5520 = vmax.xlane.f32.xlu0 %v5501
        %v5521 = vpop.xlane.xlu0 %5520
        %5522 = vmax.xlane.f32.xlu0 %v5502
        %v5523 = vpop.xlane.xlu0 %5522
        %5524 = vmax.xlane.f32.xlu0 %v5503
        %v5525 = vpop.xlane.xlu0 %5524
        %5526 = vmax.xlane.f32.xlu0 %v5504
        %v5527 = vpop.xlane.xlu0 %5526
        %5528 = vmax.xlane.f32.xlu0 %v5505
        %v5529 = vpop.xlane.xlu0 %5528
        %5530 = vmax.xlane.f32.xlu0 %v5506
        %v5531 = vpop.xlane.xlu0 %5530
        %5532 = vmax.xlane.f32.xlu0 %v5507
        %v5533 = vpop.xlane.xlu0 %5532
        %5534 = vmax.xlane.f32.xlu0 %v5508
        %v5535 = vpop.xlane.xlu0 %5534
        %5536 = vmax.xlane.f32.xlu0 %v5509
        %v5537 = vpop.xlane.xlu0 %5536
        %5538 = vmax.xlane.f32.xlu0 %v5510
        %v5539 = vpop.xlane.xlu0 %5538
        %5540 = vmax.xlane.f32.xlu0 %v5511
        %v5541 = vpop.xlane.xlu0 %5540
        %5542 = vmax.xlane.f32.xlu0 %v5512
        %v5543 = vpop.xlane.xlu0 %5542
        %5544 = vmax.xlane.f32.xlu0 %v5513
        %v5545 = vpop.xlane.xlu0 %5544
        %v5546 = vsub.f32 %v5498, %v5515
        %v5547 = vsub.f32 %v5499, %v5517
        %v5548 = vsub.f32 %v5500, %v5519
        %v5549 = vsub.f32 %v5501, %v5521
        %v5550 = vsub.f32 %v5502, %v5523
        %v5551 = vsub.f32 %v5503, %v5525
        %v5552 = vsub.f32 %v5504, %v5527
        %v5553 = vsub.f32 %v5505, %v5529
        %v5554 = vsub.f32 %v5506, %v5531
        %v5555 = vsub.f32 %v5507, %v5533
        %v5556 = vsub.f32 %v5508, %v5535
        %v5557 = vsub.f32 %v5509, %v5537
        %v5558 = vsub.f32 %v5510, %v5539
        %v5559 = vsub.f32 %v5511, %v5541
        %v5560 = vsub.f32 %v5512, %v5543
        %v5561 = vsub.f32 %v5513, %v5545
        %v5562 = vmul.f32 %v5546, 1.442695
        %v5563 = vpow.pop %v5562
        %v5564 = vmul.f32 %v5547, 1.442695
        %v5565 = vpow.pop %v5564
        %v5566 = vmul.f32 %v5548, 1.442695
        %v5567 = vpow.pop %v5566
        %v5568 = vmul.f32 %v5549, 1.442695
        %v5569 = vpow.pop %v5568
        %v5570 = vmul.f32 %v5550, 1.442695
        %v5571 = vpow.pop %v5570
        %v5572 = vmul.f32 %v5551, 1.442695
        %v5573 = vpow.pop %v5572
        %v5574 = vmul.f32 %v5552, 1.442695
        %v5575 = vpow.pop %v5574
        %v5576 = vmul.f32 %v5553, 1.442695
        %v5577 = vpow.pop %v5576
        %v5578 = vmul.f32 %v5554, 1.442695
        %v5579 = vpow.pop %v5578
        %v5580 = vmul.f32 %v5555, 1.442695
        %v5581 = vpow.pop %v5580
        %v5582 = vmul.f32 %v5556, 1.442695
        %v5583 = vpow.pop %v5582
        %v5584 = vmul.f32 %v5557, 1.442695
        %v5585 = vpow.pop %v5584
        %v5586 = vmul.f32 %v5558, 1.442695
        %v5587 = vpow.pop %v5586
        %v5588 = vmul.f32 %v5559, 1.442695
        %v5589 = vpow.pop %v5588
        %v5590 = vmul.f32 %v5560, 1.442695
        %v5591 = vpow.pop %v5590
        %v5592 = vmul.f32 %v5561, 1.442695
        %v5593 = vpow.pop %v5592
        %5594 = vadd.xlane.f32.xlu0 %v5563
        %v5595 = vpop.xlane.xlu0 %5594
        %5596 = vadd.xlane.f32.xlu0 %v5565
        %v5597 = vpop.xlane.xlu0 %5596
        %5598 = vadd.xlane.f32.xlu0 %v5567
        %v5599 = vpop.xlane.xlu0 %5598
        %5600 = vadd.xlane.f32.xlu0 %v5569
        %v5601 = vpop.xlane.xlu0 %5600
        %5602 = vadd.xlane.f32.xlu0 %v5571
        %v5603 = vpop.xlane.xlu0 %5602
        %5604 = vadd.xlane.f32.xlu0 %v5573
        %v5605 = vpop.xlane.xlu0 %5604
        %5606 = vadd.xlane.f32.xlu0 %v5575
        %v5607 = vpop.xlane.xlu0 %5606
        %5608 = vadd.xlane.f32.xlu0 %v5577
        %v5609 = vpop.xlane.xlu0 %5608
        %5610 = vadd.xlane.f32.xlu0 %v5579
        %v5611 = vpop.xlane.xlu0 %5610
        %5612 = vadd.xlane.f32.xlu0 %v5581
        %v5613 = vpop.xlane.xlu0 %5612
        %5614 = vadd.xlane.f32.xlu0 %v5583
        %v5615 = vpop.xlane.xlu0 %5614
        %5616 = vadd.xlane.f32.xlu0 %v5585
        %v5617 = vpop.xlane.xlu0 %5616
        %5618 = vadd.xlane.f32.xlu0 %v5587
        %v5619 = vpop.xlane.xlu0 %5618
        %5620 = vadd.xlane.f32.xlu0 %v5589
        %v5621 = vpop.xlane.xlu0 %5620
        %5622 = vadd.xlane.f32.xlu0 %v5591
        %v5623 = vpop.xlane.xlu0 %5622
        %5624 = vadd.xlane.f32.xlu0 %v5593
        %v5625 = vpop.xlane.xlu0 %5624
        %v5626 = vpack.c.bf16 %v5565, %v5563
        %v5627 = vpack.c.bf16 %v5569, %v5567
        %v5628 = vpack.c.bf16 %v5573, %v5571
        %v5629 = vpack.c.bf16 %v5577, %v5575
        %v5630 = vpack.c.bf16 %v5581, %v5579
        %v5631 = vpack.c.bf16 %v5585, %v5583
        %v5632 = vpack.c.bf16 %v5589, %v5587
        %v5633 = vpack.c.bf16 %v5593, %v5591
        %5642 = vrot.lane.b32.xlu0 %v2767, 64
        %v5643 = vpop.permute.xlu0 %5642
        %5644 = vrot.lane.b32.xlu0 %v2776, 64
        %v5645 = vpop.permute.xlu0 %5644
        %5646 = vrot.lane.b32.xlu0 %v2785, 64
        %v5647 = vpop.permute.xlu0 %5646
        %5648 = vrot.lane.b32.xlu0 %v2794, 64
        %v5649 = vpop.permute.xlu0 %5648
        %5650 = vrot.lane.b32.xlu0 %v2803, 64
        %v5651 = vpop.permute.xlu0 %5650
        %5652 = vrot.lane.b32.xlu0 %v2812, 64
        %v5653 = vpop.permute.xlu0 %5652
        %5654 = vrot.lane.b32.xlu0 %v2821, 64
        %v5655 = vpop.permute.xlu0 %5654
        %5656 = vrot.lane.b32.xlu0 %v2830, 64
        %v5657 = vpop.permute.xlu0 %5656
        %5666 = vmatprep.subr.bf16.mxu0 0
        %5667 = vmatpush1.bf16.msra.mxu0 %v5643
        %5668 = vmatprep.subr.bf16.mxu0 0
        %5669 = vmatpush1.bf16.msra.mxu0 %v5645
        %5670 = vmatprep.subr.bf16.mxu0 0
        %5671 = vmatpush1.bf16.msra.mxu0 %v5647
        %5672 = vmatprep.subr.bf16.mxu0 0
        %5673 = vmatpush1.bf16.msra.mxu0 %v5649
        %5674 = vmatprep.subr.bf16.mxu0 0
        %5675 = vmatpush1.bf16.msra.mxu0 %v5651
        %5676 = vmatprep.subr.bf16.mxu0 0
        %5677 = vmatpush1.bf16.msra.mxu0 %v5653
        %5678 = vmatprep.subr.bf16.mxu0 0
        %5679 = vmatpush1.bf16.msra.mxu0 %v5655
        %5680 = vmatprep.subr.bf16.mxu0 0
        %5681 = vmatpush1.bf16.msra.mxu0 %v5657
        %5682 = vmatprep.subr.bf16.mxu0 0
        %5683 = vmatpush1.bf16.msra.mxu0 0
        %5684 = vmatprep.subr.bf16.mxu0 0
        %5685 = vmatpush1.bf16.msra.mxu0 0
        %5686 = vmatprep.subr.bf16.mxu0 0
        %5687 = vmatpush1.bf16.msra.mxu0 0
        %5688 = vmatprep.subr.bf16.mxu0 0
        %5689 = vmatpush1.bf16.msra.mxu0 0
        %5690 = vmatprep.subr.bf16.mxu0 0
        %5691 = vmatpush1.bf16.msra.mxu0 0
        %5692 = vmatprep.subr.bf16.mxu0 0
        %5693 = vmatpush1.bf16.msra.mxu0 0
        %5694 = vmatprep.subr.bf16.mxu0 0
        %5695 = vmatpush1.bf16.msra.mxu0 0
        %5696 = vmatprep.subr.bf16.mxu0 0
        %5697 = vmatpush1.bf16.msra.mxu0 0
        %5698 = vmatprep.mubr.bf16.mxu0 0
        %5699 = vmatmul.mubr.bf16.gmra.mrb[0].mxu0 %v5626
        %v5700 = vpop.f32.mrb[0].mxu0
        %v5701 = vadd.f32 0.0, %v5700
        %v5702 = vpop.f32.mrb[0].mxu0
        %v5703 = vpop.f32.mrb[0].mxu0
        %v5704 = vadd.f32 0.0, %v5703
        %v5705 = vpop.f32.mrb[0].mxu0
        %5706 = vmatprep.mubr.bf16.mxu0 0
        %5707 = vmatmul.mubr.bf16.gmra.mrb[0].mxu0 %v5627
        %v5708 = vpop.f32.mrb[0].mxu0
        %v5709 = vadd.f32 0.0, %v5708
        %v5710 = vpop.f32.mrb[0].mxu0
        %v5711 = vpop.f32.mrb[0].mxu0
        %v5712 = vadd.f32 0.0, %v5711
        %v5713 = vpop.f32.mrb[0].mxu0
        %5714 = vmatprep.mubr.bf16.mxu0 0
        %5715 = vmatmul.mubr.bf16.gmra.mrb[0].mxu0 %v5628
        %v5716 = vpop.f32.mrb[0].mxu0
        %v5717 = vadd.f32 0.0, %v5716
        %v5718 = vpop.f32.mrb[0].mxu0
        %v5719 = vpop.f32.mrb[0].mxu0
        %v5720 = vadd.f32 0.0, %v5719
        %v5721 = vpop.f32.mrb[0].mxu0
        %5722 = vmatprep.mubr.bf16.mxu0 0
        %5723 = vmatmul.mubr.bf16.gmra.mrb[0].mxu0 %v5629
        %v5724 = vpop.f32.mrb[0].mxu0
        %v5725 = vadd.f32 0.0, %v5724
        %v5726 = vpop.f32.mrb[0].mxu0
        %v5727 = vpop.f32.mrb[0].mxu0
        %v5728 = vadd.f32 0.0, %v5727
        %v5729 = vpop.f32.mrb[0].mxu0
        %5730 = vmatprep.mubr.bf16.mxu0 0
        %5731 = vmatmul.mubr.bf16.gmra.mrb[0].mxu0 %v5630
        %v5732 = vpop.f32.mrb[0].mxu0
        %v5733 = vadd.f32 0.0, %v5732
        %v5734 = vpop.f32.mrb[0].mxu0
        %v5735 = vpop.f32.mrb[0].mxu0
        %v5736 = vadd.f32 0.0, %v5735
        %v5737 = vpop.f32.mrb[0].mxu0
        %5738 = vmatprep.mubr.bf16.mxu0 0
        %5739 = vmatmul.mubr.bf16.gmra.mrb[0].mxu0 %v5631
        %v5740 = vpop.f32.mrb[0].mxu0
        %v5741 = vadd.f32 0.0, %v5740
        %v5742 = vpop.f32.mrb[0].mxu0
        %v5743 = vpop.f32.mrb[0].mxu0
        %v5744 = vadd.f32 0.0, %v5743
        %v5745 = vpop.f32.mrb[0].mxu0
        %5746 = vmatprep.mubr.bf16.mxu0 0
        %5747 = vmatmul.mubr.bf16.gmra.mrb[0].mxu0 %v5632
        %v5748 = vpop.f32.mrb[0].mxu0
        %v5749 = vadd.f32 0.0, %v5748
        %v5750 = vpop.f32.mrb[0].mxu0
        %v5751 = vpop.f32.mrb[0].mxu0
        %v5752 = vadd.f32 0.0, %v5751
        %v5753 = vpop.f32.mrb[0].mxu0
        %5754 = vmatprep.mubr.bf16.mxu0 0
        %5755 = vmatmul.mubr.bf16.gmra.mrb[0].mxu0 %v5633
        %v5756 = vpop.f32.mrb[0].mxu0
        %v5757 = vadd.f32 0.0, %v5756
        %v5758 = vpop.f32.mrb[0].mxu0
        %v5759 = vpop.f32.mrb[0].mxu0
        %v5760 = vadd.f32 0.0, %v5759
        %v5761 = vpop.f32.mrb[0].mxu0
        %5762 = vdwg.mxu0
        %v5763 = vrcp.pop %v5595
        %v5764 = vrcp.pop %v5597
        %v5765 = vrcp.pop %v5599
        %v5766 = vrcp.pop %v5601
        %v5767 = vrcp.pop %v5603
        %v5768 = vrcp.pop %v5605
        %v5769 = vrcp.pop %v5607
        %v5770 = vrcp.pop %v5609
        %v5771 = vrcp.pop %v5611
        %v5772 = vrcp.pop %v5613
        %v5773 = vrcp.pop %v5615
        %v5774 = vrcp.pop %v5617
        %v5775 = vrcp.pop %v5619
        %v5776 = vrcp.pop %v5621
        %v5777 = vrcp.pop %v5623
        %v5778 = vrcp.pop %v5625
        %v5779 = vmul.f32 %v5701, %v5763
        %v5780 = vmul.f32 %v5704, %v5764
        %v5781 = vmul.f32 %v5709, %v5765
        %v5782 = vmul.f32 %v5712, %v5766
        %v5783 = vmul.f32 %v5717, %v5767
        %v5784 = vmul.f32 %v5720, %v5768
        %v5785 = vmul.f32 %v5725, %v5769
        %v5786 = vmul.f32 %v5728, %v5770
        %v5787 = vmul.f32 %v5733, %v5771
        %v5788 = vmul.f32 %v5736, %v5772
        %v5789 = vmul.f32 %v5741, %v5773
        %v5790 = vmul.f32 %v5744, %v5774
        %v5791 = vmul.f32 %v5749, %v5775
        %v5792 = vmul.f32 %v5752, %v5776
        %v5793 = vmul.f32 %v5757, %v5777
        %v5794 = vmul.f32 %v5760, %v5778
        %v5795 = vpack.c.bf16 %v5780, %v5779
        %v5796 = vpack.c.bf16 %v5782, %v5781
        %v5797 = vpack.c.bf16 %v5784, %v5783
        %v5798 = vpack.c.bf16 %v5786, %v5785
        %v5799 = vpack.c.bf16 %v5788, %v5787
        %v5800 = vpack.c.bf16 %v5790, %v5789
        %v5801 = vpack.c.bf16 %v5792, %v5791
        %v5802 = vpack.c.bf16 %v5794, %v5793
        %v5803 = vld [vmem:[#allocation7 + $0x120] sm:$0xff]
        %v5804 = vld [vmem:[#allocation7 + $0x128] sm:$0xf]
        %v5805 = vld [vmem:[#allocation7 + $0x12c] sm:$0xff]
        %v5806 = vld [vmem:[#allocation7 + $0x134] sm:$0xf]
        %v5807 = vld [vmem:[#allocation7 + $0x138] sm:$0xff]
        %v5808 = vld [vmem:[#allocation7 + $0x140] sm:$0xf]
        %v5809 = vld [vmem:[#allocation7 + $0x144] sm:$0xff]
        %v5810 = vld [vmem:[#allocation7 + $0x14c] sm:$0xf]
        %v5811 = vld [vmem:[#allocation7 + $0x150] sm:$0xff]
        %v5812 = vld [vmem:[#allocation7 + $0x158] sm:$0xf]
        %v5813 = vld [vmem:[#allocation7 + $0x15c] sm:$0xff]
        %v5814 = vld [vmem:[#allocation7 + $0x164] sm:$0xf]
        %v5815 = vld [vmem:[#allocation7 + $0x168] sm:$0xff]
        %v5816 = vld [vmem:[#allocation7 + $0x170] sm:$0xf]
        %v5817 = vld [vmem:[#allocation7 + $0x174] sm:$0xff]
        %v5818 = vld [vmem:[#allocation7 + $0x17c] sm:$0xf]
        %v5835 = vunpack.c.l.b16 %v5803
        %v5836 = vunpack.c.h.b16 %v5803
        %v5837 = vunpack.c.l.b16 %v5804
        %v5838 = vunpack.c.l.b16 %v5805
        %v5839 = vunpack.c.h.b16 %v5805
        %v5840 = vunpack.c.l.b16 %v5806
        %v5841 = vunpack.c.l.b16 %v5807
        %v5842 = vunpack.c.h.b16 %v5807
        %v5843 = vunpack.c.l.b16 %v5808
        %v5844 = vunpack.c.l.b16 %v5809
        %v5845 = vunpack.c.h.b16 %v5809
        %v5846 = vunpack.c.l.b16 %v5810
        %v5847 = vunpack.c.l.b16 %v5811
        %v5848 = vunpack.c.h.b16 %v5811
        %v5849 = vunpack.c.l.b16 %v5812
        %v5850 = vunpack.c.l.b16 %v5813
        %v5851 = vunpack.c.h.b16 %v5813
        %v5852 = vunpack.c.l.b16 %v5814
        %v5853 = vunpack.c.l.b16 %v5815
        %v5854 = vunpack.c.h.b16 %v5815
        %v5855 = vunpack.c.l.b16 %v5816
        %v5856 = vunpack.c.l.b16 %v5817
        %v5857 = vunpack.c.h.b16 %v5817
        %v5858 = vunpack.c.l.b16 %v5818
        %v5859 = vpack.c.b16 %v5838, %v5835
        %v5860 = vpack.c.b16 %v5839, %v5836
        %v5861 = vpack.c.b16 %v5840, %v5837
        %v5862 = vpack.c.b16 %v5844, %v5841
        %v5863 = vpack.c.b16 %v5845, %v5842
        %v5864 = vpack.c.b16 %v5846, %v5843
        %v5865 = vpack.c.b16 %v5850, %v5847
        %v5866 = vpack.c.b16 %v5851, %v5848
        %v5867 = vpack.c.b16 %v5852, %v5849
        %v5868 = vpack.c.b16 %v5856, %v5853
        %v5869 = vpack.c.b16 %v5857, %v5854
        %v5870 = vpack.c.b16 %v5858, %v5855
        %v5884 = vsel %vm2884, %v5795, 0
        %v5887 = vsel %vm2884, %v5796, 0
        %v5890 = vsel %vm2884, %v5797, 0
        %v5893 = vsel %vm2884, %v5798, 0
        %v5896 = vsel %vm2884, %v5799, 0
        %v5899 = vsel %vm2884, %v5800, 0
        %v5902 = vsel %vm2884, %v5801, 0
        %v5905 = vsel %vm2884, %v5802, 0
        %5907 = vmatprep.subr.bf16.mxu0 %v5860
        %5908 = vmatpush1.bf16.msra.mxu0 %v5859
        %5909 = vmatprep.subr.bf16.mxu0 %v5863
        %5910 = vmatpush1.bf16.msra.mxu0 %v5862
        %5911 = vmatprep.subr.bf16.mxu0 %v5866
        %5912 = vmatpush1.bf16.msra.mxu0 %v5865
        %5913 = vmatprep.subr.bf16.mxu0 %v5869
        %5914 = vmatpush1.bf16.msra.mxu0 %v5868
        %5915 = vmatprep.subr.bf16.mxu0 0
        %5916 = vmatpush1.bf16.msra.mxu0 0
        %5917 = vmatprep.subr.bf16.mxu0 0
        %5918 = vmatpush1.bf16.msra.mxu0 0
        %5919 = vmatprep.subr.bf16.mxu0 0
        %5920 = vmatpush1.bf16.msra.mxu0 0
        %5921 = vmatprep.subr.bf16.mxu0 0
        %5922 = vmatpush1.bf16.msra.mxu0 0
        %5923 = vmatprep.subr.bf16.mxu0 0
        %5924 = vmatpush1.bf16.msra.mxu0 0
        %5925 = vmatprep.subr.bf16.mxu0 0
        %5926 = vmatpush1.bf16.msra.mxu0 0
        %5927 = vmatprep.subr.bf16.mxu0 0
        %5928 = vmatpush1.bf16.msra.mxu0 0
        %5929 = vmatprep.subr.bf16.mxu0 0
        %5930 = vmatpush1.bf16.msra.mxu0 0
        %5931 = vmatprep.subr.bf16.mxu0 0
        %5932 = vmatpush1.bf16.msra.mxu0 0
        %5933 = vmatprep.subr.bf16.mxu0 0
        %5934 = vmatpush1.bf16.msra.mxu0 0
        %5935 = vmatprep.subr.bf16.mxu0 0
        %5936 = vmatpush1.bf16.msra.mxu0 0
        %5937 = vmatprep.subr.bf16.mxu0 0
        %5938 = vmatpush1.bf16.msra.mxu0 0
        %5939 = vmatprep.mubr.bf16.mxu0 0
        %5940 = vmatmul.mubr.bf16.gmra.mrb[0].mxu0 %v5884
        %v5941 = vpop.f32.mrb[0].mxu0
        %v5942 = vadd.f32 0.0, %v5941
        %v5943 = vpop.f32.mrb[0].mxu0
        %v5944 = vadd.f32 0.0, %v5943
        %v5945 = vpop.f32.mrb[0].mxu0
        %v5946 = vadd.f32 0.0, %v5945
        %v5947 = vpop.f32.mrb[0].mxu0
        %v5948 = vadd.f32 0.0, %v5947
        %5949 = vmatprep.mubr.bf16.mxu0 0
        %5950 = vmatmul.mubr.bf16.gmra.mrb[0].mxu0 %v5887
        %v5951 = vpop.f32.mrb[0].mxu0
        %v5952 = vadd.f32 0.0, %v5951
        %v5953 = vpop.f32.mrb[0].mxu0
        %v5954 = vadd.f32 0.0, %v5953
        %v5955 = vpop.f32.mrb[0].mxu0
        %v5956 = vadd.f32 0.0, %v5955
        %v5957 = vpop.f32.mrb[0].mxu0
        %v5958 = vadd.f32 0.0, %v5957
        %5959 = vmatprep.mubr.bf16.mxu0 0
        %5960 = vmatmul.mubr.bf16.gmra.mrb[0].mxu0 %v5890
        %v5961 = vpop.f32.mrb[0].mxu0
        %v5962 = vadd.f32 0.0, %v5961
        %v5963 = vpop.f32.mrb[0].mxu0
        %v5964 = vadd.f32 0.0, %v5963
        %v5965 = vpop.f32.mrb[0].mxu0
        %v5966 = vadd.f32 0.0, %v5965
        %v5967 = vpop.f32.mrb[0].mxu0
        %v5968 = vadd.f32 0.0, %v5967
        %5969 = vmatprep.mubr.bf16.mxu0 0
        %5970 = vmatmul.mubr.bf16.gmra.mrb[0].mxu0 %v5893
        %v5971 = vpop.f32.mrb[0].mxu0
        %v5972 = vadd.f32 0.0, %v5971
        %v5973 = vpop.f32.mrb[0].mxu0
        %v5974 = vadd.f32 0.0, %v5973
        %v5975 = vpop.f32.mrb[0].mxu0
        %v5976 = vadd.f32 0.0, %v5975
        %v5977 = vpop.f32.mrb[0].mxu0
        %v5978 = vadd.f32 0.0, %v5977
        %5979 = vmatprep.mubr.bf16.mxu0 0
        %5980 = vmatmul.mubr.bf16.gmra.mrb[0].mxu0 %v5896
        %v5981 = vpop.f32.mrb[0].mxu0
        %v5982 = vadd.f32 0.0, %v5981
        %v5983 = vpop.f32.mrb[0].mxu0
        %v5984 = vadd.f32 0.0, %v5983
        %v5985 = vpop.f32.mrb[0].mxu0
        %v5986 = vadd.f32 0.0, %v5985
        %v5987 = vpop.f32.mrb[0].mxu0
        %v5988 = vadd.f32 0.0, %v5987
        %5989 = vmatprep.mubr.bf16.mxu0 0
        %5990 = vmatmul.mubr.bf16.gmra.mrb[0].mxu0 %v5899
        %v5991 = vpop.f32.mrb[0].mxu0
        %v5992 = vadd.f32 0.0, %v5991
        %v5993 = vpop.f32.mrb[0].mxu0
        %v5994 = vadd.f32 0.0, %v5993
        %v5995 = vpop.f32.mrb[0].mxu0
        %v5996 = vadd.f32 0.0, %v5995
        %v5997 = vpop.f32.mrb[0].mxu0
        %v5998 = vadd.f32 0.0, %v5997
        %5999 = vmatprep.mubr.bf16.mxu0 0
        %6000 = vmatmul.mubr.bf16.gmra.mrb[0].mxu0 %v5902
        %v6001 = vpop.f32.mrb[0].mxu0
        %v6002 = vadd.f32 0.0, %v6001
        %v6003 = vpop.f32.mrb[0].mxu0
        %v6004 = vadd.f32 0.0, %v6003
        %v6005 = vpop.f32.mrb[0].mxu0
        %v6006 = vadd.f32 0.0, %v6005
        %v6007 = vpop.f32.mrb[0].mxu0
        %v6008 = vadd.f32 0.0, %v6007
        %6009 = vmatprep.mubr.bf16.mxu0 0
        %6010 = vmatmul.mubr.bf16.gmra.mrb[0].mxu0 %v5905
        %v6011 = vpop.f32.mrb[0].mxu0
        %v6012 = vadd.f32 0.0, %v6011
        %v6013 = vpop.f32.mrb[0].mxu0
        %v6014 = vadd.f32 0.0, %v6013
        %v6015 = vpop.f32.mrb[0].mxu0
        %v6016 = vadd.f32 0.0, %v6015
        %v6017 = vpop.f32.mrb[0].mxu0
        %v6018 = vadd.f32 0.0, %v6017
        %6019 = vdwg.mxu0
        %6020 = vmatprep.subr.bf16.mxu0 0
        %6021 = vmatpush1.bf16.msra.mxu0 %v5861
        %6022 = vmatprep.subr.bf16.mxu0 0
        %6023 = vmatpush1.bf16.msra.mxu0 %v5864
        %6024 = vmatprep.subr.bf16.mxu0 0
        %6025 = vmatpush1.bf16.msra.mxu0 %v5867
        %6026 = vmatprep.subr.bf16.mxu0 0
        %6027 = vmatpush1.bf16.msra.mxu0 %v5870
        %6028 = vmatprep.subr.bf16.mxu0 0
        %6029 = vmatpush1.bf16.msra.mxu0 0
        %6030 = vmatprep.subr.bf16.mxu0 0
        %6031 = vmatpush1.bf16.msra.mxu0 0
        %6032 = vmatprep.subr.bf16.mxu0 0
        %6033 = vmatpush1.bf16.msra.mxu0 0
        %6034 = vmatprep.subr.bf16.mxu0 0
        %6035 = vmatpush1.bf16.msra.mxu0 0
        %6036 = vmatprep.subr.bf16.mxu0 0
        %6037 = vmatpush1.bf16.msra.mxu0 0
        %6038 = vmatprep.subr.bf16.mxu0 0
        %6039 = vmatpush1.bf16.msra.mxu0 0
        %6040 = vmatprep.subr.bf16.mxu0 0
        %6041 = vmatpush1.bf16.msra.mxu0 0
        %6042 = vmatprep.subr.bf16.mxu0 0
        %6043 = vmatpush1.bf16.msra.mxu0 0
        %6044 = vmatprep.subr.bf16.mxu0 0
        %6045 = vmatpush1.bf16.msra.mxu0 0
        %6046 = vmatprep.subr.bf16.mxu0 0
        %6047 = vmatpush1.bf16.msra.mxu0 0
        %6048 = vmatprep.subr.bf16.mxu0 0
        %6049 = vmatpush1.bf16.msra.mxu0 0
        %6050 = vmatprep.subr.bf16.mxu0 0
        %6051 = vmatpush1.bf16.msra.mxu0 0
        %6052 = vmatprep.mubr.bf16.mxu0 0
        %6053 = vmatmul.mubr.bf16.gmra.mrb[0].mxu0 %v5884
        %v6054 = vpop.f32.mrb[0].mxu0
        %v6055 = vadd.f32 0.0, %v6054
        %v6056 = vpop.f32.mrb[0].mxu0
        %v6057 = vpop.f32.mrb[0].mxu0
        %v6058 = vadd.f32 0.0, %v6057
        %v6059 = vpop.f32.mrb[0].mxu0
        %6060 = vmatprep.mubr.bf16.mxu0 0
        %6061 = vmatmul.mubr.bf16.gmra.mrb[0].mxu0 %v5887
        %v6062 = vpop.f32.mrb[0].mxu0
        %v6063 = vadd.f32 0.0, %v6062
        %v6064 = vpop.f32.mrb[0].mxu0
        %v6065 = vpop.f32.mrb[0].mxu0
        %v6066 = vadd.f32 0.0, %v6065
        %v6067 = vpop.f32.mrb[0].mxu0
        %6068 = vmatprep.mubr.bf16.mxu0 0
        %6069 = vmatmul.mubr.bf16.gmra.mrb[0].mxu0 %v5890
        %v6070 = vpop.f32.mrb[0].mxu0
        %v6071 = vadd.f32 0.0, %v6070
        %v6072 = vpop.f32.mrb[0].mxu0
        %v6073 = vpop.f32.mrb[0].mxu0
        %v6074 = vadd.f32 0.0, %v6073
        %v6075 = vpop.f32.mrb[0].mxu0
        %6076 = vmatprep.mubr.bf16.mxu0 0
        %6077 = vmatmul.mubr.bf16.gmra.mrb[0].mxu0 %v5893
        %v6078 = vpop.f32.mrb[0].mxu0
        %v6079 = vadd.f32 0.0, %v6078
        %v6080 = vpop.f32.mrb[0].mxu0
        %v6081 = vpop.f32.mrb[0].mxu0
        %v6082 = vadd.f32 0.0, %v6081
        %v6083 = vpop.f32.mrb[0].mxu0
        %6084 = vmatprep.mubr.bf16.mxu0 0
        %6085 = vmatmul.mubr.bf16.gmra.mrb[0].mxu0 %v5896
        %v6086 = vpop.f32.mrb[0].mxu0
        %v6087 = vadd.f32 0.0, %v6086
        %v6088 = vpop.f32.mrb[0].mxu0
        %v6089 = vpop.f32.mrb[0].mxu0
        %v6090 = vadd.f32 0.0, %v6089
        %v6091 = vpop.f32.mrb[0].mxu0
        %6092 = vmatprep.mubr.bf16.mxu0 0
        %6093 = vmatmul.mubr.bf16.gmra.mrb[0].mxu0 %v5899
        %v6094 = vpop.f32.mrb[0].mxu0
        %v6095 = vadd.f32 0.0, %v6094
        %v6096 = vpop.f32.mrb[0].mxu0
        %v6097 = vpop.f32.mrb[0].mxu0
        %v6098 = vadd.f32 0.0, %v6097
        %v6099 = vpop.f32.mrb[0].mxu0
        %6100 = vmatprep.mubr.bf16.mxu0 0
        %6101 = vmatmul.mubr.bf16.gmra.mrb[0].mxu0 %v5902
        %v6102 = vpop.f32.mrb[0].mxu0
        %v6103 = vadd.f32 0.0, %v6102
        %v6104 = vpop.f32.mrb[0].mxu0
        %v6105 = vpop.f32.mrb[0].mxu0
        %v6106 = vadd.f32 0.0, %v6105
        %v6107 = vpop.f32.mrb[0].mxu0
        %6108 = vmatprep.mubr.bf16.mxu0 0
        %6109 = vmatmul.mubr.bf16.gmra.mrb[0].mxu0 %v5905
        %v6110 = vpop.f32.mrb[0].mxu0
        %v6111 = vadd.f32 0.0, %v6110
        %v6112 = vpop.f32.mrb[0].mxu0
        %v6113 = vpop.f32.mrb[0].mxu0
        %v6114 = vadd.f32 0.0, %v6113
        %v6115 = vpop.f32.mrb[0].mxu0
        %6116 = vdwg.mxu0
        %v6117 = vadd.f32 %v5257, %v5942
        %v6118 = vadd.f32 %v5258, %v5944
        %v6119 = vadd.f32 %v5259, %v6055
        %v6120 = vadd.f32 %v5260, %v5946
        %v6121 = vadd.f32 %v5261, %v5948
        %v6122 = vadd.f32 %v5262, %v6058
        %v6123 = vadd.f32 %v5263, %v5952
        %v6124 = vadd.f32 %v5264, %v5954
        %v6125 = vadd.f32 %v5265, %v6063
        %v6126 = vadd.f32 %v5266, %v5956
        %v6127 = vadd.f32 %v5267, %v5958
        %v6128 = vadd.f32 %v5268, %v6066
        %v6129 = vadd.f32 %v5269, %v5962
        %v6130 = vadd.f32 %v5270, %v5964
        %v6131 = vadd.f32 %v5271, %v6071
        %v6132 = vadd.f32 %v5272, %v5966
        %v6133 = vadd.f32 %v5273, %v5968
        %v6134 = vadd.f32 %v5274, %v6074
        %v6135 = vadd.f32 %v5275, %v5972
        %v6136 = vadd.f32 %v5276, %v5974
        %v6137 = vadd.f32 %v5277, %v6079
        %v6138 = vadd.f32 %v5278, %v5976
        %v6139 = vadd.f32 %v5279, %v5978
        %v6140 = vadd.f32 %v5280, %v6082
        %v6141 = vadd.f32 %v5281, %v5982
        %v6142 = vadd.f32 %v5282, %v5984
        %v6143 = vadd.f32 %v5283, %v6087
        %v6144 = vadd.f32 %v5284, %v5986
        %v6145 = vadd.f32 %v5285, %v5988
        %v6146 = vadd.f32 %v5286, %v6090
        %v6147 = vadd.f32 %v5287, %v5992
        %v6148 = vadd.f32 %v5288, %v5994
        %v6149 = vadd.f32 %v5289, %v6095
        %v6150 = vadd.f32 %v5290, %v5996
        %v6151 = vadd.f32 %v5291, %v5998
        %v6152 = vadd.f32 %v5292, %v6098
        %v6153 = vadd.f32 %v5293, %v6002
        %v6154 = vadd.f32 %v5294, %v6004
        %v6155 = vadd.f32 %v5295, %v6103
        %v6156 = vadd.f32 %v5296, %v6006
        %v6157 = vadd.f32 %v5297, %v6008
        %v6158 = vadd.f32 %v5298, %v6106
        %v6159 = vadd.f32 %v5299, %v6012
        %v6160 = vadd.f32 %v5300, %v6014
        %v6161 = vadd.f32 %v5301, %v6111
        %v6162 = vadd.f32 %v5302, %v6016
        %v6163 = vadd.f32 %v5303, %v6018
        %v6164 = vadd.f32 %v5304, %v6114
        %v6166 = vsel %vm2884, %v2762, 0
        %v6169 = vsel %vm2884, %v2771, 0
        %v6172 = vsel %vm2884, %v2780, 0
        %v6175 = vsel %vm2884, %v2789, 0
        %v6178 = vsel %vm2884, %v2798, 0
        %v6181 = vsel %vm2884, %v2807, 0
        %v6184 = vsel %vm2884, %v2816, 0
        %v6187 = vsel %vm2884, %v2825, 0
        %v6190 = vsel %vm2884, %v2765, 0
        %v6193 = vsel %vm2884, %v2774, 0
        %v6196 = vsel %vm2884, %v2783, 0
        %v6199 = vsel %vm2884, %v2792, 0
        %v6202 = vsel %vm2884, %v2801, 0
        %v6205 = vsel %vm2884, %v2810, 0
        %v6208 = vsel %vm2884, %v2819, 0
        %v6211 = vsel %vm2884, %v2828, 0
        %6213 = vmatprep.subr.bf16.mxu0 0
        %6214 = vmatpush1.bf16.xpose.msra.mxu0 %v6190
        %6215 = vmatprep.subr.bf16.mxu0 0
        %6216 = vmatpush1.bf16.xpose.msra.mxu0 %v6193
        %6217 = vmatprep.subr.bf16.mxu0 0
        %6218 = vmatpush1.bf16.xpose.msra.mxu0 %v6196
        %6219 = vmatprep.subr.bf16.mxu0 0
        %6220 = vmatpush1.bf16.xpose.msra.mxu0 %v6199
        %6221 = vmatprep.subr.bf16.mxu0 0
        %6222 = vmatpush1.bf16.xpose.msra.mxu0 %v6202
        %6223 = vmatprep.subr.bf16.mxu0 0
        %6224 = vmatpush1.bf16.xpose.msra.mxu0 %v6205
        %6225 = vmatprep.subr.bf16.mxu0 0
        %6226 = vmatpush1.bf16.xpose.msra.mxu0 %v6208
        %6227 = vmatprep.subr.bf16.mxu0 0
        %6228 = vmatpush1.bf16.xpose.msra.mxu0 %v6211
        %6229 = vmatprep.subr.bf16.mxu0 0
        %6230 = vmatpush1.bf16.xpose.msra.mxu0 0
        %6231 = vmatprep.subr.bf16.mxu0 0
        %6232 = vmatpush1.bf16.xpose.msra.mxu0 0
        %6233 = vmatprep.subr.bf16.mxu0 0
        %6234 = vmatpush1.bf16.xpose.msra.mxu0 0
        %6235 = vmatprep.subr.bf16.mxu0 0
        %6236 = vmatpush1.bf16.xpose.msra.mxu0 0
        %6237 = vmatprep.subr.bf16.mxu0 0
        %6238 = vmatpush1.bf16.xpose.msra.mxu0 0
        %6239 = vmatprep.subr.bf16.mxu0 0
        %6240 = vmatpush1.bf16.xpose.msra.mxu0 0
        %6241 = vmatprep.subr.bf16.mxu0 0
        %6242 = vmatpush1.bf16.xpose.msra.mxu0 0
        %6243 = vmatprep.subr.bf16.mxu0 0
        %6244 = vmatpush1.bf16.xpose.msra.mxu0 0
        %6245 = vmatprep.mubr.bf16.mxu0 0
        %6246 = vmatmul.mubr.bf16.gmra.mrb[0].mxu0 %v6166
        %v6247 = vpop.f32.mrb[0].mxu0
        %v6248 = vadd.f32 0.0, %v6247
        %v6249 = vpop.f32.mrb[0].mxu0
        %v6250 = vpop.f32.mrb[0].mxu0
        %v6251 = vadd.f32 0.0, %v6250
        %v6252 = vpop.f32.mrb[0].mxu0
        %6253 = vmatprep.mubr.bf16.mxu0 0
        %6254 = vmatmul.mubr.bf16.gmra.mrb[0].mxu0 %v6169
        %v6255 = vpop.f32.mrb[0].mxu0
        %v6256 = vadd.f32 0.0, %v6255
        %v6257 = vpop.f32.mrb[0].mxu0
        %v6258 = vpop.f32.mrb[0].mxu0
        %v6259 = vadd.f32 0.0, %v6258
        %v6260 = vpop.f32.mrb[0].mxu0
        %6261 = vmatprep.mubr.bf16.mxu0 0
        %6262 = vmatmul.mubr.bf16.gmra.mrb[0].mxu0 %v6172
        %v6263 = vpop.f32.mrb[0].mxu0
        %v6264 = vadd.f32 0.0, %v6263
        %v6265 = vpop.f32.mrb[0].mxu0
        %v6266 = vpop.f32.mrb[0].mxu0
        %v6267 = vadd.f32 0.0, %v6266
        %v6268 = vpop.f32.mrb[0].mxu0
        %6269 = vmatprep.mubr.bf16.mxu0 0
        %6270 = vmatmul.mubr.bf16.gmra.mrb[0].mxu0 %v6175
        %v6271 = vpop.f32.mrb[0].mxu0
        %v6272 = vadd.f32 0.0, %v6271
        %v6273 = vpop.f32.mrb[0].mxu0
        %v6274 = vpop.f32.mrb[0].mxu0
        %v6275 = vadd.f32 0.0, %v6274
        %v6276 = vpop.f32.mrb[0].mxu0
        %6277 = vmatprep.mubr.bf16.mxu0 0
        %6278 = vmatmul.mubr.bf16.gmra.mrb[0].mxu0 %v6178
        %v6279 = vpop.f32.mrb[0].mxu0
        %v6280 = vadd.f32 0.0, %v6279
        %v6281 = vpop.f32.mrb[0].mxu0
        %v6282 = vpop.f32.mrb[0].mxu0
        %v6283 = vadd.f32 0.0, %v6282
        %v6284 = vpop.f32.mrb[0].mxu0
        %6285 = vmatprep.mubr.bf16.mxu0 0
        %6286 = vmatmul.mubr.bf16.gmra.mrb[0].mxu0 %v6181
        %v6287 = vpop.f32.mrb[0].mxu0
        %v6288 = vadd.f32 0.0, %v6287
        %v6289 = vpop.f32.mrb[0].mxu0
        %v6290 = vpop.f32.mrb[0].mxu0
        %v6291 = vadd.f32 0.0, %v6290
        %v6292 = vpop.f32.mrb[0].mxu0
        %6293 = vmatprep.mubr.bf16.mxu0 0
        %6294 = vmatmul.mubr.bf16.gmra.mrb[0].mxu0 %v6184
        %v6295 = vpop.f32.mrb[0].mxu0
        %v6296 = vadd.f32 0.0, %v6295
        %v6297 = vpop.f32.mrb[0].mxu0
        %v6298 = vpop.f32.mrb[0].mxu0
        %v6299 = vadd.f32 0.0, %v6298
        %v6300 = vpop.f32.mrb[0].mxu0
        %6301 = vmatprep.mubr.bf16.mxu0 0
        %6302 = vmatmul.mubr.bf16.gmra.mrb[0].mxu0 %v6187
        %v6303 = vpop.f32.mrb[0].mxu0
        %v6304 = vadd.f32 0.0, %v6303
        %v6305 = vpop.f32.mrb[0].mxu0
        %v6306 = vpop.f32.mrb[0].mxu0
        %v6307 = vadd.f32 0.0, %v6306
        %v6308 = vpop.f32.mrb[0].mxu0
        %6309 = vdwg.mxu0
        %v6310 = vsel %vm2851, %v6248, -inf
        %v6311 = vsel %vm2852, %v6251, -inf
        %v6312 = vsel %vm2853, %v6256, -inf
        %v6313 = vsel %vm2854, %v6259, -inf
        %v6314 = vsel %vm2855, %v6264, -inf
        %v6315 = vsel %vm2856, %v6267, -inf
        %v6316 = vsel %vm2857, %v6272, -inf
        %v6317 = vsel %vm2858, %v6275, -inf
        %v6318 = vsel %vm2859, %v6280, -inf
        %v6319 = vsel %vm2860, %v6283, -inf
        %v6320 = vsel %vm2861, %v6288, -inf
        %v6321 = vsel %vm2862, %v6291, -inf
        %v6322 = vsel %vm2863, %v6296, -inf
        %v6323 = vsel %vm2864, %v6299, -inf
        %v6324 = vsel %vm2865, %v6304, -inf
        %v6325 = vsel %vm2866, %v6307, -inf
        %6326 = vmax.xlane.f32.xlu0 %v6310
        %v6327 = vpop.xlane.xlu0 %6326
        %6328 = vmax.xlane.f32.xlu0 %v6311
        %v6329 = vpop.xlane.xlu0 %6328
        %6330 = vmax.xlane.f32.xlu0 %v6312
        %v6331 = vpop.xlane.xlu0 %6330
        %6332 = vmax.xlane.f32.xlu0 %v6313
        %v6333 = vpop.xlane.xlu0 %6332
        %6334 = vmax.xlane.f32.xlu0 %v6314
        %v6335 = vpop.xlane.xlu0 %6334
        %6336 = vmax.xlane.f32.xlu0 %v6315
        %v6337 = vpop.xlane.xlu0 %6336
        %6338 = vmax.xlane.f32.xlu0 %v6316
        %v6339 = vpop.xlane.xlu0 %6338
        %6340 = vmax.xlane.f32.xlu0 %v6317
        %v6341 = vpop.xlane.xlu0 %6340
        %6342 = vmax.xlane.f32.xlu0 %v6318
        %v6343 = vpop.xlane.xlu0 %6342
        %6344 = vmax.xlane.f32.xlu0 %v6319
        %v6345 = vpop.xlane.xlu0 %6344
        %6346 = vmax.xlane.f32.xlu0 %v6320
        %v6347 = vpop.xlane.xlu0 %6346
        %6348 = vmax.xlane.f32.xlu0 %v6321
        %v6349 = vpop.xlane.xlu0 %6348
        %6350 = vmax.xlane.f32.xlu0 %v6322
        %v6351 = vpop.xlane.xlu0 %6350
        %6352 = vmax.xlane.f32.xlu0 %v6323
        %v6353 = vpop.xlane.xlu0 %6352
        %6354 = vmax.xlane.f32.xlu0 %v6324
        %v6355 = vpop.xlane.xlu0 %6354
        %6356 = vmax.xlane.f32.xlu0 %v6325
        %v6357 = vpop.xlane.xlu0 %6356
        %v6358 = vsub.f32 %v6310, %v6327
        %v6359 = vsub.f32 %v6311, %v6329
        %v6360 = vsub.f32 %v6312, %v6331
        %v6361 = vsub.f32 %v6313, %v6333
        %v6362 = vsub.f32 %v6314, %v6335
        %v6363 = vsub.f32 %v6315, %v6337
        %v6364 = vsub.f32 %v6316, %v6339
        %v6365 = vsub.f32 %v6317, %v6341
        %v6366 = vsub.f32 %v6318, %v6343
        %v6367 = vsub.f32 %v6319, %v6345
        %v6368 = vsub.f32 %v6320, %v6347
        %v6369 = vsub.f32 %v6321, %v6349
        %v6370 = vsub.f32 %v6322, %v6351
        %v6371 = vsub.f32 %v6323, %v6353
        %v6372 = vsub.f32 %v6324, %v6355
        %v6373 = vsub.f32 %v6325, %v6357
        %v6374 = vmul.f32 %v6358, 1.442695
        %v6375 = vpow.pop %v6374
        %v6376 = vmul.f32 %v6359, 1.442695
        %v6377 = vpow.pop %v6376
        %v6378 = vmul.f32 %v6360, 1.442695
        %v6379 = vpow.pop %v6378
        %v6380 = vmul.f32 %v6361, 1.442695
        %v6381 = vpow.pop %v6380
        %v6382 = vmul.f32 %v6362, 1.442695
        %v6383 = vpow.pop %v6382
        %v6384 = vmul.f32 %v6363, 1.442695
        %v6385 = vpow.pop %v6384
        %v6386 = vmul.f32 %v6364, 1.442695
        %v6387 = vpow.pop %v6386
        %v6388 = vmul.f32 %v6365, 1.442695
        %v6389 = vpow.pop %v6388
        %v6390 = vmul.f32 %v6366, 1.442695
        %v6391 = vpow.pop %v6390
        %v6392 = vmul.f32 %v6367, 1.442695
        %v6393 = vpow.pop %v6392
        %v6394 = vmul.f32 %v6368, 1.442695
        %v6395 = vpow.pop %v6394
        %v6396 = vmul.f32 %v6369, 1.442695
        %v6397 = vpow.pop %v6396
        %v6398 = vmul.f32 %v6370, 1.442695
        %v6399 = vpow.pop %v6398
        %v6400 = vmul.f32 %v6371, 1.442695
        %v6401 = vpow.pop %v6400
        %v6402 = vmul.f32 %v6372, 1.442695
        %v6403 = vpow.pop %v6402
        %v6404 = vmul.f32 %v6373, 1.442695
        %v6405 = vpow.pop %v6404
        %6406 = vadd.xlane.f32.xlu0 %v6375
        %v6407 = vpop.xlane.xlu0 %6406
        %6408 = vadd.xlane.f32.xlu0 %v6377
        %v6409 = vpop.xlane.xlu0 %6408
        %6410 = vadd.xlane.f32.xlu0 %v6379
        %v6411 = vpop.xlane.xlu0 %6410
        %6412 = vadd.xlane.f32.xlu0 %v6381
        %v6413 = vpop.xlane.xlu0 %6412
        %6414 = vadd.xlane.f32.xlu0 %v6383
        %v6415 = vpop.xlane.xlu0 %6414
        %6416 = vadd.xlane.f32.xlu0 %v6385
        %v6417 = vpop.xlane.xlu0 %6416
        %6418 = vadd.xlane.f32.xlu0 %v6387
        %v6419 = vpop.xlane.xlu0 %6418
        %6420 = vadd.xlane.f32.xlu0 %v6389
        %v6421 = vpop.xlane.xlu0 %6420
        %6422 = vadd.xlane.f32.xlu0 %v6391
        %v6423 = vpop.xlane.xlu0 %6422
        %6424 = vadd.xlane.f32.xlu0 %v6393
        %v6425 = vpop.xlane.xlu0 %6424
        %6426 = vadd.xlane.f32.xlu0 %v6395
        %v6427 = vpop.xlane.xlu0 %6426
        %6428 = vadd.xlane.f32.xlu0 %v6397
        %v6429 = vpop.xlane.xlu0 %6428
        %6430 = vadd.xlane.f32.xlu0 %v6399
        %v6431 = vpop.xlane.xlu0 %6430
        %6432 = vadd.xlane.f32.xlu0 %v6401
        %v6433 = vpop.xlane.xlu0 %6432
        %6434 = vadd.xlane.f32.xlu0 %v6403
        %v6435 = vpop.xlane.xlu0 %6434
        %6436 = vadd.xlane.f32.xlu0 %v6405
        %v6437 = vpop.xlane.xlu0 %6436
        %v6438 = vpack.c.bf16 %v6377, %v6375
        %v6439 = vpack.c.bf16 %v6381, %v6379
        %v6440 = vpack.c.bf16 %v6385, %v6383
        %v6441 = vpack.c.bf16 %v6389, %v6387
        %v6442 = vpack.c.bf16 %v6393, %v6391
        %v6443 = vpack.c.bf16 %v6397, %v6395
        %v6444 = vpack.c.bf16 %v6401, %v6399
        %v6445 = vpack.c.bf16 %v6405, %v6403
        %6446 = vmatprep.subr.bf16.mxu0 0
        %6447 = vmatpush1.bf16.msra.mxu0 %v2768
        %6448 = vmatprep.subr.bf16.mxu0 0
        %6449 = vmatpush1.bf16.msra.mxu0 %v2777
        %6450 = vmatprep.subr.bf16.mxu0 0
        %6451 = vmatpush1.bf16.msra.mxu0 %v2786
        %6452 = vmatprep.subr.bf16.mxu0 0
        %6453 = vmatpush1.bf16.msra.mxu0 %v2795
        %6454 = vmatprep.subr.bf16.mxu0 0
        %6455 = vmatpush1.bf16.msra.mxu0 %v2804
        %6456 = vmatprep.subr.bf16.mxu0 0
        %6457 = vmatpush1.bf16.msra.mxu0 %v2813
        %6458 = vmatprep.subr.bf16.mxu0 0
        %6459 = vmatpush1.bf16.msra.mxu0 %v2822
        %6460 = vmatprep.subr.bf16.mxu0 0
        %6461 = vmatpush1.bf16.msra.mxu0 %v2831
        %6462 = vmatprep.subr.bf16.mxu0 0
        %6463 = vmatpush1.bf16.msra.mxu0 0
        %6464 = vmatprep.subr.bf16.mxu0 0
        %6465 = vmatpush1.bf16.msra.mxu0 0
        %6466 = vmatprep.subr.bf16.mxu0 0
        %6467 = vmatpush1.bf16.msra.mxu0 0
        %6468 = vmatprep.subr.bf16.mxu0 0
        %6469 = vmatpush1.bf16.msra.mxu0 0
        %6470 = vmatprep.subr.bf16.mxu0 0
        %6471 = vmatpush1.bf16.msra.mxu0 0
        %6472 = vmatprep.subr.bf16.mxu0 0
        %6473 = vmatpush1.bf16.msra.mxu0 0
        %6474 = vmatprep.subr.bf16.mxu0 0
        %6475 = vmatpush1.bf16.msra.mxu0 0
        %6476 = vmatprep.subr.bf16.mxu0 0
        %6477 = vmatpush1.bf16.msra.mxu0 0
        %6478 = vmatprep.mubr.bf16.mxu0 0
        %6479 = vmatmul.mubr.bf16.gmra.mrb[0].mxu0 %v6438
        %v6480 = vpop.f32.mrb[0].mxu0
        %v6481 = vadd.f32 0.0, %v6480
        %v6482 = vpop.f32.mrb[0].mxu0
        %v6483 = vpop.f32.mrb[0].mxu0
        %v6484 = vadd.f32 0.0, %v6483
        %v6485 = vpop.f32.mrb[0].mxu0
        %6486 = vmatprep.mubr.bf16.mxu0 0
        %6487 = vmatmul.mubr.bf16.gmra.mrb[0].mxu0 %v6439
        %v6488 = vpop.f32.mrb[0].mxu0
        %v6489 = vadd.f32 0.0, %v6488
        %v6490 = vpop.f32.mrb[0].mxu0
        %v6491 = vpop.f32.mrb[0].mxu0
        %v6492 = vadd.f32 0.0, %v6491
        %v6493 = vpop.f32.mrb[0].mxu0
        %6494 = vmatprep.mubr.bf16.mxu0 0
        %6495 = vmatmul.mubr.bf16.gmra.mrb[0].mxu0 %v6440
        %v6496 = vpop.f32.mrb[0].mxu0
        %v6497 = vadd.f32 0.0, %v6496
        %v6498 = vpop.f32.mrb[0].mxu0
        %v6499 = vpop.f32.mrb[0].mxu0
        %v6500 = vadd.f32 0.0, %v6499
        %v6501 = vpop.f32.mrb[0].mxu0
        %6502 = vmatprep.mubr.bf16.mxu0 0
        %6503 = vmatmul.mubr.bf16.gmra.mrb[0].mxu0 %v6441
        %v6504 = vpop.f32.mrb[0].mxu0
        %v6505 = vadd.f32 0.0, %v6504
        %v6506 = vpop.f32.mrb[0].mxu0
        %v6507 = vpop.f32.mrb[0].mxu0
        %v6508 = vadd.f32 0.0, %v6507
        %v6509 = vpop.f32.mrb[0].mxu0
        %6510 = vmatprep.mubr.bf16.mxu0 0
        %6511 = vmatmul.mubr.bf16.gmra.mrb[0].mxu0 %v6442
        %v6512 = vpop.f32.mrb[0].mxu0
        %v6513 = vadd.f32 0.0, %v6512
        %v6514 = vpop.f32.mrb[0].mxu0
        %v6515 = vpop.f32.mrb[0].mxu0
        %v6516 = vadd.f32 0.0, %v6515
        %v6517 = vpop.f32.mrb[0].mxu0
        %6518 = vmatprep.mubr.bf16.mxu0 0
        %6519 = vmatmul.mubr.bf16.gmra.mrb[0].mxu0 %v6443
        %v6520 = vpop.f32.mrb[0].mxu0
        %v6521 = vadd.f32 0.0, %v6520
        %v6522 = vpop.f32.mrb[0].mxu0
        %v6523 = vpop.f32.mrb[0].mxu0
        %v6524 = vadd.f32 0.0, %v6523
        %v6525 = vpop.f32.mrb[0].mxu0
        %6526 = vmatprep.mubr.bf16.mxu0 0
        %6527 = vmatmul.mubr.bf16.gmra.mrb[0].mxu0 %v6444
        %v6528 = vpop.f32.mrb[0].mxu0
        %v6529 = vadd.f32 0.0, %v6528
        %v6530 = vpop.f32.mrb[0].mxu0
        %v6531 = vpop.f32.mrb[0].mxu0
        %v6532 = vadd.f32 0.0, %v6531
        %v6533 = vpop.f32.mrb[0].mxu0
        %6534 = vmatprep.mubr.bf16.mxu0 0
        %6535 = vmatmul.mubr.bf16.gmra.mrb[0].mxu0 %v6445
        %v6536 = vpop.f32.mrb[0].mxu0
        %v6537 = vadd.f32 0.0, %v6536
        %v6538 = vpop.f32.mrb[0].mxu0
        %v6539 = vpop.f32.mrb[0].mxu0
        %v6540 = vadd.f32 0.0, %v6539
        %v6541 = vpop.f32.mrb[0].mxu0
        %6542 = vdwg.mxu0
        %v6543 = vrcp.pop %v6407
        %v6544 = vrcp.pop %v6409
        %v6545 = vrcp.pop %v6411
        %v6546 = vrcp.pop %v6413
        %v6547 = vrcp.pop %v6415
        %v6548 = vrcp.pop %v6417
        %v6549 = vrcp.pop %v6419
        %v6550 = vrcp.pop %v6421
        %v6551 = vrcp.pop %v6423
        %v6552 = vrcp.pop %v6425
        %v6553 = vrcp.pop %v6427
        %v6554 = vrcp.pop %v6429
        %v6555 = vrcp.pop %v6431
        %v6556 = vrcp.pop %v6433
        %v6557 = vrcp.pop %v6435
        %v6558 = vrcp.pop %v6437
        %v6559 = vmul.f32 %v6481, %v6543
        %v6560 = vmul.f32 %v6484, %v6544
        %v6561 = vmul.f32 %v6489, %v6545
        %v6562 = vmul.f32 %v6492, %v6546
        %v6563 = vmul.f32 %v6497, %v6547
        %v6564 = vmul.f32 %v6500, %v6548
        %v6565 = vmul.f32 %v6505, %v6549
        %v6566 = vmul.f32 %v6508, %v6550
        %v6567 = vmul.f32 %v6513, %v6551
        %v6568 = vmul.f32 %v6516, %v6552
        %v6569 = vmul.f32 %v6521, %v6553
        %v6570 = vmul.f32 %v6524, %v6554
        %v6571 = vmul.f32 %v6529, %v6555
        %v6572 = vmul.f32 %v6532, %v6556
        %v6573 = vmul.f32 %v6537, %v6557
        %v6574 = vmul.f32 %v6540, %v6558
        %v6575 = vpack.c.bf16 %v6560, %v6559
        %v6576 = vpack.c.bf16 %v6562, %v6561
        %v6577 = vpack.c.bf16 %v6564, %v6563
        %v6578 = vpack.c.bf16 %v6566, %v6565
        %v6579 = vpack.c.bf16 %v6568, %v6567
        %v6580 = vpack.c.bf16 %v6570, %v6569
        %v6581 = vpack.c.bf16 %v6572, %v6571
        %v6582 = vpack.c.bf16 %v6574, %v6573
        %v6583 = vld [vmem:[#allocation7 + $0x180] sm:$0xff]
        %v6584 = vld [vmem:[#allocation7 + $0x188] sm:$0xf]
        %v6585 = vld [vmem:[#allocation7 + $0x18c] sm:$0xff]
        %v6586 = vld [vmem:[#allocation7 + $0x194] sm:$0xf]
        %v6587 = vld [vmem:[#allocation7 + $0x198] sm:$0xff]
        %v6588 = vld [vmem:[#allocation7 + $0x1a0] sm:$0xf]
        %v6589 = vld [vmem:[#allocation7 + $0x1a4] sm:$0xff]
        %v6590 = vld [vmem:[#allocation7 + $0x1ac] sm:$0xf]
        %v6591 = vld [vmem:[#allocation7 + $0x1b0] sm:$0xff]
        %v6592 = vld [vmem:[#allocation7 + $0x1b8] sm:$0xf]
        %v6593 = vld [vmem:[#allocation7 + $0x1bc] sm:$0xff]
        %v6594 = vld [vmem:[#allocation7 + $0x1c4] sm:$0xf]
        %v6595 = vld [vmem:[#allocation7 + $0x1c8] sm:$0xff]
        %v6596 = vld [vmem:[#allocation7 + $0x1d0] sm:$0xf]
        %v6597 = vld [vmem:[#allocation7 + $0x1d4] sm:$0xff]
        %v6598 = vld [vmem:[#allocation7 + $0x1dc] sm:$0xf]
        %v6615 = vunpack.c.l.b16 %v6583
        %v6616 = vunpack.c.h.b16 %v6583
        %v6617 = vunpack.c.l.b16 %v6584
        %v6618 = vunpack.c.l.b16 %v6585
        %v6619 = vunpack.c.h.b16 %v6585
        %v6620 = vunpack.c.l.b16 %v6586
        %v6621 = vunpack.c.l.b16 %v6587
        %v6622 = vunpack.c.h.b16 %v6587
        %v6623 = vunpack.c.l.b16 %v6588
        %v6624 = vunpack.c.l.b16 %v6589
        %v6625 = vunpack.c.h.b16 %v6589
        %v6626 = vunpack.c.l.b16 %v6590
        %v6627 = vunpack.c.l.b16 %v6591
        %v6628 = vunpack.c.h.b16 %v6591
        %v6629 = vunpack.c.l.b16 %v6592
        %v6630 = vunpack.c.l.b16 %v6593
        %v6631 = vunpack.c.h.b16 %v6593
        %v6632 = vunpack.c.l.b16 %v6594
        %v6633 = vunpack.c.l.b16 %v6595
        %v6634 = vunpack.c.h.b16 %v6595
        %v6635 = vunpack.c.l.b16 %v6596
        %v6636 = vunpack.c.l.b16 %v6597
        %v6637 = vunpack.c.h.b16 %v6597
        %v6638 = vunpack.c.l.b16 %v6598
        %v6639 = vpack.c.b16 %v6618, %v6615
        %v6640 = vpack.c.b16 %v6619, %v6616
        %v6641 = vpack.c.b16 %v6620, %v6617
        %v6642 = vpack.c.b16 %v6624, %v6621
        %v6643 = vpack.c.b16 %v6625, %v6622
        %v6644 = vpack.c.b16 %v6626, %v6623
        %v6645 = vpack.c.b16 %v6630, %v6627
        %v6646 = vpack.c.b16 %v6631, %v6628
        %v6647 = vpack.c.b16 %v6632, %v6629
        %v6648 = vpack.c.b16 %v6636, %v6633
        %v6649 = vpack.c.b16 %v6637, %v6634
        %v6650 = vpack.c.b16 %v6638, %v6635
        %v6664 = vsel %vm2884, %v6575, 0
        %v6667 = vsel %vm2884, %v6576, 0
        %v6670 = vsel %vm2884, %v6577, 0
        %v6673 = vsel %vm2884, %v6578, 0
        %v6676 = vsel %vm2884, %v6579, 0
        %v6679 = vsel %vm2884, %v6580, 0
        %v6682 = vsel %vm2884, %v6581, 0
        %v6685 = vsel %vm2884, %v6582, 0
        %6687 = vmatprep.subr.bf16.mxu0 %v6640
        %6688 = vmatpush1.bf16.msra.mxu0 %v6639
        %6689 = vmatprep.subr.bf16.mxu0 %v6643
        %6690 = vmatpush1.bf16.msra.mxu0 %v6642
        %6691 = vmatprep.subr.bf16.mxu0 %v6646
        %6692 = vmatpush1.bf16.msra.mxu0 %v6645
        %6693 = vmatprep.subr.bf16.mxu0 %v6649
        %6694 = vmatpush1.bf16.msra.mxu0 %v6648
        %6695 = vmatprep.subr.bf16.mxu0 0
        %6696 = vmatpush1.bf16.msra.mxu0 0
        %6697 = vmatprep.subr.bf16.mxu0 0
        %6698 = vmatpush1.bf16.msra.mxu0 0
        %6699 = vmatprep.subr.bf16.mxu0 0
        %6700 = vmatpush1.bf16.msra.mxu0 0
        %6701 = vmatprep.subr.bf16.mxu0 0
        %6702 = vmatpush1.bf16.msra.mxu0 0
        %6703 = vmatprep.subr.bf16.mxu0 0
        %6704 = vmatpush1.bf16.msra.mxu0 0
        %6705 = vmatprep.subr.bf16.mxu0 0
        %6706 = vmatpush1.bf16.msra.mxu0 0
        %6707 = vmatprep.subr.bf16.mxu0 0
        %6708 = vmatpush1.bf16.msra.mxu0 0
        %6709 = vmatprep.subr.bf16.mxu0 0
        %6710 = vmatpush1.bf16.msra.mxu0 0
        %6711 = vmatprep.subr.bf16.mxu0 0
        %6712 = vmatpush1.bf16.msra.mxu0 0
        %6713 = vmatprep.subr.bf16.mxu0 0
        %6714 = vmatpush1.bf16.msra.mxu0 0
        %6715 = vmatprep.subr.bf16.mxu0 0
        %6716 = vmatpush1.bf16.msra.mxu0 0
        %6717 = vmatprep.subr.bf16.mxu0 0
        %6718 = vmatpush1.bf16.msra.mxu0 0
        %6719 = vmatprep.mubr.bf16.mxu0 0
        %6720 = vmatmul.mubr.bf16.gmra.mrb[0].mxu0 %v6664
        %v6721 = vpop.f32.mrb[0].mxu0
        %v6722 = vadd.f32 0.0, %v6721
        %v6723 = vpop.f32.mrb[0].mxu0
        %v6724 = vadd.f32 0.0, %v6723
        %v6725 = vpop.f32.mrb[0].mxu0
        %v6726 = vadd.f32 0.0, %v6725
        %v6727 = vpop.f32.mrb[0].mxu0
        %v6728 = vadd.f32 0.0, %v6727
        %6729 = vmatprep.mubr.bf16.mxu0 0
        %6730 = vmatmul.mubr.bf16.gmra.mrb[0].mxu0 %v6667
        %v6731 = vpop.f32.mrb[0].mxu0
        %v6732 = vadd.f32 0.0, %v6731
        %v6733 = vpop.f32.mrb[0].mxu0
        %v6734 = vadd.f32 0.0, %v6733
        %v6735 = vpop.f32.mrb[0].mxu0
        %v6736 = vadd.f32 0.0, %v6735
        %v6737 = vpop.f32.mrb[0].mxu0
        %v6738 = vadd.f32 0.0, %v6737
        %6739 = vmatprep.mubr.bf16.mxu0 0
        %6740 = vmatmul.mubr.bf16.gmra.mrb[0].mxu0 %v6670
        %v6741 = vpop.f32.mrb[0].mxu0
        %v6742 = vadd.f32 0.0, %v6741
        %v6743 = vpop.f32.mrb[0].mxu0
        %v6744 = vadd.f32 0.0, %v6743
        %v6745 = vpop.f32.mrb[0].mxu0
        %v6746 = vadd.f32 0.0, %v6745
        %v6747 = vpop.f32.mrb[0].mxu0
        %v6748 = vadd.f32 0.0, %v6747
        %6749 = vmatprep.mubr.bf16.mxu0 0
        %6750 = vmatmul.mubr.bf16.gmra.mrb[0].mxu0 %v6673
        %v6751 = vpop.f32.mrb[0].mxu0
        %v6752 = vadd.f32 0.0, %v6751
        %v6753 = vpop.f32.mrb[0].mxu0
        %v6754 = vadd.f32 0.0, %v6753
        %v6755 = vpop.f32.mrb[0].mxu0
        %v6756 = vadd.f32 0.0, %v6755
        %v6757 = vpop.f32.mrb[0].mxu0
        %v6758 = vadd.f32 0.0, %v6757
        %6759 = vmatprep.mubr.bf16.mxu0 0
        %6760 = vmatmul.mubr.bf16.gmra.mrb[0].mxu0 %v6676
        %v6761 = vpop.f32.mrb[0].mxu0
        %v6762 = vadd.f32 0.0, %v6761
        %v6763 = vpop.f32.mrb[0].mxu0
        %v6764 = vadd.f32 0.0, %v6763
        %v6765 = vpop.f32.mrb[0].mxu0
        %v6766 = vadd.f32 0.0, %v6765
        %v6767 = vpop.f32.mrb[0].mxu0
        %v6768 = vadd.f32 0.0, %v6767
        %6769 = vmatprep.mubr.bf16.mxu0 0
        %6770 = vmatmul.mubr.bf16.gmra.mrb[0].mxu0 %v6679
        %v6771 = vpop.f32.mrb[0].mxu0
        %v6772 = vadd.f32 0.0, %v6771
        %v6773 = vpop.f32.mrb[0].mxu0
        %v6774 = vadd.f32 0.0, %v6773
        %v6775 = vpop.f32.mrb[0].mxu0
        %v6776 = vadd.f32 0.0, %v6775
        %v6777 = vpop.f32.mrb[0].mxu0
        %v6778 = vadd.f32 0.0, %v6777
        %6779 = vmatprep.mubr.bf16.mxu0 0
        %6780 = vmatmul.mubr.bf16.gmra.mrb[0].mxu0 %v6682
        %v6781 = vpop.f32.mrb[0].mxu0
        %v6782 = vadd.f32 0.0, %v6781
        %v6783 = vpop.f32.mrb[0].mxu0
        %v6784 = vadd.f32 0.0, %v6783
        %v6785 = vpop.f32.mrb[0].mxu0
        %v6786 = vadd.f32 0.0, %v6785
        %v6787 = vpop.f32.mrb[0].mxu0
        %v6788 = vadd.f32 0.0, %v6787
        %6789 = vmatprep.mubr.bf16.mxu0 0
        %6790 = vmatmul.mubr.bf16.gmra.mrb[0].mxu0 %v6685
        %v6791 = vpop.f32.mrb[0].mxu0
        %v6792 = vadd.f32 0.0, %v6791
        %v6793 = vpop.f32.mrb[0].mxu0
        %v6794 = vadd.f32 0.0, %v6793
        %v6795 = vpop.f32.mrb[0].mxu0
        %v6796 = vadd.f32 0.0, %v6795
        %v6797 = vpop.f32.mrb[0].mxu0
        %v6798 = vadd.f32 0.0, %v6797
        %6799 = vdwg.mxu0
        %6800 = vmatprep.subr.bf16.mxu0 0
        %6801 = vmatpush1.bf16.msra.mxu0 %v6641
        %6802 = vmatprep.subr.bf16.mxu0 0
        %6803 = vmatpush1.bf16.msra.mxu0 %v6644
        %6804 = vmatprep.subr.bf16.mxu0 0
        %6805 = vmatpush1.bf16.msra.mxu0 %v6647
        %6806 = vmatprep.subr.bf16.mxu0 0
        %6807 = vmatpush1.bf16.msra.mxu0 %v6650
        %6808 = vmatprep.subr.bf16.mxu0 0
        %6809 = vmatpush1.bf16.msra.mxu0 0
        %6810 = vmatprep.subr.bf16.mxu0 0
        %6811 = vmatpush1.bf16.msra.mxu0 0
        %6812 = vmatprep.subr.bf16.mxu0 0
        %6813 = vmatpush1.bf16.msra.mxu0 0
        %6814 = vmatprep.subr.bf16.mxu0 0
        %6815 = vmatpush1.bf16.msra.mxu0 0
        %6816 = vmatprep.subr.bf16.mxu0 0
        %6817 = vmatpush1.bf16.msra.mxu0 0
        %6818 = vmatprep.subr.bf16.mxu0 0
        %6819 = vmatpush1.bf16.msra.mxu0 0
        %6820 = vmatprep.subr.bf16.mxu0 0
        %6821 = vmatpush1.bf16.msra.mxu0 0
        %6822 = vmatprep.subr.bf16.mxu0 0
        %6823 = vmatpush1.bf16.msra.mxu0 0
        %6824 = vmatprep.subr.bf16.mxu0 0
        %6825 = vmatpush1.bf16.msra.mxu0 0
        %6826 = vmatprep.subr.bf16.mxu0 0
        %6827 = vmatpush1.bf16.msra.mxu0 0
        %6828 = vmatprep.subr.bf16.mxu0 0
        %6829 = vmatpush1.bf16.msra.mxu0 0
        %6830 = vmatprep.subr.bf16.mxu0 0
        %6831 = vmatpush1.bf16.msra.mxu0 0
        %6832 = vmatprep.mubr.bf16.mxu0 0
        %6833 = vmatmul.mubr.bf16.gmra.mrb[0].mxu0 %v6664
        %v6834 = vpop.f32.mrb[0].mxu0
        %v6835 = vadd.f32 0.0, %v6834
        %v6836 = vpop.f32.mrb[0].mxu0
        %v6837 = vpop.f32.mrb[0].mxu0
        %v6838 = vadd.f32 0.0, %v6837
        %v6839 = vpop.f32.mrb[0].mxu0
        %6840 = vmatprep.mubr.bf16.mxu0 0
        %6841 = vmatmul.mubr.bf16.gmra.mrb[0].mxu0 %v6667
        %v6842 = vpop.f32.mrb[0].mxu0
        %v6843 = vadd.f32 0.0, %v6842
        %v6844 = vpop.f32.mrb[0].mxu0
        %v6845 = vpop.f32.mrb[0].mxu0
        %v6846 = vadd.f32 0.0, %v6845
        %v6847 = vpop.f32.mrb[0].mxu0
        %6848 = vmatprep.mubr.bf16.mxu0 0
        %6849 = vmatmul.mubr.bf16.gmra.mrb[0].mxu0 %v6670
        %v6850 = vpop.f32.mrb[0].mxu0
        %v6851 = vadd.f32 0.0, %v6850
        %v6852 = vpop.f32.mrb[0].mxu0
        %v6853 = vpop.f32.mrb[0].mxu0
        %v6854 = vadd.f32 0.0, %v6853
        %v6855 = vpop.f32.mrb[0].mxu0
        %6856 = vmatprep.mubr.bf16.mxu0 0
        %6857 = vmatmul.mubr.bf16.gmra.mrb[0].mxu0 %v6673
        %v6858 = vpop.f32.mrb[0].mxu0
        %v6859 = vadd.f32 0.0, %v6858
        %v6860 = vpop.f32.mrb[0].mxu0
        %v6861 = vpop.f32.mrb[0].mxu0
        %v6862 = vadd.f32 0.0, %v6861
        %v6863 = vpop.f32.mrb[0].mxu0
        %6864 = vmatprep.mubr.bf16.mxu0 0
        %6865 = vmatmul.mubr.bf16.gmra.mrb[0].mxu0 %v6676
        %v6866 = vpop.f32.mrb[0].mxu0
        %v6867 = vadd.f32 0.0, %v6866
        %v6868 = vpop.f32.mrb[0].mxu0
        %v6869 = vpop.f32.mrb[0].mxu0
        %v6870 = vadd.f32 0.0, %v6869
        %v6871 = vpop.f32.mrb[0].mxu0
        %6872 = vmatprep.mubr.bf16.mxu0 0
        %6873 = vmatmul.mubr.bf16.gmra.mrb[0].mxu0 %v6679
        %v6874 = vpop.f32.mrb[0].mxu0
        %v6875 = vadd.f32 0.0, %v6874
        %v6876 = vpop.f32.mrb[0].mxu0
        %v6877 = vpop.f32.mrb[0].mxu0
        %v6878 = vadd.f32 0.0, %v6877
        %v6879 = vpop.f32.mrb[0].mxu0
        %6880 = vmatprep.mubr.bf16.mxu0 0
        %6881 = vmatmul.mubr.bf16.gmra.mrb[0].mxu0 %v6682
        %v6882 = vpop.f32.mrb[0].mxu0
        %v6883 = vadd.f32 0.0, %v6882
        %v6884 = vpop.f32.mrb[0].mxu0
        %v6885 = vpop.f32.mrb[0].mxu0
        %v6886 = vadd.f32 0.0, %v6885
        %v6887 = vpop.f32.mrb[0].mxu0
        %6888 = vmatprep.mubr.bf16.mxu0 0
        %6889 = vmatmul.mubr.bf16.gmra.mrb[0].mxu0 %v6685
        %v6890 = vpop.f32.mrb[0].mxu0
        %v6891 = vadd.f32 0.0, %v6890
        %v6892 = vpop.f32.mrb[0].mxu0
        %v6893 = vpop.f32.mrb[0].mxu0
        %v6894 = vadd.f32 0.0, %v6893
        %v6895 = vpop.f32.mrb[0].mxu0
        %6896 = vdwg.mxu0
        %v6897 = vadd.f32 %v6117, %v6722
        %v6898 = vadd.f32 %v6118, %v6724
        %v6899 = vadd.f32 %v6119, %v6835
        %v6900 = vadd.f32 %v6120, %v6726
        %v6901 = vadd.f32 %v6121, %v6728
        %v6902 = vadd.f32 %v6122, %v6838
        %v6903 = vadd.f32 %v6123, %v6732
        %v6904 = vadd.f32 %v6124, %v6734
        %v6905 = vadd.f32 %v6125, %v6843
        %v6906 = vadd.f32 %v6126, %v6736
        %v6907 = vadd.f32 %v6127, %v6738
        %v6908 = vadd.f32 %v6128, %v6846
        %v6909 = vadd.f32 %v6129, %v6742
        %v6910 = vadd.f32 %v6130, %v6744
        %v6911 = vadd.f32 %v6131, %v6851
        %v6912 = vadd.f32 %v6132, %v6746
        %v6913 = vadd.f32 %v6133, %v6748
        %v6914 = vadd.f32 %v6134, %v6854
        %v6915 = vadd.f32 %v6135, %v6752
        %v6916 = vadd.f32 %v6136, %v6754
        %v6917 = vadd.f32 %v6137, %v6859
        %v6918 = vadd.f32 %v6138, %v6756
        %v6919 = vadd.f32 %v6139, %v6758
        %v6920 = vadd.f32 %v6140, %v6862
        %v6921 = vadd.f32 %v6141, %v6762
        %v6922 = vadd.f32 %v6142, %v6764
        %v6923 = vadd.f32 %v6143, %v6867
        %v6924 = vadd.f32 %v6144, %v6766
        %v6925 = vadd.f32 %v6145, %v6768
        %v6926 = vadd.f32 %v6146, %v6870
        %v6927 = vadd.f32 %v6147, %v6772
        %v6928 = vadd.f32 %v6148, %v6774
        %v6929 = vadd.f32 %v6149, %v6875
        %v6930 = vadd.f32 %v6150, %v6776
        %v6931 = vadd.f32 %v6151, %v6778
        %v6932 = vadd.f32 %v6152, %v6878
        %v6933 = vadd.f32 %v6153, %v6782
        %v6934 = vadd.f32 %v6154, %v6784
        %v6935 = vadd.f32 %v6155, %v6883
        %v6936 = vadd.f32 %v6156, %v6786
        %v6937 = vadd.f32 %v6157, %v6788
        %v6938 = vadd.f32 %v6158, %v6886
        %v6939 = vadd.f32 %v6159, %v6792
        %v6940 = vadd.f32 %v6160, %v6794
        %v6941 = vadd.f32 %v6161, %v6891
        %v6942 = vadd.f32 %v6162, %v6796
        %v6943 = vadd.f32 %v6163, %v6798
        %v6944 = vadd.f32 %v6164, %v6894
        %6953 = vrot.lane.b32.xlu0 %v2762, 64
        %v6954 = vpop.permute.xlu0 %6953
        %6955 = vrot.lane.b32.xlu0 %v2771, 64
        %v6956 = vpop.permute.xlu0 %6955
        %6957 = vrot.lane.b32.xlu0 %v2780, 64
        %v6958 = vpop.permute.xlu0 %6957
        %6959 = vrot.lane.b32.xlu0 %v2789, 64
        %v6960 = vpop.permute.xlu0 %6959
        %6961 = vrot.lane.b32.xlu0 %v2798, 64
        %v6962 = vpop.permute.xlu0 %6961
        %6963 = vrot.lane.b32.xlu0 %v2807, 64
        %v6964 = vpop.permute.xlu0 %6963
        %6965 = vrot.lane.b32.xlu0 %v2816, 64
        %v6966 = vpop.permute.xlu0 %6965
        %6967 = vrot.lane.b32.xlu0 %v2825, 64
        %v6968 = vpop.permute.xlu0 %6967
        %6977 = vrot.lane.b32.xlu0 %v2765, 64
        %v6978 = vpop.permute.xlu0 %6977
        %6979 = vrot.lane.b32.xlu0 %v2774, 64
        %v6980 = vpop.permute.xlu0 %6979
        %6981 = vrot.lane.b32.xlu0 %v2783, 64
        %v6982 = vpop.permute.xlu0 %6981
        %6983 = vrot.lane.b32.xlu0 %v2792, 64
        %v6984 = vpop.permute.xlu0 %6983
        %6985 = vrot.lane.b32.xlu0 %v2801, 64
        %v6986 = vpop.permute.xlu0 %6985
        %6987 = vrot.lane.b32.xlu0 %v2810, 64
        %v6988 = vpop.permute.xlu0 %6987
        %6989 = vrot.lane.b32.xlu0 %v2819, 64
        %v6990 = vpop.permute.xlu0 %6989
        %6991 = vrot.lane.b32.xlu0 %v2828, 64
        %v6992 = vpop.permute.xlu0 %6991
        %v6994 = vsel %vm2884, %v6954, 0
        %v6997 = vsel %vm2884, %v6956, 0
        %v7000 = vsel %vm2884, %v6958, 0
        %v7003 = vsel %vm2884, %v6960, 0
        %v7006 = vsel %vm2884, %v6962, 0
        %v7009 = vsel %vm2884, %v6964, 0
        %v7012 = vsel %vm2884, %v6966, 0
        %v7015 = vsel %vm2884, %v6968, 0
        %v7018 = vsel %vm2884, %v6978, 0
        %v7021 = vsel %vm2884, %v6980, 0
        %v7024 = vsel %vm2884, %v6982, 0
        %v7027 = vsel %vm2884, %v6984, 0
        %v7030 = vsel %vm2884, %v6986, 0
        %v7033 = vsel %vm2884, %v6988, 0
        %v7036 = vsel %vm2884, %v6990, 0
        %v7039 = vsel %vm2884, %v6992, 0
        %7041 = vmatprep.subr.bf16.mxu0 0
        %7042 = vmatpush1.bf16.xpose.msra.mxu0 %v7018
        %7043 = vmatprep.subr.bf16.mxu0 0
        %7044 = vmatpush1.bf16.xpose.msra.mxu0 %v7021
        %7045 = vmatprep.subr.bf16.mxu0 0
        %7046 = vmatpush1.bf16.xpose.msra.mxu0 %v7024
        %7047 = vmatprep.subr.bf16.mxu0 0
        %7048 = vmatpush1.bf16.xpose.msra.mxu0 %v7027
        %7049 = vmatprep.subr.bf16.mxu0 0
        %7050 = vmatpush1.bf16.xpose.msra.mxu0 %v7030
        %7051 = vmatprep.subr.bf16.mxu0 0
        %7052 = vmatpush1.bf16.xpose.msra.mxu0 %v7033
        %7053 = vmatprep.subr.bf16.mxu0 0
        %7054 = vmatpush1.bf16.xpose.msra.mxu0 %v7036
        %7055 = vmatprep.subr.bf16.mxu0 0
        %7056 = vmatpush1.bf16.xpose.msra.mxu0 %v7039
        %7057 = vmatprep.subr.bf16.mxu0 0
        %7058 = vmatpush1.bf16.xpose.msra.mxu0 0
        %7059 = vmatprep.subr.bf16.mxu0 0
        %7060 = vmatpush1.bf16.xpose.msra.mxu0 0
        %7061 = vmatprep.subr.bf16.mxu0 0
        %7062 = vmatpush1.bf16.xpose.msra.mxu0 0
        %7063 = vmatprep.subr.bf16.mxu0 0
        %7064 = vmatpush1.bf16.xpose.msra.mxu0 0
        %7065 = vmatprep.subr.bf16.mxu0 0
        %7066 = vmatpush1.bf16.xpose.msra.mxu0 0
        %7067 = vmatprep.subr.bf16.mxu0 0
        %7068 = vmatpush1.bf16.xpose.msra.mxu0 0
        %7069 = vmatprep.subr.bf16.mxu0 0
        %7070 = vmatpush1.bf16.xpose.msra.mxu0 0
        %7071 = vmatprep.subr.bf16.mxu0 0
        %7072 = vmatpush1.bf16.xpose.msra.mxu0 0
        %7073 = vmatprep.mubr.bf16.mxu0 0
        %7074 = vmatmul.mubr.bf16.gmra.mrb[0].mxu0 %v6994
        %v7075 = vpop.f32.mrb[0].mxu0
        %v7076 = vadd.f32 0.0, %v7075
        %v7077 = vpop.f32.mrb[0].mxu0
        %v7078 = vpop.f32.mrb[0].mxu0
        %v7079 = vadd.f32 0.0, %v7078
        %v7080 = vpop.f32.mrb[0].mxu0
        %7081 = vmatprep.mubr.bf16.mxu0 0
        %7082 = vmatmul.mubr.bf16.gmra.mrb[0].mxu0 %v6997
        %v7083 = vpop.f32.mrb[0].mxu0
        %v7084 = vadd.f32 0.0, %v7083
        %v7085 = vpop.f32.mrb[0].mxu0
        %v7086 = vpop.f32.mrb[0].mxu0
        %v7087 = vadd.f32 0.0, %v7086
        %v7088 = vpop.f32.mrb[0].mxu0
        %7089 = vmatprep.mubr.bf16.mxu0 0
        %7090 = vmatmul.mubr.bf16.gmra.mrb[0].mxu0 %v7000
        %v7091 = vpop.f32.mrb[0].mxu0
        %v7092 = vadd.f32 0.0, %v7091
        %v7093 = vpop.f32.mrb[0].mxu0
        %v7094 = vpop.f32.mrb[0].mxu0
        %v7095 = vadd.f32 0.0, %v7094
        %v7096 = vpop.f32.mrb[0].mxu0
        %7097 = vmatprep.mubr.bf16.mxu0 0
        %7098 = vmatmul.mubr.bf16.gmra.mrb[0].mxu0 %v7003
        %v7099 = vpop.f32.mrb[0].mxu0
        %v7100 = vadd.f32 0.0, %v7099
        %v7101 = vpop.f32.mrb[0].mxu0
        %v7102 = vpop.f32.mrb[0].mxu0
        %v7103 = vadd.f32 0.0, %v7102
        %v7104 = vpop.f32.mrb[0].mxu0
        %7105 = vmatprep.mubr.bf16.mxu0 0
        %7106 = vmatmul.mubr.bf16.gmra.mrb[0].mxu0 %v7006
        %v7107 = vpop.f32.mrb[0].mxu0
        %v7108 = vadd.f32 0.0, %v7107
        %v7109 = vpop.f32.mrb[0].mxu0
        %v7110 = vpop.f32.mrb[0].mxu0
        %v7111 = vadd.f32 0.0, %v7110
        %v7112 = vpop.f32.mrb[0].mxu0
        %7113 = vmatprep.mubr.bf16.mxu0 0
        %7114 = vmatmul.mubr.bf16.gmra.mrb[0].mxu0 %v7009
        %v7115 = vpop.f32.mrb[0].mxu0
        %v7116 = vadd.f32 0.0, %v7115
        %v7117 = vpop.f32.mrb[0].mxu0
        %v7118 = vpop.f32.mrb[0].mxu0
        %v7119 = vadd.f32 0.0, %v7118
        %v7120 = vpop.f32.mrb[0].mxu0
        %7121 = vmatprep.mubr.bf16.mxu0 0
        %7122 = vmatmul.mubr.bf16.gmra.mrb[0].mxu0 %v7012
        %v7123 = vpop.f32.mrb[0].mxu0
        %v7124 = vadd.f32 0.0, %v7123
        %v7125 = vpop.f32.mrb[0].mxu0
        %v7126 = vpop.f32.mrb[0].mxu0
        %v7127 = vadd.f32 0.0, %v7126
        %v7128 = vpop.f32.mrb[0].mxu0
        %7129 = vmatprep.mubr.bf16.mxu0 0
        %7130 = vmatmul.mubr.bf16.gmra.mrb[0].mxu0 %v7015
        %v7131 = vpop.f32.mrb[0].mxu0
        %v7132 = vadd.f32 0.0, %v7131
        %v7133 = vpop.f32.mrb[0].mxu0
        %v7134 = vpop.f32.mrb[0].mxu0
        %v7135 = vadd.f32 0.0, %v7134
        %v7136 = vpop.f32.mrb[0].mxu0
        %7137 = vdwg.mxu0
        %v7138 = vsel %vm2851, %v7076, -inf
        %v7139 = vsel %vm2852, %v7079, -inf
        %v7140 = vsel %vm2853, %v7084, -inf
        %v7141 = vsel %vm2854, %v7087, -inf
        %v7142 = vsel %vm2855, %v7092, -inf
        %v7143 = vsel %vm2856, %v7095, -inf
        %v7144 = vsel %vm2857, %v7100, -inf
        %v7145 = vsel %vm2858, %v7103, -inf
        %v7146 = vsel %vm2859, %v7108, -inf
        %v7147 = vsel %vm2860, %v7111, -inf
        %v7148 = vsel %vm2861, %v7116, -inf
        %v7149 = vsel %vm2862, %v7119, -inf
        %v7150 = vsel %vm2863, %v7124, -inf
        %v7151 = vsel %vm2864, %v7127, -inf
        %v7152 = vsel %vm2865, %v7132, -inf
        %v7153 = vsel %vm2866, %v7135, -inf
        %7154 = vmax.xlane.f32.xlu0 %v7138
        %v7155 = vpop.xlane.xlu0 %7154
        %7156 = vmax.xlane.f32.xlu0 %v7139
        %v7157 = vpop.xlane.xlu0 %7156
        %7158 = vmax.xlane.f32.xlu0 %v7140
        %v7159 = vpop.xlane.xlu0 %7158
        %7160 = vmax.xlane.f32.xlu0 %v7141
        %v7161 = vpop.xlane.xlu0 %7160
        %7162 = vmax.xlane.f32.xlu0 %v7142
        %v7163 = vpop.xlane.xlu0 %7162
        %7164 = vmax.xlane.f32.xlu0 %v7143
        %v7165 = vpop.xlane.xlu0 %7164
        %7166 = vmax.xlane.f32.xlu0 %v7144
        %v7167 = vpop.xlane.xlu0 %7166
        %7168 = vmax.xlane.f32.xlu0 %v7145
        %v7169 = vpop.xlane.xlu0 %7168
        %7170 = vmax.xlane.f32.xlu0 %v7146
        %v7171 = vpop.xlane.xlu0 %7170
        %7172 = vmax.xlane.f32.xlu0 %v7147
        %v7173 = vpop.xlane.xlu0 %7172
        %7174 = vmax.xlane.f32.xlu0 %v7148
        %v7175 = vpop.xlane.xlu0 %7174
        %7176 = vmax.xlane.f32.xlu0 %v7149
        %v7177 = vpop.xlane.xlu0 %7176
        %7178 = vmax.xlane.f32.xlu0 %v7150
        %v7179 = vpop.xlane.xlu0 %7178
        %7180 = vmax.xlane.f32.xlu0 %v7151
        %v7181 = vpop.xlane.xlu0 %7180
        %7182 = vmax.xlane.f32.xlu0 %v7152
        %v7183 = vpop.xlane.xlu0 %7182
        %7184 = vmax.xlane.f32.xlu0 %v7153
        %v7185 = vpop.xlane.xlu0 %7184
        %v7186 = vsub.f32 %v7138, %v7155
        %v7187 = vsub.f32 %v7139, %v7157
        %v7188 = vsub.f32 %v7140, %v7159
        %v7189 = vsub.f32 %v7141, %v7161
        %v7190 = vsub.f32 %v7142, %v7163
        %v7191 = vsub.f32 %v7143, %v7165
        %v7192 = vsub.f32 %v7144, %v7167
        %v7193 = vsub.f32 %v7145, %v7169
        %v7194 = vsub.f32 %v7146, %v7171
        %v7195 = vsub.f32 %v7147, %v7173
        %v7196 = vsub.f32 %v7148, %v7175
        %v7197 = vsub.f32 %v7149, %v7177
        %v7198 = vsub.f32 %v7150, %v7179
        %v7199 = vsub.f32 %v7151, %v7181
        %v7200 = vsub.f32 %v7152, %v7183
        %v7201 = vsub.f32 %v7153, %v7185
        %v7202 = vmul.f32 %v7186, 1.442695
        %v7203 = vpow.pop %v7202
        %v7204 = vmul.f32 %v7187, 1.442695
        %v7205 = vpow.pop %v7204
        %v7206 = vmul.f32 %v7188, 1.442695
        %v7207 = vpow.pop %v7206
        %v7208 = vmul.f32 %v7189, 1.442695
        %v7209 = vpow.pop %v7208
        %v7210 = vmul.f32 %v7190, 1.442695
        %v7211 = vpow.pop %v7210
        %v7212 = vmul.f32 %v7191, 1.442695
        %v7213 = vpow.pop %v7212
        %v7214 = vmul.f32 %v7192, 1.442695
        %v7215 = vpow.pop %v7214
        %v7216 = vmul.f32 %v7193, 1.442695
        %v7217 = vpow.pop %v7216
        %v7218 = vmul.f32 %v7194, 1.442695
        %v7219 = vpow.pop %v7218
        %v7220 = vmul.f32 %v7195, 1.442695
        %v7221 = vpow.pop %v7220
        %v7222 = vmul.f32 %v7196, 1.442695
        %v7223 = vpow.pop %v7222
        %v7224 = vmul.f32 %v7197, 1.442695
        %v7225 = vpow.pop %v7224
        %v7226 = vmul.f32 %v7198, 1.442695
        %v7227 = vpow.pop %v7226
        %v7228 = vmul.f32 %v7199, 1.442695
        %v7229 = vpow.pop %v7228
        %v7230 = vmul.f32 %v7200, 1.442695
        %v7231 = vpow.pop %v7230
        %v7232 = vmul.f32 %v7201, 1.442695
        %v7233 = vpow.pop %v7232
        %7234 = vadd.xlane.f32.xlu0 %v7203
        %v7235 = vpop.xlane.xlu0 %7234
        %7236 = vadd.xlane.f32.xlu0 %v7205
        %v7237 = vpop.xlane.xlu0 %7236
        %7238 = vadd.xlane.f32.xlu0 %v7207
        %v7239 = vpop.xlane.xlu0 %7238
        %7240 = vadd.xlane.f32.xlu0 %v7209
        %v7241 = vpop.xlane.xlu0 %7240
        %7242 = vadd.xlane.f32.xlu0 %v7211
        %v7243 = vpop.xlane.xlu0 %7242
        %7244 = vadd.xlane.f32.xlu0 %v7213
        %v7245 = vpop.xlane.xlu0 %7244
        %7246 = vadd.xlane.f32.xlu0 %v7215
        %v7247 = vpop.xlane.xlu0 %7246
        %7248 = vadd.xlane.f32.xlu0 %v7217
        %v7249 = vpop.xlane.xlu0 %7248
        %7250 = vadd.xlane.f32.xlu0 %v7219
        %v7251 = vpop.xlane.xlu0 %7250
        %7252 = vadd.xlane.f32.xlu0 %v7221
        %v7253 = vpop.xlane.xlu0 %7252
        %7254 = vadd.xlane.f32.xlu0 %v7223
        %v7255 = vpop.xlane.xlu0 %7254
        %7256 = vadd.xlane.f32.xlu0 %v7225
        %v7257 = vpop.xlane.xlu0 %7256
        %7258 = vadd.xlane.f32.xlu0 %v7227
        %v7259 = vpop.xlane.xlu0 %7258
        %7260 = vadd.xlane.f32.xlu0 %v7229
        %v7261 = vpop.xlane.xlu0 %7260
        %7262 = vadd.xlane.f32.xlu0 %v7231
        %v7263 = vpop.xlane.xlu0 %7262
        %7264 = vadd.xlane.f32.xlu0 %v7233
        %v7265 = vpop.xlane.xlu0 %7264
        %v7266 = vpack.c.bf16 %v7205, %v7203
        %v7267 = vpack.c.bf16 %v7209, %v7207
        %v7268 = vpack.c.bf16 %v7213, %v7211
        %v7269 = vpack.c.bf16 %v7217, %v7215
        %v7270 = vpack.c.bf16 %v7221, %v7219
        %v7271 = vpack.c.bf16 %v7225, %v7223
        %v7272 = vpack.c.bf16 %v7229, %v7227
        %v7273 = vpack.c.bf16 %v7233, %v7231
        %7282 = vrot.lane.b32.xlu0 %v2768, 64
        %v7283 = vpop.permute.xlu0 %7282
        %7284 = vrot.lane.b32.xlu0 %v2777, 64
        %v7285 = vpop.permute.xlu0 %7284
        %7286 = vrot.lane.b32.xlu0 %v2786, 64
        %v7287 = vpop.permute.xlu0 %7286
        %7288 = vrot.lane.b32.xlu0 %v2795, 64
        %v7289 = vpop.permute.xlu0 %7288
        %7290 = vrot.lane.b32.xlu0 %v2804, 64
        %v7291 = vpop.permute.xlu0 %7290
        %7292 = vrot.lane.b32.xlu0 %v2813, 64
        %v7293 = vpop.permute.xlu0 %7292
        %7294 = vrot.lane.b32.xlu0 %v2822, 64
        %v7295 = vpop.permute.xlu0 %7294
        %7296 = vrot.lane.b32.xlu0 %v2831, 64
        %v7297 = vpop.permute.xlu0 %7296
        %7306 = vmatprep.subr.bf16.mxu0 0
        %7307 = vmatpush1.bf16.msra.mxu0 %v7283
        %7308 = vmatprep.subr.bf16.mxu0 0
        %7309 = vmatpush1.bf16.msra.mxu0 %v7285
        %7310 = vmatprep.subr.bf16.mxu0 0
        %7311 = vmatpush1.bf16.msra.mxu0 %v7287
        %7312 = vmatprep.subr.bf16.mxu0 0
        %7313 = vmatpush1.bf16.msra.mxu0 %v7289
        %7314 = vmatprep.subr.bf16.mxu0 0
        %7315 = vmatpush1.bf16.msra.mxu0 %v7291
        %7316 = vmatprep.subr.bf16.mxu0 0
        %7317 = vmatpush1.bf16.msra.mxu0 %v7293
        %7318 = vmatprep.subr.bf16.mxu0 0
        %7319 = vmatpush1.bf16.msra.mxu0 %v7295
        %7320 = vmatprep.subr.bf16.mxu0 0
        %7321 = vmatpush1.bf16.msra.mxu0 %v7297
        %7322 = vmatprep.subr.bf16.mxu0 0
        %7323 = vmatpush1.bf16.msra.mxu0 0
        %7324 = vmatprep.subr.bf16.mxu0 0
        %7325 = vmatpush1.bf16.msra.mxu0 0
        %7326 = vmatprep.subr.bf16.mxu0 0
        %7327 = vmatpush1.bf16.msra.mxu0 0
        %7328 = vmatprep.subr.bf16.mxu0 0
        %7329 = vmatpush1.bf16.msra.mxu0 0
        %7330 = vmatprep.subr.bf16.mxu0 0
        %7331 = vmatpush1.bf16.msra.mxu0 0
        %7332 = vmatprep.subr.bf16.mxu0 0
        %7333 = vmatpush1.bf16.msra.mxu0 0
        %7334 = vmatprep.subr.bf16.mxu0 0
        %7335 = vmatpush1.bf16.msra.mxu0 0
        %7336 = vmatprep.subr.bf16.mxu0 0
        %7337 = vmatpush1.bf16.msra.mxu0 0
        %7338 = vmatprep.mubr.bf16.mxu0 0
        %7339 = vmatmul.mubr.bf16.gmra.mrb[0].mxu0 %v7266
        %v7340 = vpop.f32.mrb[0].mxu0
        %v7341 = vadd.f32 0.0, %v7340
        %v7342 = vpop.f32.mrb[0].mxu0
        %v7343 = vpop.f32.mrb[0].mxu0
        %v7344 = vadd.f32 0.0, %v7343
        %v7345 = vpop.f32.mrb[0].mxu0
        %7346 = vmatprep.mubr.bf16.mxu0 0
        %7347 = vmatmul.mubr.bf16.gmra.mrb[0].mxu0 %v7267
        %v7348 = vpop.f32.mrb[0].mxu0
        %v7349 = vadd.f32 0.0, %v7348
        %v7350 = vpop.f32.mrb[0].mxu0
        %v7351 = vpop.f32.mrb[0].mxu0
        %v7352 = vadd.f32 0.0, %v7351
        %v7353 = vpop.f32.mrb[0].mxu0
        %7354 = vmatprep.mubr.bf16.mxu0 0
        %7355 = vmatmul.mubr.bf16.gmra.mrb[0].mxu0 %v7268
        %v7356 = vpop.f32.mrb[0].mxu0
        %v7357 = vadd.f32 0.0, %v7356
        %v7358 = vpop.f32.mrb[0].mxu0
        %v7359 = vpop.f32.mrb[0].mxu0
        %v7360 = vadd.f32 0.0, %v7359
        %v7361 = vpop.f32.mrb[0].mxu0
        %7362 = vmatprep.mubr.bf16.mxu0 0
        %7363 = vmatmul.mubr.bf16.gmra.mrb[0].mxu0 %v7269
        %v7364 = vpop.f32.mrb[0].mxu0
        %v7365 = vadd.f32 0.0, %v7364
        %v7366 = vpop.f32.mrb[0].mxu0
        %v7367 = vpop.f32.mrb[0].mxu0
        %v7368 = vadd.f32 0.0, %v7367
        %v7369 = vpop.f32.mrb[0].mxu0
        %7370 = vmatprep.mubr.bf16.mxu0 0
        %7371 = vmatmul.mubr.bf16.gmra.mrb[0].mxu0 %v7270
        %v7372 = vpop.f32.mrb[0].mxu0
        %v7373 = vadd.f32 0.0, %v7372
        %v7374 = vpop.f32.mrb[0].mxu0
        %v7375 = vpop.f32.mrb[0].mxu0
        %v7376 = vadd.f32 0.0, %v7375
        %v7377 = vpop.f32.mrb[0].mxu0
        %7378 = vmatprep.mubr.bf16.mxu0 0
        %7379 = vmatmul.mubr.bf16.gmra.mrb[0].mxu0 %v7271
        %v7380 = vpop.f32.mrb[0].mxu0
        %v7381 = vadd.f32 0.0, %v7380
        %v7382 = vpop.f32.mrb[0].mxu0
        %v7383 = vpop.f32.mrb[0].mxu0
        %v7384 = vadd.f32 0.0, %v7383
        %v7385 = vpop.f32.mrb[0].mxu0
        %7386 = vmatprep.mubr.bf16.mxu0 0
        %7387 = vmatmul.mubr.bf16.gmra.mrb[0].mxu0 %v7272
        %v7388 = vpop.f32.mrb[0].mxu0
        %v7389 = vadd.f32 0.0, %v7388
        %v7390 = vpop.f32.mrb[0].mxu0
        %v7391 = vpop.f32.mrb[0].mxu0
        %v7392 = vadd.f32 0.0, %v7391
        %v7393 = vpop.f32.mrb[0].mxu0
        %7394 = vmatprep.mubr.bf16.mxu0 0
        %7395 = vmatmul.mubr.bf16.gmra.mrb[0].mxu0 %v7273
        %v7396 = vpop.f32.mrb[0].mxu0
        %v7397 = vadd.f32 0.0, %v7396
        %v7398 = vpop.f32.mrb[0].mxu0
        %v7399 = vpop.f32.mrb[0].mxu0
        %v7400 = vadd.f32 0.0, %v7399
        %v7401 = vpop.f32.mrb[0].mxu0
        %7402 = vdwg.mxu0
        %v7403 = vrcp.pop %v7235
        %v7404 = vrcp.pop %v7237
        %v7405 = vrcp.pop %v7239
        %v7406 = vrcp.pop %v7241
        %v7407 = vrcp.pop %v7243
        %v7408 = vrcp.pop %v7245
        %v7409 = vrcp.pop %v7247
        %v7410 = vrcp.pop %v7249
        %v7411 = vrcp.pop %v7251
        %v7412 = vrcp.pop %v7253
        %v7413 = vrcp.pop %v7255
        %v7414 = vrcp.pop %v7257
        %v7415 = vrcp.pop %v7259
        %v7416 = vrcp.pop %v7261
        %v7417 = vrcp.pop %v7263
        %v7418 = vrcp.pop %v7265
        %v7419 = vmul.f32 %v7341, %v7403
        %v7420 = vmul.f32 %v7344, %v7404
        %v7421 = vmul.f32 %v7349, %v7405
        %v7422 = vmul.f32 %v7352, %v7406
        %v7423 = vmul.f32 %v7357, %v7407
        %v7424 = vmul.f32 %v7360, %v7408
        %v7425 = vmul.f32 %v7365, %v7409
        %v7426 = vmul.f32 %v7368, %v7410
        %v7427 = vmul.f32 %v7373, %v7411
        %v7428 = vmul.f32 %v7376, %v7412
        %v7429 = vmul.f32 %v7381, %v7413
        %v7430 = vmul.f32 %v7384, %v7414
        %v7431 = vmul.f32 %v7389, %v7415
        %v7432 = vmul.f32 %v7392, %v7416
        %v7433 = vmul.f32 %v7397, %v7417
        %v7434 = vmul.f32 %v7400, %v7418
        %v7435 = vpack.c.bf16 %v7420, %v7419
        %v7436 = vpack.c.bf16 %v7422, %v7421
        %v7437 = vpack.c.bf16 %v7424, %v7423
        %v7438 = vpack.c.bf16 %v7426, %v7425
        %v7439 = vpack.c.bf16 %v7428, %v7427
        %v7440 = vpack.c.bf16 %v7430, %v7429
        %v7441 = vpack.c.bf16 %v7432, %v7431
        %v7442 = vpack.c.bf16 %v7434, %v7433
        %v7443 = vld [vmem:[#allocation7 + $0x1e0] sm:$0xff]
        %v7444 = vld [vmem:[#allocation7 + $0x1e8] sm:$0xf]
        %v7445 = vld [vmem:[#allocation7 + $0x1ec] sm:$0xff]
        %v7446 = vld [vmem:[#allocation7 + $0x1f4] sm:$0xf]
        %v7447 = vld [vmem:[#allocation7 + $0x1f8] sm:$0xff]
        %v7448 = vld [vmem:[#allocation7 + $0x200] sm:$0xf]
        %v7449 = vld [vmem:[#allocation7 + $0x204] sm:$0xff]
        %v7450 = vld [vmem:[#allocation7 + $0x20c] sm:$0xf]
        %v7451 = vld [vmem:[#allocation7 + $0x210] sm:$0xff]
        %v7452 = vld [vmem:[#allocation7 + $0x218] sm:$0xf]
        %v7453 = vld [vmem:[#allocation7 + $0x21c] sm:$0xff]
        %v7454 = vld [vmem:[#allocation7 + $0x224] sm:$0xf]
        %v7455 = vld [vmem:[#allocation7 + $0x228] sm:$0xff]
        %v7456 = vld [vmem:[#allocation7 + $0x230] sm:$0xf]
        %v7457 = vld [vmem:[#allocation7 + $0x234] sm:$0xff]
        %v7458 = vld [vmem:[#allocation7 + $0x23c] sm:$0xf]
        %v7475 = vunpack.c.l.b16 %v7443
        %v7476 = vunpack.c.h.b16 %v7443
        %v7477 = vunpack.c.l.b16 %v7444
        %v7478 = vunpack.c.l.b16 %v7445
        %v7479 = vunpack.c.h.b16 %v7445
        %v7480 = vunpack.c.l.b16 %v7446
        %v7481 = vunpack.c.l.b16 %v7447
        %v7482 = vunpack.c.h.b16 %v7447
        %v7483 = vunpack.c.l.b16 %v7448
        %v7484 = vunpack.c.l.b16 %v7449
        %v7485 = vunpack.c.h.b16 %v7449
        %v7486 = vunpack.c.l.b16 %v7450
        %v7487 = vunpack.c.l.b16 %v7451
        %v7488 = vunpack.c.h.b16 %v7451
        %v7489 = vunpack.c.l.b16 %v7452
        %v7490 = vunpack.c.l.b16 %v7453
        %v7491 = vunpack.c.h.b16 %v7453
        %v7492 = vunpack.c.l.b16 %v7454
        %v7493 = vunpack.c.l.b16 %v7455
        %v7494 = vunpack.c.h.b16 %v7455
        %v7495 = vunpack.c.l.b16 %v7456
        %v7496 = vunpack.c.l.b16 %v7457
        %v7497 = vunpack.c.h.b16 %v7457
        %v7498 = vunpack.c.l.b16 %v7458
        %v7499 = vpack.c.b16 %v7478, %v7475
        %v7500 = vpack.c.b16 %v7479, %v7476
        %v7501 = vpack.c.b16 %v7480, %v7477
        %v7502 = vpack.c.b16 %v7484, %v7481
        %v7503 = vpack.c.b16 %v7485, %v7482
        %v7504 = vpack.c.b16 %v7486, %v7483
        %v7505 = vpack.c.b16 %v7490, %v7487
        %v7506 = vpack.c.b16 %v7491, %v7488
        %v7507 = vpack.c.b16 %v7492, %v7489
        %v7508 = vpack.c.b16 %v7496, %v7493
        %v7509 = vpack.c.b16 %v7497, %v7494
        %v7510 = vpack.c.b16 %v7498, %v7495
        %v7524 = vsel %vm2884, %v7435, 0
        %v7527 = vsel %vm2884, %v7436, 0
        %v7530 = vsel %vm2884, %v7437, 0
        %v7533 = vsel %vm2884, %v7438, 0
        %v7536 = vsel %vm2884, %v7439, 0
        %v7539 = vsel %vm2884, %v7440, 0
        %v7542 = vsel %vm2884, %v7441, 0
        %v7545 = vsel %vm2884, %v7442, 0
        %7547 = vmatprep.subr.bf16.mxu0 %v7500
        %7548 = vmatpush1.bf16.msra.mxu0 %v7499
        %7549 = vmatprep.subr.bf16.mxu0 %v7503
        %7550 = vmatpush1.bf16.msra.mxu0 %v7502
        %7551 = vmatprep.subr.bf16.mxu0 %v7506
        %7552 = vmatpush1.bf16.msra.mxu0 %v7505
        %7553 = vmatprep.subr.bf16.mxu0 %v7509
        %7554 = vmatpush1.bf16.msra.mxu0 %v7508
        %7555 = vmatprep.subr.bf16.mxu0 0
        %7556 = vmatpush1.bf16.msra.mxu0 0
        %7557 = vmatprep.subr.bf16.mxu0 0
        %7558 = vmatpush1.bf16.msra.mxu0 0
        %7559 = vmatprep.subr.bf16.mxu0 0
        %7560 = vmatpush1.bf16.msra.mxu0 0
        %7561 = vmatprep.subr.bf16.mxu0 0
        %7562 = vmatpush1.bf16.msra.mxu0 0
        %7563 = vmatprep.subr.bf16.mxu0 0
        %7564 = vmatpush1.bf16.msra.mxu0 0
        %7565 = vmatprep.subr.bf16.mxu0 0
        %7566 = vmatpush1.bf16.msra.mxu0 0
        %7567 = vmatprep.subr.bf16.mxu0 0
        %7568 = vmatpush1.bf16.msra.mxu0 0
        %7569 = vmatprep.subr.bf16.mxu0 0
        %7570 = vmatpush1.bf16.msra.mxu0 0
        %7571 = vmatprep.subr.bf16.mxu0 0
        %7572 = vmatpush1.bf16.msra.mxu0 0
        %7573 = vmatprep.subr.bf16.mxu0 0
        %7574 = vmatpush1.bf16.msra.mxu0 0
        %7575 = vmatprep.subr.bf16.mxu0 0
        %7576 = vmatpush1.bf16.msra.mxu0 0
        %7577 = vmatprep.subr.bf16.mxu0 0
        %7578 = vmatpush1.bf16.msra.mxu0 0
        %7579 = vmatprep.mubr.bf16.mxu0 0
        %7580 = vmatmul.mubr.bf16.gmra.mrb[0].mxu0 %v7524
        %v7581 = vpop.f32.mrb[0].mxu0
        %v7582 = vadd.f32 0.0, %v7581
        %v7583 = vpop.f32.mrb[0].mxu0
        %v7584 = vadd.f32 0.0, %v7583
        %v7585 = vpop.f32.mrb[0].mxu0
        %v7586 = vadd.f32 0.0, %v7585
        %v7587 = vpop.f32.mrb[0].mxu0
        %v7588 = vadd.f32 0.0, %v7587
        %7589 = vmatprep.mubr.bf16.mxu0 0
        %7590 = vmatmul.mubr.bf16.gmra.mrb[0].mxu0 %v7527
        %v7591 = vpop.f32.mrb[0].mxu0
        %v7592 = vadd.f32 0.0, %v7591
        %v7593 = vpop.f32.mrb[0].mxu0
        %v7594 = vadd.f32 0.0, %v7593
        %v7595 = vpop.f32.mrb[0].mxu0
        %v7596 = vadd.f32 0.0, %v7595
        %v7597 = vpop.f32.mrb[0].mxu0
        %v7598 = vadd.f32 0.0, %v7597
        %7599 = vmatprep.mubr.bf16.mxu0 0
        %7600 = vmatmul.mubr.bf16.gmra.mrb[0].mxu0 %v7530
        %v7601 = vpop.f32.mrb[0].mxu0
        %v7602 = vadd.f32 0.0, %v7601
        %v7603 = vpop.f32.mrb[0].mxu0
        %v7604 = vadd.f32 0.0, %v7603
        %v7605 = vpop.f32.mrb[0].mxu0
        %v7606 = vadd.f32 0.0, %v7605
        %v7607 = vpop.f32.mrb[0].mxu0
        %v7608 = vadd.f32 0.0, %v7607
        %7609 = vmatprep.mubr.bf16.mxu0 0
        %7610 = vmatmul.mubr.bf16.gmra.mrb[0].mxu0 %v7533
        %v7611 = vpop.f32.mrb[0].mxu0
        %v7612 = vadd.f32 0.0, %v7611
        %v7613 = vpop.f32.mrb[0].mxu0
        %v7614 = vadd.f32 0.0, %v7613
        %v7615 = vpop.f32.mrb[0].mxu0
        %v7616 = vadd.f32 0.0, %v7615
        %v7617 = vpop.f32.mrb[0].mxu0
        %v7618 = vadd.f32 0.0, %v7617
        %7619 = vmatprep.mubr.bf16.mxu0 0
        %7620 = vmatmul.mubr.bf16.gmra.mrb[0].mxu0 %v7536
        %v7621 = vpop.f32.mrb[0].mxu0
        %v7622 = vadd.f32 0.0, %v7621
        %v7623 = vpop.f32.mrb[0].mxu0
        %v7624 = vadd.f32 0.0, %v7623
        %v7625 = vpop.f32.mrb[0].mxu0
        %v7626 = vadd.f32 0.0, %v7625
        %v7627 = vpop.f32.mrb[0].mxu0
        %v7628 = vadd.f32 0.0, %v7627
        %7629 = vmatprep.mubr.bf16.mxu0 0
        %7630 = vmatmul.mubr.bf16.gmra.mrb[0].mxu0 %v7539
        %v7631 = vpop.f32.mrb[0].mxu0
        %v7632 = vadd.f32 0.0, %v7631
        %v7633 = vpop.f32.mrb[0].mxu0
        %v7634 = vadd.f32 0.0, %v7633
        %v7635 = vpop.f32.mrb[0].mxu0
        %v7636 = vadd.f32 0.0, %v7635
        %v7637 = vpop.f32.mrb[0].mxu0
        %v7638 = vadd.f32 0.0, %v7637
        %7639 = vmatprep.mubr.bf16.mxu0 0
        %7640 = vmatmul.mubr.bf16.gmra.mrb[0].mxu0 %v7542
        %v7641 = vpop.f32.mrb[0].mxu0
        %v7642 = vadd.f32 0.0, %v7641
        %v7643 = vpop.f32.mrb[0].mxu0
        %v7644 = vadd.f32 0.0, %v7643
        %v7645 = vpop.f32.mrb[0].mxu0
        %v7646 = vadd.f32 0.0, %v7645
        %v7647 = vpop.f32.mrb[0].mxu0
        %v7648 = vadd.f32 0.0, %v7647
        %7649 = vmatprep.mubr.bf16.mxu0 0
        %7650 = vmatmul.mubr.bf16.gmra.mrb[0].mxu0 %v7545
        %v7651 = vpop.f32.mrb[0].mxu0
        %v7652 = vadd.f32 0.0, %v7651
        %v7653 = vpop.f32.mrb[0].mxu0
        %v7654 = vadd.f32 0.0, %v7653
        %v7655 = vpop.f32.mrb[0].mxu0
        %v7656 = vadd.f32 0.0, %v7655
        %v7657 = vpop.f32.mrb[0].mxu0
        %v7658 = vadd.f32 0.0, %v7657
        %7659 = vdwg.mxu0
        %7660 = vmatprep.subr.bf16.mxu0 0
        %7661 = vmatpush1.bf16.msra.mxu0 %v7501
        %7662 = vmatprep.subr.bf16.mxu0 0
        %7663 = vmatpush1.bf16.msra.mxu0 %v7504
        %7664 = vmatprep.subr.bf16.mxu0 0
        %7665 = vmatpush1.bf16.msra.mxu0 %v7507
        %7666 = vmatprep.subr.bf16.mxu0 0
        %7667 = vmatpush1.bf16.msra.mxu0 %v7510
        %7668 = vmatprep.subr.bf16.mxu0 0
        %7669 = vmatpush1.bf16.msra.mxu0 0
        %7670 = vmatprep.subr.bf16.mxu0 0
        %7671 = vmatpush1.bf16.msra.mxu0 0
        %7672 = vmatprep.subr.bf16.mxu0 0
        %7673 = vmatpush1.bf16.msra.mxu0 0
        %7674 = vmatprep.subr.bf16.mxu0 0
        %7675 = vmatpush1.bf16.msra.mxu0 0
        %7676 = vmatprep.subr.bf16.mxu0 0
        %7677 = vmatpush1.bf16.msra.mxu0 0
        %7678 = vmatprep.subr.bf16.mxu0 0
        %7679 = vmatpush1.bf16.msra.mxu0 0
        %7680 = vmatprep.subr.bf16.mxu0 0
        %7681 = vmatpush1.bf16.msra.mxu0 0
        %7682 = vmatprep.subr.bf16.mxu0 0
        %7683 = vmatpush1.bf16.msra.mxu0 0
        %7684 = vmatprep.subr.bf16.mxu0 0
        %7685 = vmatpush1.bf16.msra.mxu0 0
        %7686 = vmatprep.subr.bf16.mxu0 0
        %7687 = vmatpush1.bf16.msra.mxu0 0
        %7688 = vmatprep.subr.bf16.mxu0 0
        %7689 = vmatpush1.bf16.msra.mxu0 0
        %7690 = vmatprep.subr.bf16.mxu0 0
        %7691 = vmatpush1.bf16.msra.mxu0 0
        %7692 = vmatprep.mubr.bf16.mxu0 0
        %7693 = vmatmul.mubr.bf16.gmra.mrb[0].mxu0 %v7524
        %v7694 = vpop.f32.mrb[0].mxu0
        %v7695 = vadd.f32 0.0, %v7694
        %v7696 = vpop.f32.mrb[0].mxu0
        %v7697 = vpop.f32.mrb[0].mxu0
        %v7698 = vadd.f32 0.0, %v7697
        %v7699 = vpop.f32.mrb[0].mxu0
        %7700 = vmatprep.mubr.bf16.mxu0 0
        %7701 = vmatmul.mubr.bf16.gmra.mrb[0].mxu0 %v7527
        %v7702 = vpop.f32.mrb[0].mxu0
        %v7703 = vadd.f32 0.0, %v7702
        %v7704 = vpop.f32.mrb[0].mxu0
        %v7705 = vpop.f32.mrb[0].mxu0
        %v7706 = vadd.f32 0.0, %v7705
        %v7707 = vpop.f32.mrb[0].mxu0
        %7708 = vmatprep.mubr.bf16.mxu0 0
        %7709 = vmatmul.mubr.bf16.gmra.mrb[0].mxu0 %v7530
        %v7710 = vpop.f32.mrb[0].mxu0
        %v7711 = vadd.f32 0.0, %v7710
        %v7712 = vpop.f32.mrb[0].mxu0
        %v7713 = vpop.f32.mrb[0].mxu0
        %v7714 = vadd.f32 0.0, %v7713
        %v7715 = vpop.f32.mrb[0].mxu0
        %7716 = vmatprep.mubr.bf16.mxu0 0
        %7717 = vmatmul.mubr.bf16.gmra.mrb[0].mxu0 %v7533
        %v7718 = vpop.f32.mrb[0].mxu0
        %v7719 = vadd.f32 0.0, %v7718
        %v7720 = vpop.f32.mrb[0].mxu0
        %v7721 = vpop.f32.mrb[0].mxu0
        %v7722 = vadd.f32 0.0, %v7721
        %v7723 = vpop.f32.mrb[0].mxu0
        %7724 = vmatprep.mubr.bf16.mxu0 0
        %7725 = vmatmul.mubr.bf16.gmra.mrb[0].mxu0 %v7536
        %v7726 = vpop.f32.mrb[0].mxu0
        %v7727 = vadd.f32 0.0, %v7726
        %v7728 = vpop.f32.mrb[0].mxu0
        %v7729 = vpop.f32.mrb[0].mxu0
        %v7730 = vadd.f32 0.0, %v7729
        %v7731 = vpop.f32.mrb[0].mxu0
        %7732 = vmatprep.mubr.bf16.mxu0 0
        %7733 = vmatmul.mubr.bf16.gmra.mrb[0].mxu0 %v7539
        %v7734 = vpop.f32.mrb[0].mxu0
        %v7735 = vadd.f32 0.0, %v7734
        %v7736 = vpop.f32.mrb[0].mxu0
        %v7737 = vpop.f32.mrb[0].mxu0
        %v7738 = vadd.f32 0.0, %v7737
        %v7739 = vpop.f32.mrb[0].mxu0
        %7740 = vmatprep.mubr.bf16.mxu0 0
        %7741 = vmatmul.mubr.bf16.gmra.mrb[0].mxu0 %v7542
        %v7742 = vpop.f32.mrb[0].mxu0
        %v7743 = vadd.f32 0.0, %v7742
        %v7744 = vpop.f32.mrb[0].mxu0
        %v7745 = vpop.f32.mrb[0].mxu0
        %v7746 = vadd.f32 0.0, %v7745
        %v7747 = vpop.f32.mrb[0].mxu0
        %7748 = vmatprep.mubr.bf16.mxu0 0
        %7749 = vmatmul.mubr.bf16.gmra.mrb[0].mxu0 %v7545
        %v7750 = vpop.f32.mrb[0].mxu0
        %v7751 = vadd.f32 0.0, %v7750
        %v7752 = vpop.f32.mrb[0].mxu0
        %v7753 = vpop.f32.mrb[0].mxu0
        %v7754 = vadd.f32 0.0, %v7753
        %v7755 = vpop.f32.mrb[0].mxu0
        %7756 = vdwg.mxu0
        %v7757 = vadd.f32 %v6897, %v7582
        %v7758 = vadd.f32 %v6898, %v7584
        %v7759 = vadd.f32 %v6899, %v7695
        %v7760 = vadd.f32 %v6900, %v7586
        %v7761 = vadd.f32 %v6901, %v7588
        %v7762 = vadd.f32 %v6902, %v7698
        %v7763 = vadd.f32 %v6903, %v7592
        %v7764 = vadd.f32 %v6904, %v7594
        %v7765 = vadd.f32 %v6905, %v7703
        %v7766 = vadd.f32 %v6906, %v7596
        %v7767 = vadd.f32 %v6907, %v7598
        %v7768 = vadd.f32 %v6908, %v7706
        %v7769 = vadd.f32 %v6909, %v7602
        %v7770 = vadd.f32 %v6910, %v7604
        %v7771 = vadd.f32 %v6911, %v7711
        %v7772 = vadd.f32 %v6912, %v7606
        %v7773 = vadd.f32 %v6913, %v7608
        %v7774 = vadd.f32 %v6914, %v7714
        %v7775 = vadd.f32 %v6915, %v7612
        %v7776 = vadd.f32 %v6916, %v7614
        %v7777 = vadd.f32 %v6917, %v7719
        %v7778 = vadd.f32 %v6918, %v7616
        %v7779 = vadd.f32 %v6919, %v7618
        %v7780 = vadd.f32 %v6920, %v7722
        %v7781 = vadd.f32 %v6921, %v7622
        %v7782 = vadd.f32 %v6922, %v7624
        %v7783 = vadd.f32 %v6923, %v7727
        %v7784 = vadd.f32 %v6924, %v7626
        %v7785 = vadd.f32 %v6925, %v7628
        %v7786 = vadd.f32 %v6926, %v7730
        %v7787 = vadd.f32 %v6927, %v7632
        %v7788 = vadd.f32 %v6928, %v7634
        %v7789 = vadd.f32 %v6929, %v7735
        %v7790 = vadd.f32 %v6930, %v7636
        %v7791 = vadd.f32 %v6931, %v7638
        %v7792 = vadd.f32 %v6932, %v7738
        %v7793 = vadd.f32 %v6933, %v7642
        %v7794 = vadd.f32 %v6934, %v7644
        %v7795 = vadd.f32 %v6935, %v7743
        %v7796 = vadd.f32 %v6936, %v7646
        %v7797 = vadd.f32 %v6937, %v7648
        %v7798 = vadd.f32 %v6938, %v7746
        %v7799 = vadd.f32 %v6939, %v7652
        %v7800 = vadd.f32 %v6940, %v7654
        %v7801 = vadd.f32 %v6941, %v7751
        %v7802 = vadd.f32 %v6942, %v7656
        %v7803 = vadd.f32 %v6943, %v7658
        %v7804 = vadd.f32 %v6944, %v7754
        %7805 = vst [vmem:[%s244] sm:$0xff] %v7757
        %7806 = vst [vmem:[%s244 + $0x8] sm:$0xff] %v7758
        %7807 = vst [vmem:[%s244 + $0x10] sm:$0xff] %v7759
        %7808 = vst [vmem:[%s244 + $0x18] sm:$0xff] %v7760
        %7809 = vst [vmem:[%s244 + $0x20] sm:$0xff] %v7761
        %7810 = vst [vmem:[%s244 + $0x28] sm:$0xff] %v7762
        %7811 = vst [vmem:[%s244 + $0x30] sm:$0xff] %v7763
        %7812 = vst [vmem:[%s244 + $0x38] sm:$0xff] %v7764
        %7813 = vst [vmem:[%s244 + $0x40] sm:$0xff] %v7765
        %7814 = vst [vmem:[%s244 + $0x48] sm:$0xff] %v7766
        %7815 = vst [vmem:[%s244 + $0x50] sm:$0xff] %v7767
        %7816 = vst [vmem:[%s244 + $0x58] sm:$0xff] %v7768
        %7817 = vst [vmem:[%s244 + $0x60] sm:$0xff] %v7769
        %7818 = vst [vmem:[%s244 + $0x68] sm:$0xff] %v7770
        %7819 = vst [vmem:[%s244 + $0x70] sm:$0xff] %v7771
        %7820 = vst [vmem:[%s244 + $0x78] sm:$0xff] %v7772
        %7821 = vst [vmem:[%s244 + $0x80] sm:$0xff] %v7773
        %7822 = vst [vmem:[%s244 + $0x88] sm:$0xff] %v7774
        %7823 = vst [vmem:[%s244 + $0x90] sm:$0xff] %v7775
        %7824 = vst [vmem:[%s244 + $0x98] sm:$0xff] %v7776
        %7825 = vst [vmem:[%s244 + $0xa0] sm:$0xff] %v7777
        %7826 = vst [vmem:[%s244 + $0xa8] sm:$0xff] %v7778
        %7827 = vst [vmem:[%s244 + $0xb0] sm:$0xff] %v7779
        %7828 = vst [vmem:[%s244 + $0xb8] sm:$0xff] %v7780
        %7829 = vst [vmem:[%s244 + $0xc0] sm:$0xff] %v7781
        %7830 = vst [vmem:[%s244 + $0xc8] sm:$0xff] %v7782
        %7831 = vst [vmem:[%s244 + $0xd0] sm:$0xff] %v7783
        %7832 = vst [vmem:[%s244 + $0xd8] sm:$0xff] %v7784
        %7833 = vst [vmem:[%s244 + $0xe0] sm:$0xff] %v7785
        %7834 = vst [vmem:[%s244 + $0xe8] sm:$0xff] %v7786
        %7835 = vst [vmem:[%s244 + $0xf0] sm:$0xff] %v7787
        %7836 = vst [vmem:[%s244 + $0xf8] sm:$0xff] %v7788
        %7837 = vst [vmem:[%s244 + $0x100] sm:$0xff] %v7789
        %7838 = vst [vmem:[%s244 + $0x108] sm:$0xff] %v7790
        %7839 = vst [vmem:[%s244 + $0x110] sm:$0xff] %v7791
        %7840 = vst [vmem:[%s244 + $0x118] sm:$0xff] %v7792
        %7841 = vst [vmem:[%s244 + $0x120] sm:$0xff] %v7793
        %7842 = vst [vmem:[%s244 + $0x128] sm:$0xff] %v7794
        %7843 = vst [vmem:[%s244 + $0x130] sm:$0xff] %v7795
        %7844 = vst [vmem:[%s244 + $0x138] sm:$0xff] %v7796
        %7845 = vst [vmem:[%s244 + $0x140] sm:$0xff] %v7797
        %7846 = vst [vmem:[%s244 + $0x148] sm:$0xff] %v7798
        %7847 = vst [vmem:[%s244 + $0x150] sm:$0xff] %v7799
        %7848 = vst [vmem:[%s244 + $0x158] sm:$0xff] %v7800
        %7849 = vst [vmem:[%s244 + $0x160] sm:$0xff] %v7801
        %7850 = vst [vmem:[%s244 + $0x168] sm:$0xff] %v7802
        %7851 = vst [vmem:[%s244 + $0x170] sm:$0xff] %v7803
        %7852 = vst [vmem:[%s244 + $0x178] sm:$0xff] %v7804
        %s7853 = sand.u32 %s119, 1
        %s7854 = scalar_lea.sflag [#allocation4], %s7853
        %s7855 = sand.u32 %s119, 1
        %s7856 = smul.addr %s7855, 384
        %s7857 = scalar_lea.vmem [#allocation8], %s7856
        // Predicated region
        $region49: #{tpu_custom_call.1} parent=35 // pred_check
          %p7858 = pneg %p129
        $region50: #{tpu_custom_call.1} parent=35 // pred_check_branch
          %7860 = sbr.rel (%p7858) target = $region52
        $region51: #{tpu_custom_call.1} parent=35 // pred_region
          %s7862 = ssub.s32 6144, 6144
          %7863 = vsyncadd %s7854, %s7862
          %s7864 = smul.addr %s22, 48
          %s7865 = smul.addr %s7864, 128
          %s7866 = scalar_lea.hbm %s4, %s7865
          %s7867 = sshll.u32 %s7857, 4
          %s7868 = int_to_ptr.vmem [resolvable:$true] %s7867
          %7873 = dma.vmem_to_hbm [thread:$0]  %s7868, 6144, %s7866, %s7854, 384, 384, 24
        $region52: #{tpu_custom_call.1} parent=35 // pred_fallthru
          _
      $region36: #{tpu_custom_call.1} parent=5 // pred_fallthru
        _
      %p7874 = scmp.le.s32.totalorder 2, %s17
      // Predicated region
      $region53: #{tpu_custom_call.1} parent=5 // pred_check
        %p7875 = pneg %p7874
      $region54: #{tpu_custom_call.1} parent=5 // pred_check_branch
        %7877 = sbr.rel (%p7875) target = $region56
      $region55: #{tpu_custom_call.1} parent=5 // pred_region
        %s7878 = ssub.s32 %s17, 2
        // Predicated region
        $region57: #{tpu_custom_call.1} parent=55 // pred_check
          %p7879 = pneg %p135
        $region58: #{tpu_custom_call.1} parent=55 // pred_check_branch
          %7881 = sbr.rel (%p7879) target = $region60
        $region59: #{tpu_custom_call.1} parent=55 // pred_region
          %s7882 = sand.u32 %s120, 1
          %s7883 = scalar_lea.sflag [#allocation4], %s7882
          %s7884 = sand.u32 %s120, 1
          %s7885 = smul.addr %s7884, 384
          %s7886 = scalar_lea.vmem [#allocation8], %s7885
          %7887 = dma.done %s7883, 6144
        $region60: #{tpu_custom_call.1} parent=55 // pred_fallthru
          _
      $region56: #{tpu_custom_call.1} parent=5 // pred_fallthru
        _
    $region6: #{tpu_custom_call.1} parent=1 // loop_footer
      %s21 = sadd.s32 1, %s17
    $region7: #{tpu_custom_call.1} parent=1 // loop_footer_branch
      %16 = sbr.rel target = $region3
    $region8: #{tpu_custom_call.1} parent=1 // loop_exit
      _
    %7888 = vsyncpa [#allocation3], 1
    %s7889 = scalar_lea.sflag [#allocation3], 1
    %7890 = vsyncpa %s7889, 1
    %7891 = vsyncpa [#allocation6], 1
    %7892 = vsyncpa [#allocation4], 1
    %s7893 = scalar_lea.sflag [#allocation4], 1
    %7894 = vsyncpa %s7893, 1

</llo_original>
